<compile_context>
chip_gen: v6e
topology: v6e:2x2x1
jax: 0.10.0
libtpu: 0.0.40
codegen_flags: <defaults>
</compile_context>

<pallas_src>
import jax
import jax.numpy as jnp
from jax.experimental import pallas as pl
from jax.experimental.pallas import tpu as pltpu


# ------------------------------ fused kernel -------------------------------

def _classifier_fused_kernel(x_ref, wt1_ref, b1_ref, wt2_ref, b2_ref,
                             wf1_ref, bf1_ref, wf2_ref, bf2_ref, wf3_ref,
                             bf3_ref, o_ref):
    f32 = jnp.float32

    # ---- conv1 (3->6, k=16) + bias + ReLU ---------------------------------
    # y1[ph, co*16 + pw] ; 48 accumulated (16,31)@(31,96) MXU matmuls
    # (loop over kernel row kh and input channel c; width window is folded
    #  into the pre-packed Toeplitz weight wt1[kh, c]).
    acc1 = jnp.zeros((16, 96), f32)
    for kh in range(16):
        for c in range(3):
            lhs = x_ref[0, c, kh:kh + 16, :]                  # (16, 31)
            acc1 = acc1 + jnp.dot(lhs, wt1_ref[kh, c],
                                  preferred_element_type=f32)
    y1 = jnp.maximum(acc1 + b1_ref[...], 0.0)                 # (16, 96)

    # ---- maxpool1 2x2 (kept "wide") ---------------------------------------
    # rows: max(r, r+1)  -> valid at even rows (pooled row oh at row 2*oh)
    a1 = jnp.maximum(y1[0:15, :], y1[1:16, :])                # (15, 96)
    # cols: max(m, m+1)  -> pooled value (co, oh, ow) at [2*oh, co*16 + 2*ow]
    p1 = jnp.maximum(a1[:, 0:95], a1[:, 1:96])                # (15, 95)

    # ---- conv2 (6->16, k=5) + bias + ReLU ---------------------------------
    # wt2[i] reads only the valid "wide" columns co*16 + 2*(qw+j); output rows
    # are kept wide too (valid conv2 row qh lives at row 2*qh).
    acc2 = jnp.zeros((7, 64), f32)
    for i in range(5):
        acc2 = acc2 + jnp.dot(p1[2 * i:2 * i + 7, :], wt2_ref[i],
                              preferred_element_type=f32)     # (7, 64)
    y2 = jnp.maximum(acc2 + b2_ref[...], 0.0)                 # (7, 64)

    # ---- maxpool2 2x2 (wide) ----------------------------------------------
    # rows: pooled row rh at row 4*rh ; cols: pooled (do, rh, rw) at
    # [4*rh, do*4 + 2*rw]
    a2 = jnp.maximum(y2[0:5, :], y2[2:7, :])                  # (5, 64)
    p2 = jnp.maximum(a2[:, 0:63], a2[:, 1:64])                # (5, 63)

    # ---- flatten (torch NCHW .view order folded into fc1 weight) + head ---
    h = (jnp.dot(p2[0:1, :], wf1_ref[0], preferred_element_type=f32)
         + jnp.dot(p2[4:5, :], wf1_ref[1], preferred_element_type=f32)
         + bf1_ref[...])
    h = jnp.maximum(h, 0.0)                                   # (1, 32)
    h = jnp.maximum(jnp.dot(h, wf2_ref[...], preferred_element_type=f32)
                    + bf2_ref[...], 0.0)                      # (1, 16)
    z = jnp.dot(h, wf3_ref[...], preferred_element_type=f32) + bf3_ref[...]
    # sigmoid: exp on EUP; exact reciprocal kept (single scalar, and keeps the
    # 1e-3 correctness margin) -- approx=True buys nothing at this size.
    o_ref[0] = pl.reciprocal(1.0 + jnp.exp(-z))               # (1, 1)


def classification_forward(x_nchw, packed):
    (wt1, b1e, wt2, b2e, wf1w, bf1r, wf2, bf2r, wf3, bf3r) = packed
    B = x_nchw.shape[0]
    out = pl.pallas_call(
        _classifier_fused_kernel,
        out_shape=jax.ShapeDtypeStruct((B, 1, 1), jnp.float32),
        grid=(B,),
        in_specs=[
            pl.BlockSpec((1, 3, 31, 31), lambda b: (b, 0, 0, 0)),
            pl.BlockSpec((16, 3, 31, 96), lambda b: (0, 0, 0, 0)),
            pl.BlockSpec((1, 96), lambda b: (0, 0)),
            pl.BlockSpec((5, 95, 64), lambda b: (0, 0, 0)),
            pl.BlockSpec((1, 64), lambda b: (0, 0)),
            pl.BlockSpec((2, 63, 32), lambda b: (0, 0, 0)),
            pl.BlockSpec((1, 32), lambda b: (0, 0)),
            pl.BlockSpec((32, 16), lambda b: (0, 0)),
            pl.BlockSpec((1, 16), lambda b: (0, 0)),
            pl.BlockSpec((16, 1), lambda b: (0, 0)),
            pl.BlockSpec((1, 1), lambda b: (0, 0)),
        ],
        out_specs=pl.BlockSpec((1, 1, 1), lambda b: (b, 0, 0)),
        compiler_params=pltpu.CompilerParams(
            dimension_semantics=("parallel",)),
    )(x_nchw, wt1, b1e, wt2, b2e, wf1w, bf1r, wf2, bf2r, wf3, bf3r)
    return out.reshape(B, 1)


# --------------------- one-time weight packing (outside jit) ----------------

def pack_params(params):
    """Pre-pack torch-layout weights into the layouts the fused kernel wants."""
    (w1, b1, w2, b2, wf1, bf1, wf2, bf2, wf3, bf3) = params
    f32 = jnp.float32

    # conv1 width-Toeplitz: wt1[kh, c, j, co*16+pw] = w1[co,c,kh,j-pw] (0<=j-pw<16)
    kw = jnp.arange(16)
    pw = jnp.arange(16)
    jj = jnp.arange(31)
    R = (jj[None, None, :] == pw[None, :, None] + kw[:, None, None]).astype(f32)
    F = jnp.einsum('ochk,kpj->ochpj', w1, R)            # (o,c,h,p,j)
    wt1 = F.transpose(2, 1, 4, 0, 3).reshape(16, 3, 31, 96)
    b1e = jnp.repeat(b1, 16).reshape(1, 96)             # index co*16+pw -> b1[co]

    # conv2 Toeplitz over the wide pooled layout:
    # wt2[i, co*16 + 2*(qw+j), do*4+qw] = w2[do,co,i,j]
    co = jnp.arange(6)
    j2 = jnp.arange(5)
    qw = jnp.arange(4)
    mm = jnp.arange(95)
    P = (mm[None, None, None, :] ==
         (co[:, None, None, None] * 16
          + 2 * (qw[None, None, :, None] + j2[None, :, None, None]))).astype(f32)
    E = jnp.einsum('dcij,cjqm->diqm', w2, P)            # (d,i,q,m)
    wt2 = E.transpose(1, 3, 0, 2).reshape(5, 95, 64)
    b2e = jnp.repeat(b2, 4).reshape(1, 64)              # index do*4+qw -> b2[do]

    # fc1 with the NCHW flatten + wide-layout column gather folded in:
    # wf1w[rh, do*4 + 2*rw, u] = wf1[do*4 + 2*rh + rw, u]
    do = jnp.arange(16)
    rw = jnp.arange(2)
    rh = jnp.arange(2)
    nn = jnp.arange(63)
    oneh = (nn[None, None, :] ==
            (do[:, None, None] * 4 + 2 * rw[None, :, None])).astype(f32)  # (d,w,n)
    src = do[None, :, None] * 4 + 2 * rh[:, None, None] + rw[None, None, :]
    G = wf1[src]                                        # (rh, do, rw, 32)
    wf1w = jnp.einsum('dwn,rdwu->rnu', oneh, G)         # (2, 63, 32)

    return (wt1, b1e, wt2, b2e, wf1w,
            bf1.reshape(1, 32), wf2, bf2.reshape(1, 16), wf3, bf3.reshape(1, 1))


# -------------------------- params / reference -----------------------------

def init_params(key):
    ks = jax.random.split(key, 10)

    def u(k, shape, fan_in):
        bound = 1.0 / jnp.sqrt(jnp.float32(fan_in))
        return jax.random.uniform(k, shape, jnp.float32, -bound, bound)

    w1 = u(ks[0], (6, 3, 16, 16), 3 * 16 * 16)   # torch conv1.weight
    b1 = u(ks[1], (6,), 3 * 16 * 16)
    w2 = u(ks[2], (16, 6, 5, 5), 6 * 5 * 5)      # torch conv2.weight
    b2 = u(ks[3], (16,), 6 * 5 * 5)
    wf1 = u(ks[4], (64, 32), 64)                 # torch fc1.weight.T
    bf1 = u(ks[5], (32,), 64)
    wf2 = u(ks[6], (32, 16), 32)                 # torch fc2.weight.T
    bf2 = u(ks[7], (16,), 32)
    wf3 = u(ks[8], (16, 1), 16)                  # torch fc3.weight.T
    bf3 = u(ks[9], (1,), 16)
    return (w1, b1, w2, b2, wf1, bf1, wf2, bf2, wf3, bf3)


def reference_forward(x, params):
    (w1, b1, w2, b2, wf1, bf1, wf2, bf2, wf3, bf3) = params
    dn = ("NCHW", "OIHW", "NCHW")
    hp = jax.lax.Precision.HIGHEST
    y = jax.lax.conv_general_dilated(x, w1, (1, 1), "VALID",
                                     dimension_numbers=dn, precision=hp)
    y = jnp.maximum(y + b1.reshape(1, -1, 1, 1), 0.0)
    y = jax.lax.reduce_window(y, -jnp.inf, jax.lax.max, (1, 1, 2, 2), (1, 1, 2, 2), "VALID")
    y = jax.lax.conv_general_dilated(y, w2, (1, 1), "VALID",
                                     dimension_numbers=dn, precision=hp)
    y = jnp.maximum(y + b2.reshape(1, -1, 1, 1), 0.0)
    y = jax.lax.reduce_window(y, -jnp.inf, jax.lax.max, (1, 1, 2, 2), (1, 1, 2, 2), "VALID")
    y = y.reshape(y.shape[0], -1)
    y = jnp.maximum(jnp.dot(y, wf1, precision=hp) + bf1, 0.0)
    y = jnp.maximum(jnp.dot(y, wf2, precision=hp) + bf2, 0.0)
    y = jnp.dot(y, wf3, precision=hp) + bf3
    return jax.nn.sigmoid(y)


if __name__ == "__main__":
    key = jax.random.PRNGKey(0)
    pkey, xkey = jax.random.split(key)
    params = init_params(pkey)
    packed = pack_params(params)          # one-time packing, outside the jit

    # Input spatial size 31 so that fc1's in_features=64 is satisfied:
    # 31 -conv16-> 16 -pool-> 8 -conv5-> 4 -pool-> 2 ; 16*2*2 = 64.
    x = jax.random.normal(xkey, (2, 3, 31, 31), jnp.float32)

    fwd = jax.jit(classification_forward)
    out = jax.block_until_ready(fwd(x, packed))

    ref = reference_forward(x, params)
    assert out.shape == (2, 1), out.shape
    assert bool(jnp.all(jnp.abs(out - ref) < 1e-3)), (out, ref)
    print("KERNEL_OK")
</pallas_src>

<mosaic_0001>
module attributes {stable_mosaic.version = 11 : i64} {
  func.func @_classifier_fused_kernel(%arg0: i32, %arg1: memref<1x3x31x31xf32, #tpu.memory_space<vmem>>, %arg2: memref<16x3x31x96xf32, #tpu.memory_space<vmem>>, %arg3: memref<1x96xf32, #tpu.memory_space<vmem>>, %arg4: memref<5x95x64xf32, #tpu.memory_space<vmem>>, %arg5: memref<1x64xf32, #tpu.memory_space<vmem>>, %arg6: memref<2x63x32xf32, #tpu.memory_space<vmem>>, %arg7: memref<1x32xf32, #tpu.memory_space<vmem>>, %arg8: memref<32x16xf32, #tpu.memory_space<vmem>>, %arg9: memref<1x16xf32, #tpu.memory_space<vmem>>, %arg10: memref<16x1xf32, #tpu.memory_space<vmem>>, %arg11: memref<1x1xf32, #tpu.memory_space<vmem>>, %arg12: memref<1x1x1xf32, #tpu.memory_space<vmem>>) attributes {dimension_semantics = [#tpu.dimension_semantics<parallel>], iteration_bounds = array<i64: 2>, scalar_prefetch = 0 : i64, scratch_operands = 0 : i64, tpu.core_type = #tpu.core_type<tc>, window_params = [{transform_indices = @transform_0, window_bounds = array<i64: 1, 3, 31, 31>}, {pipeline_mode = #tpu.pipeline_mode<synchronous>, transform_indices = @transform_1, window_bounds = array<i64: 16, 3, 31, 96>}, {pipeline_mode = #tpu.pipeline_mode<synchronous>, transform_indices = @transform_2, window_bounds = array<i64: 1, 96>}, {pipeline_mode = #tpu.pipeline_mode<synchronous>, transform_indices = @transform_3, window_bounds = array<i64: 5, 95, 64>}, {pipeline_mode = #tpu.pipeline_mode<synchronous>, transform_indices = @transform_4, window_bounds = array<i64: 1, 64>}, {pipeline_mode = #tpu.pipeline_mode<synchronous>, transform_indices = @transform_5, window_bounds = array<i64: 2, 63, 32>}, {pipeline_mode = #tpu.pipeline_mode<synchronous>, transform_indices = @transform_6, window_bounds = array<i64: 1, 32>}, {pipeline_mode = #tpu.pipeline_mode<synchronous>, transform_indices = @transform_7, window_bounds = array<i64: 32, 16>}, {pipeline_mode = #tpu.pipeline_mode<synchronous>, transform_indices = @transform_8, window_bounds = array<i64: 1, 16>}, {pipeline_mode = #tpu.pipeline_mode<synchronous>, transform_indices = @transform_9, window_bounds = array<i64: 16, 1>}, {pipeline_mode = #tpu.pipeline_mode<synchronous>, transform_indices = @transform_10, window_bounds = array<i64: 1, 1>}, {transform_indices = @transform_11, window_bounds = array<i64: 1, 1, 1>}]} {
    %cst = arith.constant 0.000000e+00 : f32
    %0 = vector.broadcast %cst : f32 to vector<16x96xf32>
    %c0 = arith.constant 0 : index
    %c0_0 = arith.constant 0 : index
    %c0_1 = arith.constant 0 : index
    %c0_2 = arith.constant 0 : index
    %1 = vector.load %arg1[%c0, %c0_0, %c0_1, %c0_2] : memref<1x3x31x31xf32, #tpu.memory_space<vmem>>, vector<1x1x16x31xf32>
    %2 = vector.shape_cast %1 : vector<1x1x16x31xf32> to vector<16x31xf32>
    %c0_3 = arith.constant 0 : index
    %c0_4 = arith.constant 0 : index
    %c0_5 = arith.constant 0 : index
    %c0_6 = arith.constant 0 : index
    %3 = vector.load %arg2[%c0_3, %c0_4, %c0_5, %c0_6] : memref<16x3x31x96xf32, #tpu.memory_space<vmem>>, vector<1x1x31x96xf32>
    %4 = vector.shape_cast %3 : vector<1x1x31x96xf32> to vector<31x96xf32>
    %cst_7 = arith.constant dense<0.000000e+00> : vector<16x96xf32>
    %5 = tpu.matmul %2, %4, %cst_7 {dimension_numbers = #tpu.dot_dimension_numbers<[1], [0], [0], [1], [0, 0, 1, 1], [], []>} : vector<16x31xf32>, vector<31x96xf32>, vector<16x96xf32> -> vector<16x96xf32>
    %6 = arith.addf %0, %5 : vector<16x96xf32>
    %c0_8 = arith.constant 0 : index
    %c1 = arith.constant 1 : index
    %c0_9 = arith.constant 0 : index
    %c0_10 = arith.constant 0 : index
    %7 = vector.load %arg1[%c0_8, %c1, %c0_9, %c0_10] : memref<1x3x31x31xf32, #tpu.memory_space<vmem>>, vector<1x1x16x31xf32>
    %8 = vector.shape_cast %7 : vector<1x1x16x31xf32> to vector<16x31xf32>
    %c0_11 = arith.constant 0 : index
    %c1_12 = arith.constant 1 : index
    %c0_13 = arith.constant 0 : index
    %c0_14 = arith.constant 0 : index
    %9 = vector.load %arg2[%c0_11, %c1_12, %c0_13, %c0_14] : memref<16x3x31x96xf32, #tpu.memory_space<vmem>>, vector<1x1x31x96xf32>
    %10 = vector.shape_cast %9 : vector<1x1x31x96xf32> to vector<31x96xf32>
    %cst_15 = arith.constant dense<0.000000e+00> : vector<16x96xf32>
    %11 = tpu.matmul %8, %10, %cst_15 {dimension_numbers = #tpu.dot_dimension_numbers<[1], [0], [0], [1], [0, 0, 1, 1], [], []>} : vector<16x31xf32>, vector<31x96xf32>, vector<16x96xf32> -> vector<16x96xf32>
    %12 = arith.addf %6, %11 : vector<16x96xf32>
    %c0_16 = arith.constant 0 : index
    %c2 = arith.constant 2 : index
    %c0_17 = arith.constant 0 : index
    %c0_18 = arith.constant 0 : index
    %13 = vector.load %arg1[%c0_16, %c2, %c0_17, %c0_18] : memref<1x3x31x31xf32, #tpu.memory_space<vmem>>, vector<1x1x16x31xf32>
    %14 = vector.shape_cast %13 : vector<1x1x16x31xf32> to vector<16x31xf32>
    %c0_19 = arith.constant 0 : index
    %c2_20 = arith.constant 2 : index
    %c0_21 = arith.constant 0 : index
    %c0_22 = arith.constant 0 : index
    %15 = vector.load %arg2[%c0_19, %c2_20, %c0_21, %c0_22] : memref<16x3x31x96xf32, #tpu.memory_space<vmem>>, vector<1x1x31x96xf32>
    %16 = vector.shape_cast %15 : vector<1x1x31x96xf32> to vector<31x96xf32>
    %cst_23 = arith.constant dense<0.000000e+00> : vector<16x96xf32>
    %17 = tpu.matmul %14, %16, %cst_23 {dimension_numbers = #tpu.dot_dimension_numbers<[1], [0], [0], [1], [0, 0, 1, 1], [], []>} : vector<16x31xf32>, vector<31x96xf32>, vector<16x96xf32> -> vector<16x96xf32>
    %18 = arith.addf %12, %17 : vector<16x96xf32>
    %c0_24 = arith.constant 0 : index
    %c0_25 = arith.constant 0 : index
    %c1_26 = arith.constant 1 : index
    %c0_27 = arith.constant 0 : index
    %19 = vector.load %arg1[%c0_24, %c0_25, %c1_26, %c0_27] : memref<1x3x31x31xf32, #tpu.memory_space<vmem>>, vector<1x1x16x31xf32>
    %20 = vector.shape_cast %19 : vector<1x1x16x31xf32> to vector<16x31xf32>
    %c1_28 = arith.constant 1 : index
    %c0_29 = arith.constant 0 : index
    %c0_30 = arith.constant 0 : index
    %c0_31 = arith.constant 0 : index
    %21 = vector.load %arg2[%c1_28, %c0_29, %c0_30, %c0_31] : memref<16x3x31x96xf32, #tpu.memory_space<vmem>>, vector<1x1x31x96xf32>
    %22 = vector.shape_cast %21 : vector<1x1x31x96xf32> to vector<31x96xf32>
    %cst_32 = arith.constant dense<0.000000e+00> : vector<16x96xf32>
    %23 = tpu.matmul %20, %22, %cst_32 {dimension_numbers = #tpu.dot_dimension_numbers<[1], [0], [0], [1], [0, 0, 1, 1], [], []>} : vector<16x31xf32>, vector<31x96xf32>, vector<16x96xf32> -> vector<16x96xf32>
    %24 = arith.addf %18, %23 : vector<16x96xf32>
    %c0_33 = arith.constant 0 : index
    %c1_34 = arith.constant 1 : index
    %c1_35 = arith.constant 1 : index
    %c0_36 = arith.constant 0 : index
    %25 = vector.load %arg1[%c0_33, %c1_34, %c1_35, %c0_36] : memref<1x3x31x31xf32, #tpu.memory_space<vmem>>, vector<1x1x16x31xf32>
    %26 = vector.shape_cast %25 : vector<1x1x16x31xf32> to vector<16x31xf32>
    %c1_37 = arith.constant 1 : index
    %c1_38 = arith.constant 1 : index
    %c0_39 = arith.constant 0 : index
    %c0_40 = arith.constant 0 : index
    %27 = vector.load %arg2[%c1_37, %c1_38, %c0_39, %c0_40] : memref<16x3x31x96xf32, #tpu.memory_space<vmem>>, vector<1x1x31x96xf32>
    %28 = vector.shape_cast %27 : vector<1x1x31x96xf32> to vector<31x96xf32>
    %cst_41 = arith.constant dense<0.000000e+00> : vector<16x96xf32>
    %29 = tpu.matmul %26, %28, %cst_41 {dimension_numbers = #tpu.dot_dimension_numbers<[1], [0], [0], [1], [0, 0, 1, 1], [], []>} : vector<16x31xf32>, vector<31x96xf32>, vector<16x96xf32> -> vector<16x96xf32>
    %30 = arith.addf %24, %29 : vector<16x96xf32>
    %c0_42 = arith.constant 0 : index
    %c2_43 = arith.constant 2 : index
    %c1_44 = arith.constant 1 : index
    %c0_45 = arith.constant 0 : index
    %31 = vector.load %arg1[%c0_42, %c2_43, %c1_44, %c0_45] : memref<1x3x31x31xf32, #tpu.memory_space<vmem>>, vector<1x1x16x31xf32>
    %32 = vector.shape_cast %31 : vector<1x1x16x31xf32> to vector<16x31xf32>
    %c1_46 = arith.constant 1 : index
    %c2_47 = arith.constant 2 : index
    %c0_48 = arith.constant 0 : index
    %c0_49 = arith.constant 0 : index
    %33 = vector.load %arg2[%c1_46, %c2_47, %c0_48, %c0_49] : memref<16x3x31x96xf32, #tpu.memory_space<vmem>>, vector<1x1x31x96xf32>
    %34 = vector.shape_cast %33 : vector<1x1x31x96xf32> to vector<31x96xf32>
    %cst_50 = arith.constant dense<0.000000e+00> : vector<16x96xf32>
    %35 = tpu.matmul %32, %34, %cst_50 {dimension_numbers = #tpu.dot_dimension_numbers<[1], [0], [0], [1], [0, 0, 1, 1], [], []>} : vector<16x31xf32>, vector<31x96xf32>, vector<16x96xf32> -> vector<16x96xf32>
    %36 = arith.addf %30, %35 : vector<16x96xf32>
    %c0_51 = arith.constant 0 : index
    %c0_52 = arith.constant 0 : index
    %c2_53 = arith.constant 2 : index
    %c0_54 = arith.constant 0 : index
    %37 = vector.load %arg1[%c0_51, %c0_52, %c2_53, %c0_54] : memref<1x3x31x31xf32, #tpu.memory_space<vmem>>, vector<1x1x16x31xf32>
    %38 = vector.shape_cast %37 : vector<1x1x16x31xf32> to vector<16x31xf32>
    %c2_55 = arith.constant 2 : index
    %c0_56 = arith.constant 0 : index
    %c0_57 = arith.constant 0 : index
    %c0_58 = arith.constant 0 : index
    %39 = vector.load %arg2[%c2_55, %c0_56, %c0_57, %c0_58] : memref<16x3x31x96xf32, #tpu.memory_space<vmem>>, vector<1x1x31x96xf32>
    %40 = vector.shape_cast %39 : vector<1x1x31x96xf32> to vector<31x96xf32>
    %cst_59 = arith.constant dense<0.000000e+00> : vector<16x96xf32>
    %41 = tpu.matmul %38, %40, %cst_59 {dimension_numbers = #tpu.dot_dimension_numbers<[1], [0], [0], [1], [0, 0, 1, 1], [], []>} : vector<16x31xf32>, vector<31x96xf32>, vector<16x96xf32> -> vector<16x96xf32>
    %42 = arith.addf %36, %41 : vector<16x96xf32>
    %c0_60 = arith.constant 0 : index
    %c1_61 = arith.constant 1 : index
    %c2_62 = arith.constant 2 : index
    %c0_63 = arith.constant 0 : index
    %43 = vector.load %arg1[%c0_60, %c1_61, %c2_62, %c0_63] : memref<1x3x31x31xf32, #tpu.memory_space<vmem>>, vector<1x1x16x31xf32>
    %44 = vector.shape_cast %43 : vector<1x1x16x31xf32> to vector<16x31xf32>
    %c2_64 = arith.constant 2 : index
    %c1_65 = arith.constant 1 : index
    %c0_66 = arith.constant 0 : index
    %c0_67 = arith.constant 0 : index
    %45 = vector.load %arg2[%c2_64, %c1_65, %c0_66, %c0_67] : memref<16x3x31x96xf32, #tpu.memory_space<vmem>>, vector<1x1x31x96xf32>
    %46 = vector.shape_cast %45 : vector<1x1x31x96xf32> to vector<31x96xf32>
    %cst_68 = arith.constant dense<0.000000e+00> : vector<16x96xf32>
    %47 = tpu.matmul %44, %46, %cst_68 {dimension_numbers = #tpu.dot_dimension_numbers<[1], [0], [0], [1], [0, 0, 1, 1], [], []>} : vector<16x31xf32>, vector<31x96xf32>, vector<16x96xf32> -> vector<16x96xf32>
    %48 = arith.addf %42, %47 : vector<16x96xf32>
    %c0_69 = arith.constant 0 : index
    %c2_70 = arith.constant 2 : index
    %c2_71 = arith.constant 2 : index
    %c0_72 = arith.constant 0 : index
    %49 = vector.load %arg1[%c0_69, %c2_70, %c2_71, %c0_72] : memref<1x3x31x31xf32, #tpu.memory_space<vmem>>, vector<1x1x16x31xf32>
    %50 = vector.shape_cast %49 : vector<1x1x16x31xf32> to vector<16x31xf32>
    %c2_73 = arith.constant 2 : index
    %c2_74 = arith.constant 2 : index
    %c0_75 = arith.constant 0 : index
    %c0_76 = arith.constant 0 : index
    %51 = vector.load %arg2[%c2_73, %c2_74, %c0_75, %c0_76] : memref<16x3x31x96xf32, #tpu.memory_space<vmem>>, vector<1x1x31x96xf32>
    %52 = vector.shape_cast %51 : vector<1x1x31x96xf32> to vector<31x96xf32>
    %cst_77 = arith.constant dense<0.000000e+00> : vector<16x96xf32>
    %53 = tpu.matmul %50, %52, %cst_77 {dimension_numbers = #tpu.dot_dimension_numbers<[1], [0], [0], [1], [0, 0, 1, 1], [], []>} : vector<16x31xf32>, vector<31x96xf32>, vector<16x96xf32> -> vector<16x96xf32>
    %54 = arith.addf %48, %53 : vector<16x96xf32>
    %c0_78 = arith.constant 0 : index
    %c0_79 = arith.constant 0 : index
    %c3 = arith.constant 3 : index
    %c0_80 = arith.constant 0 : index
    %55 = vector.load %arg1[%c0_78, %c0_79, %c3, %c0_80] : memref<1x3x31x31xf32, #tpu.memory_space<vmem>>, vector<1x1x16x31xf32>
    %56 = vector.shape_cast %55 : vector<1x1x16x31xf32> to vector<16x31xf32>
    %c3_81 = arith.constant 3 : index
    %c0_82 = arith.constant 0 : index
    %c0_83 = arith.constant 0 : index
    %c0_84 = arith.constant 0 : index
    %57 = vector.load %arg2[%c3_81, %c0_82, %c0_83, %c0_84] : memref<16x3x31x96xf32, #tpu.memory_space<vmem>>, vector<1x1x31x96xf32>
    %58 = vector.shape_cast %57 : vector<1x1x31x96xf32> to vector<31x96xf32>
    %cst_85 = arith.constant dense<0.000000e+00> : vector<16x96xf32>
    %59 = tpu.matmul %56, %58, %cst_85 {dimension_numbers = #tpu.dot_dimension_numbers<[1], [0], [0], [1], [0, 0, 1, 1], [], []>} : vector<16x31xf32>, vector<31x96xf32>, vector<16x96xf32> -> vector<16x96xf32>
    %60 = arith.addf %54, %59 : vector<16x96xf32>
    %c0_86 = arith.constant 0 : index
    %c1_87 = arith.constant 1 : index
    %c3_88 = arith.constant 3 : index
    %c0_89 = arith.constant 0 : index
    %61 = vector.load %arg1[%c0_86, %c1_87, %c3_88, %c0_89] : memref<1x3x31x31xf32, #tpu.memory_space<vmem>>, vector<1x1x16x31xf32>
    %62 = vector.shape_cast %61 : vector<1x1x16x31xf32> to vector<16x31xf32>
    %c3_90 = arith.constant 3 : index
    %c1_91 = arith.constant 1 : index
    %c0_92 = arith.constant 0 : index
    %c0_93 = arith.constant 0 : index
    %63 = vector.load %arg2[%c3_90, %c1_91, %c0_92, %c0_93] : memref<16x3x31x96xf32, #tpu.memory_space<vmem>>, vector<1x1x31x96xf32>
    %64 = vector.shape_cast %63 : vector<1x1x31x96xf32> to vector<31x96xf32>
    %cst_94 = arith.constant dense<0.000000e+00> : vector<16x96xf32>
    %65 = tpu.matmul %62, %64, %cst_94 {dimension_numbers = #tpu.dot_dimension_numbers<[1], [0], [0], [1], [0, 0, 1, 1], [], []>} : vector<16x31xf32>, vector<31x96xf32>, vector<16x96xf32> -> vector<16x96xf32>
    %66 = arith.addf %60, %65 : vector<16x96xf32>
    %c0_95 = arith.constant 0 : index
    %c2_96 = arith.constant 2 : index
    %c3_97 = arith.constant 3 : index
    %c0_98 = arith.constant 0 : index
    %67 = vector.load %arg1[%c0_95, %c2_96, %c3_97, %c0_98] : memref<1x3x31x31xf32, #tpu.memory_space<vmem>>, vector<1x1x16x31xf32>
    %68 = vector.shape_cast %67 : vector<1x1x16x31xf32> to vector<16x31xf32>
    %c3_99 = arith.constant 3 : index
    %c2_100 = arith.constant 2 : index
    %c0_101 = arith.constant 0 : index
    %c0_102 = arith.constant 0 : index
    %69 = vector.load %arg2[%c3_99, %c2_100, %c0_101, %c0_102] : memref<16x3x31x96xf32, #tpu.memory_space<vmem>>, vector<1x1x31x96xf32>
    %70 = vector.shape_cast %69 : vector<1x1x31x96xf32> to vector<31x96xf32>
    %cst_103 = arith.constant dense<0.000000e+00> : vector<16x96xf32>
    %71 = tpu.matmul %68, %70, %cst_103 {dimension_numbers = #tpu.dot_dimension_numbers<[1], [0], [0], [1], [0, 0, 1, 1], [], []>} : vector<16x31xf32>, vector<31x96xf32>, vector<16x96xf32> -> vector<16x96xf32>
    %72 = arith.addf %66, %71 : vector<16x96xf32>
    %c0_104 = arith.constant 0 : index
    %c0_105 = arith.constant 0 : index
    %c4 = arith.constant 4 : index
    %c0_106 = arith.constant 0 : index
    %73 = vector.load %arg1[%c0_104, %c0_105, %c4, %c0_106] : memref<1x3x31x31xf32, #tpu.memory_space<vmem>>, vector<1x1x16x31xf32>
    %74 = vector.shape_cast %73 : vector<1x1x16x31xf32> to vector<16x31xf32>
    %c4_107 = arith.constant 4 : index
    %c0_108 = arith.constant 0 : index
    %c0_109 = arith.constant 0 : index
    %c0_110 = arith.constant 0 : index
    %75 = vector.load %arg2[%c4_107, %c0_108, %c0_109, %c0_110] : memref<16x3x31x96xf32, #tpu.memory_space<vmem>>, vector<1x1x31x96xf32>
    %76 = vector.shape_cast %75 : vector<1x1x31x96xf32> to vector<31x96xf32>
    %cst_111 = arith.constant dense<0.000000e+00> : vector<16x96xf32>
    %77 = tpu.matmul %74, %76, %cst_111 {dimension_numbers = #tpu.dot_dimension_numbers<[1], [0], [0], [1], [0, 0, 1, 1], [], []>} : vector<16x31xf32>, vector<31x96xf32>, vector<16x96xf32> -> vector<16x96xf32>
    %78 = arith.addf %72, %77 : vector<16x96xf32>
    %c0_112 = arith.constant 0 : index
    %c1_113 = arith.constant 1 : index
    %c4_114 = arith.constant 4 : index
    %c0_115 = arith.constant 0 : index
    %79 = vector.load %arg1[%c0_112, %c1_113, %c4_114, %c0_115] : memref<1x3x31x31xf32, #tpu.memory_space<vmem>>, vector<1x1x16x31xf32>
    %80 = vector.shape_cast %79 : vector<1x1x16x31xf32> to vector<16x31xf32>
    %c4_116 = arith.constant 4 : index
    %c1_117 = arith.constant 1 : index
    %c0_118 = arith.constant 0 : index
    %c0_119 = arith.constant 0 : index
    %81 = vector.load %arg2[%c4_116, %c1_117, %c0_118, %c0_119] : memref<16x3x31x96xf32, #tpu.memory_space<vmem>>, vector<1x1x31x96xf32>
    %82 = vector.shape_cast %81 : vector<1x1x31x96xf32> to vector<31x96xf32>
    %cst_120 = arith.constant dense<0.000000e+00> : vector<16x96xf32>
    %83 = tpu.matmul %80, %82, %cst_120 {dimension_numbers = #tpu.dot_dimension_numbers<[1], [0], [0], [1], [0, 0, 1, 1], [], []>} : vector<16x31xf32>, vector<31x96xf32>, vector<16x96xf32> -> vector<16x96xf32>
    %84 = arith.addf %78, %83 : vector<16x96xf32>
    %c0_121 = arith.constant 0 : index
    %c2_122 = arith.constant 2 : index
    %c4_123 = arith.constant 4 : index
    %c0_124 = arith.constant 0 : index
    %85 = vector.load %arg1[%c0_121, %c2_122, %c4_123, %c0_124] : memref<1x3x31x31xf32, #tpu.memory_space<vmem>>, vector<1x1x16x31xf32>
    %86 = vector.shape_cast %85 : vector<1x1x16x31xf32> to vector<16x31xf32>
    %c4_125 = arith.constant 4 : index
    %c2_126 = arith.constant 2 : index
    %c0_127 = arith.constant 0 : index
    %c0_128 = arith.constant 0 : index
    %87 = vector.load %arg2[%c4_125, %c2_126, %c0_127, %c0_128] : memref<16x3x31x96xf32, #tpu.memory_space<vmem>>, vector<1x1x31x96xf32>
    %88 = vector.shape_cast %87 : vector<1x1x31x96xf32> to vector<31x96xf32>
    %cst_129 = arith.constant dense<0.000000e+00> : vector<16x96xf32>
    %89 = tpu.matmul %86, %88, %cst_129 {dimension_numbers = #tpu.dot_dimension_numbers<[1], [0], [0], [1], [0, 0, 1, 1], [], []>} : vector<16x31xf32>, vector<31x96xf32>, vector<16x96xf32> -> vector<16x96xf32>
    %90 = arith.addf %84, %89 : vector<16x96xf32>
    %c0_130 = arith.constant 0 : index
    %c0_131 = arith.constant 0 : index
    %c5 = arith.constant 5 : index
    %c0_132 = arith.constant 0 : index
    %91 = vector.load %arg1[%c0_130, %c0_131, %c5, %c0_132] : memref<1x3x31x31xf32, #tpu.memory_space<vmem>>, vector<1x1x16x31xf32>
    %92 = vector.shape_cast %91 : vector<1x1x16x31xf32> to vector<16x31xf32>
    %c5_133 = arith.constant 5 : index
    %c0_134 = arith.constant 0 : index
    %c0_135 = arith.constant 0 : index
    %c0_136 = arith.constant 0 : index
    %93 = vector.load %arg2[%c5_133, %c0_134, %c0_135, %c0_136] : memref<16x3x31x96xf32, #tpu.memory_space<vmem>>, vector<1x1x31x96xf32>
    %94 = vector.shape_cast %93 : vector<1x1x31x96xf32> to vector<31x96xf32>
    %cst_137 = arith.constant dense<0.000000e+00> : vector<16x96xf32>
    %95 = tpu.matmul %92, %94, %cst_137 {dimension_numbers = #tpu.dot_dimension_numbers<[1], [0], [0], [1], [0, 0, 1, 1], [], []>} : vector<16x31xf32>, vector<31x96xf32>, vector<16x96xf32> -> vector<16x96xf32>
    %96 = arith.addf %90, %95 : vector<16x96xf32>
    %c0_138 = arith.constant 0 : index
    %c1_139 = arith.constant 1 : index
    %c5_140 = arith.constant 5 : index
    %c0_141 = arith.constant 0 : index
    %97 = vector.load %arg1[%c0_138, %c1_139, %c5_140, %c0_141] : memref<1x3x31x31xf32, #tpu.memory_space<vmem>>, vector<1x1x16x31xf32>
    %98 = vector.shape_cast %97 : vector<1x1x16x31xf32> to vector<16x31xf32>
    %c5_142 = arith.constant 5 : index
    %c1_143 = arith.constant 1 : index
    %c0_144 = arith.constant 0 : index
    %c0_145 = arith.constant 0 : index
    %99 = vector.load %arg2[%c5_142, %c1_143, %c0_144, %c0_145] : memref<16x3x31x96xf32, #tpu.memory_space<vmem>>, vector<1x1x31x96xf32>
    %100 = vector.shape_cast %99 : vector<1x1x31x96xf32> to vector<31x96xf32>
    %cst_146 = arith.constant dense<0.000000e+00> : vector<16x96xf32>
    %101 = tpu.matmul %98, %100, %cst_146 {dimension_numbers = #tpu.dot_dimension_numbers<[1], [0], [0], [1], [0, 0, 1, 1], [], []>} : vector<16x31xf32>, vector<31x96xf32>, vector<16x96xf32> -> vector<16x96xf32>
    %102 = arith.addf %96, %101 : vector<16x96xf32>
    %c0_147 = arith.constant 0 : index
    %c2_148 = arith.constant 2 : index
    %c5_149 = arith.constant 5 : index
    %c0_150 = arith.constant 0 : index
    %103 = vector.load %arg1[%c0_147, %c2_148, %c5_149, %c0_150] : memref<1x3x31x31xf32, #tpu.memory_space<vmem>>, vector<1x1x16x31xf32>
    %104 = vector.shape_cast %103 : vector<1x1x16x31xf32> to vector<16x31xf32>
    %c5_151 = arith.constant 5 : index
    %c2_152 = arith.constant 2 : index
    %c0_153 = arith.constant 0 : index
    %c0_154 = arith.constant 0 : index
    %105 = vector.load %arg2[%c5_151, %c2_152, %c0_153, %c0_154] : memref<16x3x31x96xf32, #tpu.memory_space<vmem>>, vector<1x1x31x96xf32>
    %106 = vector.shape_cast %105 : vector<1x1x31x96xf32> to vector<31x96xf32>
    %cst_155 = arith.constant dense<0.000000e+00> : vector<16x96xf32>
    %107 = tpu.matmul %104, %106, %cst_155 {dimension_numbers = #tpu.dot_dimension_numbers<[1], [0], [0], [1], [0, 0, 1, 1], [], []>} : vector<16x31xf32>, vector<31x96xf32>, vector<16x96xf32> -> vector<16x96xf32>
    %108 = arith.addf %102, %107 : vector<16x96xf32>
    %c0_156 = arith.constant 0 : index
    %c0_157 = arith.constant 0 : index
    %c6 = arith.constant 6 : index
    %c0_158 = arith.constant 0 : index
    %109 = vector.load %arg1[%c0_156, %c0_157, %c6, %c0_158] : memref<1x3x31x31xf32, #tpu.memory_space<vmem>>, vector<1x1x16x31xf32>
    %110 = vector.shape_cast %109 : vector<1x1x16x31xf32> to vector<16x31xf32>
    %c6_159 = arith.constant 6 : index
    %c0_160 = arith.constant 0 : index
    %c0_161 = arith.constant 0 : index
    %c0_162 = arith.constant 0 : index
    %111 = vector.load %arg2[%c6_159, %c0_160, %c0_161, %c0_162] : memref<16x3x31x96xf32, #tpu.memory_space<vmem>>, vector<1x1x31x96xf32>
    %112 = vector.shape_cast %111 : vector<1x1x31x96xf32> to vector<31x96xf32>
    %cst_163 = arith.constant dense<0.000000e+00> : vector<16x96xf32>
    %113 = tpu.matmul %110, %112, %cst_163 {dimension_numbers = #tpu.dot_dimension_numbers<[1], [0], [0], [1], [0, 0, 1, 1], [], []>} : vector<16x31xf32>, vector<31x96xf32>, vector<16x96xf32> -> vector<16x96xf32>
    %114 = arith.addf %108, %113 : vector<16x96xf32>
    %c0_164 = arith.constant 0 : index
    %c1_165 = arith.constant 1 : index
    %c6_166 = arith.constant 6 : index
    %c0_167 = arith.constant 0 : index
    %115 = vector.load %arg1[%c0_164, %c1_165, %c6_166, %c0_167] : memref<1x3x31x31xf32, #tpu.memory_space<vmem>>, vector<1x1x16x31xf32>
    %116 = vector.shape_cast %115 : vector<1x1x16x31xf32> to vector<16x31xf32>
    %c6_168 = arith.constant 6 : index
    %c1_169 = arith.constant 1 : index
    %c0_170 = arith.constant 0 : index
    %c0_171 = arith.constant 0 : index
    %117 = vector.load %arg2[%c6_168, %c1_169, %c0_170, %c0_171] : memref<16x3x31x96xf32, #tpu.memory_space<vmem>>, vector<1x1x31x96xf32>
    %118 = vector.shape_cast %117 : vector<1x1x31x96xf32> to vector<31x96xf32>
    %cst_172 = arith.constant dense<0.000000e+00> : vector<16x96xf32>
    %119 = tpu.matmul %116, %118, %cst_172 {dimension_numbers = #tpu.dot_dimension_numbers<[1], [0], [0], [1], [0, 0, 1, 1], [], []>} : vector<16x31xf32>, vector<31x96xf32>, vector<16x96xf32> -> vector<16x96xf32>
    %120 = arith.addf %114, %119 : vector<16x96xf32>
    %c0_173 = arith.constant 0 : index
    %c2_174 = arith.constant 2 : index
    %c6_175 = arith.constant 6 : index
    %c0_176 = arith.constant 0 : index
    %121 = vector.load %arg1[%c0_173, %c2_174, %c6_175, %c0_176] : memref<1x3x31x31xf32, #tpu.memory_space<vmem>>, vector<1x1x16x31xf32>
    %122 = vector.shape_cast %121 : vector<1x1x16x31xf32> to vector<16x31xf32>
    %c6_177 = arith.constant 6 : index
    %c2_178 = arith.constant 2 : index
    %c0_179 = arith.constant 0 : index
    %c0_180 = arith.constant 0 : index
    %123 = vector.load %arg2[%c6_177, %c2_178, %c0_179, %c0_180] : memref<16x3x31x96xf32, #tpu.memory_space<vmem>>, vector<1x1x31x96xf32>
    %124 = vector.shape_cast %123 : vector<1x1x31x96xf32> to vector<31x96xf32>
    %cst_181 = arith.constant dense<0.000000e+00> : vector<16x96xf32>
    %125 = tpu.matmul %122, %124, %cst_181 {dimension_numbers = #tpu.dot_dimension_numbers<[1], [0], [0], [1], [0, 0, 1, 1], [], []>} : vector<16x31xf32>, vector<31x96xf32>, vector<16x96xf32> -> vector<16x96xf32>
    %126 = arith.addf %120, %125 : vector<16x96xf32>
    %c0_182 = arith.constant 0 : index
    %c0_183 = arith.constant 0 : index
    %c7 = arith.constant 7 : index
    %c0_184 = arith.constant 0 : index
    %127 = vector.load %arg1[%c0_182, %c0_183, %c7, %c0_184] : memref<1x3x31x31xf32, #tpu.memory_space<vmem>>, vector<1x1x16x31xf32>
    %128 = vector.shape_cast %127 : vector<1x1x16x31xf32> to vector<16x31xf32>
    %c7_185 = arith.constant 7 : index
    %c0_186 = arith.constant 0 : index
    %c0_187 = arith.constant 0 : index
    %c0_188 = arith.constant 0 : index
    %129 = vector.load %arg2[%c7_185, %c0_186, %c0_187, %c0_188] : memref<16x3x31x96xf32, #tpu.memory_space<vmem>>, vector<1x1x31x96xf32>
    %130 = vector.shape_cast %129 : vector<1x1x31x96xf32> to vector<31x96xf32>
    %cst_189 = arith.constant dense<0.000000e+00> : vector<16x96xf32>
    %131 = tpu.matmul %128, %130, %cst_189 {dimension_numbers = #tpu.dot_dimension_numbers<[1], [0], [0], [1], [0, 0, 1, 1], [], []>} : vector<16x31xf32>, vector<31x96xf32>, vector<16x96xf32> -> vector<16x96xf32>
    %132 = arith.addf %126, %131 : vector<16x96xf32>
    %c0_190 = arith.constant 0 : index
    %c1_191 = arith.constant 1 : index
    %c7_192 = arith.constant 7 : index
    %c0_193 = arith.constant 0 : index
    %133 = vector.load %arg1[%c0_190, %c1_191, %c7_192, %c0_193] : memref<1x3x31x31xf32, #tpu.memory_space<vmem>>, vector<1x1x16x31xf32>
    %134 = vector.shape_cast %133 : vector<1x1x16x31xf32> to vector<16x31xf32>
    %c7_194 = arith.constant 7 : index
    %c1_195 = arith.constant 1 : index
    %c0_196 = arith.constant 0 : index
    %c0_197 = arith.constant 0 : index
    %135 = vector.load %arg2[%c7_194, %c1_195, %c0_196, %c0_197] : memref<16x3x31x96xf32, #tpu.memory_space<vmem>>, vector<1x1x31x96xf32>
    %136 = vector.shape_cast %135 : vector<1x1x31x96xf32> to vector<31x96xf32>
    %cst_198 = arith.constant dense<0.000000e+00> : vector<16x96xf32>
    %137 = tpu.matmul %134, %136, %cst_198 {dimension_numbers = #tpu.dot_dimension_numbers<[1], [0], [0], [1], [0, 0, 1, 1], [], []>} : vector<16x31xf32>, vector<31x96xf32>, vector<16x96xf32> -> vector<16x96xf32>
    %138 = arith.addf %132, %137 : vector<16x96xf32>
    %c0_199 = arith.constant 0 : index
    %c2_200 = arith.constant 2 : index
    %c7_201 = arith.constant 7 : index
    %c0_202 = arith.constant 0 : index
    %139 = vector.load %arg1[%c0_199, %c2_200, %c7_201, %c0_202] : memref<1x3x31x31xf32, #tpu.memory_space<vmem>>, vector<1x1x16x31xf32>
    %140 = vector.shape_cast %139 : vector<1x1x16x31xf32> to vector<16x31xf32>
    %c7_203 = arith.constant 7 : index
    %c2_204 = arith.constant 2 : index
    %c0_205 = arith.constant 0 : index
    %c0_206 = arith.constant 0 : index
    %141 = vector.load %arg2[%c7_203, %c2_204, %c0_205, %c0_206] : memref<16x3x31x96xf32, #tpu.memory_space<vmem>>, vector<1x1x31x96xf32>
    %142 = vector.shape_cast %141 : vector<1x1x31x96xf32> to vector<31x96xf32>
    %cst_207 = arith.constant dense<0.000000e+00> : vector<16x96xf32>
    %143 = tpu.matmul %140, %142, %cst_207 {dimension_numbers = #tpu.dot_dimension_numbers<[1], [0], [0], [1], [0, 0, 1, 1], [], []>} : vector<16x31xf32>, vector<31x96xf32>, vector<16x96xf32> -> vector<16x96xf32>
    %144 = arith.addf %138, %143 : vector<16x96xf32>
    %c0_208 = arith.constant 0 : index
    %c0_209 = arith.constant 0 : index
    %c8 = arith.constant 8 : index
    %c0_210 = arith.constant 0 : index
    %145 = vector.load %arg1[%c0_208, %c0_209, %c8, %c0_210] : memref<1x3x31x31xf32, #tpu.memory_space<vmem>>, vector<1x1x16x31xf32>
    %146 = vector.shape_cast %145 : vector<1x1x16x31xf32> to vector<16x31xf32>
    %c8_211 = arith.constant 8 : index
    %c0_212 = arith.constant 0 : index
    %c0_213 = arith.constant 0 : index
    %c0_214 = arith.constant 0 : index
    %147 = vector.load %arg2[%c8_211, %c0_212, %c0_213, %c0_214] : memref<16x3x31x96xf32, #tpu.memory_space<vmem>>, vector<1x1x31x96xf32>
    %148 = vector.shape_cast %147 : vector<1x1x31x96xf32> to vector<31x96xf32>
    %cst_215 = arith.constant dense<0.000000e+00> : vector<16x96xf32>
    %149 = tpu.matmul %146, %148, %cst_215 {dimension_numbers = #tpu.dot_dimension_numbers<[1], [0], [0], [1], [0, 0, 1, 1], [], []>} : vector<16x31xf32>, vector<31x96xf32>, vector<16x96xf32> -> vector<16x96xf32>
    %150 = arith.addf %144, %149 : vector<16x96xf32>
    %c0_216 = arith.constant 0 : index
    %c1_217 = arith.constant 1 : index
    %c8_218 = arith.constant 8 : index
    %c0_219 = arith.constant 0 : index
    %151 = vector.load %arg1[%c0_216, %c1_217, %c8_218, %c0_219] : memref<1x3x31x31xf32, #tpu.memory_space<vmem>>, vector<1x1x16x31xf32>
    %152 = vector.shape_cast %151 : vector<1x1x16x31xf32> to vector<16x31xf32>
    %c8_220 = arith.constant 8 : index
    %c1_221 = arith.constant 1 : index
    %c0_222 = arith.constant 0 : index
    %c0_223 = arith.constant 0 : index
    %153 = vector.load %arg2[%c8_220, %c1_221, %c0_222, %c0_223] : memref<16x3x31x96xf32, #tpu.memory_space<vmem>>, vector<1x1x31x96xf32>
    %154 = vector.shape_cast %153 : vector<1x1x31x96xf32> to vector<31x96xf32>
    %cst_224 = arith.constant dense<0.000000e+00> : vector<16x96xf32>
    %155 = tpu.matmul %152, %154, %cst_224 {dimension_numbers = #tpu.dot_dimension_numbers<[1], [0], [0], [1], [0, 0, 1, 1], [], []>} : vector<16x31xf32>, vector<31x96xf32>, vector<16x96xf32> -> vector<16x96xf32>
    %156 = arith.addf %150, %155 : vector<16x96xf32>
    %c0_225 = arith.constant 0 : index
    %c2_226 = arith.constant 2 : index
    %c8_227 = arith.constant 8 : index
    %c0_228 = arith.constant 0 : index
    %157 = vector.load %arg1[%c0_225, %c2_226, %c8_227, %c0_228] : memref<1x3x31x31xf32, #tpu.memory_space<vmem>>, vector<1x1x16x31xf32>
    %158 = vector.shape_cast %157 : vector<1x1x16x31xf32> to vector<16x31xf32>
    %c8_229 = arith.constant 8 : index
    %c2_230 = arith.constant 2 : index
    %c0_231 = arith.constant 0 : index
    %c0_232 = arith.constant 0 : index
    %159 = vector.load %arg2[%c8_229, %c2_230, %c0_231, %c0_232] : memref<16x3x31x96xf32, #tpu.memory_space<vmem>>, vector<1x1x31x96xf32>
    %160 = vector.shape_cast %159 : vector<1x1x31x96xf32> to vector<31x96xf32>
    %cst_233 = arith.constant dense<0.000000e+00> : vector<16x96xf32>
    %161 = tpu.matmul %158, %160, %cst_233 {dimension_numbers = #tpu.dot_dimension_numbers<[1], [0], [0], [1], [0, 0, 1, 1], [], []>} : vector<16x31xf32>, vector<31x96xf32>, vector<16x96xf32> -> vector<16x96xf32>
    %162 = arith.addf %156, %161 : vector<16x96xf32>
    %c0_234 = arith.constant 0 : index
    %c0_235 = arith.constant 0 : index
    %c9 = arith.constant 9 : index
    %c0_236 = arith.constant 0 : index
    %163 = vector.load %arg1[%c0_234, %c0_235, %c9, %c0_236] : memref<1x3x31x31xf32, #tpu.memory_space<vmem>>, vector<1x1x16x31xf32>
    %164 = vector.shape_cast %163 : vector<1x1x16x31xf32> to vector<16x31xf32>
    %c9_237 = arith.constant 9 : index
    %c0_238 = arith.constant 0 : index
    %c0_239 = arith.constant 0 : index
    %c0_240 = arith.constant 0 : index
    %165 = vector.load %arg2[%c9_237, %c0_238, %c0_239, %c0_240] : memref<16x3x31x96xf32, #tpu.memory_space<vmem>>, vector<1x1x31x96xf32>
    %166 = vector.shape_cast %165 : vector<1x1x31x96xf32> to vector<31x96xf32>
    %cst_241 = arith.constant dense<0.000000e+00> : vector<16x96xf32>
    %167 = tpu.matmul %164, %166, %cst_241 {dimension_numbers = #tpu.dot_dimension_numbers<[1], [0], [0], [1], [0, 0, 1, 1], [], []>} : vector<16x31xf32>, vector<31x96xf32>, vector<16x96xf32> -> vector<16x96xf32>
    %168 = arith.addf %162, %167 : vector<16x96xf32>
    %c0_242 = arith.constant 0 : index
    %c1_243 = arith.constant 1 : index
    %c9_244 = arith.constant 9 : index
    %c0_245 = arith.constant 0 : index
    %169 = vector.load %arg1[%c0_242, %c1_243, %c9_244, %c0_245] : memref<1x3x31x31xf32, #tpu.memory_space<vmem>>, vector<1x1x16x31xf32>
    %170 = vector.shape_cast %169 : vector<1x1x16x31xf32> to vector<16x31xf32>
    %c9_246 = arith.constant 9 : index
    %c1_247 = arith.constant 1 : index
    %c0_248 = arith.constant 0 : index
    %c0_249 = arith.constant 0 : index
    %171 = vector.load %arg2[%c9_246, %c1_247, %c0_248, %c0_249] : memref<16x3x31x96xf32, #tpu.memory_space<vmem>>, vector<1x1x31x96xf32>
    %172 = vector.shape_cast %171 : vector<1x1x31x96xf32> to vector<31x96xf32>
    %cst_250 = arith.constant dense<0.000000e+00> : vector<16x96xf32>
    %173 = tpu.matmul %170, %172, %cst_250 {dimension_numbers = #tpu.dot_dimension_numbers<[1], [0], [0], [1], [0, 0, 1, 1], [], []>} : vector<16x31xf32>, vector<31x96xf32>, vector<16x96xf32> -> vector<16x96xf32>
    %174 = arith.addf %168, %173 : vector<16x96xf32>
    %c0_251 = arith.constant 0 : index
    %c2_252 = arith.constant 2 : index
    %c9_253 = arith.constant 9 : index
    %c0_254 = arith.constant 0 : index
    %175 = vector.load %arg1[%c0_251, %c2_252, %c9_253, %c0_254] : memref<1x3x31x31xf32, #tpu.memory_space<vmem>>, vector<1x1x16x31xf32>
    %176 = vector.shape_cast %175 : vector<1x1x16x31xf32> to vector<16x31xf32>
    %c9_255 = arith.constant 9 : index
    %c2_256 = arith.constant 2 : index
    %c0_257 = arith.constant 0 : index
    %c0_258 = arith.constant 0 : index
    %177 = vector.load %arg2[%c9_255, %c2_256, %c0_257, %c0_258] : memref<16x3x31x96xf32, #tpu.memory_space<vmem>>, vector<1x1x31x96xf32>
    %178 = vector.shape_cast %177 : vector<1x1x31x96xf32> to vector<31x96xf32>
    %cst_259 = arith.constant dense<0.000000e+00> : vector<16x96xf32>
    %179 = tpu.matmul %176, %178, %cst_259 {dimension_numbers = #tpu.dot_dimension_numbers<[1], [0], [0], [1], [0, 0, 1, 1], [], []>} : vector<16x31xf32>, vector<31x96xf32>, vector<16x96xf32> -> vector<16x96xf32>
    %180 = arith.addf %174, %179 : vector<16x96xf32>
    %c0_260 = arith.constant 0 : index
    %c0_261 = arith.constant 0 : index
    %c10 = arith.constant 10 : index
    %c0_262 = arith.constant 0 : index
    %181 = vector.load %arg1[%c0_260, %c0_261, %c10, %c0_262] : memref<1x3x31x31xf32, #tpu.memory_space<vmem>>, vector<1x1x16x31xf32>
    %182 = vector.shape_cast %181 : vector<1x1x16x31xf32> to vector<16x31xf32>
    %c10_263 = arith.constant 10 : index
    %c0_264 = arith.constant 0 : index
    %c0_265 = arith.constant 0 : index
    %c0_266 = arith.constant 0 : index
    %183 = vector.load %arg2[%c10_263, %c0_264, %c0_265, %c0_266] : memref<16x3x31x96xf32, #tpu.memory_space<vmem>>, vector<1x1x31x96xf32>
    %184 = vector.shape_cast %183 : vector<1x1x31x96xf32> to vector<31x96xf32>
    %cst_267 = arith.constant dense<0.000000e+00> : vector<16x96xf32>
    %185 = tpu.matmul %182, %184, %cst_267 {dimension_numbers = #tpu.dot_dimension_numbers<[1], [0], [0], [1], [0, 0, 1, 1], [], []>} : vector<16x31xf32>, vector<31x96xf32>, vector<16x96xf32> -> vector<16x96xf32>
    %186 = arith.addf %180, %185 : vector<16x96xf32>
    %c0_268 = arith.constant 0 : index
    %c1_269 = arith.constant 1 : index
    %c10_270 = arith.constant 10 : index
    %c0_271 = arith.constant 0 : index
    %187 = vector.load %arg1[%c0_268, %c1_269, %c10_270, %c0_271] : memref<1x3x31x31xf32, #tpu.memory_space<vmem>>, vector<1x1x16x31xf32>
    %188 = vector.shape_cast %187 : vector<1x1x16x31xf32> to vector<16x31xf32>
    %c10_272 = arith.constant 10 : index
    %c1_273 = arith.constant 1 : index
    %c0_274 = arith.constant 0 : index
    %c0_275 = arith.constant 0 : index
    %189 = vector.load %arg2[%c10_272, %c1_273, %c0_274, %c0_275] : memref<16x3x31x96xf32, #tpu.memory_space<vmem>>, vector<1x1x31x96xf32>
    %190 = vector.shape_cast %189 : vector<1x1x31x96xf32> to vector<31x96xf32>
    %cst_276 = arith.constant dense<0.000000e+00> : vector<16x96xf32>
    %191 = tpu.matmul %188, %190, %cst_276 {dimension_numbers = #tpu.dot_dimension_numbers<[1], [0], [0], [1], [0, 0, 1, 1], [], []>} : vector<16x31xf32>, vector<31x96xf32>, vector<16x96xf32> -> vector<16x96xf32>
    %192 = arith.addf %186, %191 : vector<16x96xf32>
    %c0_277 = arith.constant 0 : index
    %c2_278 = arith.constant 2 : index
    %c10_279 = arith.constant 10 : index
    %c0_280 = arith.constant 0 : index
    %193 = vector.load %arg1[%c0_277, %c2_278, %c10_279, %c0_280] : memref<1x3x31x31xf32, #tpu.memory_space<vmem>>, vector<1x1x16x31xf32>
    %194 = vector.shape_cast %193 : vector<1x1x16x31xf32> to vector<16x31xf32>
    %c10_281 = arith.constant 10 : index
    %c2_282 = arith.constant 2 : index
    %c0_283 = arith.constant 0 : index
    %c0_284 = arith.constant 0 : index
    %195 = vector.load %arg2[%c10_281, %c2_282, %c0_283, %c0_284] : memref<16x3x31x96xf32, #tpu.memory_space<vmem>>, vector<1x1x31x96xf32>
    %196 = vector.shape_cast %195 : vector<1x1x31x96xf32> to vector<31x96xf32>
    %cst_285 = arith.constant dense<0.000000e+00> : vector<16x96xf32>
    %197 = tpu.matmul %194, %196, %cst_285 {dimension_numbers = #tpu.dot_dimension_numbers<[1], [0], [0], [1], [0, 0, 1, 1], [], []>} : vector<16x31xf32>, vector<31x96xf32>, vector<16x96xf32> -> vector<16x96xf32>
    %198 = arith.addf %192, %197 : vector<16x96xf32>
    %c0_286 = arith.constant 0 : index
    %c0_287 = arith.constant 0 : index
    %c11 = arith.constant 11 : index
    %c0_288 = arith.constant 0 : index
    %199 = vector.load %arg1[%c0_286, %c0_287, %c11, %c0_288] : memref<1x3x31x31xf32, #tpu.memory_space<vmem>>, vector<1x1x16x31xf32>
    %200 = vector.shape_cast %199 : vector<1x1x16x31xf32> to vector<16x31xf32>
    %c11_289 = arith.constant 11 : index
    %c0_290 = arith.constant 0 : index
    %c0_291 = arith.constant 0 : index
    %c0_292 = arith.constant 0 : index
    %201 = vector.load %arg2[%c11_289, %c0_290, %c0_291, %c0_292] : memref<16x3x31x96xf32, #tpu.memory_space<vmem>>, vector<1x1x31x96xf32>
    %202 = vector.shape_cast %201 : vector<1x1x31x96xf32> to vector<31x96xf32>
    %cst_293 = arith.constant dense<0.000000e+00> : vector<16x96xf32>
    %203 = tpu.matmul %200, %202, %cst_293 {dimension_numbers = #tpu.dot_dimension_numbers<[1], [0], [0], [1], [0, 0, 1, 1], [], []>} : vector<16x31xf32>, vector<31x96xf32>, vector<16x96xf32> -> vector<16x96xf32>
    %204 = arith.addf %198, %203 : vector<16x96xf32>
    %c0_294 = arith.constant 0 : index
    %c1_295 = arith.constant 1 : index
    %c11_296 = arith.constant 11 : index
    %c0_297 = arith.constant 0 : index
    %205 = vector.load %arg1[%c0_294, %c1_295, %c11_296, %c0_297] : memref<1x3x31x31xf32, #tpu.memory_space<vmem>>, vector<1x1x16x31xf32>
    %206 = vector.shape_cast %205 : vector<1x1x16x31xf32> to vector<16x31xf32>
    %c11_298 = arith.constant 11 : index
    %c1_299 = arith.constant 1 : index
    %c0_300 = arith.constant 0 : index
    %c0_301 = arith.constant 0 : index
    %207 = vector.load %arg2[%c11_298, %c1_299, %c0_300, %c0_301] : memref<16x3x31x96xf32, #tpu.memory_space<vmem>>, vector<1x1x31x96xf32>
    %208 = vector.shape_cast %207 : vector<1x1x31x96xf32> to vector<31x96xf32>
    %cst_302 = arith.constant dense<0.000000e+00> : vector<16x96xf32>
    %209 = tpu.matmul %206, %208, %cst_302 {dimension_numbers = #tpu.dot_dimension_numbers<[1], [0], [0], [1], [0, 0, 1, 1], [], []>} : vector<16x31xf32>, vector<31x96xf32>, vector<16x96xf32> -> vector<16x96xf32>
    %210 = arith.addf %204, %209 : vector<16x96xf32>
    %c0_303 = arith.constant 0 : index
    %c2_304 = arith.constant 2 : index
    %c11_305 = arith.constant 11 : index
    %c0_306 = arith.constant 0 : index
    %211 = vector.load %arg1[%c0_303, %c2_304, %c11_305, %c0_306] : memref<1x3x31x31xf32, #tpu.memory_space<vmem>>, vector<1x1x16x31xf32>
    %212 = vector.shape_cast %211 : vector<1x1x16x31xf32> to vector<16x31xf32>
    %c11_307 = arith.constant 11 : index
    %c2_308 = arith.constant 2 : index
    %c0_309 = arith.constant 0 : index
    %c0_310 = arith.constant 0 : index
    %213 = vector.load %arg2[%c11_307, %c2_308, %c0_309, %c0_310] : memref<16x3x31x96xf32, #tpu.memory_space<vmem>>, vector<1x1x31x96xf32>
    %214 = vector.shape_cast %213 : vector<1x1x31x96xf32> to vector<31x96xf32>
    %cst_311 = arith.constant dense<0.000000e+00> : vector<16x96xf32>
    %215 = tpu.matmul %212, %214, %cst_311 {dimension_numbers = #tpu.dot_dimension_numbers<[1], [0], [0], [1], [0, 0, 1, 1], [], []>} : vector<16x31xf32>, vector<31x96xf32>, vector<16x96xf32> -> vector<16x96xf32>
    %216 = arith.addf %210, %215 : vector<16x96xf32>
    %c0_312 = arith.constant 0 : index
    %c0_313 = arith.constant 0 : index
    %c12 = arith.constant 12 : index
    %c0_314 = arith.constant 0 : index
    %217 = vector.load %arg1[%c0_312, %c0_313, %c12, %c0_314] : memref<1x3x31x31xf32, #tpu.memory_space<vmem>>, vector<1x1x16x31xf32>
    %218 = vector.shape_cast %217 : vector<1x1x16x31xf32> to vector<16x31xf32>
    %c12_315 = arith.constant 12 : index
    %c0_316 = arith.constant 0 : index
    %c0_317 = arith.constant 0 : index
    %c0_318 = arith.constant 0 : index
    %219 = vector.load %arg2[%c12_315, %c0_316, %c0_317, %c0_318] : memref<16x3x31x96xf32, #tpu.memory_space<vmem>>, vector<1x1x31x96xf32>
    %220 = vector.shape_cast %219 : vector<1x1x31x96xf32> to vector<31x96xf32>
    %cst_319 = arith.constant dense<0.000000e+00> : vector<16x96xf32>
    %221 = tpu.matmul %218, %220, %cst_319 {dimension_numbers = #tpu.dot_dimension_numbers<[1], [0], [0], [1], [0, 0, 1, 1], [], []>} : vector<16x31xf32>, vector<31x96xf32>, vector<16x96xf32> -> vector<16x96xf32>
    %222 = arith.addf %216, %221 : vector<16x96xf32>
    %c0_320 = arith.constant 0 : index
    %c1_321 = arith.constant 1 : index
    %c12_322 = arith.constant 12 : index
    %c0_323 = arith.constant 0 : index
    %223 = vector.load %arg1[%c0_320, %c1_321, %c12_322, %c0_323] : memref<1x3x31x31xf32, #tpu.memory_space<vmem>>, vector<1x1x16x31xf32>
    %224 = vector.shape_cast %223 : vector<1x1x16x31xf32> to vector<16x31xf32>
    %c12_324 = arith.constant 12 : index
    %c1_325 = arith.constant 1 : index
    %c0_326 = arith.constant 0 : index
    %c0_327 = arith.constant 0 : index
    %225 = vector.load %arg2[%c12_324, %c1_325, %c0_326, %c0_327] : memref<16x3x31x96xf32, #tpu.memory_space<vmem>>, vector<1x1x31x96xf32>
    %226 = vector.shape_cast %225 : vector<1x1x31x96xf32> to vector<31x96xf32>
    %cst_328 = arith.constant dense<0.000000e+00> : vector<16x96xf32>
    %227 = tpu.matmul %224, %226, %cst_328 {dimension_numbers = #tpu.dot_dimension_numbers<[1], [0], [0], [1], [0, 0, 1, 1], [], []>} : vector<16x31xf32>, vector<31x96xf32>, vector<16x96xf32> -> vector<16x96xf32>
    %228 = arith.addf %222, %227 : vector<16x96xf32>
    %c0_329 = arith.constant 0 : index
    %c2_330 = arith.constant 2 : index
    %c12_331 = arith.constant 12 : index
    %c0_332 = arith.constant 0 : index
    %229 = vector.load %arg1[%c0_329, %c2_330, %c12_331, %c0_332] : memref<1x3x31x31xf32, #tpu.memory_space<vmem>>, vector<1x1x16x31xf32>
    %230 = vector.shape_cast %229 : vector<1x1x16x31xf32> to vector<16x31xf32>
    %c12_333 = arith.constant 12 : index
    %c2_334 = arith.constant 2 : index
    %c0_335 = arith.constant 0 : index
    %c0_336 = arith.constant 0 : index
    %231 = vector.load %arg2[%c12_333, %c2_334, %c0_335, %c0_336] : memref<16x3x31x96xf32, #tpu.memory_space<vmem>>, vector<1x1x31x96xf32>
    %232 = vector.shape_cast %231 : vector<1x1x31x96xf32> to vector<31x96xf32>
    %cst_337 = arith.constant dense<0.000000e+00> : vector<16x96xf32>
    %233 = tpu.matmul %230, %232, %cst_337 {dimension_numbers = #tpu.dot_dimension_numbers<[1], [0], [0], [1], [0, 0, 1, 1], [], []>} : vector<16x31xf32>, vector<31x96xf32>, vector<16x96xf32> -> vector<16x96xf32>
    %234 = arith.addf %228, %233 : vector<16x96xf32>
    %c0_338 = arith.constant 0 : index
    %c0_339 = arith.constant 0 : index
    %c13 = arith.constant 13 : index
    %c0_340 = arith.constant 0 : index
    %235 = vector.load %arg1[%c0_338, %c0_339, %c13, %c0_340] : memref<1x3x31x31xf32, #tpu.memory_space<vmem>>, vector<1x1x16x31xf32>
    %236 = vector.shape_cast %235 : vector<1x1x16x31xf32> to vector<16x31xf32>
    %c13_341 = arith.constant 13 : index
    %c0_342 = arith.constant 0 : index
    %c0_343 = arith.constant 0 : index
    %c0_344 = arith.constant 0 : index
    %237 = vector.load %arg2[%c13_341, %c0_342, %c0_343, %c0_344] : memref<16x3x31x96xf32, #tpu.memory_space<vmem>>, vector<1x1x31x96xf32>
    %238 = vector.shape_cast %237 : vector<1x1x31x96xf32> to vector<31x96xf32>
    %cst_345 = arith.constant dense<0.000000e+00> : vector<16x96xf32>
    %239 = tpu.matmul %236, %238, %cst_345 {dimension_numbers = #tpu.dot_dimension_numbers<[1], [0], [0], [1], [0, 0, 1, 1], [], []>} : vector<16x31xf32>, vector<31x96xf32>, vector<16x96xf32> -> vector<16x96xf32>
    %240 = arith.addf %234, %239 : vector<16x96xf32>
    %c0_346 = arith.constant 0 : index
    %c1_347 = arith.constant 1 : index
    %c13_348 = arith.constant 13 : index
    %c0_349 = arith.constant 0 : index
    %241 = vector.load %arg1[%c0_346, %c1_347, %c13_348, %c0_349] : memref<1x3x31x31xf32, #tpu.memory_space<vmem>>, vector<1x1x16x31xf32>
    %242 = vector.shape_cast %241 : vector<1x1x16x31xf32> to vector<16x31xf32>
    %c13_350 = arith.constant 13 : index
    %c1_351 = arith.constant 1 : index
    %c0_352 = arith.constant 0 : index
    %c0_353 = arith.constant 0 : index
    %243 = vector.load %arg2[%c13_350, %c1_351, %c0_352, %c0_353] : memref<16x3x31x96xf32, #tpu.memory_space<vmem>>, vector<1x1x31x96xf32>
    %244 = vector.shape_cast %243 : vector<1x1x31x96xf32> to vector<31x96xf32>
    %cst_354 = arith.constant dense<0.000000e+00> : vector<16x96xf32>
    %245 = tpu.matmul %242, %244, %cst_354 {dimension_numbers = #tpu.dot_dimension_numbers<[1], [0], [0], [1], [0, 0, 1, 1], [], []>} : vector<16x31xf32>, vector<31x96xf32>, vector<16x96xf32> -> vector<16x96xf32>
    %246 = arith.addf %240, %245 : vector<16x96xf32>
    %c0_355 = arith.constant 0 : index
    %c2_356 = arith.constant 2 : index
    %c13_357 = arith.constant 13 : index
    %c0_358 = arith.constant 0 : index
    %247 = vector.load %arg1[%c0_355, %c2_356, %c13_357, %c0_358] : memref<1x3x31x31xf32, #tpu.memory_space<vmem>>, vector<1x1x16x31xf32>
    %248 = vector.shape_cast %247 : vector<1x1x16x31xf32> to vector<16x31xf32>
    %c13_359 = arith.constant 13 : index
    %c2_360 = arith.constant 2 : index
    %c0_361 = arith.constant 0 : index
    %c0_362 = arith.constant 0 : index
    %249 = vector.load %arg2[%c13_359, %c2_360, %c0_361, %c0_362] : memref<16x3x31x96xf32, #tpu.memory_space<vmem>>, vector<1x1x31x96xf32>
    %250 = vector.shape_cast %249 : vector<1x1x31x96xf32> to vector<31x96xf32>
    %cst_363 = arith.constant dense<0.000000e+00> : vector<16x96xf32>
    %251 = tpu.matmul %248, %250, %cst_363 {dimension_numbers = #tpu.dot_dimension_numbers<[1], [0], [0], [1], [0, 0, 1, 1], [], []>} : vector<16x31xf32>, vector<31x96xf32>, vector<16x96xf32> -> vector<16x96xf32>
    %252 = arith.addf %246, %251 : vector<16x96xf32>
    %c0_364 = arith.constant 0 : index
    %c0_365 = arith.constant 0 : index
    %c14 = arith.constant 14 : index
    %c0_366 = arith.constant 0 : index
    %253 = vector.load %arg1[%c0_364, %c0_365, %c14, %c0_366] : memref<1x3x31x31xf32, #tpu.memory_space<vmem>>, vector<1x1x16x31xf32>
    %254 = vector.shape_cast %253 : vector<1x1x16x31xf32> to vector<16x31xf32>
    %c14_367 = arith.constant 14 : index
    %c0_368 = arith.constant 0 : index
    %c0_369 = arith.constant 0 : index
    %c0_370 = arith.constant 0 : index
    %255 = vector.load %arg2[%c14_367, %c0_368, %c0_369, %c0_370] : memref<16x3x31x96xf32, #tpu.memory_space<vmem>>, vector<1x1x31x96xf32>
    %256 = vector.shape_cast %255 : vector<1x1x31x96xf32> to vector<31x96xf32>
    %cst_371 = arith.constant dense<0.000000e+00> : vector<16x96xf32>
    %257 = tpu.matmul %254, %256, %cst_371 {dimension_numbers = #tpu.dot_dimension_numbers<[1], [0], [0], [1], [0, 0, 1, 1], [], []>} : vector<16x31xf32>, vector<31x96xf32>, vector<16x96xf32> -> vector<16x96xf32>
    %258 = arith.addf %252, %257 : vector<16x96xf32>
    %c0_372 = arith.constant 0 : index
    %c1_373 = arith.constant 1 : index
    %c14_374 = arith.constant 14 : index
    %c0_375 = arith.constant 0 : index
    %259 = vector.load %arg1[%c0_372, %c1_373, %c14_374, %c0_375] : memref<1x3x31x31xf32, #tpu.memory_space<vmem>>, vector<1x1x16x31xf32>
    %260 = vector.shape_cast %259 : vector<1x1x16x31xf32> to vector<16x31xf32>
    %c14_376 = arith.constant 14 : index
    %c1_377 = arith.constant 1 : index
    %c0_378 = arith.constant 0 : index
    %c0_379 = arith.constant 0 : index
    %261 = vector.load %arg2[%c14_376, %c1_377, %c0_378, %c0_379] : memref<16x3x31x96xf32, #tpu.memory_space<vmem>>, vector<1x1x31x96xf32>
    %262 = vector.shape_cast %261 : vector<1x1x31x96xf32> to vector<31x96xf32>
    %cst_380 = arith.constant dense<0.000000e+00> : vector<16x96xf32>
    %263 = tpu.matmul %260, %262, %cst_380 {dimension_numbers = #tpu.dot_dimension_numbers<[1], [0], [0], [1], [0, 0, 1, 1], [], []>} : vector<16x31xf32>, vector<31x96xf32>, vector<16x96xf32> -> vector<16x96xf32>
    %264 = arith.addf %258, %263 : vector<16x96xf32>
    %c0_381 = arith.constant 0 : index
    %c2_382 = arith.constant 2 : index
    %c14_383 = arith.constant 14 : index
    %c0_384 = arith.constant 0 : index
    %265 = vector.load %arg1[%c0_381, %c2_382, %c14_383, %c0_384] : memref<1x3x31x31xf32, #tpu.memory_space<vmem>>, vector<1x1x16x31xf32>
    %266 = vector.shape_cast %265 : vector<1x1x16x31xf32> to vector<16x31xf32>
    %c14_385 = arith.constant 14 : index
    %c2_386 = arith.constant 2 : index
    %c0_387 = arith.constant 0 : index
    %c0_388 = arith.constant 0 : index
    %267 = vector.load %arg2[%c14_385, %c2_386, %c0_387, %c0_388] : memref<16x3x31x96xf32, #tpu.memory_space<vmem>>, vector<1x1x31x96xf32>
    %268 = vector.shape_cast %267 : vector<1x1x31x96xf32> to vector<31x96xf32>
    %cst_389 = arith.constant dense<0.000000e+00> : vector<16x96xf32>
    %269 = tpu.matmul %266, %268, %cst_389 {dimension_numbers = #tpu.dot_dimension_numbers<[1], [0], [0], [1], [0, 0, 1, 1], [], []>} : vector<16x31xf32>, vector<31x96xf32>, vector<16x96xf32> -> vector<16x96xf32>
    %270 = arith.addf %264, %269 : vector<16x96xf32>
    %c0_390 = arith.constant 0 : index
    %c0_391 = arith.constant 0 : index
    %c15 = arith.constant 15 : index
    %c0_392 = arith.constant 0 : index
    %271 = vector.load %arg1[%c0_390, %c0_391, %c15, %c0_392] : memref<1x3x31x31xf32, #tpu.memory_space<vmem>>, vector<1x1x16x31xf32>
    %272 = vector.shape_cast %271 : vector<1x1x16x31xf32> to vector<16x31xf32>
    %c15_393 = arith.constant 15 : index
    %c0_394 = arith.constant 0 : index
    %c0_395 = arith.constant 0 : index
    %c0_396 = arith.constant 0 : index
    %273 = vector.load %arg2[%c15_393, %c0_394, %c0_395, %c0_396] : memref<16x3x31x96xf32, #tpu.memory_space<vmem>>, vector<1x1x31x96xf32>
    %274 = vector.shape_cast %273 : vector<1x1x31x96xf32> to vector<31x96xf32>
    %cst_397 = arith.constant dense<0.000000e+00> : vector<16x96xf32>
    %275 = tpu.matmul %272, %274, %cst_397 {dimension_numbers = #tpu.dot_dimension_numbers<[1], [0], [0], [1], [0, 0, 1, 1], [], []>} : vector<16x31xf32>, vector<31x96xf32>, vector<16x96xf32> -> vector<16x96xf32>
    %276 = arith.addf %270, %275 : vector<16x96xf32>
    %c0_398 = arith.constant 0 : index
    %c1_399 = arith.constant 1 : index
    %c15_400 = arith.constant 15 : index
    %c0_401 = arith.constant 0 : index
    %277 = vector.load %arg1[%c0_398, %c1_399, %c15_400, %c0_401] : memref<1x3x31x31xf32, #tpu.memory_space<vmem>>, vector<1x1x16x31xf32>
    %278 = vector.shape_cast %277 : vector<1x1x16x31xf32> to vector<16x31xf32>
    %c15_402 = arith.constant 15 : index
    %c1_403 = arith.constant 1 : index
    %c0_404 = arith.constant 0 : index
    %c0_405 = arith.constant 0 : index
    %279 = vector.load %arg2[%c15_402, %c1_403, %c0_404, %c0_405] : memref<16x3x31x96xf32, #tpu.memory_space<vmem>>, vector<1x1x31x96xf32>
    %280 = vector.shape_cast %279 : vector<1x1x31x96xf32> to vector<31x96xf32>
    %cst_406 = arith.constant dense<0.000000e+00> : vector<16x96xf32>
    %281 = tpu.matmul %278, %280, %cst_406 {dimension_numbers = #tpu.dot_dimension_numbers<[1], [0], [0], [1], [0, 0, 1, 1], [], []>} : vector<16x31xf32>, vector<31x96xf32>, vector<16x96xf32> -> vector<16x96xf32>
    %282 = arith.addf %276, %281 : vector<16x96xf32>
    %c0_407 = arith.constant 0 : index
    %c2_408 = arith.constant 2 : index
    %c15_409 = arith.constant 15 : index
    %c0_410 = arith.constant 0 : index
    %283 = vector.load %arg1[%c0_407, %c2_408, %c15_409, %c0_410] : memref<1x3x31x31xf32, #tpu.memory_space<vmem>>, vector<1x1x16x31xf32>
    %284 = vector.shape_cast %283 : vector<1x1x16x31xf32> to vector<16x31xf32>
    %c15_411 = arith.constant 15 : index
    %c2_412 = arith.constant 2 : index
    %c0_413 = arith.constant 0 : index
    %c0_414 = arith.constant 0 : index
    %285 = vector.load %arg2[%c15_411, %c2_412, %c0_413, %c0_414] : memref<16x3x31x96xf32, #tpu.memory_space<vmem>>, vector<1x1x31x96xf32>
    %286 = vector.shape_cast %285 : vector<1x1x31x96xf32> to vector<31x96xf32>
    %cst_415 = arith.constant dense<0.000000e+00> : vector<16x96xf32>
    %287 = tpu.matmul %284, %286, %cst_415 {dimension_numbers = #tpu.dot_dimension_numbers<[1], [0], [0], [1], [0, 0, 1, 1], [], []>} : vector<16x31xf32>, vector<31x96xf32>, vector<16x96xf32> -> vector<16x96xf32>
    %288 = arith.addf %282, %287 : vector<16x96xf32>
    %c0_416 = arith.constant 0 : index
    %c0_417 = arith.constant 0 : index
    %289 = vector.load %arg3[%c0_416, %c0_417] : memref<1x96xf32, #tpu.memory_space<vmem>>, vector<1x96xf32>
    %290 = vector.broadcast %289 : vector<1x96xf32> to vector<16x96xf32>
    %291 = arith.addf %288, %290 : vector<16x96xf32>
    %cst_418 = arith.constant 0.000000e+00 : f32
    %292 = vector.broadcast %cst_418 : f32 to vector<16x96xf32>
    %293 = arith.maximumf %291, %292 : vector<16x96xf32>
    %294 = vector.extract_strided_slice %293 {offsets = [0, 0], sizes = [15, 96], strides = [1, 1]} : vector<16x96xf32> to vector<15x96xf32>
    %295 = vector.extract_strided_slice %293 {offsets = [1, 0], sizes = [15, 96], strides = [1, 1]} : vector<16x96xf32> to vector<15x96xf32>
    %296 = arith.maximumf %294, %295 : vector<15x96xf32>
    %297 = vector.extract_strided_slice %296 {offsets = [0, 0], sizes = [15, 95], strides = [1, 1]} : vector<15x96xf32> to vector<15x95xf32>
    %298 = vector.extract_strided_slice %296 {offsets = [0, 1], sizes = [15, 95], strides = [1, 1]} : vector<15x96xf32> to vector<15x95xf32>
    %299 = arith.maximumf %297, %298 : vector<15x95xf32>
    %cst_419 = arith.constant 0.000000e+00 : f32
    %300 = vector.broadcast %cst_419 : f32 to vector<7x64xf32>
    %301 = vector.extract_strided_slice %299 {offsets = [0, 0], sizes = [7, 95], strides = [1, 1]} : vector<15x95xf32> to vector<7x95xf32>
    %c0_420 = arith.constant 0 : index
    %c0_421 = arith.constant 0 : index
    %c0_422 = arith.constant 0 : index
    %302 = vector.load %arg4[%c0_420, %c0_421, %c0_422] : memref<5x95x64xf32, #tpu.memory_space<vmem>>, vector<1x95x64xf32>
    %303 = vector.shape_cast %302 : vector<1x95x64xf32> to vector<95x64xf32>
    %cst_423 = arith.constant dense<0.000000e+00> : vector<7x64xf32>
    %304 = tpu.matmul %301, %303, %cst_423 {dimension_numbers = #tpu.dot_dimension_numbers<[1], [0], [0], [1], [0, 0, 1, 1], [], []>} : vector<7x95xf32>, vector<95x64xf32>, vector<7x64xf32> -> vector<7x64xf32>
    %305 = arith.addf %300, %304 : vector<7x64xf32>
    %306 = vector.extract_strided_slice %299 {offsets = [2, 0], sizes = [7, 95], strides = [1, 1]} : vector<15x95xf32> to vector<7x95xf32>
    %c1_424 = arith.constant 1 : index
    %c0_425 = arith.constant 0 : index
    %c0_426 = arith.constant 0 : index
    %307 = vector.load %arg4[%c1_424, %c0_425, %c0_426] : memref<5x95x64xf32, #tpu.memory_space<vmem>>, vector<1x95x64xf32>
    %308 = vector.shape_cast %307 : vector<1x95x64xf32> to vector<95x64xf32>
    %cst_427 = arith.constant dense<0.000000e+00> : vector<7x64xf32>
    %309 = tpu.matmul %306, %308, %cst_427 {dimension_numbers = #tpu.dot_dimension_numbers<[1], [0], [0], [1], [0, 0, 1, 1], [], []>} : vector<7x95xf32>, vector<95x64xf32>, vector<7x64xf32> -> vector<7x64xf32>
    %310 = arith.addf %305, %309 : vector<7x64xf32>
    %311 = vector.extract_strided_slice %299 {offsets = [4, 0], sizes = [7, 95], strides = [1, 1]} : vector<15x95xf32> to vector<7x95xf32>
    %c2_428 = arith.constant 2 : index
    %c0_429 = arith.constant 0 : index
    %c0_430 = arith.constant 0 : index
    %312 = vector.load %arg4[%c2_428, %c0_429, %c0_430] : memref<5x95x64xf32, #tpu.memory_space<vmem>>, vector<1x95x64xf32>
    %313 = vector.shape_cast %312 : vector<1x95x64xf32> to vector<95x64xf32>
    %cst_431 = arith.constant dense<0.000000e+00> : vector<7x64xf32>
    %314 = tpu.matmul %311, %313, %cst_431 {dimension_numbers = #tpu.dot_dimension_numbers<[1], [0], [0], [1], [0, 0, 1, 1], [], []>} : vector<7x95xf32>, vector<95x64xf32>, vector<7x64xf32> -> vector<7x64xf32>
    %315 = arith.addf %310, %314 : vector<7x64xf32>
    %316 = vector.extract_strided_slice %299 {offsets = [6, 0], sizes = [7, 95], strides = [1, 1]} : vector<15x95xf32> to vector<7x95xf32>
    %c3_432 = arith.constant 3 : index
    %c0_433 = arith.constant 0 : index
    %c0_434 = arith.constant 0 : index
    %317 = vector.load %arg4[%c3_432, %c0_433, %c0_434] : memref<5x95x64xf32, #tpu.memory_space<vmem>>, vector<1x95x64xf32>
    %318 = vector.shape_cast %317 : vector<1x95x64xf32> to vector<95x64xf32>
    %cst_435 = arith.constant dense<0.000000e+00> : vector<7x64xf32>
    %319 = tpu.matmul %316, %318, %cst_435 {dimension_numbers = #tpu.dot_dimension_numbers<[1], [0], [0], [1], [0, 0, 1, 1], [], []>} : vector<7x95xf32>, vector<95x64xf32>, vector<7x64xf32> -> vector<7x64xf32>
    %320 = arith.addf %315, %319 : vector<7x64xf32>
    %321 = vector.extract_strided_slice %299 {offsets = [8, 0], sizes = [7, 95], strides = [1, 1]} : vector<15x95xf32> to vector<7x95xf32>
    %c4_436 = arith.constant 4 : index
    %c0_437 = arith.constant 0 : index
    %c0_438 = arith.constant 0 : index
    %322 = vector.load %arg4[%c4_436, %c0_437, %c0_438] : memref<5x95x64xf32, #tpu.memory_space<vmem>>, vector<1x95x64xf32>
    %323 = vector.shape_cast %322 : vector<1x95x64xf32> to vector<95x64xf32>
    %cst_439 = arith.constant dense<0.000000e+00> : vector<7x64xf32>
    %324 = tpu.matmul %321, %323, %cst_439 {dimension_numbers = #tpu.dot_dimension_numbers<[1], [0], [0], [1], [0, 0, 1, 1], [], []>} : vector<7x95xf32>, vector<95x64xf32>, vector<7x64xf32> -> vector<7x64xf32>
    %325 = arith.addf %320, %324 : vector<7x64xf32>
    %c0_440 = arith.constant 0 : index
    %c0_441 = arith.constant 0 : index
    %326 = vector.load %arg5[%c0_440, %c0_441] : memref<1x64xf32, #tpu.memory_space<vmem>>, vector<1x64xf32>
    %327 = vector.broadcast %326 : vector<1x64xf32> to vector<7x64xf32>
    %328 = arith.addf %325, %327 : vector<7x64xf32>
    %cst_442 = arith.constant 0.000000e+00 : f32
    %329 = vector.broadcast %cst_442 : f32 to vector<7x64xf32>
    %330 = arith.maximumf %328, %329 : vector<7x64xf32>
    %331 = vector.extract_strided_slice %330 {offsets = [0, 0], sizes = [5, 64], strides = [1, 1]} : vector<7x64xf32> to vector<5x64xf32>
    %332 = vector.extract_strided_slice %330 {offsets = [2, 0], sizes = [5, 64], strides = [1, 1]} : vector<7x64xf32> to vector<5x64xf32>
    %333 = arith.maximumf %331, %332 : vector<5x64xf32>
    %334 = vector.extract_strided_slice %333 {offsets = [0, 0], sizes = [5, 63], strides = [1, 1]} : vector<5x64xf32> to vector<5x63xf32>
    %335 = vector.extract_strided_slice %333 {offsets = [0, 1], sizes = [5, 63], strides = [1, 1]} : vector<5x64xf32> to vector<5x63xf32>
    %336 = arith.maximumf %334, %335 : vector<5x63xf32>
    %337 = vector.extract_strided_slice %336 {offsets = [0, 0], sizes = [1, 63], strides = [1, 1]} : vector<5x63xf32> to vector<1x63xf32>
    %c0_443 = arith.constant 0 : index
    %c0_444 = arith.constant 0 : index
    %c0_445 = arith.constant 0 : index
    %338 = vector.load %arg6[%c0_443, %c0_444, %c0_445] : memref<2x63x32xf32, #tpu.memory_space<vmem>>, vector<1x63x32xf32>
    %339 = vector.shape_cast %338 : vector<1x63x32xf32> to vector<63x32xf32>
    %cst_446 = arith.constant dense<0.000000e+00> : vector<1x32xf32>
    %340 = tpu.matmul %337, %339, %cst_446 {dimension_numbers = #tpu.dot_dimension_numbers<[1], [0], [0], [1], [0, 0, 1, 1], [], []>} : vector<1x63xf32>, vector<63x32xf32>, vector<1x32xf32> -> vector<1x32xf32>
    %341 = vector.extract_strided_slice %336 {offsets = [4, 0], sizes = [1, 63], strides = [1, 1]} : vector<5x63xf32> to vector<1x63xf32>
    %c1_447 = arith.constant 1 : index
    %c0_448 = arith.constant 0 : index
    %c0_449 = arith.constant 0 : index
    %342 = vector.load %arg6[%c1_447, %c0_448, %c0_449] : memref<2x63x32xf32, #tpu.memory_space<vmem>>, vector<1x63x32xf32>
    %343 = vector.shape_cast %342 : vector<1x63x32xf32> to vector<63x32xf32>
    %cst_450 = arith.constant dense<0.000000e+00> : vector<1x32xf32>
    %344 = tpu.matmul %341, %343, %cst_450 {dimension_numbers = #tpu.dot_dimension_numbers<[1], [0], [0], [1], [0, 0, 1, 1], [], []>} : vector<1x63xf32>, vector<63x32xf32>, vector<1x32xf32> -> vector<1x32xf32>
    %345 = arith.addf %340, %344 : vector<1x32xf32>
    %c0_451 = arith.constant 0 : index
    %c0_452 = arith.constant 0 : index
    %346 = vector.load %arg7[%c0_451, %c0_452] : memref<1x32xf32, #tpu.memory_space<vmem>>, vector<1x32xf32>
    %347 = arith.addf %345, %346 : vector<1x32xf32>
    %cst_453 = arith.constant 0.000000e+00 : f32
    %348 = vector.broadcast %cst_453 : f32 to vector<1x32xf32>
    %349 = arith.maximumf %347, %348 : vector<1x32xf32>
    %c0_454 = arith.constant 0 : index
    %c0_455 = arith.constant 0 : index
    %350 = vector.load %arg8[%c0_454, %c0_455] : memref<32x16xf32, #tpu.memory_space<vmem>>, vector<32x16xf32>
    %cst_456 = arith.constant dense<0.000000e+00> : vector<1x16xf32>
    %351 = tpu.matmul %349, %350, %cst_456 {dimension_numbers = #tpu.dot_dimension_numbers<[1], [0], [0], [1], [0, 0, 1, 1], [], []>} : vector<1x32xf32>, vector<32x16xf32>, vector<1x16xf32> -> vector<1x16xf32>
    %c0_457 = arith.constant 0 : index
    %c0_458 = arith.constant 0 : index
    %352 = vector.load %arg9[%c0_457, %c0_458] : memref<1x16xf32, #tpu.memory_space<vmem>>, vector<1x16xf32>
    %353 = arith.addf %351, %352 : vector<1x16xf32>
    %cst_459 = arith.constant 0.000000e+00 : f32
    %354 = vector.broadcast %cst_459 : f32 to vector<1x16xf32>
    %355 = arith.maximumf %353, %354 : vector<1x16xf32>
    %c0_460 = arith.constant 0 : index
    %c0_461 = arith.constant 0 : index
    %356 = vector.load %arg10[%c0_460, %c0_461] : memref<16x1xf32, #tpu.memory_space<vmem>>, vector<16x1xf32>
    %cst_462 = arith.constant dense<0.000000e+00> : vector<1x1xf32>
    %357 = tpu.matmul %355, %356, %cst_462 {dimension_numbers = #tpu.dot_dimension_numbers<[1], [0], [0], [1], [0, 0, 1, 1], [], []>} : vector<1x16xf32>, vector<16x1xf32>, vector<1x1xf32> -> vector<1x1xf32>
    %c0_463 = arith.constant 0 : index
    %c0_464 = arith.constant 0 : index
    %358 = vector.load %arg11[%c0_463, %c0_464] : memref<1x1xf32, #tpu.memory_space<vmem>>, vector<1x1xf32>
    %359 = arith.addf %357, %358 : vector<1x1xf32>
    %cst_465 = arith.constant 0.000000e+00 : f32
    %360 = vector.broadcast %cst_465 : f32 to vector<1x1xf32>
    %361 = arith.subf %360, %359 : vector<1x1xf32>
    %362 = math.exp %361 : vector<1x1xf32>
    %cst_466 = arith.constant 1.000000e+00 : f32
    %363 = vector.broadcast %cst_466 : f32 to vector<1x1xf32>
    %364 = arith.addf %363, %362 : vector<1x1xf32>
    %365 = tpu.reciprocal %364 : vector<1x1xf32> -> vector<1x1xf32>
    %c0_467 = arith.constant 0 : index
    %c0_468 = arith.constant 0 : index
    %c0_469 = arith.constant 0 : index
    %366 = vector.load %arg12[%c0_467, %c0_468, %c0_469] : memref<1x1x1xf32, #tpu.memory_space<vmem>>, vector<1x1x1xf32>
    %367 = vector.shape_cast %366 : vector<1x1x1xf32> to vector<1x1xf32>
    %368 = vector.shape_cast %365 : vector<1x1xf32> to vector<1x1x1xf32>
    tpu.vector_store %arg12[%c0_467, %c0_468, %c0_469], %368 {strides = array<i32>} : memref<1x1x1xf32, #tpu.memory_space<vmem>>, vector<1x1x1xf32>,
    return
  }
  func.func @transform_0(%arg0: i32) -> (i32, i32, i32, i32) {
    %c0_i32 = arith.constant 0 : i32
    %c0_i32_0 = arith.constant 0 : i32
    %c0_i32_1 = arith.constant 0 : i32
    %c0_i32_2 = arith.constant 0 : i32
    return %arg0, %c0_i32, %c0_i32_0, %c0_i32_1 : i32, i32, i32, i32
  }
  func.func @transform_1(%arg0: i32) -> (i32, i32, i32, i32) {
    %c0_i32 = arith.constant 0 : i32
    %c0_i32_0 = arith.constant 0 : i32
    %c0_i32_1 = arith.constant 0 : i32
    %c0_i32_2 = arith.constant 0 : i32
    %c0_i32_3 = arith.constant 0 : i32
    return %c0_i32, %c0_i32_0, %c0_i32_1, %c0_i32_2 : i32, i32, i32, i32
  }
  func.func @transform_2(%arg0: i32) -> (i32, i32) {
    %c0_i32 = arith.constant 0 : i32
    %c0_i32_0 = arith.constant 0 : i32
    %c0_i32_1 = arith.constant 0 : i32
    return %c0_i32, %c0_i32_0 : i32, i32
  }
  func.func @transform_3(%arg0: i32) -> (i32, i32, i32) {
    %c0_i32 = arith.constant 0 : i32
    %c0_i32_0 = arith.constant 0 : i32
    %c0_i32_1 = arith.constant 0 : i32
    %c0_i32_2 = arith.constant 0 : i32
    return %c0_i32, %c0_i32_0, %c0_i32_1 : i32, i32, i32
  }
  func.func @transform_4(%arg0: i32) -> (i32, i32) {
    %c0_i32 = arith.constant 0 : i32
    %c0_i32_0 = arith.constant 0 : i32
    %c0_i32_1 = arith.constant 0 : i32
    return %c0_i32, %c0_i32_0 : i32, i32
  }
  func.func @transform_5(%arg0: i32) -> (i32, i32, i32) {
    %c0_i32 = arith.constant 0 : i32
    %c0_i32_0 = arith.constant 0 : i32
    %c0_i32_1 = arith.constant 0 : i32
    %c0_i32_2 = arith.constant 0 : i32
    return %c0_i32, %c0_i32_0, %c0_i32_1 : i32, i32, i32
  }
  func.func @transform_6(%arg0: i32) -> (i32, i32) {
    %c0_i32 = arith.constant 0 : i32
    %c0_i32_0 = arith.constant 0 : i32
    %c0_i32_1 = arith.constant 0 : i32
    return %c0_i32, %c0_i32_0 : i32, i32
  }
  func.func @transform_7(%arg0: i32) -> (i32, i32) {
    %c0_i32 = arith.constant 0 : i32
    %c0_i32_0 = arith.constant 0 : i32
    %c0_i32_1 = arith.constant 0 : i32
    return %c0_i32, %c0_i32_0 : i32, i32
  }
  func.func @transform_8(%arg0: i32) -> (i32, i32) {
    %c0_i32 = arith.constant 0 : i32
    %c0_i32_0 = arith.constant 0 : i32
    %c0_i32_1 = arith.constant 0 : i32
    return %c0_i32, %c0_i32_0 : i32, i32
  }
  func.func @transform_9(%arg0: i32) -> (i32, i32) {
    %c0_i32 = arith.constant 0 : i32
    %c0_i32_0 = arith.constant 0 : i32
    %c0_i32_1 = arith.constant 0 : i32
    return %c0_i32, %c0_i32_0 : i32, i32
  }
  func.func @transform_10(%arg0: i32) -> (i32, i32) {
    %c0_i32 = arith.constant 0 : i32
    %c0_i32_0 = arith.constant 0 : i32
    %c0_i32_1 = arith.constant 0 : i32
    return %c0_i32, %c0_i32_0 : i32, i32
  }
  func.func @transform_11(%arg0: i32) -> (i32, i32, i32) {
    %c0_i32 = arith.constant 0 : i32
    %c0_i32_0 = arith.constant 0 : i32
    %c0_i32_1 = arith.constant 0 : i32
    return %arg0, %c0_i32, %c0_i32_0 : i32, i32, i32
  }
}

</mosaic_0001>

<llo_original>
// kernel: classification_forward.1
$region0: #{classification_forward.1}
  #allocation0 [shape = 'u32[]', space=smem, size = 0x4, offset = 0x4, fixed_abs, tag = 'smem constant byte address 0x4 - core index']
  #allocation1 [shape = 'u32[144,128]{1,0:T(1,128)}', space=vmem, size = 0x12000, scoped, tag = 'internal scratch']
  #allocation2 [shape = 'f32[1,1]{1,0:T(1,128)S(1)}', space=vmem, size = 0x200, scoped, tag = 'scoped memory for classification_forward.1']
  %s0 = inlined_call_operand.vmem [shape: f32[2,3,31,31], index: 0, kind: input, shape index: {}]
  %s1 = inlined_call_operand.vmem [shape: f32[16,3,31,96], index: 1, kind: input, shape index: {}]
  %s2 = inlined_call_operand.vmem [shape: f32[1,96], index: 2, kind: input, shape index: {}]
  %s3 = inlined_call_operand.vmem [shape: f32[5,95,64], index: 3, kind: input, shape index: {}]
  %s4 = inlined_call_operand.vmem [shape: f32[1,64], index: 4, kind: input, shape index: {}]
  %s5 = inlined_call_operand.vmem [shape: f32[2,63,32], index: 5, kind: input, shape index: {}]
  %s6 = inlined_call_operand.vmem [shape: f32[1,32], index: 6, kind: input, shape index: {}]
  %s7 = inlined_call_operand.vmem [shape: f32[32,16], index: 7, kind: input, shape index: {}]
  %s8 = inlined_call_operand.vmem [shape: f32[1,16], index: 8, kind: input, shape index: {}]
  %s9 = inlined_call_operand.vmem [shape: f32[16,1], index: 9, kind: input, shape index: {}]
  %s10 = inlined_call_operand.<no memory space> [shape: f32[1,1], index: 10, kind: input, shape index: {}]
  %s11 = inlined_call_operand.vmem [shape: f32[2,1,1], index: 11, kind: output, shape index: {}]
  %s12 = sld [smem:[#allocation0]]
  $region77: #{classification_forward.1} parent=0
    _
  %s14 = ssub.s32 1, %s12
  %s15 = scalar_select 0, %s14, %s12
  %v16 = vstv %s10
  %17 = vst [vmem:[#allocation2] sm:$0x1] %v16
  loop: start=0, step=1, limit=4
  $region2: #{classification_forward.1} parent=0 // loop_pre_header
    _
  $region3: #{classification_forward.1} parent=0 // loop_header
    %s19 = sphi 0, %s23
    %p20 = scmp.ge.s32.totalorder %s19, 4
    %s29 = sphi 0, %s31
    %s32 = sphi 0, %s29
    %s33 = sphi 0, %s32
    %s49 = sphi 0, %s33
    %s53 = sphi 0, %s53
    %s55 = sphi 0, %s53
    %s56 = sphi 0, %s55
    %s70 = sphi 0, %s56
    %s74 = sphi 0, %s74
    %s76 = sphi 0, %s74
    %s77 = sphi 0, %s76
    %s91 = sphi 0, %s77
    %s95 = sphi 0, %s95
    %s97 = sphi 0, %s95
    %s98 = sphi 0, %s97
    %s112 = sphi 0, %s98
    %s116 = sphi 0, %s116
    %s118 = sphi 0, %s116
    %s119 = sphi 0, %s118
    %s133 = sphi 0, %s119
    %s137 = sphi 0, %s137
    %s139 = sphi 0, %s137
    %s140 = sphi 0, %s139
    %s154 = sphi 0, %s140
    %s158 = sphi 0, %s158
    %s160 = sphi 0, %s158
    %s161 = sphi 0, %s160
    %s175 = sphi 0, %s161
    %s179 = sphi 0, %s179
    %s181 = sphi 0, %s179
    %s182 = sphi 0, %s181
    %s196 = sphi 0, %s182
    %s200 = sphi 0, %s200
    %s202 = sphi 0, %s200
    %s203 = sphi 0, %s202
    %s217 = sphi 0, %s203
    %s221 = sphi 0, %s221
    %s223 = sphi 0, %s221
    %s224 = sphi 0, %s223
    %s238 = sphi 0, %s224
    %s242 = sphi 0, %s242
    %s244 = sphi 0, %s242
    %s245 = sphi 0, %s244
    %s259 = sphi 0, %s245
    %s265 = sphi 0, %s267
    %s268 = sphi 0, %s265
    %s269 = sphi 0, %s268
    %s285 = sphi 0, %s269
  $region4: #{classification_forward.1} parent=0 // loop_header_branch
    %22 = sbr.rel (%p20) target = $region8
  $region5: #{classification_forward.1} parent=0 // loop_body
    %s24 = ssub.s32 %s19, 1
    %s25 = ssub.s32 %s19, 2
    %s26 = sadd.s32 %s19, 1
    %s27 = ssub.s32 %s19, %s26
    %p28 = scmp.eq.s32.totalorder %s27, 0
    %s30 = sadd.s32 %s29, 1
    %s31 = scalar_select %p28, %s29, %s30
    %p34 = pneg %p28
    %p35 = scmp.eq.s32.totalorder %s19, 1
    %p36 = por %p34, %p35
    %p37 = scmp.ne.s32.totalorder %s29, %s32
    %p38 = scmp.eq.s32.totalorder %s19, 0
    %p39 = por %p37, %p38
    %p40 = scmp.ne.s32.totalorder %s29, %s32
    %p41 = scmp.eq.s32.totalorder %s24, 1
    %p42 = por %p40, %p41
    %p43 = scmp.ne.s32.totalorder %s32, %s33
    %p44 = scmp.eq.s32.totalorder %s24, 0
    %p45 = por %p43, %p44
    %p46 = scmp.ne.s32.totalorder %s32, %s33
    %p47 = scmp.eq.s32.totalorder %s25, 1
    %p48 = por %p46, %p47
    %p50 = scmp.ne.s32.totalorder %s33, %s49
    %p51 = scmp.eq.s32.totalorder %s25, 0
    %p52 = por %p50, %p51
    %s54 = sadd.s32 %s53, 1
    %p57 = scmp.eq.s32.totalorder %s19, 1
    %p58 = scmp.ne.s32.totalorder %s53, %s55
    %p59 = scmp.eq.s32.totalorder %s19, 0
    %p60 = por %p58, %p59
    %p61 = scmp.ne.s32.totalorder %s53, %s55
    %p62 = scmp.eq.s32.totalorder %s24, 1
    %p63 = por %p61, %p62
    %p64 = scmp.ne.s32.totalorder %s55, %s56
    %p65 = scmp.eq.s32.totalorder %s24, 0
    %p66 = por %p64, %p65
    %p67 = scmp.ne.s32.totalorder %s55, %s56
    %p68 = scmp.eq.s32.totalorder %s25, 1
    %p69 = por %p67, %p68
    %p71 = scmp.ne.s32.totalorder %s56, %s70
    %p72 = scmp.eq.s32.totalorder %s25, 0
    %p73 = por %p71, %p72
    %s75 = sadd.s32 %s74, 1
    %p78 = scmp.eq.s32.totalorder %s19, 1
    %p79 = scmp.ne.s32.totalorder %s74, %s76
    %p80 = scmp.eq.s32.totalorder %s19, 0
    %p81 = por %p79, %p80
    %p82 = scmp.ne.s32.totalorder %s74, %s76
    %p83 = scmp.eq.s32.totalorder %s24, 1
    %p84 = por %p82, %p83
    %p85 = scmp.ne.s32.totalorder %s76, %s77
    %p86 = scmp.eq.s32.totalorder %s24, 0
    %p87 = por %p85, %p86
    %p88 = scmp.ne.s32.totalorder %s76, %s77
    %p89 = scmp.eq.s32.totalorder %s25, 1
    %p90 = por %p88, %p89
    %p92 = scmp.ne.s32.totalorder %s77, %s91
    %p93 = scmp.eq.s32.totalorder %s25, 0
    %p94 = por %p92, %p93
    %s96 = sadd.s32 %s95, 1
    %p99 = scmp.eq.s32.totalorder %s19, 1
    %p100 = scmp.ne.s32.totalorder %s95, %s97
    %p101 = scmp.eq.s32.totalorder %s19, 0
    %p102 = por %p100, %p101
    %p103 = scmp.ne.s32.totalorder %s95, %s97
    %p104 = scmp.eq.s32.totalorder %s24, 1
    %p105 = por %p103, %p104
    %p106 = scmp.ne.s32.totalorder %s97, %s98
    %p107 = scmp.eq.s32.totalorder %s24, 0
    %p108 = por %p106, %p107
    %p109 = scmp.ne.s32.totalorder %s97, %s98
    %p110 = scmp.eq.s32.totalorder %s25, 1
    %p111 = por %p109, %p110
    %p113 = scmp.ne.s32.totalorder %s98, %s112
    %p114 = scmp.eq.s32.totalorder %s25, 0
    %p115 = por %p113, %p114
    %s117 = sadd.s32 %s116, 1
    %p120 = scmp.eq.s32.totalorder %s19, 1
    %p121 = scmp.ne.s32.totalorder %s116, %s118
    %p122 = scmp.eq.s32.totalorder %s19, 0
    %p123 = por %p121, %p122
    %p124 = scmp.ne.s32.totalorder %s116, %s118
    %p125 = scmp.eq.s32.totalorder %s24, 1
    %p126 = por %p124, %p125
    %p127 = scmp.ne.s32.totalorder %s118, %s119
    %p128 = scmp.eq.s32.totalorder %s24, 0
    %p129 = por %p127, %p128
    %p130 = scmp.ne.s32.totalorder %s118, %s119
    %p131 = scmp.eq.s32.totalorder %s25, 1
    %p132 = por %p130, %p131
    %p134 = scmp.ne.s32.totalorder %s119, %s133
    %p135 = scmp.eq.s32.totalorder %s25, 0
    %p136 = por %p134, %p135
    %s138 = sadd.s32 %s137, 1
    %p141 = scmp.eq.s32.totalorder %s19, 1
    %p142 = scmp.ne.s32.totalorder %s137, %s139
    %p143 = scmp.eq.s32.totalorder %s19, 0
    %p144 = por %p142, %p143
    %p145 = scmp.ne.s32.totalorder %s137, %s139
    %p146 = scmp.eq.s32.totalorder %s24, 1
    %p147 = por %p145, %p146
    %p148 = scmp.ne.s32.totalorder %s139, %s140
    %p149 = scmp.eq.s32.totalorder %s24, 0
    %p150 = por %p148, %p149
    %p151 = scmp.ne.s32.totalorder %s139, %s140
    %p152 = scmp.eq.s32.totalorder %s25, 1
    %p153 = por %p151, %p152
    %p155 = scmp.ne.s32.totalorder %s140, %s154
    %p156 = scmp.eq.s32.totalorder %s25, 0
    %p157 = por %p155, %p156
    %s159 = sadd.s32 %s158, 1
    %p162 = scmp.eq.s32.totalorder %s19, 1
    %p163 = scmp.ne.s32.totalorder %s158, %s160
    %p164 = scmp.eq.s32.totalorder %s19, 0
    %p165 = por %p163, %p164
    %p166 = scmp.ne.s32.totalorder %s158, %s160
    %p167 = scmp.eq.s32.totalorder %s24, 1
    %p168 = por %p166, %p167
    %p169 = scmp.ne.s32.totalorder %s160, %s161
    %p170 = scmp.eq.s32.totalorder %s24, 0
    %p171 = por %p169, %p170
    %p172 = scmp.ne.s32.totalorder %s160, %s161
    %p173 = scmp.eq.s32.totalorder %s25, 1
    %p174 = por %p172, %p173
    %p176 = scmp.ne.s32.totalorder %s161, %s175
    %p177 = scmp.eq.s32.totalorder %s25, 0
    %p178 = por %p176, %p177
    %s180 = sadd.s32 %s179, 1
    %p183 = scmp.eq.s32.totalorder %s19, 1
    %p184 = scmp.ne.s32.totalorder %s179, %s181
    %p185 = scmp.eq.s32.totalorder %s19, 0
    %p186 = por %p184, %p185
    %p187 = scmp.ne.s32.totalorder %s179, %s181
    %p188 = scmp.eq.s32.totalorder %s24, 1
    %p189 = por %p187, %p188
    %p190 = scmp.ne.s32.totalorder %s181, %s182
    %p191 = scmp.eq.s32.totalorder %s24, 0
    %p192 = por %p190, %p191
    %p193 = scmp.ne.s32.totalorder %s181, %s182
    %p194 = scmp.eq.s32.totalorder %s25, 1
    %p195 = por %p193, %p194
    %p197 = scmp.ne.s32.totalorder %s182, %s196
    %p198 = scmp.eq.s32.totalorder %s25, 0
    %p199 = por %p197, %p198
    %s201 = sadd.s32 %s200, 1
    %p204 = scmp.eq.s32.totalorder %s19, 1
    %p205 = scmp.ne.s32.totalorder %s200, %s202
    %p206 = scmp.eq.s32.totalorder %s19, 0
    %p207 = por %p205, %p206
    %p208 = scmp.ne.s32.totalorder %s200, %s202
    %p209 = scmp.eq.s32.totalorder %s24, 1
    %p210 = por %p208, %p209
    %p211 = scmp.ne.s32.totalorder %s202, %s203
    %p212 = scmp.eq.s32.totalorder %s24, 0
    %p213 = por %p211, %p212
    %p214 = scmp.ne.s32.totalorder %s202, %s203
    %p215 = scmp.eq.s32.totalorder %s25, 1
    %p216 = por %p214, %p215
    %p218 = scmp.ne.s32.totalorder %s203, %s217
    %p219 = scmp.eq.s32.totalorder %s25, 0
    %p220 = por %p218, %p219
    %s222 = sadd.s32 %s221, 1
    %p225 = scmp.eq.s32.totalorder %s19, 1
    %p226 = scmp.ne.s32.totalorder %s221, %s223
    %p227 = scmp.eq.s32.totalorder %s19, 0
    %p228 = por %p226, %p227
    %p229 = scmp.ne.s32.totalorder %s221, %s223
    %p230 = scmp.eq.s32.totalorder %s24, 1
    %p231 = por %p229, %p230
    %p232 = scmp.ne.s32.totalorder %s223, %s224
    %p233 = scmp.eq.s32.totalorder %s24, 0
    %p234 = por %p232, %p233
    %p235 = scmp.ne.s32.totalorder %s223, %s224
    %p236 = scmp.eq.s32.totalorder %s25, 1
    %p237 = por %p235, %p236
    %p239 = scmp.ne.s32.totalorder %s224, %s238
    %p240 = scmp.eq.s32.totalorder %s25, 0
    %p241 = por %p239, %p240
    %s243 = sadd.s32 %s242, 1
    %p246 = scmp.eq.s32.totalorder %s19, 1
    %p247 = scmp.ne.s32.totalorder %s242, %s244
    %p248 = scmp.eq.s32.totalorder %s19, 0
    %p249 = por %p247, %p248
    %p250 = scmp.ne.s32.totalorder %s242, %s244
    %p251 = scmp.eq.s32.totalorder %s24, 1
    %p252 = por %p250, %p251
    %p253 = scmp.ne.s32.totalorder %s244, %s245
    %p254 = scmp.eq.s32.totalorder %s24, 0
    %p255 = por %p253, %p254
    %p256 = scmp.ne.s32.totalorder %s244, %s245
    %p257 = scmp.eq.s32.totalorder %s25, 1
    %p258 = por %p256, %p257
    %p260 = scmp.ne.s32.totalorder %s245, %s259
    %p261 = scmp.eq.s32.totalorder %s25, 0
    %p262 = por %p260, %p261
    %s263 = ssub.s32 %s19, %s26
    %p264 = scmp.eq.s32.totalorder %s263, 0
    %s266 = sadd.s32 %s265, 1
    %s267 = scalar_select %p264, %s265, %s266
    %p270 = pneg %p264
    %p271 = scmp.eq.s32.totalorder %s19, 1
    %p272 = por %p270, %p271
    %p273 = scmp.ne.s32.totalorder %s265, %s268
    %p274 = scmp.eq.s32.totalorder %s19, 0
    %p275 = por %p273, %p274
    %p276 = scmp.ne.s32.totalorder %s265, %s268
    %p277 = scmp.eq.s32.totalorder %s24, 1
    %p278 = por %p276, %p277
    %p279 = scmp.ne.s32.totalorder %s268, %s269
    %p280 = scmp.eq.s32.totalorder %s24, 0
    %p281 = por %p279, %p280
    %p282 = scmp.ne.s32.totalorder %s268, %s269
    %p283 = scmp.eq.s32.totalorder %s25, 1
    %p284 = por %p282, %p283
    %p286 = scmp.ne.s32.totalorder %s269, %s285
    %p287 = scmp.eq.s32.totalorder %s25, 0
    %p288 = por %p286, %p287
    %p289 = scmp.le.s32.totalorder 1, %s19
    %p290 = scmp.lt.s32.totalorder %s19, 3
    %p291 = pnand %p289, %p290
    %p292 = pneg %p291
    // Predicated region
    $region9: #{classification_forward.1} parent=5 // pred_check
      _
    $region10: #{classification_forward.1} parent=5 // pred_check_branch
      %294 = sbr.rel (%p291) target = $region12
    $region11: #{classification_forward.1} parent=5 // pred_region
      %s295 = ssub.s32 %s19, 1
      // Predicated region
      $region13: #{classification_forward.1} parent=11 // pred_check
        %p296 = pneg %p66
      $region14: #{classification_forward.1} parent=11 // pred_check_branch
        %298 = sbr.rel (%p296) target = $region16
      $region15: #{classification_forward.1} parent=11 // pred_region
        _
      $region16: #{classification_forward.1} parent=11 // pred_fallthru
        _
      // Predicated region
      $region17: #{classification_forward.1} parent=11 // pred_check
        %p299 = pneg %p87
      $region18: #{classification_forward.1} parent=11 // pred_check_branch
        %301 = sbr.rel (%p299) target = $region20
      $region19: #{classification_forward.1} parent=11 // pred_region
        _
      $region20: #{classification_forward.1} parent=11 // pred_fallthru
        _
      // Predicated region
      $region21: #{classification_forward.1} parent=11 // pred_check
        %p302 = pneg %p108
      $region22: #{classification_forward.1} parent=11 // pred_check_branch
        %304 = sbr.rel (%p302) target = $region24
      $region23: #{classification_forward.1} parent=11 // pred_region
        _
      $region24: #{classification_forward.1} parent=11 // pred_fallthru
        _
      // Predicated region
      $region25: #{classification_forward.1} parent=11 // pred_check
        %p305 = pneg %p129
      $region26: #{classification_forward.1} parent=11 // pred_check_branch
        %307 = sbr.rel (%p305) target = $region28
      $region27: #{classification_forward.1} parent=11 // pred_region
        _
      $region28: #{classification_forward.1} parent=11 // pred_fallthru
        _
      // Predicated region
      $region29: #{classification_forward.1} parent=11 // pred_check
        %p308 = pneg %p150
      $region30: #{classification_forward.1} parent=11 // pred_check_branch
        %310 = sbr.rel (%p308) target = $region32
      $region31: #{classification_forward.1} parent=11 // pred_region
        _
      $region32: #{classification_forward.1} parent=11 // pred_fallthru
        _
      // Predicated region
      $region33: #{classification_forward.1} parent=11 // pred_check
        %p311 = pneg %p171
      $region34: #{classification_forward.1} parent=11 // pred_check_branch
        %313 = sbr.rel (%p311) target = $region36
      $region35: #{classification_forward.1} parent=11 // pred_region
        _
      $region36: #{classification_forward.1} parent=11 // pred_fallthru
        _
      // Predicated region
      $region37: #{classification_forward.1} parent=11 // pred_check
        %p314 = pneg %p192
      $region38: #{classification_forward.1} parent=11 // pred_check_branch
        %316 = sbr.rel (%p314) target = $region40
      $region39: #{classification_forward.1} parent=11 // pred_region
        _
      $region40: #{classification_forward.1} parent=11 // pred_fallthru
        _
      // Predicated region
      $region41: #{classification_forward.1} parent=11 // pred_check
        %p317 = pneg %p213
      $region42: #{classification_forward.1} parent=11 // pred_check_branch
        %319 = sbr.rel (%p317) target = $region44
      $region43: #{classification_forward.1} parent=11 // pred_region
        _
      $region44: #{classification_forward.1} parent=11 // pred_fallthru
        _
      // Predicated region
      $region45: #{classification_forward.1} parent=11 // pred_check
        %p320 = pneg %p234
      $region46: #{classification_forward.1} parent=11 // pred_check_branch
        %322 = sbr.rel (%p320) target = $region48
      $region47: #{classification_forward.1} parent=11 // pred_region
        _
      $region48: #{classification_forward.1} parent=11 // pred_fallthru
        _
      // Predicated region
      $region49: #{classification_forward.1} parent=11 // pred_check
        %p323 = pneg %p255
      $region50: #{classification_forward.1} parent=11 // pred_check_branch
        %325 = sbr.rel (%p323) target = $region52
      $region51: #{classification_forward.1} parent=11 // pred_region
        _
      $region52: #{classification_forward.1} parent=11 // pred_fallthru
        _
    $region12: #{classification_forward.1} parent=5 // pred_fallthru
      _
    %p326 = scmp.lt.s32.totalorder %s19, 2
    // Predicated region
    $region53: #{classification_forward.1} parent=5 // pred_check
      %p327 = pneg %p326
    $region54: #{classification_forward.1} parent=5 // pred_check_branch
      %329 = sbr.rel (%p327) target = $region56
    $region55: #{classification_forward.1} parent=5 // pred_region
      // Predicated region
      $region57: #{classification_forward.1} parent=55 // pred_check
        %p330 = pneg %p39
      $region58: #{classification_forward.1} parent=55 // pred_check_branch
        %332 = sbr.rel (%p330) target = $region60
      $region59: #{classification_forward.1} parent=55 // pred_region
        %p333 = scmp.lt.s32.totalorder %s19, 1
        %s334 = scalar_select %p333, %s19, 1
        %s335 = smul.addr %s334, 12
        %s336 = smul.addr %s335, 8
        %s337 = scalar_lea.vmem %s0, %s336
      $region60: #{classification_forward.1} parent=55 // pred_fallthru
        _
    $region56: #{classification_forward.1} parent=5 // pred_fallthru
      _
    %p338 = scmp.le.s32.totalorder 1, %s19
    %p339 = scmp.lt.s32.totalorder %s19, 3
    %p340 = pnand %p338, %p339
    %p341 = pneg %p340
    // Predicated region
    $region61: #{classification_forward.1} parent=5 // pred_check
      _
    $region62: #{classification_forward.1} parent=5 // pred_check_branch
      %343 = sbr.rel (%p340) target = $region64
    $region63: #{classification_forward.1} parent=5 // pred_region
      %s344 = ssub.s32 %s19, 1
      %p345 = scmp.lt.s32.totalorder %s24, 1
      %s346 = scalar_select %p345, %s24, 1
      %s347 = smul.addr %s346, 12
      %s348 = smul.addr %s347, 8
      %s349 = scalar_lea.vmem %s0, %s348
      %p350 = pneg %p45
      %p351 = pneg %p42
      %p352 = pneg %p66
      %p353 = pneg %p63
      %p354 = pneg %p87
      %p355 = pneg %p84
      %p356 = pneg %p108
      %p357 = pneg %p105
      %p358 = pneg %p129
      %p359 = pneg %p126
      %p360 = pneg %p150
      %p361 = pneg %p147
      %p362 = pneg %p171
      %p363 = pneg %p168
      %p364 = pneg %p192
      %p365 = pneg %p189
      %p366 = pneg %p213
      %p367 = pneg %p210
      %p368 = pneg %p234
      %p369 = pneg %p231
      %p370 = pneg %p255
      %p371 = pneg %p252
      %p372 = pneg %p281
      %p373 = pneg %p278
      %p374 = scmp.lt.s32.totalorder %s24, 1
      %s375 = scalar_select %p374, %s24, 1
      %s376 = scalar_lea.vmem %s11, %s375
      %p377 = scmp.lt.s32.totalorder %s24, 1
      %s378 = scalar_select %p377, %s24, 1
      %s379 = smul.addr %s378, 12
      %s380 = smul.addr %s379, 8
      %s381 = scalar_lea.vmem %s0, %s380
      %p382 = scmp.lt.s32.totalorder %s24, 1
      %s383 = scalar_select %p382, %s24, 1
      %s384 = scalar_lea.vmem %s11, %s383
      %v385 = vld [vmem:[%s381] sm:$0xff]
      %v386 = vld [vmem:[%s381 + $0x8] sm:$0xff]
      %v387 = vld [vmem:[%s1] sm:$0xff]
      %v388 = vld [vmem:[%s1 + $0x8] sm:$0xff]
      %v389 = vld [vmem:[%s1 + $0x10] sm:$0xff]
      %v390 = vld [vmem:[%s1 + $0x18] sm:$0x7f]
      %s391 = scalar_lea.vmem %s381, 32
      %v392 = vld [vmem:[%s391] sm:$0xff]
      %v393 = vld [vmem:[%s391 + $0x8] sm:$0xff]
      %s394 = scalar_lea.vmem %s1, 32
      %v395 = vld [vmem:[%s394] sm:$0xff]
      %v396 = vld [vmem:[%s394 + $0x8] sm:$0xff]
      %v397 = vld [vmem:[%s394 + $0x10] sm:$0xff]
      %v398 = vld [vmem:[%s394 + $0x18] sm:$0x7f]
      %vm399 = vcmask 252928
      %v401 = vsel %vm399, %v392, 0
      %v404 = vsel %vm399, %v393, 0
      %vm406 = vcmask 1046528
      %v408 = vsel %vm406, %v398, 0
      %410 = vmatprep.subr.mxu0 0.0
      %411 = vmatpush1.msra.mxu0 0.0
      %412 = vmatprep.subr.mxu0 0.0
      %413 = vmatpush1.msra.mxu0 0.0
      %414 = vmatprep.subr.mxu0 0.0
      %415 = vmatpush1.msra.mxu0 0.0
      %416 = vmatprep.subr.mxu0 0.0
      %417 = vmatpush1.msra.mxu0 0.0
      %418 = vmatprep.subr.mxu0 0.0
      %419 = vmatpush1.msra.mxu0 0.0
      %420 = vmatprep.subr.mxu0 0.0
      %421 = vmatpush1.msra.mxu0 0.0
      %422 = vmatprep.subr.mxu0 0.0
      %423 = vmatpush1.msra.mxu0 0.0
      %424 = vmatprep.subr.mxu0 0.0
      %425 = vmatpush1.msra.mxu0 0.0
      %426 = vmatprep.subr.mxu0 0.0
      %427 = vmatpush1.msra.mxu0 0.0
      %428 = vmatprep.subr.mxu0 0.0
      %429 = vmatpush1.msra.mxu0 0.0
      %430 = vmatprep.subr.mxu0 0.0
      %431 = vmatpush1.msra.mxu0 0.0
      %432 = vmatprep.subr.mxu0 0.0
      %433 = vmatpush1.msra.mxu0 0.0
      %434 = vmatprep.subr.mxu0 0.0
      %435 = vmatpush1.msra.mxu0 %v408
      %436 = vmatprep.subr.mxu0 0.0
      %437 = vmatpush1.msra.mxu0 %v397
      %438 = vmatprep.subr.mxu0 0.0
      %439 = vmatpush1.msra.mxu0 %v396
      %440 = vmatprep.subr.mxu0 0.0
      %441 = vmatpush1.msra.mxu0 %v395
      %442 = vmatprep.subr.mxu0 0.0
      %443 = vmatpush2.msra.mxu0 0.0
      %444 = vmatprep.subr.mxu0 0.0
      %445 = vmatpush2.msra.mxu0 0.0
      %446 = vmatprep.subr.mxu0 0.0
      %447 = vmatpush2.msra.mxu0 0.0
      %448 = vmatprep.subr.mxu0 0.0
      %449 = vmatpush2.msra.mxu0 0.0
      %450 = vmatprep.subr.mxu0 0.0
      %451 = vmatpush2.msra.mxu0 0.0
      %452 = vmatprep.subr.mxu0 0.0
      %453 = vmatpush2.msra.mxu0 0.0
      %454 = vmatprep.subr.mxu0 0.0
      %455 = vmatpush2.msra.mxu0 0.0
      %456 = vmatprep.subr.mxu0 0.0
      %457 = vmatpush2.msra.mxu0 0.0
      %458 = vmatprep.subr.mxu0 0.0
      %459 = vmatpush2.msra.mxu0 0.0
      %460 = vmatprep.subr.mxu0 0.0
      %461 = vmatpush2.msra.mxu0 0.0
      %462 = vmatprep.subr.mxu0 0.0
      %463 = vmatpush2.msra.mxu0 0.0
      %464 = vmatprep.subr.mxu0 0.0
      %465 = vmatpush2.msra.mxu0 0.0
      %466 = vmatprep.subr.mxu0 0.0
      %467 = vmatpush2.msra.mxu0 0.0
      %468 = vmatprep.subr.mxu0 0.0
      %469 = vmatpush2.msra.mxu0 0.0
      %470 = vmatprep.subr.mxu0 0.0
      %471 = vmatpush2.msra.mxu0 0.0
      %472 = vmatprep.subr.mxu0 0.0
      %473 = vmatpush2.msra.mxu0 0.0
      %474 = vmatprep.mubr.f32.mxu0 0.0
      %475 = vmatmul.mubr.f32.gmra.mxu0 %v401
      %v476 = vpop.f32.mrf.mxu0
      %v477 = vadd.f32 0.0, %v476
      %v478 = vpop.f32.mrf.mxu0
      %479 = vmatprep.mubr.f32.mxu0 0.0
      %480 = vmatmul.mubr.f32.gmra.mxu0 %v404
      %v481 = vpop.f32.mrf.mxu0
      %v482 = vadd.f32 0.0, %v481
      %v483 = vpop.f32.mrf.mxu0
      %484 = vdwg.mxu0
      %v486 = vsel %vm399, %v385, 0
      %v489 = vsel %vm399, %v386, 0
      %v492 = vsel %vm406, %v390, 0
      %494 = vmatprep.subr.mxu0 0.0
      %495 = vmatpush1.msra.mxu0 0.0
      %496 = vmatprep.subr.mxu0 0.0
      %497 = vmatpush1.msra.mxu0 0.0
      %498 = vmatprep.subr.mxu0 0.0
      %499 = vmatpush1.msra.mxu0 0.0
      %500 = vmatprep.subr.mxu0 0.0
      %501 = vmatpush1.msra.mxu0 0.0
      %502 = vmatprep.subr.mxu0 0.0
      %503 = vmatpush1.msra.mxu0 0.0
      %504 = vmatprep.subr.mxu0 0.0
      %505 = vmatpush1.msra.mxu0 0.0
      %506 = vmatprep.subr.mxu0 0.0
      %507 = vmatpush1.msra.mxu0 0.0
      %508 = vmatprep.subr.mxu0 0.0
      %509 = vmatpush1.msra.mxu0 0.0
      %510 = vmatprep.subr.mxu0 0.0
      %511 = vmatpush1.msra.mxu0 0.0
      %512 = vmatprep.subr.mxu0 0.0
      %513 = vmatpush1.msra.mxu0 0.0
      %514 = vmatprep.subr.mxu0 0.0
      %515 = vmatpush1.msra.mxu0 0.0
      %516 = vmatprep.subr.mxu0 0.0
      %517 = vmatpush1.msra.mxu0 0.0
      %518 = vmatprep.subr.mxu0 0.0
      %519 = vmatpush1.msra.mxu0 %v492
      %520 = vmatprep.subr.mxu0 0.0
      %521 = vmatpush1.msra.mxu0 %v389
      %522 = vmatprep.subr.mxu0 0.0
      %523 = vmatpush1.msra.mxu0 %v388
      %524 = vmatprep.subr.mxu0 0.0
      %525 = vmatpush1.msra.mxu0 %v387
      %526 = vmatprep.subr.mxu0 0.0
      %527 = vmatpush2.msra.mxu0 0.0
      %528 = vmatprep.subr.mxu0 0.0
      %529 = vmatpush2.msra.mxu0 0.0
      %530 = vmatprep.subr.mxu0 0.0
      %531 = vmatpush2.msra.mxu0 0.0
      %532 = vmatprep.subr.mxu0 0.0
      %533 = vmatpush2.msra.mxu0 0.0
      %534 = vmatprep.subr.mxu0 0.0
      %535 = vmatpush2.msra.mxu0 0.0
      %536 = vmatprep.subr.mxu0 0.0
      %537 = vmatpush2.msra.mxu0 0.0
      %538 = vmatprep.subr.mxu0 0.0
      %539 = vmatpush2.msra.mxu0 0.0
      %540 = vmatprep.subr.mxu0 0.0
      %541 = vmatpush2.msra.mxu0 0.0
      %542 = vmatprep.subr.mxu0 0.0
      %543 = vmatpush2.msra.mxu0 0.0
      %544 = vmatprep.subr.mxu0 0.0
      %545 = vmatpush2.msra.mxu0 0.0
      %546 = vmatprep.subr.mxu0 0.0
      %547 = vmatpush2.msra.mxu0 0.0
      %548 = vmatprep.subr.mxu0 0.0
      %549 = vmatpush2.msra.mxu0 0.0
      %550 = vmatprep.subr.mxu0 0.0
      %551 = vmatpush2.msra.mxu0 0.0
      %552 = vmatprep.subr.mxu0 0.0
      %553 = vmatpush2.msra.mxu0 0.0
      %554 = vmatprep.subr.mxu0 0.0
      %555 = vmatpush2.msra.mxu0 0.0
      %556 = vmatprep.subr.mxu0 0.0
      %557 = vmatpush2.msra.mxu0 0.0
      %558 = vmatprep.mubr.f32.mxu0 0.0
      %559 = vmatmul.mubr.f32.gmra.mxu0 %v486
      %v560 = vpop.f32.mrf.mxu0
      %v561 = vadd.f32 %v477, %v560
      %v562 = vpop.f32.mrf.mxu0
      %563 = vmatprep.mubr.f32.mxu0 0.0
      %564 = vmatmul.mubr.f32.gmra.mxu0 %v489
      %v565 = vpop.f32.mrf.mxu0
      %v566 = vadd.f32 %v482, %v565
      %v567 = vpop.f32.mrf.mxu0
      %568 = vdwg.mxu0
      %s569 = scalar_lea.vmem %s381, 64
      %v570 = vld [vmem:[%s569] sm:$0xff]
      %v571 = vld [vmem:[%s569 + $0x8] sm:$0xff]
      %s572 = scalar_lea.vmem %s1, 64
      %v573 = vld [vmem:[%s572] sm:$0xff]
      %v574 = vld [vmem:[%s572 + $0x8] sm:$0xff]
      %v575 = vld [vmem:[%s572 + $0x10] sm:$0xff]
      %v576 = vld [vmem:[%s572 + $0x18] sm:$0x7f]
      %v578 = vsel %vm399, %v570, 0
      %v581 = vsel %vm399, %v571, 0
      %v584 = vsel %vm406, %v576, 0
      %586 = vmatprep.subr.mxu0 0.0
      %587 = vmatpush1.msra.mxu0 0.0
      %588 = vmatprep.subr.mxu0 0.0
      %589 = vmatpush1.msra.mxu0 0.0
      %590 = vmatprep.subr.mxu0 0.0
      %591 = vmatpush1.msra.mxu0 0.0
      %592 = vmatprep.subr.mxu0 0.0
      %593 = vmatpush1.msra.mxu0 0.0
      %594 = vmatprep.subr.mxu0 0.0
      %595 = vmatpush1.msra.mxu0 0.0
      %596 = vmatprep.subr.mxu0 0.0
      %597 = vmatpush1.msra.mxu0 0.0
      %598 = vmatprep.subr.mxu0 0.0
      %599 = vmatpush1.msra.mxu0 0.0
      %600 = vmatprep.subr.mxu0 0.0
      %601 = vmatpush1.msra.mxu0 0.0
      %602 = vmatprep.subr.mxu0 0.0
      %603 = vmatpush1.msra.mxu0 0.0
      %604 = vmatprep.subr.mxu0 0.0
      %605 = vmatpush1.msra.mxu0 0.0
      %606 = vmatprep.subr.mxu0 0.0
      %607 = vmatpush1.msra.mxu0 0.0
      %608 = vmatprep.subr.mxu0 0.0
      %609 = vmatpush1.msra.mxu0 0.0
      %610 = vmatprep.subr.mxu0 0.0
      %611 = vmatpush1.msra.mxu0 %v584
      %612 = vmatprep.subr.mxu0 0.0
      %613 = vmatpush1.msra.mxu0 %v575
      %614 = vmatprep.subr.mxu0 0.0
      %615 = vmatpush1.msra.mxu0 %v574
      %616 = vmatprep.subr.mxu0 0.0
      %617 = vmatpush1.msra.mxu0 %v573
      %618 = vmatprep.subr.mxu0 0.0
      %619 = vmatpush2.msra.mxu0 0.0
      %620 = vmatprep.subr.mxu0 0.0
      %621 = vmatpush2.msra.mxu0 0.0
      %622 = vmatprep.subr.mxu0 0.0
      %623 = vmatpush2.msra.mxu0 0.0
      %624 = vmatprep.subr.mxu0 0.0
      %625 = vmatpush2.msra.mxu0 0.0
      %626 = vmatprep.subr.mxu0 0.0
      %627 = vmatpush2.msra.mxu0 0.0
      %628 = vmatprep.subr.mxu0 0.0
      %629 = vmatpush2.msra.mxu0 0.0
      %630 = vmatprep.subr.mxu0 0.0
      %631 = vmatpush2.msra.mxu0 0.0
      %632 = vmatprep.subr.mxu0 0.0
      %633 = vmatpush2.msra.mxu0 0.0
      %634 = vmatprep.subr.mxu0 0.0
      %635 = vmatpush2.msra.mxu0 0.0
      %636 = vmatprep.subr.mxu0 0.0
      %637 = vmatpush2.msra.mxu0 0.0
      %638 = vmatprep.subr.mxu0 0.0
      %639 = vmatpush2.msra.mxu0 0.0
      %640 = vmatprep.subr.mxu0 0.0
      %641 = vmatpush2.msra.mxu0 0.0
      %642 = vmatprep.subr.mxu0 0.0
      %643 = vmatpush2.msra.mxu0 0.0
      %644 = vmatprep.subr.mxu0 0.0
      %645 = vmatpush2.msra.mxu0 0.0
      %646 = vmatprep.subr.mxu0 0.0
      %647 = vmatpush2.msra.mxu0 0.0
      %648 = vmatprep.subr.mxu0 0.0
      %649 = vmatpush2.msra.mxu0 0.0
      %650 = vmatprep.mubr.f32.mxu0 0.0
      %651 = vmatmul.mubr.f32.gmra.mxu0 %v578
      %v652 = vpop.f32.mrf.mxu0
      %v653 = vadd.f32 0.0, %v652
      %v654 = vpop.f32.mrf.mxu0
      %655 = vmatprep.mubr.f32.mxu0 0.0
      %656 = vmatmul.mubr.f32.gmra.mxu0 %v581
      %v657 = vpop.f32.mrf.mxu0
      %v658 = vadd.f32 0.0, %v657
      %v659 = vpop.f32.mrf.mxu0
      %660 = vdwg.mxu0
      %v661 = vadd.f32 %v561, %v653
      %v662 = vadd.f32 %v566, %v658
      %v663 = vld [vmem:[%s381 + $0x1] sm:$0xff]
      %v664 = vld [vmem:[%s381 + $0x9] sm:$0xff]
      %s665 = scalar_lea.vmem %s1, 96
      %v666 = vld [vmem:[%s665] sm:$0xff]
      %v667 = vld [vmem:[%s665 + $0x8] sm:$0xff]
      %v668 = vld [vmem:[%s665 + $0x10] sm:$0xff]
      %v669 = vld [vmem:[%s665 + $0x18] sm:$0x7f]
      %v671 = vsel %vm399, %v663, 0
      %v674 = vsel %vm399, %v664, 0
      %v677 = vsel %vm406, %v669, 0
      %679 = vmatprep.subr.mxu0 0.0
      %680 = vmatpush1.msra.mxu0 0.0
      %681 = vmatprep.subr.mxu0 0.0
      %682 = vmatpush1.msra.mxu0 0.0
      %683 = vmatprep.subr.mxu0 0.0
      %684 = vmatpush1.msra.mxu0 0.0
      %685 = vmatprep.subr.mxu0 0.0
      %686 = vmatpush1.msra.mxu0 0.0
      %687 = vmatprep.subr.mxu0 0.0
      %688 = vmatpush1.msra.mxu0 0.0
      %689 = vmatprep.subr.mxu0 0.0
      %690 = vmatpush1.msra.mxu0 0.0
      %691 = vmatprep.subr.mxu0 0.0
      %692 = vmatpush1.msra.mxu0 0.0
      %693 = vmatprep.subr.mxu0 0.0
      %694 = vmatpush1.msra.mxu0 0.0
      %695 = vmatprep.subr.mxu0 0.0
      %696 = vmatpush1.msra.mxu0 0.0
      %697 = vmatprep.subr.mxu0 0.0
      %698 = vmatpush1.msra.mxu0 0.0
      %699 = vmatprep.subr.mxu0 0.0
      %700 = vmatpush1.msra.mxu0 0.0
      %701 = vmatprep.subr.mxu0 0.0
      %702 = vmatpush1.msra.mxu0 0.0
      %703 = vmatprep.subr.mxu0 0.0
      %704 = vmatpush1.msra.mxu0 %v677
      %705 = vmatprep.subr.mxu0 0.0
      %706 = vmatpush1.msra.mxu0 %v668
      %707 = vmatprep.subr.mxu0 0.0
      %708 = vmatpush1.msra.mxu0 %v667
      %709 = vmatprep.subr.mxu0 0.0
      %710 = vmatpush1.msra.mxu0 %v666
      %711 = vmatprep.subr.mxu0 0.0
      %712 = vmatpush2.msra.mxu0 0.0
      %713 = vmatprep.subr.mxu0 0.0
      %714 = vmatpush2.msra.mxu0 0.0
      %715 = vmatprep.subr.mxu0 0.0
      %716 = vmatpush2.msra.mxu0 0.0
      %717 = vmatprep.subr.mxu0 0.0
      %718 = vmatpush2.msra.mxu0 0.0
      %719 = vmatprep.subr.mxu0 0.0
      %720 = vmatpush2.msra.mxu0 0.0
      %721 = vmatprep.subr.mxu0 0.0
      %722 = vmatpush2.msra.mxu0 0.0
      %723 = vmatprep.subr.mxu0 0.0
      %724 = vmatpush2.msra.mxu0 0.0
      %725 = vmatprep.subr.mxu0 0.0
      %726 = vmatpush2.msra.mxu0 0.0
      %727 = vmatprep.subr.mxu0 0.0
      %728 = vmatpush2.msra.mxu0 0.0
      %729 = vmatprep.subr.mxu0 0.0
      %730 = vmatpush2.msra.mxu0 0.0
      %731 = vmatprep.subr.mxu0 0.0
      %732 = vmatpush2.msra.mxu0 0.0
      %733 = vmatprep.subr.mxu0 0.0
      %734 = vmatpush2.msra.mxu0 0.0
      %735 = vmatprep.subr.mxu0 0.0
      %736 = vmatpush2.msra.mxu0 0.0
      %737 = vmatprep.subr.mxu0 0.0
      %738 = vmatpush2.msra.mxu0 0.0
      %739 = vmatprep.subr.mxu0 0.0
      %740 = vmatpush2.msra.mxu0 0.0
      %741 = vmatprep.subr.mxu0 0.0
      %742 = vmatpush2.msra.mxu0 0.0
      %743 = vmatprep.mubr.f32.mxu0 0.0
      %744 = vmatmul.mubr.f32.gmra.mxu0 %v671
      %v745 = vpop.f32.mrf.mxu0
      %v746 = vadd.f32 0.0, %v745
      %v747 = vpop.f32.mrf.mxu0
      %748 = vmatprep.mubr.f32.mxu0 0.0
      %749 = vmatmul.mubr.f32.gmra.mxu0 %v674
      %v750 = vpop.f32.mrf.mxu0
      %v751 = vadd.f32 0.0, %v750
      %v752 = vpop.f32.mrf.mxu0
      %753 = vdwg.mxu0
      %v754 = vadd.f32 %v661, %v746
      %v755 = vadd.f32 %v662, %v751
      %v756 = vld [vmem:[%s391 + $0x1] sm:$0xff]
      %v757 = vld [vmem:[%s391 + $0x9] sm:$0xff]
      %s758 = scalar_lea.vmem %s1, 128
      %v759 = vld [vmem:[%s758] sm:$0xff]
      %v760 = vld [vmem:[%s758 + $0x8] sm:$0xff]
      %v761 = vld [vmem:[%s758 + $0x10] sm:$0xff]
      %v762 = vld [vmem:[%s758 + $0x18] sm:$0x7f]
      %v764 = vsel %vm399, %v756, 0
      %v767 = vsel %vm399, %v757, 0
      %v770 = vsel %vm406, %v762, 0
      %772 = vmatprep.subr.mxu0 0.0
      %773 = vmatpush1.msra.mxu0 0.0
      %774 = vmatprep.subr.mxu0 0.0
      %775 = vmatpush1.msra.mxu0 0.0
      %776 = vmatprep.subr.mxu0 0.0
      %777 = vmatpush1.msra.mxu0 0.0
      %778 = vmatprep.subr.mxu0 0.0
      %779 = vmatpush1.msra.mxu0 0.0
      %780 = vmatprep.subr.mxu0 0.0
      %781 = vmatpush1.msra.mxu0 0.0
      %782 = vmatprep.subr.mxu0 0.0
      %783 = vmatpush1.msra.mxu0 0.0
      %784 = vmatprep.subr.mxu0 0.0
      %785 = vmatpush1.msra.mxu0 0.0
      %786 = vmatprep.subr.mxu0 0.0
      %787 = vmatpush1.msra.mxu0 0.0
      %788 = vmatprep.subr.mxu0 0.0
      %789 = vmatpush1.msra.mxu0 0.0
      %790 = vmatprep.subr.mxu0 0.0
      %791 = vmatpush1.msra.mxu0 0.0
      %792 = vmatprep.subr.mxu0 0.0
      %793 = vmatpush1.msra.mxu0 0.0
      %794 = vmatprep.subr.mxu0 0.0
      %795 = vmatpush1.msra.mxu0 0.0
      %796 = vmatprep.subr.mxu0 0.0
      %797 = vmatpush1.msra.mxu0 %v770
      %798 = vmatprep.subr.mxu0 0.0
      %799 = vmatpush1.msra.mxu0 %v761
      %800 = vmatprep.subr.mxu0 0.0
      %801 = vmatpush1.msra.mxu0 %v760
      %802 = vmatprep.subr.mxu0 0.0
      %803 = vmatpush1.msra.mxu0 %v759
      %804 = vmatprep.subr.mxu0 0.0
      %805 = vmatpush2.msra.mxu0 0.0
      %806 = vmatprep.subr.mxu0 0.0
      %807 = vmatpush2.msra.mxu0 0.0
      %808 = vmatprep.subr.mxu0 0.0
      %809 = vmatpush2.msra.mxu0 0.0
      %810 = vmatprep.subr.mxu0 0.0
      %811 = vmatpush2.msra.mxu0 0.0
      %812 = vmatprep.subr.mxu0 0.0
      %813 = vmatpush2.msra.mxu0 0.0
      %814 = vmatprep.subr.mxu0 0.0
      %815 = vmatpush2.msra.mxu0 0.0
      %816 = vmatprep.subr.mxu0 0.0
      %817 = vmatpush2.msra.mxu0 0.0
      %818 = vmatprep.subr.mxu0 0.0
      %819 = vmatpush2.msra.mxu0 0.0
      %820 = vmatprep.subr.mxu0 0.0
      %821 = vmatpush2.msra.mxu0 0.0
      %822 = vmatprep.subr.mxu0 0.0
      %823 = vmatpush2.msra.mxu0 0.0
      %824 = vmatprep.subr.mxu0 0.0
      %825 = vmatpush2.msra.mxu0 0.0
      %826 = vmatprep.subr.mxu0 0.0
      %827 = vmatpush2.msra.mxu0 0.0
      %828 = vmatprep.subr.mxu0 0.0
      %829 = vmatpush2.msra.mxu0 0.0
      %830 = vmatprep.subr.mxu0 0.0
      %831 = vmatpush2.msra.mxu0 0.0
      %832 = vmatprep.subr.mxu0 0.0
      %833 = vmatpush2.msra.mxu0 0.0
      %834 = vmatprep.subr.mxu0 0.0
      %835 = vmatpush2.msra.mxu0 0.0
      %836 = vmatprep.mubr.f32.mxu0 0.0
      %837 = vmatmul.mubr.f32.gmra.mxu0 %v764
      %v838 = vpop.f32.mrf.mxu0
      %v839 = vadd.f32 0.0, %v838
      %v840 = vpop.f32.mrf.mxu0
      %841 = vmatprep.mubr.f32.mxu0 0.0
      %842 = vmatmul.mubr.f32.gmra.mxu0 %v767
      %v843 = vpop.f32.mrf.mxu0
      %v844 = vadd.f32 0.0, %v843
      %v845 = vpop.f32.mrf.mxu0
      %846 = vdwg.mxu0
      %v847 = vadd.f32 %v754, %v839
      %v848 = vadd.f32 %v755, %v844
      %v849 = vld [vmem:[%s569 + $0x1] sm:$0xff]
      %v850 = vld [vmem:[%s569 + $0x9] sm:$0xff]
      %s851 = scalar_lea.vmem %s1, 160
      %v852 = vld [vmem:[%s851] sm:$0xff]
      %v853 = vld [vmem:[%s851 + $0x8] sm:$0xff]
      %v854 = vld [vmem:[%s851 + $0x10] sm:$0xff]
      %v855 = vld [vmem:[%s851 + $0x18] sm:$0x7f]
      %v857 = vsel %vm399, %v849, 0
      %v860 = vsel %vm399, %v850, 0
      %v863 = vsel %vm406, %v855, 0
      %865 = vmatprep.subr.mxu0 0.0
      %866 = vmatpush1.msra.mxu0 0.0
      %867 = vmatprep.subr.mxu0 0.0
      %868 = vmatpush1.msra.mxu0 0.0
      %869 = vmatprep.subr.mxu0 0.0
      %870 = vmatpush1.msra.mxu0 0.0
      %871 = vmatprep.subr.mxu0 0.0
      %872 = vmatpush1.msra.mxu0 0.0
      %873 = vmatprep.subr.mxu0 0.0
      %874 = vmatpush1.msra.mxu0 0.0
      %875 = vmatprep.subr.mxu0 0.0
      %876 = vmatpush1.msra.mxu0 0.0
      %877 = vmatprep.subr.mxu0 0.0
      %878 = vmatpush1.msra.mxu0 0.0
      %879 = vmatprep.subr.mxu0 0.0
      %880 = vmatpush1.msra.mxu0 0.0
      %881 = vmatprep.subr.mxu0 0.0
      %882 = vmatpush1.msra.mxu0 0.0
      %883 = vmatprep.subr.mxu0 0.0
      %884 = vmatpush1.msra.mxu0 0.0
      %885 = vmatprep.subr.mxu0 0.0
      %886 = vmatpush1.msra.mxu0 0.0
      %887 = vmatprep.subr.mxu0 0.0
      %888 = vmatpush1.msra.mxu0 0.0
      %889 = vmatprep.subr.mxu0 0.0
      %890 = vmatpush1.msra.mxu0 %v863
      %891 = vmatprep.subr.mxu0 0.0
      %892 = vmatpush1.msra.mxu0 %v854
      %893 = vmatprep.subr.mxu0 0.0
      %894 = vmatpush1.msra.mxu0 %v853
      %895 = vmatprep.subr.mxu0 0.0
      %896 = vmatpush1.msra.mxu0 %v852
      %897 = vmatprep.subr.mxu0 0.0
      %898 = vmatpush2.msra.mxu0 0.0
      %899 = vmatprep.subr.mxu0 0.0
      %900 = vmatpush2.msra.mxu0 0.0
      %901 = vmatprep.subr.mxu0 0.0
      %902 = vmatpush2.msra.mxu0 0.0
      %903 = vmatprep.subr.mxu0 0.0
      %904 = vmatpush2.msra.mxu0 0.0
      %905 = vmatprep.subr.mxu0 0.0
      %906 = vmatpush2.msra.mxu0 0.0
      %907 = vmatprep.subr.mxu0 0.0
      %908 = vmatpush2.msra.mxu0 0.0
      %909 = vmatprep.subr.mxu0 0.0
      %910 = vmatpush2.msra.mxu0 0.0
      %911 = vmatprep.subr.mxu0 0.0
      %912 = vmatpush2.msra.mxu0 0.0
      %913 = vmatprep.subr.mxu0 0.0
      %914 = vmatpush2.msra.mxu0 0.0
      %915 = vmatprep.subr.mxu0 0.0
      %916 = vmatpush2.msra.mxu0 0.0
      %917 = vmatprep.subr.mxu0 0.0
      %918 = vmatpush2.msra.mxu0 0.0
      %919 = vmatprep.subr.mxu0 0.0
      %920 = vmatpush2.msra.mxu0 0.0
      %921 = vmatprep.subr.mxu0 0.0
      %922 = vmatpush2.msra.mxu0 0.0
      %923 = vmatprep.subr.mxu0 0.0
      %924 = vmatpush2.msra.mxu0 0.0
      %925 = vmatprep.subr.mxu0 0.0
      %926 = vmatpush2.msra.mxu0 0.0
      %927 = vmatprep.subr.mxu0 0.0
      %928 = vmatpush2.msra.mxu0 0.0
      %929 = vmatprep.mubr.f32.mxu0 0.0
      %930 = vmatmul.mubr.f32.gmra.mxu0 %v857
      %v931 = vpop.f32.mrf.mxu0
      %v932 = vadd.f32 0.0, %v931
      %v933 = vpop.f32.mrf.mxu0
      %934 = vmatprep.mubr.f32.mxu0 0.0
      %935 = vmatmul.mubr.f32.gmra.mxu0 %v860
      %v936 = vpop.f32.mrf.mxu0
      %v937 = vadd.f32 0.0, %v936
      %v938 = vpop.f32.mrf.mxu0
      %939 = vdwg.mxu0
      %v940 = vadd.f32 %v847, %v932
      %v941 = vadd.f32 %v848, %v937
      %v942 = vld [vmem:[%s381 + $0x2] sm:$0xff]
      %v943 = vld [vmem:[%s381 + $0xa] sm:$0xff]
      %s944 = scalar_lea.vmem %s1, 192
      %v945 = vld [vmem:[%s944] sm:$0xff]
      %v946 = vld [vmem:[%s944 + $0x8] sm:$0xff]
      %v947 = vld [vmem:[%s944 + $0x10] sm:$0xff]
      %v948 = vld [vmem:[%s944 + $0x18] sm:$0x7f]
      %v950 = vsel %vm399, %v942, 0
      %v953 = vsel %vm399, %v943, 0
      %v956 = vsel %vm406, %v948, 0
      %958 = vmatprep.subr.mxu0 0.0
      %959 = vmatpush1.msra.mxu0 0.0
      %960 = vmatprep.subr.mxu0 0.0
      %961 = vmatpush1.msra.mxu0 0.0
      %962 = vmatprep.subr.mxu0 0.0
      %963 = vmatpush1.msra.mxu0 0.0
      %964 = vmatprep.subr.mxu0 0.0
      %965 = vmatpush1.msra.mxu0 0.0
      %966 = vmatprep.subr.mxu0 0.0
      %967 = vmatpush1.msra.mxu0 0.0
      %968 = vmatprep.subr.mxu0 0.0
      %969 = vmatpush1.msra.mxu0 0.0
      %970 = vmatprep.subr.mxu0 0.0
      %971 = vmatpush1.msra.mxu0 0.0
      %972 = vmatprep.subr.mxu0 0.0
      %973 = vmatpush1.msra.mxu0 0.0
      %974 = vmatprep.subr.mxu0 0.0
      %975 = vmatpush1.msra.mxu0 0.0
      %976 = vmatprep.subr.mxu0 0.0
      %977 = vmatpush1.msra.mxu0 0.0
      %978 = vmatprep.subr.mxu0 0.0
      %979 = vmatpush1.msra.mxu0 0.0
      %980 = vmatprep.subr.mxu0 0.0
      %981 = vmatpush1.msra.mxu0 0.0
      %982 = vmatprep.subr.mxu0 0.0
      %983 = vmatpush1.msra.mxu0 %v956
      %984 = vmatprep.subr.mxu0 0.0
      %985 = vmatpush1.msra.mxu0 %v947
      %986 = vmatprep.subr.mxu0 0.0
      %987 = vmatpush1.msra.mxu0 %v946
      %988 = vmatprep.subr.mxu0 0.0
      %989 = vmatpush1.msra.mxu0 %v945
      %990 = vmatprep.subr.mxu0 0.0
      %991 = vmatpush2.msra.mxu0 0.0
      %992 = vmatprep.subr.mxu0 0.0
      %993 = vmatpush2.msra.mxu0 0.0
      %994 = vmatprep.subr.mxu0 0.0
      %995 = vmatpush2.msra.mxu0 0.0
      %996 = vmatprep.subr.mxu0 0.0
      %997 = vmatpush2.msra.mxu0 0.0
      %998 = vmatprep.subr.mxu0 0.0
      %999 = vmatpush2.msra.mxu0 0.0
      %1000 = vmatprep.subr.mxu0 0.0
      %1001 = vmatpush2.msra.mxu0 0.0
      %1002 = vmatprep.subr.mxu0 0.0
      %1003 = vmatpush2.msra.mxu0 0.0
      %1004 = vmatprep.subr.mxu0 0.0
      %1005 = vmatpush2.msra.mxu0 0.0
      %1006 = vmatprep.subr.mxu0 0.0
      %1007 = vmatpush2.msra.mxu0 0.0
      %1008 = vmatprep.subr.mxu0 0.0
      %1009 = vmatpush2.msra.mxu0 0.0
      %1010 = vmatprep.subr.mxu0 0.0
      %1011 = vmatpush2.msra.mxu0 0.0
      %1012 = vmatprep.subr.mxu0 0.0
      %1013 = vmatpush2.msra.mxu0 0.0
      %1014 = vmatprep.subr.mxu0 0.0
      %1015 = vmatpush2.msra.mxu0 0.0
      %1016 = vmatprep.subr.mxu0 0.0
      %1017 = vmatpush2.msra.mxu0 0.0
      %1018 = vmatprep.subr.mxu0 0.0
      %1019 = vmatpush2.msra.mxu0 0.0
      %1020 = vmatprep.subr.mxu0 0.0
      %1021 = vmatpush2.msra.mxu0 0.0
      %1022 = vmatprep.mubr.f32.mxu0 0.0
      %1023 = vmatmul.mubr.f32.gmra.mxu0 %v950
      %v1024 = vpop.f32.mrf.mxu0
      %v1025 = vadd.f32 0.0, %v1024
      %v1026 = vpop.f32.mrf.mxu0
      %1027 = vmatprep.mubr.f32.mxu0 0.0
      %1028 = vmatmul.mubr.f32.gmra.mxu0 %v953
      %v1029 = vpop.f32.mrf.mxu0
      %v1030 = vadd.f32 0.0, %v1029
      %v1031 = vpop.f32.mrf.mxu0
      %1032 = vdwg.mxu0
      %v1033 = vadd.f32 %v940, %v1025
      %v1034 = vadd.f32 %v941, %v1030
      %v1035 = vld [vmem:[%s391 + $0x2] sm:$0xff]
      %v1036 = vld [vmem:[%s391 + $0xa] sm:$0xff]
      %s1037 = scalar_lea.vmem %s1, 224
      %v1038 = vld [vmem:[%s1037] sm:$0xff]
      %v1039 = vld [vmem:[%s1037 + $0x8] sm:$0xff]
      %v1040 = vld [vmem:[%s1037 + $0x10] sm:$0xff]
      %v1041 = vld [vmem:[%s1037 + $0x18] sm:$0x7f]
      %v1043 = vsel %vm399, %v1035, 0
      %v1046 = vsel %vm399, %v1036, 0
      %v1049 = vsel %vm406, %v1041, 0
      %1051 = vmatprep.subr.mxu0 0.0
      %1052 = vmatpush1.msra.mxu0 0.0
      %1053 = vmatprep.subr.mxu0 0.0
      %1054 = vmatpush1.msra.mxu0 0.0
      %1055 = vmatprep.subr.mxu0 0.0
      %1056 = vmatpush1.msra.mxu0 0.0
      %1057 = vmatprep.subr.mxu0 0.0
      %1058 = vmatpush1.msra.mxu0 0.0
      %1059 = vmatprep.subr.mxu0 0.0
      %1060 = vmatpush1.msra.mxu0 0.0
      %1061 = vmatprep.subr.mxu0 0.0
      %1062 = vmatpush1.msra.mxu0 0.0
      %1063 = vmatprep.subr.mxu0 0.0
      %1064 = vmatpush1.msra.mxu0 0.0
      %1065 = vmatprep.subr.mxu0 0.0
      %1066 = vmatpush1.msra.mxu0 0.0
      %1067 = vmatprep.subr.mxu0 0.0
      %1068 = vmatpush1.msra.mxu0 0.0
      %1069 = vmatprep.subr.mxu0 0.0
      %1070 = vmatpush1.msra.mxu0 0.0
      %1071 = vmatprep.subr.mxu0 0.0
      %1072 = vmatpush1.msra.mxu0 0.0
      %1073 = vmatprep.subr.mxu0 0.0
      %1074 = vmatpush1.msra.mxu0 0.0
      %1075 = vmatprep.subr.mxu0 0.0
      %1076 = vmatpush1.msra.mxu0 %v1049
      %1077 = vmatprep.subr.mxu0 0.0
      %1078 = vmatpush1.msra.mxu0 %v1040
      %1079 = vmatprep.subr.mxu0 0.0
      %1080 = vmatpush1.msra.mxu0 %v1039
      %1081 = vmatprep.subr.mxu0 0.0
      %1082 = vmatpush1.msra.mxu0 %v1038
      %1083 = vmatprep.subr.mxu0 0.0
      %1084 = vmatpush2.msra.mxu0 0.0
      %1085 = vmatprep.subr.mxu0 0.0
      %1086 = vmatpush2.msra.mxu0 0.0
      %1087 = vmatprep.subr.mxu0 0.0
      %1088 = vmatpush2.msra.mxu0 0.0
      %1089 = vmatprep.subr.mxu0 0.0
      %1090 = vmatpush2.msra.mxu0 0.0
      %1091 = vmatprep.subr.mxu0 0.0
      %1092 = vmatpush2.msra.mxu0 0.0
      %1093 = vmatprep.subr.mxu0 0.0
      %1094 = vmatpush2.msra.mxu0 0.0
      %1095 = vmatprep.subr.mxu0 0.0
      %1096 = vmatpush2.msra.mxu0 0.0
      %1097 = vmatprep.subr.mxu0 0.0
      %1098 = vmatpush2.msra.mxu0 0.0
      %1099 = vmatprep.subr.mxu0 0.0
      %1100 = vmatpush2.msra.mxu0 0.0
      %1101 = vmatprep.subr.mxu0 0.0
      %1102 = vmatpush2.msra.mxu0 0.0
      %1103 = vmatprep.subr.mxu0 0.0
      %1104 = vmatpush2.msra.mxu0 0.0
      %1105 = vmatprep.subr.mxu0 0.0
      %1106 = vmatpush2.msra.mxu0 0.0
      %1107 = vmatprep.subr.mxu0 0.0
      %1108 = vmatpush2.msra.mxu0 0.0
      %1109 = vmatprep.subr.mxu0 0.0
      %1110 = vmatpush2.msra.mxu0 0.0
      %1111 = vmatprep.subr.mxu0 0.0
      %1112 = vmatpush2.msra.mxu0 0.0
      %1113 = vmatprep.subr.mxu0 0.0
      %1114 = vmatpush2.msra.mxu0 0.0
      %1115 = vmatprep.mubr.f32.mxu0 0.0
      %1116 = vmatmul.mubr.f32.gmra.mxu0 %v1043
      %v1117 = vpop.f32.mrf.mxu0
      %v1118 = vadd.f32 0.0, %v1117
      %v1119 = vpop.f32.mrf.mxu0
      %1120 = vmatprep.mubr.f32.mxu0 0.0
      %1121 = vmatmul.mubr.f32.gmra.mxu0 %v1046
      %v1122 = vpop.f32.mrf.mxu0
      %v1123 = vadd.f32 0.0, %v1122
      %v1124 = vpop.f32.mrf.mxu0
      %1125 = vdwg.mxu0
      %v1126 = vadd.f32 %v1033, %v1118
      %v1127 = vadd.f32 %v1034, %v1123
      %v1128 = vld [vmem:[%s569 + $0x2] sm:$0xff]
      %v1129 = vld [vmem:[%s569 + $0xa] sm:$0xff]
      %s1130 = scalar_lea.vmem %s1, 256
      %v1131 = vld [vmem:[%s1130] sm:$0xff]
      %v1132 = vld [vmem:[%s1130 + $0x8] sm:$0xff]
      %v1133 = vld [vmem:[%s1130 + $0x10] sm:$0xff]
      %v1134 = vld [vmem:[%s1130 + $0x18] sm:$0x7f]
      %v1136 = vsel %vm399, %v1128, 0
      %v1139 = vsel %vm399, %v1129, 0
      %v1142 = vsel %vm406, %v1134, 0
      %1144 = vmatprep.subr.mxu0 0.0
      %1145 = vmatpush1.msra.mxu0 0.0
      %1146 = vmatprep.subr.mxu0 0.0
      %1147 = vmatpush1.msra.mxu0 0.0
      %1148 = vmatprep.subr.mxu0 0.0
      %1149 = vmatpush1.msra.mxu0 0.0
      %1150 = vmatprep.subr.mxu0 0.0
      %1151 = vmatpush1.msra.mxu0 0.0
      %1152 = vmatprep.subr.mxu0 0.0
      %1153 = vmatpush1.msra.mxu0 0.0
      %1154 = vmatprep.subr.mxu0 0.0
      %1155 = vmatpush1.msra.mxu0 0.0
      %1156 = vmatprep.subr.mxu0 0.0
      %1157 = vmatpush1.msra.mxu0 0.0
      %1158 = vmatprep.subr.mxu0 0.0
      %1159 = vmatpush1.msra.mxu0 0.0
      %1160 = vmatprep.subr.mxu0 0.0
      %1161 = vmatpush1.msra.mxu0 0.0
      %1162 = vmatprep.subr.mxu0 0.0
      %1163 = vmatpush1.msra.mxu0 0.0
      %1164 = vmatprep.subr.mxu0 0.0
      %1165 = vmatpush1.msra.mxu0 0.0
      %1166 = vmatprep.subr.mxu0 0.0
      %1167 = vmatpush1.msra.mxu0 0.0
      %1168 = vmatprep.subr.mxu0 0.0
      %1169 = vmatpush1.msra.mxu0 %v1142
      %1170 = vmatprep.subr.mxu0 0.0
      %1171 = vmatpush1.msra.mxu0 %v1133
      %1172 = vmatprep.subr.mxu0 0.0
      %1173 = vmatpush1.msra.mxu0 %v1132
      %1174 = vmatprep.subr.mxu0 0.0
      %1175 = vmatpush1.msra.mxu0 %v1131
      %1176 = vmatprep.subr.mxu0 0.0
      %1177 = vmatpush2.msra.mxu0 0.0
      %1178 = vmatprep.subr.mxu0 0.0
      %1179 = vmatpush2.msra.mxu0 0.0
      %1180 = vmatprep.subr.mxu0 0.0
      %1181 = vmatpush2.msra.mxu0 0.0
      %1182 = vmatprep.subr.mxu0 0.0
      %1183 = vmatpush2.msra.mxu0 0.0
      %1184 = vmatprep.subr.mxu0 0.0
      %1185 = vmatpush2.msra.mxu0 0.0
      %1186 = vmatprep.subr.mxu0 0.0
      %1187 = vmatpush2.msra.mxu0 0.0
      %1188 = vmatprep.subr.mxu0 0.0
      %1189 = vmatpush2.msra.mxu0 0.0
      %1190 = vmatprep.subr.mxu0 0.0
      %1191 = vmatpush2.msra.mxu0 0.0
      %1192 = vmatprep.subr.mxu0 0.0
      %1193 = vmatpush2.msra.mxu0 0.0
      %1194 = vmatprep.subr.mxu0 0.0
      %1195 = vmatpush2.msra.mxu0 0.0
      %1196 = vmatprep.subr.mxu0 0.0
      %1197 = vmatpush2.msra.mxu0 0.0
      %1198 = vmatprep.subr.mxu0 0.0
      %1199 = vmatpush2.msra.mxu0 0.0
      %1200 = vmatprep.subr.mxu0 0.0
      %1201 = vmatpush2.msra.mxu0 0.0
      %1202 = vmatprep.subr.mxu0 0.0
      %1203 = vmatpush2.msra.mxu0 0.0
      %1204 = vmatprep.subr.mxu0 0.0
      %1205 = vmatpush2.msra.mxu0 0.0
      %1206 = vmatprep.subr.mxu0 0.0
      %1207 = vmatpush2.msra.mxu0 0.0
      %1208 = vmatprep.mubr.f32.mxu0 0.0
      %1209 = vmatmul.mubr.f32.gmra.mxu0 %v1136
      %v1210 = vpop.f32.mrf.mxu0
      %v1211 = vadd.f32 0.0, %v1210
      %v1212 = vpop.f32.mrf.mxu0
      %1213 = vmatprep.mubr.f32.mxu0 0.0
      %1214 = vmatmul.mubr.f32.gmra.mxu0 %v1139
      %v1215 = vpop.f32.mrf.mxu0
      %v1216 = vadd.f32 0.0, %v1215
      %v1217 = vpop.f32.mrf.mxu0
      %1218 = vdwg.mxu0
      %v1219 = vadd.f32 %v1126, %v1211
      %v1220 = vadd.f32 %v1127, %v1216
      %v1221 = vld [vmem:[%s381 + $0x3] sm:$0xff]
      %v1222 = vld [vmem:[%s381 + $0xb] sm:$0xff]
      %s1223 = scalar_lea.vmem %s1, 288
      %v1224 = vld [vmem:[%s1223] sm:$0xff]
      %v1225 = vld [vmem:[%s1223 + $0x8] sm:$0xff]
      %v1226 = vld [vmem:[%s1223 + $0x10] sm:$0xff]
      %v1227 = vld [vmem:[%s1223 + $0x18] sm:$0x7f]
      %v1229 = vsel %vm399, %v1221, 0
      %v1232 = vsel %vm399, %v1222, 0
      %v1235 = vsel %vm406, %v1227, 0
      %1237 = vmatprep.subr.mxu0 0.0
      %1238 = vmatpush1.msra.mxu0 0.0
      %1239 = vmatprep.subr.mxu0 0.0
      %1240 = vmatpush1.msra.mxu0 0.0
      %1241 = vmatprep.subr.mxu0 0.0
      %1242 = vmatpush1.msra.mxu0 0.0
      %1243 = vmatprep.subr.mxu0 0.0
      %1244 = vmatpush1.msra.mxu0 0.0
      %1245 = vmatprep.subr.mxu0 0.0
      %1246 = vmatpush1.msra.mxu0 0.0
      %1247 = vmatprep.subr.mxu0 0.0
      %1248 = vmatpush1.msra.mxu0 0.0
      %1249 = vmatprep.subr.mxu0 0.0
      %1250 = vmatpush1.msra.mxu0 0.0
      %1251 = vmatprep.subr.mxu0 0.0
      %1252 = vmatpush1.msra.mxu0 0.0
      %1253 = vmatprep.subr.mxu0 0.0
      %1254 = vmatpush1.msra.mxu0 0.0
      %1255 = vmatprep.subr.mxu0 0.0
      %1256 = vmatpush1.msra.mxu0 0.0
      %1257 = vmatprep.subr.mxu0 0.0
      %1258 = vmatpush1.msra.mxu0 0.0
      %1259 = vmatprep.subr.mxu0 0.0
      %1260 = vmatpush1.msra.mxu0 0.0
      %1261 = vmatprep.subr.mxu0 0.0
      %1262 = vmatpush1.msra.mxu0 %v1235
      %1263 = vmatprep.subr.mxu0 0.0
      %1264 = vmatpush1.msra.mxu0 %v1226
      %1265 = vmatprep.subr.mxu0 0.0
      %1266 = vmatpush1.msra.mxu0 %v1225
      %1267 = vmatprep.subr.mxu0 0.0
      %1268 = vmatpush1.msra.mxu0 %v1224
      %1269 = vmatprep.subr.mxu0 0.0
      %1270 = vmatpush2.msra.mxu0 0.0
      %1271 = vmatprep.subr.mxu0 0.0
      %1272 = vmatpush2.msra.mxu0 0.0
      %1273 = vmatprep.subr.mxu0 0.0
      %1274 = vmatpush2.msra.mxu0 0.0
      %1275 = vmatprep.subr.mxu0 0.0
      %1276 = vmatpush2.msra.mxu0 0.0
      %1277 = vmatprep.subr.mxu0 0.0
      %1278 = vmatpush2.msra.mxu0 0.0
      %1279 = vmatprep.subr.mxu0 0.0
      %1280 = vmatpush2.msra.mxu0 0.0
      %1281 = vmatprep.subr.mxu0 0.0
      %1282 = vmatpush2.msra.mxu0 0.0
      %1283 = vmatprep.subr.mxu0 0.0
      %1284 = vmatpush2.msra.mxu0 0.0
      %1285 = vmatprep.subr.mxu0 0.0
      %1286 = vmatpush2.msra.mxu0 0.0
      %1287 = vmatprep.subr.mxu0 0.0
      %1288 = vmatpush2.msra.mxu0 0.0
      %1289 = vmatprep.subr.mxu0 0.0
      %1290 = vmatpush2.msra.mxu0 0.0
      %1291 = vmatprep.subr.mxu0 0.0
      %1292 = vmatpush2.msra.mxu0 0.0
      %1293 = vmatprep.subr.mxu0 0.0
      %1294 = vmatpush2.msra.mxu0 0.0
      %1295 = vmatprep.subr.mxu0 0.0
      %1296 = vmatpush2.msra.mxu0 0.0
      %1297 = vmatprep.subr.mxu0 0.0
      %1298 = vmatpush2.msra.mxu0 0.0
      %1299 = vmatprep.subr.mxu0 0.0
      %1300 = vmatpush2.msra.mxu0 0.0
      %1301 = vmatprep.mubr.f32.mxu0 0.0
      %1302 = vmatmul.mubr.f32.gmra.mxu0 %v1229
      %v1303 = vpop.f32.mrf.mxu0
      %v1304 = vadd.f32 0.0, %v1303
      %v1305 = vpop.f32.mrf.mxu0
      %1306 = vmatprep.mubr.f32.mxu0 0.0
      %1307 = vmatmul.mubr.f32.gmra.mxu0 %v1232
      %v1308 = vpop.f32.mrf.mxu0
      %v1309 = vadd.f32 0.0, %v1308
      %v1310 = vpop.f32.mrf.mxu0
      %1311 = vdwg.mxu0
      %v1312 = vadd.f32 %v1219, %v1304
      %v1313 = vadd.f32 %v1220, %v1309
      %v1314 = vld [vmem:[%s391 + $0x3] sm:$0xff]
      %v1315 = vld [vmem:[%s391 + $0xb] sm:$0xff]
      %s1316 = scalar_lea.vmem %s1, 320
      %v1317 = vld [vmem:[%s1316] sm:$0xff]
      %v1318 = vld [vmem:[%s1316 + $0x8] sm:$0xff]
      %v1319 = vld [vmem:[%s1316 + $0x10] sm:$0xff]
      %v1320 = vld [vmem:[%s1316 + $0x18] sm:$0x7f]
      %v1322 = vsel %vm399, %v1314, 0
      %v1325 = vsel %vm399, %v1315, 0
      %v1328 = vsel %vm406, %v1320, 0
      %1330 = vmatprep.subr.mxu0 0.0
      %1331 = vmatpush1.msra.mxu0 0.0
      %1332 = vmatprep.subr.mxu0 0.0
      %1333 = vmatpush1.msra.mxu0 0.0
      %1334 = vmatprep.subr.mxu0 0.0
      %1335 = vmatpush1.msra.mxu0 0.0
      %1336 = vmatprep.subr.mxu0 0.0
      %1337 = vmatpush1.msra.mxu0 0.0
      %1338 = vmatprep.subr.mxu0 0.0
      %1339 = vmatpush1.msra.mxu0 0.0
      %1340 = vmatprep.subr.mxu0 0.0
      %1341 = vmatpush1.msra.mxu0 0.0
      %1342 = vmatprep.subr.mxu0 0.0
      %1343 = vmatpush1.msra.mxu0 0.0
      %1344 = vmatprep.subr.mxu0 0.0
      %1345 = vmatpush1.msra.mxu0 0.0
      %1346 = vmatprep.subr.mxu0 0.0
      %1347 = vmatpush1.msra.mxu0 0.0
      %1348 = vmatprep.subr.mxu0 0.0
      %1349 = vmatpush1.msra.mxu0 0.0
      %1350 = vmatprep.subr.mxu0 0.0
      %1351 = vmatpush1.msra.mxu0 0.0
      %1352 = vmatprep.subr.mxu0 0.0
      %1353 = vmatpush1.msra.mxu0 0.0
      %1354 = vmatprep.subr.mxu0 0.0
      %1355 = vmatpush1.msra.mxu0 %v1328
      %1356 = vmatprep.subr.mxu0 0.0
      %1357 = vmatpush1.msra.mxu0 %v1319
      %1358 = vmatprep.subr.mxu0 0.0
      %1359 = vmatpush1.msra.mxu0 %v1318
      %1360 = vmatprep.subr.mxu0 0.0
      %1361 = vmatpush1.msra.mxu0 %v1317
      %1362 = vmatprep.subr.mxu0 0.0
      %1363 = vmatpush2.msra.mxu0 0.0
      %1364 = vmatprep.subr.mxu0 0.0
      %1365 = vmatpush2.msra.mxu0 0.0
      %1366 = vmatprep.subr.mxu0 0.0
      %1367 = vmatpush2.msra.mxu0 0.0
      %1368 = vmatprep.subr.mxu0 0.0
      %1369 = vmatpush2.msra.mxu0 0.0
      %1370 = vmatprep.subr.mxu0 0.0
      %1371 = vmatpush2.msra.mxu0 0.0
      %1372 = vmatprep.subr.mxu0 0.0
      %1373 = vmatpush2.msra.mxu0 0.0
      %1374 = vmatprep.subr.mxu0 0.0
      %1375 = vmatpush2.msra.mxu0 0.0
      %1376 = vmatprep.subr.mxu0 0.0
      %1377 = vmatpush2.msra.mxu0 0.0
      %1378 = vmatprep.subr.mxu0 0.0
      %1379 = vmatpush2.msra.mxu0 0.0
      %1380 = vmatprep.subr.mxu0 0.0
      %1381 = vmatpush2.msra.mxu0 0.0
      %1382 = vmatprep.subr.mxu0 0.0
      %1383 = vmatpush2.msra.mxu0 0.0
      %1384 = vmatprep.subr.mxu0 0.0
      %1385 = vmatpush2.msra.mxu0 0.0
      %1386 = vmatprep.subr.mxu0 0.0
      %1387 = vmatpush2.msra.mxu0 0.0
      %1388 = vmatprep.subr.mxu0 0.0
      %1389 = vmatpush2.msra.mxu0 0.0
      %1390 = vmatprep.subr.mxu0 0.0
      %1391 = vmatpush2.msra.mxu0 0.0
      %1392 = vmatprep.subr.mxu0 0.0
      %1393 = vmatpush2.msra.mxu0 0.0
      %1394 = vmatprep.mubr.f32.mxu0 0.0
      %1395 = vmatmul.mubr.f32.gmra.mxu0 %v1322
      %v1396 = vpop.f32.mrf.mxu0
      %v1397 = vadd.f32 0.0, %v1396
      %v1398 = vpop.f32.mrf.mxu0
      %1399 = vmatprep.mubr.f32.mxu0 0.0
      %1400 = vmatmul.mubr.f32.gmra.mxu0 %v1325
      %v1401 = vpop.f32.mrf.mxu0
      %v1402 = vadd.f32 0.0, %v1401
      %v1403 = vpop.f32.mrf.mxu0
      %1404 = vdwg.mxu0
      %v1405 = vadd.f32 %v1312, %v1397
      %v1406 = vadd.f32 %v1313, %v1402
      %v1407 = vld [vmem:[%s569 + $0x3] sm:$0xff]
      %v1408 = vld [vmem:[%s569 + $0xb] sm:$0xff]
      %s1409 = scalar_lea.vmem %s1, 352
      %v1410 = vld [vmem:[%s1409] sm:$0xff]
      %v1411 = vld [vmem:[%s1409 + $0x8] sm:$0xff]
      %v1412 = vld [vmem:[%s1409 + $0x10] sm:$0xff]
      %v1413 = vld [vmem:[%s1409 + $0x18] sm:$0x7f]
      %v1415 = vsel %vm399, %v1407, 0
      %v1418 = vsel %vm399, %v1408, 0
      %v1421 = vsel %vm406, %v1413, 0
      %1423 = vmatprep.subr.mxu0 0.0
      %1424 = vmatpush1.msra.mxu0 0.0
      %1425 = vmatprep.subr.mxu0 0.0
      %1426 = vmatpush1.msra.mxu0 0.0
      %1427 = vmatprep.subr.mxu0 0.0
      %1428 = vmatpush1.msra.mxu0 0.0
      %1429 = vmatprep.subr.mxu0 0.0
      %1430 = vmatpush1.msra.mxu0 0.0
      %1431 = vmatprep.subr.mxu0 0.0
      %1432 = vmatpush1.msra.mxu0 0.0
      %1433 = vmatprep.subr.mxu0 0.0
      %1434 = vmatpush1.msra.mxu0 0.0
      %1435 = vmatprep.subr.mxu0 0.0
      %1436 = vmatpush1.msra.mxu0 0.0
      %1437 = vmatprep.subr.mxu0 0.0
      %1438 = vmatpush1.msra.mxu0 0.0
      %1439 = vmatprep.subr.mxu0 0.0
      %1440 = vmatpush1.msra.mxu0 0.0
      %1441 = vmatprep.subr.mxu0 0.0
      %1442 = vmatpush1.msra.mxu0 0.0
      %1443 = vmatprep.subr.mxu0 0.0
      %1444 = vmatpush1.msra.mxu0 0.0
      %1445 = vmatprep.subr.mxu0 0.0
      %1446 = vmatpush1.msra.mxu0 0.0
      %1447 = vmatprep.subr.mxu0 0.0
      %1448 = vmatpush1.msra.mxu0 %v1421
      %1449 = vmatprep.subr.mxu0 0.0
      %1450 = vmatpush1.msra.mxu0 %v1412
      %1451 = vmatprep.subr.mxu0 0.0
      %1452 = vmatpush1.msra.mxu0 %v1411
      %1453 = vmatprep.subr.mxu0 0.0
      %1454 = vmatpush1.msra.mxu0 %v1410
      %1455 = vmatprep.subr.mxu0 0.0
      %1456 = vmatpush2.msra.mxu0 0.0
      %1457 = vmatprep.subr.mxu0 0.0
      %1458 = vmatpush2.msra.mxu0 0.0
      %1459 = vmatprep.subr.mxu0 0.0
      %1460 = vmatpush2.msra.mxu0 0.0
      %1461 = vmatprep.subr.mxu0 0.0
      %1462 = vmatpush2.msra.mxu0 0.0
      %1463 = vmatprep.subr.mxu0 0.0
      %1464 = vmatpush2.msra.mxu0 0.0
      %1465 = vmatprep.subr.mxu0 0.0
      %1466 = vmatpush2.msra.mxu0 0.0
      %1467 = vmatprep.subr.mxu0 0.0
      %1468 = vmatpush2.msra.mxu0 0.0
      %1469 = vmatprep.subr.mxu0 0.0
      %1470 = vmatpush2.msra.mxu0 0.0
      %1471 = vmatprep.subr.mxu0 0.0
      %1472 = vmatpush2.msra.mxu0 0.0
      %1473 = vmatprep.subr.mxu0 0.0
      %1474 = vmatpush2.msra.mxu0 0.0
      %1475 = vmatprep.subr.mxu0 0.0
      %1476 = vmatpush2.msra.mxu0 0.0
      %1477 = vmatprep.subr.mxu0 0.0
      %1478 = vmatpush2.msra.mxu0 0.0
      %1479 = vmatprep.subr.mxu0 0.0
      %1480 = vmatpush2.msra.mxu0 0.0
      %1481 = vmatprep.subr.mxu0 0.0
      %1482 = vmatpush2.msra.mxu0 0.0
      %1483 = vmatprep.subr.mxu0 0.0
      %1484 = vmatpush2.msra.mxu0 0.0
      %1485 = vmatprep.subr.mxu0 0.0
      %1486 = vmatpush2.msra.mxu0 0.0
      %1487 = vmatprep.mubr.f32.mxu0 0.0
      %1488 = vmatmul.mubr.f32.gmra.mxu0 %v1415
      %v1489 = vpop.f32.mrf.mxu0
      %v1490 = vadd.f32 0.0, %v1489
      %v1491 = vpop.f32.mrf.mxu0
      %1492 = vmatprep.mubr.f32.mxu0 0.0
      %1493 = vmatmul.mubr.f32.gmra.mxu0 %v1418
      %v1494 = vpop.f32.mrf.mxu0
      %v1495 = vadd.f32 0.0, %v1494
      %v1496 = vpop.f32.mrf.mxu0
      %1497 = vdwg.mxu0
      %v1498 = vadd.f32 %v1405, %v1490
      %v1499 = vadd.f32 %v1406, %v1495
      %v1500 = vld [vmem:[%s381 + $0x4] sm:$0xff]
      %v1501 = vld [vmem:[%s381 + $0xc] sm:$0xff]
      %s1502 = scalar_lea.vmem %s1, 384
      %v1503 = vld [vmem:[%s1502] sm:$0xff]
      %v1504 = vld [vmem:[%s1502 + $0x8] sm:$0xff]
      %v1505 = vld [vmem:[%s1502 + $0x10] sm:$0xff]
      %v1506 = vld [vmem:[%s1502 + $0x18] sm:$0x7f]
      %v1508 = vsel %vm399, %v1500, 0
      %v1511 = vsel %vm399, %v1501, 0
      %v1514 = vsel %vm406, %v1506, 0
      %1516 = vmatprep.subr.mxu0 0.0
      %1517 = vmatpush1.msra.mxu0 0.0
      %1518 = vmatprep.subr.mxu0 0.0
      %1519 = vmatpush1.msra.mxu0 0.0
      %1520 = vmatprep.subr.mxu0 0.0
      %1521 = vmatpush1.msra.mxu0 0.0
      %1522 = vmatprep.subr.mxu0 0.0
      %1523 = vmatpush1.msra.mxu0 0.0
      %1524 = vmatprep.subr.mxu0 0.0
      %1525 = vmatpush1.msra.mxu0 0.0
      %1526 = vmatprep.subr.mxu0 0.0
      %1527 = vmatpush1.msra.mxu0 0.0
      %1528 = vmatprep.subr.mxu0 0.0
      %1529 = vmatpush1.msra.mxu0 0.0
      %1530 = vmatprep.subr.mxu0 0.0
      %1531 = vmatpush1.msra.mxu0 0.0
      %1532 = vmatprep.subr.mxu0 0.0
      %1533 = vmatpush1.msra.mxu0 0.0
      %1534 = vmatprep.subr.mxu0 0.0
      %1535 = vmatpush1.msra.mxu0 0.0
      %1536 = vmatprep.subr.mxu0 0.0
      %1537 = vmatpush1.msra.mxu0 0.0
      %1538 = vmatprep.subr.mxu0 0.0
      %1539 = vmatpush1.msra.mxu0 0.0
      %1540 = vmatprep.subr.mxu0 0.0
      %1541 = vmatpush1.msra.mxu0 %v1514
      %1542 = vmatprep.subr.mxu0 0.0
      %1543 = vmatpush1.msra.mxu0 %v1505
      %1544 = vmatprep.subr.mxu0 0.0
      %1545 = vmatpush1.msra.mxu0 %v1504
      %1546 = vmatprep.subr.mxu0 0.0
      %1547 = vmatpush1.msra.mxu0 %v1503
      %1548 = vmatprep.subr.mxu0 0.0
      %1549 = vmatpush2.msra.mxu0 0.0
      %1550 = vmatprep.subr.mxu0 0.0
      %1551 = vmatpush2.msra.mxu0 0.0
      %1552 = vmatprep.subr.mxu0 0.0
      %1553 = vmatpush2.msra.mxu0 0.0
      %1554 = vmatprep.subr.mxu0 0.0
      %1555 = vmatpush2.msra.mxu0 0.0
      %1556 = vmatprep.subr.mxu0 0.0
      %1557 = vmatpush2.msra.mxu0 0.0
      %1558 = vmatprep.subr.mxu0 0.0
      %1559 = vmatpush2.msra.mxu0 0.0
      %1560 = vmatprep.subr.mxu0 0.0
      %1561 = vmatpush2.msra.mxu0 0.0
      %1562 = vmatprep.subr.mxu0 0.0
      %1563 = vmatpush2.msra.mxu0 0.0
      %1564 = vmatprep.subr.mxu0 0.0
      %1565 = vmatpush2.msra.mxu0 0.0
      %1566 = vmatprep.subr.mxu0 0.0
      %1567 = vmatpush2.msra.mxu0 0.0
      %1568 = vmatprep.subr.mxu0 0.0
      %1569 = vmatpush2.msra.mxu0 0.0
      %1570 = vmatprep.subr.mxu0 0.0
      %1571 = vmatpush2.msra.mxu0 0.0
      %1572 = vmatprep.subr.mxu0 0.0
      %1573 = vmatpush2.msra.mxu0 0.0
      %1574 = vmatprep.subr.mxu0 0.0
      %1575 = vmatpush2.msra.mxu0 0.0
      %1576 = vmatprep.subr.mxu0 0.0
      %1577 = vmatpush2.msra.mxu0 0.0
      %1578 = vmatprep.subr.mxu0 0.0
      %1579 = vmatpush2.msra.mxu0 0.0
      %1580 = vmatprep.mubr.f32.mxu0 0.0
      %1581 = vmatmul.mubr.f32.gmra.mxu0 %v1508
      %v1582 = vpop.f32.mrf.mxu0
      %v1583 = vadd.f32 0.0, %v1582
      %v1584 = vpop.f32.mrf.mxu0
      %1585 = vmatprep.mubr.f32.mxu0 0.0
      %1586 = vmatmul.mubr.f32.gmra.mxu0 %v1511
      %v1587 = vpop.f32.mrf.mxu0
      %v1588 = vadd.f32 0.0, %v1587
      %v1589 = vpop.f32.mrf.mxu0
      %1590 = vdwg.mxu0
      %v1591 = vadd.f32 %v1498, %v1583
      %v1592 = vadd.f32 %v1499, %v1588
      %v1593 = vld [vmem:[%s391 + $0x4] sm:$0xff]
      %v1594 = vld [vmem:[%s391 + $0xc] sm:$0xff]
      %s1595 = scalar_lea.vmem %s1, 416
      %v1596 = vld [vmem:[%s1595] sm:$0xff]
      %v1597 = vld [vmem:[%s1595 + $0x8] sm:$0xff]
      %v1598 = vld [vmem:[%s1595 + $0x10] sm:$0xff]
      %v1599 = vld [vmem:[%s1595 + $0x18] sm:$0x7f]
      %v1601 = vsel %vm399, %v1593, 0
      %v1604 = vsel %vm399, %v1594, 0
      %v1607 = vsel %vm406, %v1599, 0
      %1609 = vmatprep.subr.mxu0 0.0
      %1610 = vmatpush1.msra.mxu0 0.0
      %1611 = vmatprep.subr.mxu0 0.0
      %1612 = vmatpush1.msra.mxu0 0.0
      %1613 = vmatprep.subr.mxu0 0.0
      %1614 = vmatpush1.msra.mxu0 0.0
      %1615 = vmatprep.subr.mxu0 0.0
      %1616 = vmatpush1.msra.mxu0 0.0
      %1617 = vmatprep.subr.mxu0 0.0
      %1618 = vmatpush1.msra.mxu0 0.0
      %1619 = vmatprep.subr.mxu0 0.0
      %1620 = vmatpush1.msra.mxu0 0.0
      %1621 = vmatprep.subr.mxu0 0.0
      %1622 = vmatpush1.msra.mxu0 0.0
      %1623 = vmatprep.subr.mxu0 0.0
      %1624 = vmatpush1.msra.mxu0 0.0
      %1625 = vmatprep.subr.mxu0 0.0
      %1626 = vmatpush1.msra.mxu0 0.0
      %1627 = vmatprep.subr.mxu0 0.0
      %1628 = vmatpush1.msra.mxu0 0.0
      %1629 = vmatprep.subr.mxu0 0.0
      %1630 = vmatpush1.msra.mxu0 0.0
      %1631 = vmatprep.subr.mxu0 0.0
      %1632 = vmatpush1.msra.mxu0 0.0
      %1633 = vmatprep.subr.mxu0 0.0
      %1634 = vmatpush1.msra.mxu0 %v1607
      %1635 = vmatprep.subr.mxu0 0.0
      %1636 = vmatpush1.msra.mxu0 %v1598
      %1637 = vmatprep.subr.mxu0 0.0
      %1638 = vmatpush1.msra.mxu0 %v1597
      %1639 = vmatprep.subr.mxu0 0.0
      %1640 = vmatpush1.msra.mxu0 %v1596
      %1641 = vmatprep.subr.mxu0 0.0
      %1642 = vmatpush2.msra.mxu0 0.0
      %1643 = vmatprep.subr.mxu0 0.0
      %1644 = vmatpush2.msra.mxu0 0.0
      %1645 = vmatprep.subr.mxu0 0.0
      %1646 = vmatpush2.msra.mxu0 0.0
      %1647 = vmatprep.subr.mxu0 0.0
      %1648 = vmatpush2.msra.mxu0 0.0
      %1649 = vmatprep.subr.mxu0 0.0
      %1650 = vmatpush2.msra.mxu0 0.0
      %1651 = vmatprep.subr.mxu0 0.0
      %1652 = vmatpush2.msra.mxu0 0.0
      %1653 = vmatprep.subr.mxu0 0.0
      %1654 = vmatpush2.msra.mxu0 0.0
      %1655 = vmatprep.subr.mxu0 0.0
      %1656 = vmatpush2.msra.mxu0 0.0
      %1657 = vmatprep.subr.mxu0 0.0
      %1658 = vmatpush2.msra.mxu0 0.0
      %1659 = vmatprep.subr.mxu0 0.0
      %1660 = vmatpush2.msra.mxu0 0.0
      %1661 = vmatprep.subr.mxu0 0.0
      %1662 = vmatpush2.msra.mxu0 0.0
      %1663 = vmatprep.subr.mxu0 0.0
      %1664 = vmatpush2.msra.mxu0 0.0
      %1665 = vmatprep.subr.mxu0 0.0
      %1666 = vmatpush2.msra.mxu0 0.0
      %1667 = vmatprep.subr.mxu0 0.0
      %1668 = vmatpush2.msra.mxu0 0.0
      %1669 = vmatprep.subr.mxu0 0.0
      %1670 = vmatpush2.msra.mxu0 0.0
      %1671 = vmatprep.subr.mxu0 0.0
      %1672 = vmatpush2.msra.mxu0 0.0
      %1673 = vmatprep.mubr.f32.mxu0 0.0
      %1674 = vmatmul.mubr.f32.gmra.mxu0 %v1601
      %v1675 = vpop.f32.mrf.mxu0
      %v1676 = vadd.f32 0.0, %v1675
      %v1677 = vpop.f32.mrf.mxu0
      %1678 = vmatprep.mubr.f32.mxu0 0.0
      %1679 = vmatmul.mubr.f32.gmra.mxu0 %v1604
      %v1680 = vpop.f32.mrf.mxu0
      %v1681 = vadd.f32 0.0, %v1680
      %v1682 = vpop.f32.mrf.mxu0
      %1683 = vdwg.mxu0
      %v1684 = vadd.f32 %v1591, %v1676
      %v1685 = vadd.f32 %v1592, %v1681
      %v1686 = vld [vmem:[%s569 + $0x4] sm:$0xff]
      %v1687 = vld [vmem:[%s569 + $0xc] sm:$0xff]
      %s1688 = scalar_lea.vmem %s1, 448
      %v1689 = vld [vmem:[%s1688] sm:$0xff]
      %v1690 = vld [vmem:[%s1688 + $0x8] sm:$0xff]
      %v1691 = vld [vmem:[%s1688 + $0x10] sm:$0xff]
      %v1692 = vld [vmem:[%s1688 + $0x18] sm:$0x7f]
      %v1694 = vsel %vm399, %v1686, 0
      %v1697 = vsel %vm399, %v1687, 0
      %v1700 = vsel %vm406, %v1692, 0
      %1702 = vmatprep.subr.mxu0 0.0
      %1703 = vmatpush1.msra.mxu0 0.0
      %1704 = vmatprep.subr.mxu0 0.0
      %1705 = vmatpush1.msra.mxu0 0.0
      %1706 = vmatprep.subr.mxu0 0.0
      %1707 = vmatpush1.msra.mxu0 0.0
      %1708 = vmatprep.subr.mxu0 0.0
      %1709 = vmatpush1.msra.mxu0 0.0
      %1710 = vmatprep.subr.mxu0 0.0
      %1711 = vmatpush1.msra.mxu0 0.0
      %1712 = vmatprep.subr.mxu0 0.0
      %1713 = vmatpush1.msra.mxu0 0.0
      %1714 = vmatprep.subr.mxu0 0.0
      %1715 = vmatpush1.msra.mxu0 0.0
      %1716 = vmatprep.subr.mxu0 0.0
      %1717 = vmatpush1.msra.mxu0 0.0
      %1718 = vmatprep.subr.mxu0 0.0
      %1719 = vmatpush1.msra.mxu0 0.0
      %1720 = vmatprep.subr.mxu0 0.0
      %1721 = vmatpush1.msra.mxu0 0.0
      %1722 = vmatprep.subr.mxu0 0.0
      %1723 = vmatpush1.msra.mxu0 0.0
      %1724 = vmatprep.subr.mxu0 0.0
      %1725 = vmatpush1.msra.mxu0 0.0
      %1726 = vmatprep.subr.mxu0 0.0
      %1727 = vmatpush1.msra.mxu0 %v1700
      %1728 = vmatprep.subr.mxu0 0.0
      %1729 = vmatpush1.msra.mxu0 %v1691
      %1730 = vmatprep.subr.mxu0 0.0
      %1731 = vmatpush1.msra.mxu0 %v1690
      %1732 = vmatprep.subr.mxu0 0.0
      %1733 = vmatpush1.msra.mxu0 %v1689
      %1734 = vmatprep.subr.mxu0 0.0
      %1735 = vmatpush2.msra.mxu0 0.0
      %1736 = vmatprep.subr.mxu0 0.0
      %1737 = vmatpush2.msra.mxu0 0.0
      %1738 = vmatprep.subr.mxu0 0.0
      %1739 = vmatpush2.msra.mxu0 0.0
      %1740 = vmatprep.subr.mxu0 0.0
      %1741 = vmatpush2.msra.mxu0 0.0
      %1742 = vmatprep.subr.mxu0 0.0
      %1743 = vmatpush2.msra.mxu0 0.0
      %1744 = vmatprep.subr.mxu0 0.0
      %1745 = vmatpush2.msra.mxu0 0.0
      %1746 = vmatprep.subr.mxu0 0.0
      %1747 = vmatpush2.msra.mxu0 0.0
      %1748 = vmatprep.subr.mxu0 0.0
      %1749 = vmatpush2.msra.mxu0 0.0
      %1750 = vmatprep.subr.mxu0 0.0
      %1751 = vmatpush2.msra.mxu0 0.0
      %1752 = vmatprep.subr.mxu0 0.0
      %1753 = vmatpush2.msra.mxu0 0.0
      %1754 = vmatprep.subr.mxu0 0.0
      %1755 = vmatpush2.msra.mxu0 0.0
      %1756 = vmatprep.subr.mxu0 0.0
      %1757 = vmatpush2.msra.mxu0 0.0
      %1758 = vmatprep.subr.mxu0 0.0
      %1759 = vmatpush2.msra.mxu0 0.0
      %1760 = vmatprep.subr.mxu0 0.0
      %1761 = vmatpush2.msra.mxu0 0.0
      %1762 = vmatprep.subr.mxu0 0.0
      %1763 = vmatpush2.msra.mxu0 0.0
      %1764 = vmatprep.subr.mxu0 0.0
      %1765 = vmatpush2.msra.mxu0 0.0
      %1766 = vmatprep.mubr.f32.mxu0 0.0
      %1767 = vmatmul.mubr.f32.gmra.mxu0 %v1694
      %v1768 = vpop.f32.mrf.mxu0
      %v1769 = vadd.f32 0.0, %v1768
      %v1770 = vpop.f32.mrf.mxu0
      %1771 = vmatprep.mubr.f32.mxu0 0.0
      %1772 = vmatmul.mubr.f32.gmra.mxu0 %v1697
      %v1773 = vpop.f32.mrf.mxu0
      %v1774 = vadd.f32 0.0, %v1773
      %v1775 = vpop.f32.mrf.mxu0
      %1776 = vdwg.mxu0
      %v1777 = vadd.f32 %v1684, %v1769
      %v1778 = vadd.f32 %v1685, %v1774
      %v1779 = vld [vmem:[%s381 + $0x5] sm:$0xff]
      %v1780 = vld [vmem:[%s381 + $0xd] sm:$0xff]
      %s1781 = scalar_lea.vmem %s1, 480
      %v1782 = vld [vmem:[%s1781] sm:$0xff]
      %v1783 = vld [vmem:[%s1781 + $0x8] sm:$0xff]
      %v1784 = vld [vmem:[%s1781 + $0x10] sm:$0xff]
      %v1785 = vld [vmem:[%s1781 + $0x18] sm:$0x7f]
      %v1787 = vsel %vm399, %v1779, 0
      %v1790 = vsel %vm399, %v1780, 0
      %v1793 = vsel %vm406, %v1785, 0
      %1795 = vmatprep.subr.mxu0 0.0
      %1796 = vmatpush1.msra.mxu0 0.0
      %1797 = vmatprep.subr.mxu0 0.0
      %1798 = vmatpush1.msra.mxu0 0.0
      %1799 = vmatprep.subr.mxu0 0.0
      %1800 = vmatpush1.msra.mxu0 0.0
      %1801 = vmatprep.subr.mxu0 0.0
      %1802 = vmatpush1.msra.mxu0 0.0
      %1803 = vmatprep.subr.mxu0 0.0
      %1804 = vmatpush1.msra.mxu0 0.0
      %1805 = vmatprep.subr.mxu0 0.0
      %1806 = vmatpush1.msra.mxu0 0.0
      %1807 = vmatprep.subr.mxu0 0.0
      %1808 = vmatpush1.msra.mxu0 0.0
      %1809 = vmatprep.subr.mxu0 0.0
      %1810 = vmatpush1.msra.mxu0 0.0
      %1811 = vmatprep.subr.mxu0 0.0
      %1812 = vmatpush1.msra.mxu0 0.0
      %1813 = vmatprep.subr.mxu0 0.0
      %1814 = vmatpush1.msra.mxu0 0.0
      %1815 = vmatprep.subr.mxu0 0.0
      %1816 = vmatpush1.msra.mxu0 0.0
      %1817 = vmatprep.subr.mxu0 0.0
      %1818 = vmatpush1.msra.mxu0 0.0
      %1819 = vmatprep.subr.mxu0 0.0
      %1820 = vmatpush1.msra.mxu0 %v1793
      %1821 = vmatprep.subr.mxu0 0.0
      %1822 = vmatpush1.msra.mxu0 %v1784
      %1823 = vmatprep.subr.mxu0 0.0
      %1824 = vmatpush1.msra.mxu0 %v1783
      %1825 = vmatprep.subr.mxu0 0.0
      %1826 = vmatpush1.msra.mxu0 %v1782
      %1827 = vmatprep.subr.mxu0 0.0
      %1828 = vmatpush2.msra.mxu0 0.0
      %1829 = vmatprep.subr.mxu0 0.0
      %1830 = vmatpush2.msra.mxu0 0.0
      %1831 = vmatprep.subr.mxu0 0.0
      %1832 = vmatpush2.msra.mxu0 0.0
      %1833 = vmatprep.subr.mxu0 0.0
      %1834 = vmatpush2.msra.mxu0 0.0
      %1835 = vmatprep.subr.mxu0 0.0
      %1836 = vmatpush2.msra.mxu0 0.0
      %1837 = vmatprep.subr.mxu0 0.0
      %1838 = vmatpush2.msra.mxu0 0.0
      %1839 = vmatprep.subr.mxu0 0.0
      %1840 = vmatpush2.msra.mxu0 0.0
      %1841 = vmatprep.subr.mxu0 0.0
      %1842 = vmatpush2.msra.mxu0 0.0
      %1843 = vmatprep.subr.mxu0 0.0
      %1844 = vmatpush2.msra.mxu0 0.0
      %1845 = vmatprep.subr.mxu0 0.0
      %1846 = vmatpush2.msra.mxu0 0.0
      %1847 = vmatprep.subr.mxu0 0.0
      %1848 = vmatpush2.msra.mxu0 0.0
      %1849 = vmatprep.subr.mxu0 0.0
      %1850 = vmatpush2.msra.mxu0 0.0
      %1851 = vmatprep.subr.mxu0 0.0
      %1852 = vmatpush2.msra.mxu0 0.0
      %1853 = vmatprep.subr.mxu0 0.0
      %1854 = vmatpush2.msra.mxu0 0.0
      %1855 = vmatprep.subr.mxu0 0.0
      %1856 = vmatpush2.msra.mxu0 0.0
      %1857 = vmatprep.subr.mxu0 0.0
      %1858 = vmatpush2.msra.mxu0 0.0
      %1859 = vmatprep.mubr.f32.mxu0 0.0
      %1860 = vmatmul.mubr.f32.gmra.mxu0 %v1787
      %v1861 = vpop.f32.mrf.mxu0
      %v1862 = vadd.f32 0.0, %v1861
      %v1863 = vpop.f32.mrf.mxu0
      %1864 = vmatprep.mubr.f32.mxu0 0.0
      %1865 = vmatmul.mubr.f32.gmra.mxu0 %v1790
      %v1866 = vpop.f32.mrf.mxu0
      %v1867 = vadd.f32 0.0, %v1866
      %v1868 = vpop.f32.mrf.mxu0
      %1869 = vdwg.mxu0
      %v1870 = vadd.f32 %v1777, %v1862
      %v1871 = vadd.f32 %v1778, %v1867
      %v1872 = vld [vmem:[%s391 + $0x5] sm:$0xff]
      %v1873 = vld [vmem:[%s391 + $0xd] sm:$0xff]
      %s1874 = scalar_lea.vmem %s1, 512
      %v1875 = vld [vmem:[%s1874] sm:$0xff]
      %v1876 = vld [vmem:[%s1874 + $0x8] sm:$0xff]
      %v1877 = vld [vmem:[%s1874 + $0x10] sm:$0xff]
      %v1878 = vld [vmem:[%s1874 + $0x18] sm:$0x7f]
      %v1880 = vsel %vm399, %v1872, 0
      %v1883 = vsel %vm399, %v1873, 0
      %v1886 = vsel %vm406, %v1878, 0
      %1888 = vmatprep.subr.mxu0 0.0
      %1889 = vmatpush1.msra.mxu0 0.0
      %1890 = vmatprep.subr.mxu0 0.0
      %1891 = vmatpush1.msra.mxu0 0.0
      %1892 = vmatprep.subr.mxu0 0.0
      %1893 = vmatpush1.msra.mxu0 0.0
      %1894 = vmatprep.subr.mxu0 0.0
      %1895 = vmatpush1.msra.mxu0 0.0
      %1896 = vmatprep.subr.mxu0 0.0
      %1897 = vmatpush1.msra.mxu0 0.0
      %1898 = vmatprep.subr.mxu0 0.0
      %1899 = vmatpush1.msra.mxu0 0.0
      %1900 = vmatprep.subr.mxu0 0.0
      %1901 = vmatpush1.msra.mxu0 0.0
      %1902 = vmatprep.subr.mxu0 0.0
      %1903 = vmatpush1.msra.mxu0 0.0
      %1904 = vmatprep.subr.mxu0 0.0
      %1905 = vmatpush1.msra.mxu0 0.0
      %1906 = vmatprep.subr.mxu0 0.0
      %1907 = vmatpush1.msra.mxu0 0.0
      %1908 = vmatprep.subr.mxu0 0.0
      %1909 = vmatpush1.msra.mxu0 0.0
      %1910 = vmatprep.subr.mxu0 0.0
      %1911 = vmatpush1.msra.mxu0 0.0
      %1912 = vmatprep.subr.mxu0 0.0
      %1913 = vmatpush1.msra.mxu0 %v1886
      %1914 = vmatprep.subr.mxu0 0.0
      %1915 = vmatpush1.msra.mxu0 %v1877
      %1916 = vmatprep.subr.mxu0 0.0
      %1917 = vmatpush1.msra.mxu0 %v1876
      %1918 = vmatprep.subr.mxu0 0.0
      %1919 = vmatpush1.msra.mxu0 %v1875
      %1920 = vmatprep.subr.mxu0 0.0
      %1921 = vmatpush2.msra.mxu0 0.0
      %1922 = vmatprep.subr.mxu0 0.0
      %1923 = vmatpush2.msra.mxu0 0.0
      %1924 = vmatprep.subr.mxu0 0.0
      %1925 = vmatpush2.msra.mxu0 0.0
      %1926 = vmatprep.subr.mxu0 0.0
      %1927 = vmatpush2.msra.mxu0 0.0
      %1928 = vmatprep.subr.mxu0 0.0
      %1929 = vmatpush2.msra.mxu0 0.0
      %1930 = vmatprep.subr.mxu0 0.0
      %1931 = vmatpush2.msra.mxu0 0.0
      %1932 = vmatprep.subr.mxu0 0.0
      %1933 = vmatpush2.msra.mxu0 0.0
      %1934 = vmatprep.subr.mxu0 0.0
      %1935 = vmatpush2.msra.mxu0 0.0
      %1936 = vmatprep.subr.mxu0 0.0
      %1937 = vmatpush2.msra.mxu0 0.0
      %1938 = vmatprep.subr.mxu0 0.0
      %1939 = vmatpush2.msra.mxu0 0.0
      %1940 = vmatprep.subr.mxu0 0.0
      %1941 = vmatpush2.msra.mxu0 0.0
      %1942 = vmatprep.subr.mxu0 0.0
      %1943 = vmatpush2.msra.mxu0 0.0
      %1944 = vmatprep.subr.mxu0 0.0
      %1945 = vmatpush2.msra.mxu0 0.0
      %1946 = vmatprep.subr.mxu0 0.0
      %1947 = vmatpush2.msra.mxu0 0.0
      %1948 = vmatprep.subr.mxu0 0.0
      %1949 = vmatpush2.msra.mxu0 0.0
      %1950 = vmatprep.subr.mxu0 0.0
      %1951 = vmatpush2.msra.mxu0 0.0
      %1952 = vmatprep.mubr.f32.mxu0 0.0
      %1953 = vmatmul.mubr.f32.gmra.mxu0 %v1880
      %v1954 = vpop.f32.mrf.mxu0
      %v1955 = vadd.f32 0.0, %v1954
      %v1956 = vpop.f32.mrf.mxu0
      %1957 = vmatprep.mubr.f32.mxu0 0.0
      %1958 = vmatmul.mubr.f32.gmra.mxu0 %v1883
      %v1959 = vpop.f32.mrf.mxu0
      %v1960 = vadd.f32 0.0, %v1959
      %v1961 = vpop.f32.mrf.mxu0
      %1962 = vdwg.mxu0
      %v1963 = vadd.f32 %v1870, %v1955
      %v1964 = vadd.f32 %v1871, %v1960
      %v1965 = vld [vmem:[%s569 + $0x5] sm:$0xff]
      %v1966 = vld [vmem:[%s569 + $0xd] sm:$0xff]
      %s1967 = scalar_lea.vmem %s1, 544
      %v1968 = vld [vmem:[%s1967] sm:$0xff]
      %v1969 = vld [vmem:[%s1967 + $0x8] sm:$0xff]
      %v1970 = vld [vmem:[%s1967 + $0x10] sm:$0xff]
      %v1971 = vld [vmem:[%s1967 + $0x18] sm:$0x7f]
      %v1973 = vsel %vm399, %v1965, 0
      %v1976 = vsel %vm399, %v1966, 0
      %v1979 = vsel %vm406, %v1971, 0
      %1981 = vmatprep.subr.mxu0 0.0
      %1982 = vmatpush1.msra.mxu0 0.0
      %1983 = vmatprep.subr.mxu0 0.0
      %1984 = vmatpush1.msra.mxu0 0.0
      %1985 = vmatprep.subr.mxu0 0.0
      %1986 = vmatpush1.msra.mxu0 0.0
      %1987 = vmatprep.subr.mxu0 0.0
      %1988 = vmatpush1.msra.mxu0 0.0
      %1989 = vmatprep.subr.mxu0 0.0
      %1990 = vmatpush1.msra.mxu0 0.0
      %1991 = vmatprep.subr.mxu0 0.0
      %1992 = vmatpush1.msra.mxu0 0.0
      %1993 = vmatprep.subr.mxu0 0.0
      %1994 = vmatpush1.msra.mxu0 0.0
      %1995 = vmatprep.subr.mxu0 0.0
      %1996 = vmatpush1.msra.mxu0 0.0
      %1997 = vmatprep.subr.mxu0 0.0
      %1998 = vmatpush1.msra.mxu0 0.0
      %1999 = vmatprep.subr.mxu0 0.0
      %2000 = vmatpush1.msra.mxu0 0.0
      %2001 = vmatprep.subr.mxu0 0.0
      %2002 = vmatpush1.msra.mxu0 0.0
      %2003 = vmatprep.subr.mxu0 0.0
      %2004 = vmatpush1.msra.mxu0 0.0
      %2005 = vmatprep.subr.mxu0 0.0
      %2006 = vmatpush1.msra.mxu0 %v1979
      %2007 = vmatprep.subr.mxu0 0.0
      %2008 = vmatpush1.msra.mxu0 %v1970
      %2009 = vmatprep.subr.mxu0 0.0
      %2010 = vmatpush1.msra.mxu0 %v1969
      %2011 = vmatprep.subr.mxu0 0.0
      %2012 = vmatpush1.msra.mxu0 %v1968
      %2013 = vmatprep.subr.mxu0 0.0
      %2014 = vmatpush2.msra.mxu0 0.0
      %2015 = vmatprep.subr.mxu0 0.0
      %2016 = vmatpush2.msra.mxu0 0.0
      %2017 = vmatprep.subr.mxu0 0.0
      %2018 = vmatpush2.msra.mxu0 0.0
      %2019 = vmatprep.subr.mxu0 0.0
      %2020 = vmatpush2.msra.mxu0 0.0
      %2021 = vmatprep.subr.mxu0 0.0
      %2022 = vmatpush2.msra.mxu0 0.0
      %2023 = vmatprep.subr.mxu0 0.0
      %2024 = vmatpush2.msra.mxu0 0.0
      %2025 = vmatprep.subr.mxu0 0.0
      %2026 = vmatpush2.msra.mxu0 0.0
      %2027 = vmatprep.subr.mxu0 0.0
      %2028 = vmatpush2.msra.mxu0 0.0
      %2029 = vmatprep.subr.mxu0 0.0
      %2030 = vmatpush2.msra.mxu0 0.0
      %2031 = vmatprep.subr.mxu0 0.0
      %2032 = vmatpush2.msra.mxu0 0.0
      %2033 = vmatprep.subr.mxu0 0.0
      %2034 = vmatpush2.msra.mxu0 0.0
      %2035 = vmatprep.subr.mxu0 0.0
      %2036 = vmatpush2.msra.mxu0 0.0
      %2037 = vmatprep.subr.mxu0 0.0
      %2038 = vmatpush2.msra.mxu0 0.0
      %2039 = vmatprep.subr.mxu0 0.0
      %2040 = vmatpush2.msra.mxu0 0.0
      %2041 = vmatprep.subr.mxu0 0.0
      %2042 = vmatpush2.msra.mxu0 0.0
      %2043 = vmatprep.subr.mxu0 0.0
      %2044 = vmatpush2.msra.mxu0 0.0
      %2045 = vmatprep.mubr.f32.mxu0 0.0
      %2046 = vmatmul.mubr.f32.gmra.mxu0 %v1973
      %v2047 = vpop.f32.mrf.mxu0
      %v2048 = vadd.f32 0.0, %v2047
      %v2049 = vpop.f32.mrf.mxu0
      %2050 = vmatprep.mubr.f32.mxu0 0.0
      %2051 = vmatmul.mubr.f32.gmra.mxu0 %v1976
      %v2052 = vpop.f32.mrf.mxu0
      %v2053 = vadd.f32 0.0, %v2052
      %v2054 = vpop.f32.mrf.mxu0
      %2055 = vdwg.mxu0
      %v2056 = vadd.f32 %v1963, %v2048
      %v2057 = vadd.f32 %v1964, %v2053
      %v2058 = vld [vmem:[%s381 + $0x6] sm:$0xff]
      %v2059 = vld [vmem:[%s381 + $0xe] sm:$0xff]
      %s2060 = scalar_lea.vmem %s1, 576
      %v2061 = vld [vmem:[%s2060] sm:$0xff]
      %v2062 = vld [vmem:[%s2060 + $0x8] sm:$0xff]
      %v2063 = vld [vmem:[%s2060 + $0x10] sm:$0xff]
      %v2064 = vld [vmem:[%s2060 + $0x18] sm:$0x7f]
      %v2066 = vsel %vm399, %v2058, 0
      %v2069 = vsel %vm399, %v2059, 0
      %v2072 = vsel %vm406, %v2064, 0
      %2074 = vmatprep.subr.mxu0 0.0
      %2075 = vmatpush1.msra.mxu0 0.0
      %2076 = vmatprep.subr.mxu0 0.0
      %2077 = vmatpush1.msra.mxu0 0.0
      %2078 = vmatprep.subr.mxu0 0.0
      %2079 = vmatpush1.msra.mxu0 0.0
      %2080 = vmatprep.subr.mxu0 0.0
      %2081 = vmatpush1.msra.mxu0 0.0
      %2082 = vmatprep.subr.mxu0 0.0
      %2083 = vmatpush1.msra.mxu0 0.0
      %2084 = vmatprep.subr.mxu0 0.0
      %2085 = vmatpush1.msra.mxu0 0.0
      %2086 = vmatprep.subr.mxu0 0.0
      %2087 = vmatpush1.msra.mxu0 0.0
      %2088 = vmatprep.subr.mxu0 0.0
      %2089 = vmatpush1.msra.mxu0 0.0
      %2090 = vmatprep.subr.mxu0 0.0
      %2091 = vmatpush1.msra.mxu0 0.0
      %2092 = vmatprep.subr.mxu0 0.0
      %2093 = vmatpush1.msra.mxu0 0.0
      %2094 = vmatprep.subr.mxu0 0.0
      %2095 = vmatpush1.msra.mxu0 0.0
      %2096 = vmatprep.subr.mxu0 0.0
      %2097 = vmatpush1.msra.mxu0 0.0
      %2098 = vmatprep.subr.mxu0 0.0
      %2099 = vmatpush1.msra.mxu0 %v2072
      %2100 = vmatprep.subr.mxu0 0.0
      %2101 = vmatpush1.msra.mxu0 %v2063
      %2102 = vmatprep.subr.mxu0 0.0
      %2103 = vmatpush1.msra.mxu0 %v2062
      %2104 = vmatprep.subr.mxu0 0.0
      %2105 = vmatpush1.msra.mxu0 %v2061
      %2106 = vmatprep.subr.mxu0 0.0
      %2107 = vmatpush2.msra.mxu0 0.0
      %2108 = vmatprep.subr.mxu0 0.0
      %2109 = vmatpush2.msra.mxu0 0.0
      %2110 = vmatprep.subr.mxu0 0.0
      %2111 = vmatpush2.msra.mxu0 0.0
      %2112 = vmatprep.subr.mxu0 0.0
      %2113 = vmatpush2.msra.mxu0 0.0
      %2114 = vmatprep.subr.mxu0 0.0
      %2115 = vmatpush2.msra.mxu0 0.0
      %2116 = vmatprep.subr.mxu0 0.0
      %2117 = vmatpush2.msra.mxu0 0.0
      %2118 = vmatprep.subr.mxu0 0.0
      %2119 = vmatpush2.msra.mxu0 0.0
      %2120 = vmatprep.subr.mxu0 0.0
      %2121 = vmatpush2.msra.mxu0 0.0
      %2122 = vmatprep.subr.mxu0 0.0
      %2123 = vmatpush2.msra.mxu0 0.0
      %2124 = vmatprep.subr.mxu0 0.0
      %2125 = vmatpush2.msra.mxu0 0.0
      %2126 = vmatprep.subr.mxu0 0.0
      %2127 = vmatpush2.msra.mxu0 0.0
      %2128 = vmatprep.subr.mxu0 0.0
      %2129 = vmatpush2.msra.mxu0 0.0
      %2130 = vmatprep.subr.mxu0 0.0
      %2131 = vmatpush2.msra.mxu0 0.0
      %2132 = vmatprep.subr.mxu0 0.0
      %2133 = vmatpush2.msra.mxu0 0.0
      %2134 = vmatprep.subr.mxu0 0.0
      %2135 = vmatpush2.msra.mxu0 0.0
      %2136 = vmatprep.subr.mxu0 0.0
      %2137 = vmatpush2.msra.mxu0 0.0
      %2138 = vmatprep.mubr.f32.mxu0 0.0
      %2139 = vmatmul.mubr.f32.gmra.mxu0 %v2066
      %v2140 = vpop.f32.mrf.mxu0
      %v2141 = vadd.f32 0.0, %v2140
      %v2142 = vpop.f32.mrf.mxu0
      %2143 = vmatprep.mubr.f32.mxu0 0.0
      %2144 = vmatmul.mubr.f32.gmra.mxu0 %v2069
      %v2145 = vpop.f32.mrf.mxu0
      %v2146 = vadd.f32 0.0, %v2145
      %v2147 = vpop.f32.mrf.mxu0
      %2148 = vdwg.mxu0
      %v2149 = vadd.f32 %v2056, %v2141
      %v2150 = vadd.f32 %v2057, %v2146
      %v2151 = vld [vmem:[%s391 + $0x6] sm:$0xff]
      %v2152 = vld [vmem:[%s391 + $0xe] sm:$0xff]
      %s2153 = scalar_lea.vmem %s1, 608
      %v2154 = vld [vmem:[%s2153] sm:$0xff]
      %v2155 = vld [vmem:[%s2153 + $0x8] sm:$0xff]
      %v2156 = vld [vmem:[%s2153 + $0x10] sm:$0xff]
      %v2157 = vld [vmem:[%s2153 + $0x18] sm:$0x7f]
      %v2159 = vsel %vm399, %v2151, 0
      %v2162 = vsel %vm399, %v2152, 0
      %v2165 = vsel %vm406, %v2157, 0
      %2167 = vmatprep.subr.mxu0 0.0
      %2168 = vmatpush1.msra.mxu0 0.0
      %2169 = vmatprep.subr.mxu0 0.0
      %2170 = vmatpush1.msra.mxu0 0.0
      %2171 = vmatprep.subr.mxu0 0.0
      %2172 = vmatpush1.msra.mxu0 0.0
      %2173 = vmatprep.subr.mxu0 0.0
      %2174 = vmatpush1.msra.mxu0 0.0
      %2175 = vmatprep.subr.mxu0 0.0
      %2176 = vmatpush1.msra.mxu0 0.0
      %2177 = vmatprep.subr.mxu0 0.0
      %2178 = vmatpush1.msra.mxu0 0.0
      %2179 = vmatprep.subr.mxu0 0.0
      %2180 = vmatpush1.msra.mxu0 0.0
      %2181 = vmatprep.subr.mxu0 0.0
      %2182 = vmatpush1.msra.mxu0 0.0
      %2183 = vmatprep.subr.mxu0 0.0
      %2184 = vmatpush1.msra.mxu0 0.0
      %2185 = vmatprep.subr.mxu0 0.0
      %2186 = vmatpush1.msra.mxu0 0.0
      %2187 = vmatprep.subr.mxu0 0.0
      %2188 = vmatpush1.msra.mxu0 0.0
      %2189 = vmatprep.subr.mxu0 0.0
      %2190 = vmatpush1.msra.mxu0 0.0
      %2191 = vmatprep.subr.mxu0 0.0
      %2192 = vmatpush1.msra.mxu0 %v2165
      %2193 = vmatprep.subr.mxu0 0.0
      %2194 = vmatpush1.msra.mxu0 %v2156
      %2195 = vmatprep.subr.mxu0 0.0
      %2196 = vmatpush1.msra.mxu0 %v2155
      %2197 = vmatprep.subr.mxu0 0.0
      %2198 = vmatpush1.msra.mxu0 %v2154
      %2199 = vmatprep.subr.mxu0 0.0
      %2200 = vmatpush2.msra.mxu0 0.0
      %2201 = vmatprep.subr.mxu0 0.0
      %2202 = vmatpush2.msra.mxu0 0.0
      %2203 = vmatprep.subr.mxu0 0.0
      %2204 = vmatpush2.msra.mxu0 0.0
      %2205 = vmatprep.subr.mxu0 0.0
      %2206 = vmatpush2.msra.mxu0 0.0
      %2207 = vmatprep.subr.mxu0 0.0
      %2208 = vmatpush2.msra.mxu0 0.0
      %2209 = vmatprep.subr.mxu0 0.0
      %2210 = vmatpush2.msra.mxu0 0.0
      %2211 = vmatprep.subr.mxu0 0.0
      %2212 = vmatpush2.msra.mxu0 0.0
      %2213 = vmatprep.subr.mxu0 0.0
      %2214 = vmatpush2.msra.mxu0 0.0
      %2215 = vmatprep.subr.mxu0 0.0
      %2216 = vmatpush2.msra.mxu0 0.0
      %2217 = vmatprep.subr.mxu0 0.0
      %2218 = vmatpush2.msra.mxu0 0.0
      %2219 = vmatprep.subr.mxu0 0.0
      %2220 = vmatpush2.msra.mxu0 0.0
      %2221 = vmatprep.subr.mxu0 0.0
      %2222 = vmatpush2.msra.mxu0 0.0
      %2223 = vmatprep.subr.mxu0 0.0
      %2224 = vmatpush2.msra.mxu0 0.0
      %2225 = vmatprep.subr.mxu0 0.0
      %2226 = vmatpush2.msra.mxu0 0.0
      %2227 = vmatprep.subr.mxu0 0.0
      %2228 = vmatpush2.msra.mxu0 0.0
      %2229 = vmatprep.subr.mxu0 0.0
      %2230 = vmatpush2.msra.mxu0 0.0
      %2231 = vmatprep.mubr.f32.mxu0 0.0
      %2232 = vmatmul.mubr.f32.gmra.mxu0 %v2159
      %v2233 = vpop.f32.mrf.mxu0
      %v2234 = vadd.f32 0.0, %v2233
      %v2235 = vpop.f32.mrf.mxu0
      %2236 = vmatprep.mubr.f32.mxu0 0.0
      %2237 = vmatmul.mubr.f32.gmra.mxu0 %v2162
      %v2238 = vpop.f32.mrf.mxu0
      %v2239 = vadd.f32 0.0, %v2238
      %v2240 = vpop.f32.mrf.mxu0
      %2241 = vdwg.mxu0
      %v2242 = vadd.f32 %v2149, %v2234
      %v2243 = vadd.f32 %v2150, %v2239
      %v2244 = vld [vmem:[%s569 + $0x6] sm:$0xff]
      %v2245 = vld [vmem:[%s569 + $0xe] sm:$0xff]
      %s2246 = scalar_lea.vmem %s1, 640
      %v2247 = vld [vmem:[%s2246] sm:$0xff]
      %v2248 = vld [vmem:[%s2246 + $0x8] sm:$0xff]
      %v2249 = vld [vmem:[%s2246 + $0x10] sm:$0xff]
      %v2250 = vld [vmem:[%s2246 + $0x18] sm:$0x7f]
      %v2252 = vsel %vm399, %v2244, 0
      %v2255 = vsel %vm399, %v2245, 0
      %v2258 = vsel %vm406, %v2250, 0
      %2260 = vmatprep.subr.mxu0 0.0
      %2261 = vmatpush1.msra.mxu0 0.0
      %2262 = vmatprep.subr.mxu0 0.0
      %2263 = vmatpush1.msra.mxu0 0.0
      %2264 = vmatprep.subr.mxu0 0.0
      %2265 = vmatpush1.msra.mxu0 0.0
      %2266 = vmatprep.subr.mxu0 0.0
      %2267 = vmatpush1.msra.mxu0 0.0
      %2268 = vmatprep.subr.mxu0 0.0
      %2269 = vmatpush1.msra.mxu0 0.0
      %2270 = vmatprep.subr.mxu0 0.0
      %2271 = vmatpush1.msra.mxu0 0.0
      %2272 = vmatprep.subr.mxu0 0.0
      %2273 = vmatpush1.msra.mxu0 0.0
      %2274 = vmatprep.subr.mxu0 0.0
      %2275 = vmatpush1.msra.mxu0 0.0
      %2276 = vmatprep.subr.mxu0 0.0
      %2277 = vmatpush1.msra.mxu0 0.0
      %2278 = vmatprep.subr.mxu0 0.0
      %2279 = vmatpush1.msra.mxu0 0.0
      %2280 = vmatprep.subr.mxu0 0.0
      %2281 = vmatpush1.msra.mxu0 0.0
      %2282 = vmatprep.subr.mxu0 0.0
      %2283 = vmatpush1.msra.mxu0 0.0
      %2284 = vmatprep.subr.mxu0 0.0
      %2285 = vmatpush1.msra.mxu0 %v2258
      %2286 = vmatprep.subr.mxu0 0.0
      %2287 = vmatpush1.msra.mxu0 %v2249
      %2288 = vmatprep.subr.mxu0 0.0
      %2289 = vmatpush1.msra.mxu0 %v2248
      %2290 = vmatprep.subr.mxu0 0.0
      %2291 = vmatpush1.msra.mxu0 %v2247
      %2292 = vmatprep.subr.mxu0 0.0
      %2293 = vmatpush2.msra.mxu0 0.0
      %2294 = vmatprep.subr.mxu0 0.0
      %2295 = vmatpush2.msra.mxu0 0.0
      %2296 = vmatprep.subr.mxu0 0.0
      %2297 = vmatpush2.msra.mxu0 0.0
      %2298 = vmatprep.subr.mxu0 0.0
      %2299 = vmatpush2.msra.mxu0 0.0
      %2300 = vmatprep.subr.mxu0 0.0
      %2301 = vmatpush2.msra.mxu0 0.0
      %2302 = vmatprep.subr.mxu0 0.0
      %2303 = vmatpush2.msra.mxu0 0.0
      %2304 = vmatprep.subr.mxu0 0.0
      %2305 = vmatpush2.msra.mxu0 0.0
      %2306 = vmatprep.subr.mxu0 0.0
      %2307 = vmatpush2.msra.mxu0 0.0
      %2308 = vmatprep.subr.mxu0 0.0
      %2309 = vmatpush2.msra.mxu0 0.0
      %2310 = vmatprep.subr.mxu0 0.0
      %2311 = vmatpush2.msra.mxu0 0.0
      %2312 = vmatprep.subr.mxu0 0.0
      %2313 = vmatpush2.msra.mxu0 0.0
      %2314 = vmatprep.subr.mxu0 0.0
      %2315 = vmatpush2.msra.mxu0 0.0
      %2316 = vmatprep.subr.mxu0 0.0
      %2317 = vmatpush2.msra.mxu0 0.0
      %2318 = vmatprep.subr.mxu0 0.0
      %2319 = vmatpush2.msra.mxu0 0.0
      %2320 = vmatprep.subr.mxu0 0.0
      %2321 = vmatpush2.msra.mxu0 0.0
      %2322 = vmatprep.subr.mxu0 0.0
      %2323 = vmatpush2.msra.mxu0 0.0
      %2324 = vmatprep.mubr.f32.mxu0 0.0
      %2325 = vmatmul.mubr.f32.gmra.mxu0 %v2252
      %v2326 = vpop.f32.mrf.mxu0
      %v2327 = vadd.f32 0.0, %v2326
      %v2328 = vpop.f32.mrf.mxu0
      %2329 = vmatprep.mubr.f32.mxu0 0.0
      %2330 = vmatmul.mubr.f32.gmra.mxu0 %v2255
      %v2331 = vpop.f32.mrf.mxu0
      %v2332 = vadd.f32 0.0, %v2331
      %v2333 = vpop.f32.mrf.mxu0
      %2334 = vdwg.mxu0
      %v2335 = vadd.f32 %v2242, %v2327
      %v2336 = vadd.f32 %v2243, %v2332
      %v2337 = vld [vmem:[%s381 + $0x7] sm:$0xff]
      %v2338 = vld [vmem:[%s381 + $0xf] sm:$0xff]
      %s2339 = scalar_lea.vmem %s1, 672
      %v2340 = vld [vmem:[%s2339] sm:$0xff]
      %v2341 = vld [vmem:[%s2339 + $0x8] sm:$0xff]
      %v2342 = vld [vmem:[%s2339 + $0x10] sm:$0xff]
      %v2343 = vld [vmem:[%s2339 + $0x18] sm:$0x7f]
      %v2345 = vsel %vm399, %v2337, 0
      %v2348 = vsel %vm399, %v2338, 0
      %v2351 = vsel %vm406, %v2343, 0
      %2353 = vmatprep.subr.mxu0 0.0
      %2354 = vmatpush1.msra.mxu0 0.0
      %2355 = vmatprep.subr.mxu0 0.0
      %2356 = vmatpush1.msra.mxu0 0.0
      %2357 = vmatprep.subr.mxu0 0.0
      %2358 = vmatpush1.msra.mxu0 0.0
      %2359 = vmatprep.subr.mxu0 0.0
      %2360 = vmatpush1.msra.mxu0 0.0
      %2361 = vmatprep.subr.mxu0 0.0
      %2362 = vmatpush1.msra.mxu0 0.0
      %2363 = vmatprep.subr.mxu0 0.0
      %2364 = vmatpush1.msra.mxu0 0.0
      %2365 = vmatprep.subr.mxu0 0.0
      %2366 = vmatpush1.msra.mxu0 0.0
      %2367 = vmatprep.subr.mxu0 0.0
      %2368 = vmatpush1.msra.mxu0 0.0
      %2369 = vmatprep.subr.mxu0 0.0
      %2370 = vmatpush1.msra.mxu0 0.0
      %2371 = vmatprep.subr.mxu0 0.0
      %2372 = vmatpush1.msra.mxu0 0.0
      %2373 = vmatprep.subr.mxu0 0.0
      %2374 = vmatpush1.msra.mxu0 0.0
      %2375 = vmatprep.subr.mxu0 0.0
      %2376 = vmatpush1.msra.mxu0 0.0
      %2377 = vmatprep.subr.mxu0 0.0
      %2378 = vmatpush1.msra.mxu0 %v2351
      %2379 = vmatprep.subr.mxu0 0.0
      %2380 = vmatpush1.msra.mxu0 %v2342
      %2381 = vmatprep.subr.mxu0 0.0
      %2382 = vmatpush1.msra.mxu0 %v2341
      %2383 = vmatprep.subr.mxu0 0.0
      %2384 = vmatpush1.msra.mxu0 %v2340
      %2385 = vmatprep.subr.mxu0 0.0
      %2386 = vmatpush2.msra.mxu0 0.0
      %2387 = vmatprep.subr.mxu0 0.0
      %2388 = vmatpush2.msra.mxu0 0.0
      %2389 = vmatprep.subr.mxu0 0.0
      %2390 = vmatpush2.msra.mxu0 0.0
      %2391 = vmatprep.subr.mxu0 0.0
      %2392 = vmatpush2.msra.mxu0 0.0
      %2393 = vmatprep.subr.mxu0 0.0
      %2394 = vmatpush2.msra.mxu0 0.0
      %2395 = vmatprep.subr.mxu0 0.0
      %2396 = vmatpush2.msra.mxu0 0.0
      %2397 = vmatprep.subr.mxu0 0.0
      %2398 = vmatpush2.msra.mxu0 0.0
      %2399 = vmatprep.subr.mxu0 0.0
      %2400 = vmatpush2.msra.mxu0 0.0
      %2401 = vmatprep.subr.mxu0 0.0
      %2402 = vmatpush2.msra.mxu0 0.0
      %2403 = vmatprep.subr.mxu0 0.0
      %2404 = vmatpush2.msra.mxu0 0.0
      %2405 = vmatprep.subr.mxu0 0.0
      %2406 = vmatpush2.msra.mxu0 0.0
      %2407 = vmatprep.subr.mxu0 0.0
      %2408 = vmatpush2.msra.mxu0 0.0
      %2409 = vmatprep.subr.mxu0 0.0
      %2410 = vmatpush2.msra.mxu0 0.0
      %2411 = vmatprep.subr.mxu0 0.0
      %2412 = vmatpush2.msra.mxu0 0.0
      %2413 = vmatprep.subr.mxu0 0.0
      %2414 = vmatpush2.msra.mxu0 0.0
      %2415 = vmatprep.subr.mxu0 0.0
      %2416 = vmatpush2.msra.mxu0 0.0
      %2417 = vmatprep.mubr.f32.mxu0 0.0
      %2418 = vmatmul.mubr.f32.gmra.mxu0 %v2345
      %v2419 = vpop.f32.mrf.mxu0
      %v2420 = vadd.f32 0.0, %v2419
      %v2421 = vpop.f32.mrf.mxu0
      %2422 = vmatprep.mubr.f32.mxu0 0.0
      %2423 = vmatmul.mubr.f32.gmra.mxu0 %v2348
      %v2424 = vpop.f32.mrf.mxu0
      %v2425 = vadd.f32 0.0, %v2424
      %v2426 = vpop.f32.mrf.mxu0
      %2427 = vdwg.mxu0
      %v2428 = vadd.f32 %v2335, %v2420
      %v2429 = vadd.f32 %v2336, %v2425
      %v2430 = vld [vmem:[%s391 + $0x7] sm:$0xff]
      %v2431 = vld [vmem:[%s391 + $0xf] sm:$0xff]
      %s2432 = scalar_lea.vmem %s1, 704
      %v2433 = vld [vmem:[%s2432] sm:$0xff]
      %v2434 = vld [vmem:[%s2432 + $0x8] sm:$0xff]
      %v2435 = vld [vmem:[%s2432 + $0x10] sm:$0xff]
      %v2436 = vld [vmem:[%s2432 + $0x18] sm:$0x7f]
      %v2438 = vsel %vm399, %v2430, 0
      %v2441 = vsel %vm399, %v2431, 0
      %v2444 = vsel %vm406, %v2436, 0
      %2446 = vmatprep.subr.mxu0 0.0
      %2447 = vmatpush1.msra.mxu0 0.0
      %2448 = vmatprep.subr.mxu0 0.0
      %2449 = vmatpush1.msra.mxu0 0.0
      %2450 = vmatprep.subr.mxu0 0.0
      %2451 = vmatpush1.msra.mxu0 0.0
      %2452 = vmatprep.subr.mxu0 0.0
      %2453 = vmatpush1.msra.mxu0 0.0
      %2454 = vmatprep.subr.mxu0 0.0
      %2455 = vmatpush1.msra.mxu0 0.0
      %2456 = vmatprep.subr.mxu0 0.0
      %2457 = vmatpush1.msra.mxu0 0.0
      %2458 = vmatprep.subr.mxu0 0.0
      %2459 = vmatpush1.msra.mxu0 0.0
      %2460 = vmatprep.subr.mxu0 0.0
      %2461 = vmatpush1.msra.mxu0 0.0
      %2462 = vmatprep.subr.mxu0 0.0
      %2463 = vmatpush1.msra.mxu0 0.0
      %2464 = vmatprep.subr.mxu0 0.0
      %2465 = vmatpush1.msra.mxu0 0.0
      %2466 = vmatprep.subr.mxu0 0.0
      %2467 = vmatpush1.msra.mxu0 0.0
      %2468 = vmatprep.subr.mxu0 0.0
      %2469 = vmatpush1.msra.mxu0 0.0
      %2470 = vmatprep.subr.mxu0 0.0
      %2471 = vmatpush1.msra.mxu0 %v2444
      %2472 = vmatprep.subr.mxu0 0.0
      %2473 = vmatpush1.msra.mxu0 %v2435
      %2474 = vmatprep.subr.mxu0 0.0
      %2475 = vmatpush1.msra.mxu0 %v2434
      %2476 = vmatprep.subr.mxu0 0.0
      %2477 = vmatpush1.msra.mxu0 %v2433
      %2478 = vmatprep.subr.mxu0 0.0
      %2479 = vmatpush2.msra.mxu0 0.0
      %2480 = vmatprep.subr.mxu0 0.0
      %2481 = vmatpush2.msra.mxu0 0.0
      %2482 = vmatprep.subr.mxu0 0.0
      %2483 = vmatpush2.msra.mxu0 0.0
      %2484 = vmatprep.subr.mxu0 0.0
      %2485 = vmatpush2.msra.mxu0 0.0
      %2486 = vmatprep.subr.mxu0 0.0
      %2487 = vmatpush2.msra.mxu0 0.0
      %2488 = vmatprep.subr.mxu0 0.0
      %2489 = vmatpush2.msra.mxu0 0.0
      %2490 = vmatprep.subr.mxu0 0.0
      %2491 = vmatpush2.msra.mxu0 0.0
      %2492 = vmatprep.subr.mxu0 0.0
      %2493 = vmatpush2.msra.mxu0 0.0
      %2494 = vmatprep.subr.mxu0 0.0
      %2495 = vmatpush2.msra.mxu0 0.0
      %2496 = vmatprep.subr.mxu0 0.0
      %2497 = vmatpush2.msra.mxu0 0.0
      %2498 = vmatprep.subr.mxu0 0.0
      %2499 = vmatpush2.msra.mxu0 0.0
      %2500 = vmatprep.subr.mxu0 0.0
      %2501 = vmatpush2.msra.mxu0 0.0
      %2502 = vmatprep.subr.mxu0 0.0
      %2503 = vmatpush2.msra.mxu0 0.0
      %2504 = vmatprep.subr.mxu0 0.0
      %2505 = vmatpush2.msra.mxu0 0.0
      %2506 = vmatprep.subr.mxu0 0.0
      %2507 = vmatpush2.msra.mxu0 0.0
      %2508 = vmatprep.subr.mxu0 0.0
      %2509 = vmatpush2.msra.mxu0 0.0
      %2510 = vmatprep.mubr.f32.mxu0 0.0
      %2511 = vmatmul.mubr.f32.gmra.mxu0 %v2438
      %v2512 = vpop.f32.mrf.mxu0
      %v2513 = vadd.f32 0.0, %v2512
      %v2514 = vpop.f32.mrf.mxu0
      %2515 = vmatprep.mubr.f32.mxu0 0.0
      %2516 = vmatmul.mubr.f32.gmra.mxu0 %v2441
      %v2517 = vpop.f32.mrf.mxu0
      %v2518 = vadd.f32 0.0, %v2517
      %v2519 = vpop.f32.mrf.mxu0
      %2520 = vdwg.mxu0
      %v2521 = vadd.f32 %v2428, %v2513
      %v2522 = vadd.f32 %v2429, %v2518
      %v2523 = vld [vmem:[%s569 + $0x7] sm:$0xff]
      %v2524 = vld [vmem:[%s569 + $0xf] sm:$0xff]
      %s2525 = scalar_lea.vmem %s1, 736
      %v2526 = vld [vmem:[%s2525] sm:$0xff]
      %v2527 = vld [vmem:[%s2525 + $0x8] sm:$0xff]
      %v2528 = vld [vmem:[%s2525 + $0x10] sm:$0xff]
      %v2529 = vld [vmem:[%s2525 + $0x18] sm:$0x7f]
      %v2531 = vsel %vm399, %v2523, 0
      %v2534 = vsel %vm399, %v2524, 0
      %v2537 = vsel %vm406, %v2529, 0
      %2539 = vmatprep.subr.mxu0 0.0
      %2540 = vmatpush1.msra.mxu0 0.0
      %2541 = vmatprep.subr.mxu0 0.0
      %2542 = vmatpush1.msra.mxu0 0.0
      %2543 = vmatprep.subr.mxu0 0.0
      %2544 = vmatpush1.msra.mxu0 0.0
      %2545 = vmatprep.subr.mxu0 0.0
      %2546 = vmatpush1.msra.mxu0 0.0
      %2547 = vmatprep.subr.mxu0 0.0
      %2548 = vmatpush1.msra.mxu0 0.0
      %2549 = vmatprep.subr.mxu0 0.0
      %2550 = vmatpush1.msra.mxu0 0.0
      %2551 = vmatprep.subr.mxu0 0.0
      %2552 = vmatpush1.msra.mxu0 0.0
      %2553 = vmatprep.subr.mxu0 0.0
      %2554 = vmatpush1.msra.mxu0 0.0
      %2555 = vmatprep.subr.mxu0 0.0
      %2556 = vmatpush1.msra.mxu0 0.0
      %2557 = vmatprep.subr.mxu0 0.0
      %2558 = vmatpush1.msra.mxu0 0.0
      %2559 = vmatprep.subr.mxu0 0.0
      %2560 = vmatpush1.msra.mxu0 0.0
      %2561 = vmatprep.subr.mxu0 0.0
      %2562 = vmatpush1.msra.mxu0 0.0
      %2563 = vmatprep.subr.mxu0 0.0
      %2564 = vmatpush1.msra.mxu0 %v2537
      %2565 = vmatprep.subr.mxu0 0.0
      %2566 = vmatpush1.msra.mxu0 %v2528
      %2567 = vmatprep.subr.mxu0 0.0
      %2568 = vmatpush1.msra.mxu0 %v2527
      %2569 = vmatprep.subr.mxu0 0.0
      %2570 = vmatpush1.msra.mxu0 %v2526
      %2571 = vmatprep.subr.mxu0 0.0
      %2572 = vmatpush2.msra.mxu0 0.0
      %2573 = vmatprep.subr.mxu0 0.0
      %2574 = vmatpush2.msra.mxu0 0.0
      %2575 = vmatprep.subr.mxu0 0.0
      %2576 = vmatpush2.msra.mxu0 0.0
      %2577 = vmatprep.subr.mxu0 0.0
      %2578 = vmatpush2.msra.mxu0 0.0
      %2579 = vmatprep.subr.mxu0 0.0
      %2580 = vmatpush2.msra.mxu0 0.0
      %2581 = vmatprep.subr.mxu0 0.0
      %2582 = vmatpush2.msra.mxu0 0.0
      %2583 = vmatprep.subr.mxu0 0.0
      %2584 = vmatpush2.msra.mxu0 0.0
      %2585 = vmatprep.subr.mxu0 0.0
      %2586 = vmatpush2.msra.mxu0 0.0
      %2587 = vmatprep.subr.mxu0 0.0
      %2588 = vmatpush2.msra.mxu0 0.0
      %2589 = vmatprep.subr.mxu0 0.0
      %2590 = vmatpush2.msra.mxu0 0.0
      %2591 = vmatprep.subr.mxu0 0.0
      %2592 = vmatpush2.msra.mxu0 0.0
      %2593 = vmatprep.subr.mxu0 0.0
      %2594 = vmatpush2.msra.mxu0 0.0
      %2595 = vmatprep.subr.mxu0 0.0
      %2596 = vmatpush2.msra.mxu0 0.0
      %2597 = vmatprep.subr.mxu0 0.0
      %2598 = vmatpush2.msra.mxu0 0.0
      %2599 = vmatprep.subr.mxu0 0.0
      %2600 = vmatpush2.msra.mxu0 0.0
      %2601 = vmatprep.subr.mxu0 0.0
      %2602 = vmatpush2.msra.mxu0 0.0
      %2603 = vmatprep.mubr.f32.mxu0 0.0
      %2604 = vmatmul.mubr.f32.gmra.mxu0 %v2531
      %v2605 = vpop.f32.mrf.mxu0
      %v2606 = vadd.f32 0.0, %v2605
      %v2607 = vpop.f32.mrf.mxu0
      %2608 = vmatprep.mubr.f32.mxu0 0.0
      %2609 = vmatmul.mubr.f32.gmra.mxu0 %v2534
      %v2610 = vpop.f32.mrf.mxu0
      %v2611 = vadd.f32 0.0, %v2610
      %v2612 = vpop.f32.mrf.mxu0
      %2613 = vdwg.mxu0
      %v2614 = vadd.f32 %v2521, %v2606
      %v2615 = vadd.f32 %v2522, %v2611
      %v2616 = vld [vmem:[%s381 + $0x8] sm:$0xff]
      %v2617 = vld [vmem:[%s381 + $0x10] sm:$0xff]
      %s2618 = scalar_lea.vmem %s1, 768
      %v2619 = vld [vmem:[%s2618] sm:$0xff]
      %v2620 = vld [vmem:[%s2618 + $0x8] sm:$0xff]
      %v2621 = vld [vmem:[%s2618 + $0x10] sm:$0xff]
      %v2622 = vld [vmem:[%s2618 + $0x18] sm:$0x7f]
      %v2624 = vsel %vm399, %v2616, 0
      %v2627 = vsel %vm399, %v2617, 0
      %v2630 = vsel %vm406, %v2622, 0
      %2632 = vmatprep.subr.mxu0 0.0
      %2633 = vmatpush1.msra.mxu0 0.0
      %2634 = vmatprep.subr.mxu0 0.0
      %2635 = vmatpush1.msra.mxu0 0.0
      %2636 = vmatprep.subr.mxu0 0.0
      %2637 = vmatpush1.msra.mxu0 0.0
      %2638 = vmatprep.subr.mxu0 0.0
      %2639 = vmatpush1.msra.mxu0 0.0
      %2640 = vmatprep.subr.mxu0 0.0
      %2641 = vmatpush1.msra.mxu0 0.0
      %2642 = vmatprep.subr.mxu0 0.0
      %2643 = vmatpush1.msra.mxu0 0.0
      %2644 = vmatprep.subr.mxu0 0.0
      %2645 = vmatpush1.msra.mxu0 0.0
      %2646 = vmatprep.subr.mxu0 0.0
      %2647 = vmatpush1.msra.mxu0 0.0
      %2648 = vmatprep.subr.mxu0 0.0
      %2649 = vmatpush1.msra.mxu0 0.0
      %2650 = vmatprep.subr.mxu0 0.0
      %2651 = vmatpush1.msra.mxu0 0.0
      %2652 = vmatprep.subr.mxu0 0.0
      %2653 = vmatpush1.msra.mxu0 0.0
      %2654 = vmatprep.subr.mxu0 0.0
      %2655 = vmatpush1.msra.mxu0 0.0
      %2656 = vmatprep.subr.mxu0 0.0
      %2657 = vmatpush1.msra.mxu0 %v2630
      %2658 = vmatprep.subr.mxu0 0.0
      %2659 = vmatpush1.msra.mxu0 %v2621
      %2660 = vmatprep.subr.mxu0 0.0
      %2661 = vmatpush1.msra.mxu0 %v2620
      %2662 = vmatprep.subr.mxu0 0.0
      %2663 = vmatpush1.msra.mxu0 %v2619
      %2664 = vmatprep.subr.mxu0 0.0
      %2665 = vmatpush2.msra.mxu0 0.0
      %2666 = vmatprep.subr.mxu0 0.0
      %2667 = vmatpush2.msra.mxu0 0.0
      %2668 = vmatprep.subr.mxu0 0.0
      %2669 = vmatpush2.msra.mxu0 0.0
      %2670 = vmatprep.subr.mxu0 0.0
      %2671 = vmatpush2.msra.mxu0 0.0
      %2672 = vmatprep.subr.mxu0 0.0
      %2673 = vmatpush2.msra.mxu0 0.0
      %2674 = vmatprep.subr.mxu0 0.0
      %2675 = vmatpush2.msra.mxu0 0.0
      %2676 = vmatprep.subr.mxu0 0.0
      %2677 = vmatpush2.msra.mxu0 0.0
      %2678 = vmatprep.subr.mxu0 0.0
      %2679 = vmatpush2.msra.mxu0 0.0
      %2680 = vmatprep.subr.mxu0 0.0
      %2681 = vmatpush2.msra.mxu0 0.0
      %2682 = vmatprep.subr.mxu0 0.0
      %2683 = vmatpush2.msra.mxu0 0.0
      %2684 = vmatprep.subr.mxu0 0.0
      %2685 = vmatpush2.msra.mxu0 0.0
      %2686 = vmatprep.subr.mxu0 0.0
      %2687 = vmatpush2.msra.mxu0 0.0
      %2688 = vmatprep.subr.mxu0 0.0
      %2689 = vmatpush2.msra.mxu0 0.0
      %2690 = vmatprep.subr.mxu0 0.0
      %2691 = vmatpush2.msra.mxu0 0.0
      %2692 = vmatprep.subr.mxu0 0.0
      %2693 = vmatpush2.msra.mxu0 0.0
      %2694 = vmatprep.subr.mxu0 0.0
      %2695 = vmatpush2.msra.mxu0 0.0
      %2696 = vmatprep.mubr.f32.mxu0 0.0
      %2697 = vmatmul.mubr.f32.gmra.mxu0 %v2624
      %v2698 = vpop.f32.mrf.mxu0
      %v2699 = vadd.f32 0.0, %v2698
      %v2700 = vpop.f32.mrf.mxu0
      %2701 = vmatprep.mubr.f32.mxu0 0.0
      %2702 = vmatmul.mubr.f32.gmra.mxu0 %v2627
      %v2703 = vpop.f32.mrf.mxu0
      %v2704 = vadd.f32 0.0, %v2703
      %v2705 = vpop.f32.mrf.mxu0
      %2706 = vdwg.mxu0
      %v2707 = vadd.f32 %v2614, %v2699
      %v2708 = vadd.f32 %v2615, %v2704
      %v2709 = vld [vmem:[%s391 + $0x8] sm:$0xff]
      %v2710 = vld [vmem:[%s391 + $0x10] sm:$0xff]
      %s2711 = scalar_lea.vmem %s1, 800
      %v2712 = vld [vmem:[%s2711] sm:$0xff]
      %v2713 = vld [vmem:[%s2711 + $0x8] sm:$0xff]
      %v2714 = vld [vmem:[%s2711 + $0x10] sm:$0xff]
      %v2715 = vld [vmem:[%s2711 + $0x18] sm:$0x7f]
      %v2717 = vsel %vm399, %v2709, 0
      %v2720 = vsel %vm399, %v2710, 0
      %v2723 = vsel %vm406, %v2715, 0
      %2725 = vmatprep.subr.mxu0 0.0
      %2726 = vmatpush1.msra.mxu0 0.0
      %2727 = vmatprep.subr.mxu0 0.0
      %2728 = vmatpush1.msra.mxu0 0.0
      %2729 = vmatprep.subr.mxu0 0.0
      %2730 = vmatpush1.msra.mxu0 0.0
      %2731 = vmatprep.subr.mxu0 0.0
      %2732 = vmatpush1.msra.mxu0 0.0
      %2733 = vmatprep.subr.mxu0 0.0
      %2734 = vmatpush1.msra.mxu0 0.0
      %2735 = vmatprep.subr.mxu0 0.0
      %2736 = vmatpush1.msra.mxu0 0.0
      %2737 = vmatprep.subr.mxu0 0.0
      %2738 = vmatpush1.msra.mxu0 0.0
      %2739 = vmatprep.subr.mxu0 0.0
      %2740 = vmatpush1.msra.mxu0 0.0
      %2741 = vmatprep.subr.mxu0 0.0
      %2742 = vmatpush1.msra.mxu0 0.0
      %2743 = vmatprep.subr.mxu0 0.0
      %2744 = vmatpush1.msra.mxu0 0.0
      %2745 = vmatprep.subr.mxu0 0.0
      %2746 = vmatpush1.msra.mxu0 0.0
      %2747 = vmatprep.subr.mxu0 0.0
      %2748 = vmatpush1.msra.mxu0 0.0
      %2749 = vmatprep.subr.mxu0 0.0
      %2750 = vmatpush1.msra.mxu0 %v2723
      %2751 = vmatprep.subr.mxu0 0.0
      %2752 = vmatpush1.msra.mxu0 %v2714
      %2753 = vmatprep.subr.mxu0 0.0
      %2754 = vmatpush1.msra.mxu0 %v2713
      %2755 = vmatprep.subr.mxu0 0.0
      %2756 = vmatpush1.msra.mxu0 %v2712
      %2757 = vmatprep.subr.mxu0 0.0
      %2758 = vmatpush2.msra.mxu0 0.0
      %2759 = vmatprep.subr.mxu0 0.0
      %2760 = vmatpush2.msra.mxu0 0.0
      %2761 = vmatprep.subr.mxu0 0.0
      %2762 = vmatpush2.msra.mxu0 0.0
      %2763 = vmatprep.subr.mxu0 0.0
      %2764 = vmatpush2.msra.mxu0 0.0
      %2765 = vmatprep.subr.mxu0 0.0
      %2766 = vmatpush2.msra.mxu0 0.0
      %2767 = vmatprep.subr.mxu0 0.0
      %2768 = vmatpush2.msra.mxu0 0.0
      %2769 = vmatprep.subr.mxu0 0.0
      %2770 = vmatpush2.msra.mxu0 0.0
      %2771 = vmatprep.subr.mxu0 0.0
      %2772 = vmatpush2.msra.mxu0 0.0
      %2773 = vmatprep.subr.mxu0 0.0
      %2774 = vmatpush2.msra.mxu0 0.0
      %2775 = vmatprep.subr.mxu0 0.0
      %2776 = vmatpush2.msra.mxu0 0.0
      %2777 = vmatprep.subr.mxu0 0.0
      %2778 = vmatpush2.msra.mxu0 0.0
      %2779 = vmatprep.subr.mxu0 0.0
      %2780 = vmatpush2.msra.mxu0 0.0
      %2781 = vmatprep.subr.mxu0 0.0
      %2782 = vmatpush2.msra.mxu0 0.0
      %2783 = vmatprep.subr.mxu0 0.0
      %2784 = vmatpush2.msra.mxu0 0.0
      %2785 = vmatprep.subr.mxu0 0.0
      %2786 = vmatpush2.msra.mxu0 0.0
      %2787 = vmatprep.subr.mxu0 0.0
      %2788 = vmatpush2.msra.mxu0 0.0
      %2789 = vmatprep.mubr.f32.mxu0 0.0
      %2790 = vmatmul.mubr.f32.gmra.mxu0 %v2717
      %v2791 = vpop.f32.mrf.mxu0
      %v2792 = vadd.f32 0.0, %v2791
      %v2793 = vpop.f32.mrf.mxu0
      %2794 = vmatprep.mubr.f32.mxu0 0.0
      %2795 = vmatmul.mubr.f32.gmra.mxu0 %v2720
      %v2796 = vpop.f32.mrf.mxu0
      %v2797 = vadd.f32 0.0, %v2796
      %v2798 = vpop.f32.mrf.mxu0
      %2799 = vdwg.mxu0
      %v2800 = vadd.f32 %v2707, %v2792
      %v2801 = vadd.f32 %v2708, %v2797
      %v2802 = vld [vmem:[%s569 + $0x8] sm:$0xff]
      %v2803 = vld [vmem:[%s569 + $0x10] sm:$0xff]
      %s2804 = scalar_lea.vmem %s1, 832
      %v2805 = vld [vmem:[%s2804] sm:$0xff]
      %v2806 = vld [vmem:[%s2804 + $0x8] sm:$0xff]
      %v2807 = vld [vmem:[%s2804 + $0x10] sm:$0xff]
      %v2808 = vld [vmem:[%s2804 + $0x18] sm:$0x7f]
      %v2810 = vsel %vm399, %v2802, 0
      %v2813 = vsel %vm399, %v2803, 0
      %v2816 = vsel %vm406, %v2808, 0
      %2818 = vmatprep.subr.mxu0 0.0
      %2819 = vmatpush1.msra.mxu0 0.0
      %2820 = vmatprep.subr.mxu0 0.0
      %2821 = vmatpush1.msra.mxu0 0.0
      %2822 = vmatprep.subr.mxu0 0.0
      %2823 = vmatpush1.msra.mxu0 0.0
      %2824 = vmatprep.subr.mxu0 0.0
      %2825 = vmatpush1.msra.mxu0 0.0
      %2826 = vmatprep.subr.mxu0 0.0
      %2827 = vmatpush1.msra.mxu0 0.0
      %2828 = vmatprep.subr.mxu0 0.0
      %2829 = vmatpush1.msra.mxu0 0.0
      %2830 = vmatprep.subr.mxu0 0.0
      %2831 = vmatpush1.msra.mxu0 0.0
      %2832 = vmatprep.subr.mxu0 0.0
      %2833 = vmatpush1.msra.mxu0 0.0
      %2834 = vmatprep.subr.mxu0 0.0
      %2835 = vmatpush1.msra.mxu0 0.0
      %2836 = vmatprep.subr.mxu0 0.0
      %2837 = vmatpush1.msra.mxu0 0.0
      %2838 = vmatprep.subr.mxu0 0.0
      %2839 = vmatpush1.msra.mxu0 0.0
      %2840 = vmatprep.subr.mxu0 0.0
      %2841 = vmatpush1.msra.mxu0 0.0
      %2842 = vmatprep.subr.mxu0 0.0
      %2843 = vmatpush1.msra.mxu0 %v2816
      %2844 = vmatprep.subr.mxu0 0.0
      %2845 = vmatpush1.msra.mxu0 %v2807
      %2846 = vmatprep.subr.mxu0 0.0
      %2847 = vmatpush1.msra.mxu0 %v2806
      %2848 = vmatprep.subr.mxu0 0.0
      %2849 = vmatpush1.msra.mxu0 %v2805
      %2850 = vmatprep.subr.mxu0 0.0
      %2851 = vmatpush2.msra.mxu0 0.0
      %2852 = vmatprep.subr.mxu0 0.0
      %2853 = vmatpush2.msra.mxu0 0.0
      %2854 = vmatprep.subr.mxu0 0.0
      %2855 = vmatpush2.msra.mxu0 0.0
      %2856 = vmatprep.subr.mxu0 0.0
      %2857 = vmatpush2.msra.mxu0 0.0
      %2858 = vmatprep.subr.mxu0 0.0
      %2859 = vmatpush2.msra.mxu0 0.0
      %2860 = vmatprep.subr.mxu0 0.0
      %2861 = vmatpush2.msra.mxu0 0.0
      %2862 = vmatprep.subr.mxu0 0.0
      %2863 = vmatpush2.msra.mxu0 0.0
      %2864 = vmatprep.subr.mxu0 0.0
      %2865 = vmatpush2.msra.mxu0 0.0
      %2866 = vmatprep.subr.mxu0 0.0
      %2867 = vmatpush2.msra.mxu0 0.0
      %2868 = vmatprep.subr.mxu0 0.0
      %2869 = vmatpush2.msra.mxu0 0.0
      %2870 = vmatprep.subr.mxu0 0.0
      %2871 = vmatpush2.msra.mxu0 0.0
      %2872 = vmatprep.subr.mxu0 0.0
      %2873 = vmatpush2.msra.mxu0 0.0
      %2874 = vmatprep.subr.mxu0 0.0
      %2875 = vmatpush2.msra.mxu0 0.0
      %2876 = vmatprep.subr.mxu0 0.0
      %2877 = vmatpush2.msra.mxu0 0.0
      %2878 = vmatprep.subr.mxu0 0.0
      %2879 = vmatpush2.msra.mxu0 0.0
      %2880 = vmatprep.subr.mxu0 0.0
      %2881 = vmatpush2.msra.mxu0 0.0
      %2882 = vmatprep.mubr.f32.mxu0 0.0
      %2883 = vmatmul.mubr.f32.gmra.mxu0 %v2810
      %v2884 = vpop.f32.mrf.mxu0
      %v2885 = vadd.f32 0.0, %v2884
      %v2886 = vpop.f32.mrf.mxu0
      %2887 = vmatprep.mubr.f32.mxu0 0.0
      %2888 = vmatmul.mubr.f32.gmra.mxu0 %v2813
      %v2889 = vpop.f32.mrf.mxu0
      %v2890 = vadd.f32 0.0, %v2889
      %v2891 = vpop.f32.mrf.mxu0
      %2892 = vdwg.mxu0
      %v2893 = vadd.f32 %v2800, %v2885
      %v2894 = vadd.f32 %v2801, %v2890
      %v2895 = vld [vmem:[%s381 + $0x9] sm:$0xff]
      %v2896 = vld [vmem:[%s381 + $0x11] sm:$0xff]
      %s2897 = scalar_lea.vmem %s1, 864
      %v2898 = vld [vmem:[%s2897] sm:$0xff]
      %v2899 = vld [vmem:[%s2897 + $0x8] sm:$0xff]
      %v2900 = vld [vmem:[%s2897 + $0x10] sm:$0xff]
      %v2901 = vld [vmem:[%s2897 + $0x18] sm:$0x7f]
      %v2903 = vsel %vm399, %v2895, 0
      %v2906 = vsel %vm399, %v2896, 0
      %v2909 = vsel %vm406, %v2901, 0
      %2911 = vmatprep.subr.mxu0 0.0
      %2912 = vmatpush1.msra.mxu0 0.0
      %2913 = vmatprep.subr.mxu0 0.0
      %2914 = vmatpush1.msra.mxu0 0.0
      %2915 = vmatprep.subr.mxu0 0.0
      %2916 = vmatpush1.msra.mxu0 0.0
      %2917 = vmatprep.subr.mxu0 0.0
      %2918 = vmatpush1.msra.mxu0 0.0
      %2919 = vmatprep.subr.mxu0 0.0
      %2920 = vmatpush1.msra.mxu0 0.0
      %2921 = vmatprep.subr.mxu0 0.0
      %2922 = vmatpush1.msra.mxu0 0.0
      %2923 = vmatprep.subr.mxu0 0.0
      %2924 = vmatpush1.msra.mxu0 0.0
      %2925 = vmatprep.subr.mxu0 0.0
      %2926 = vmatpush1.msra.mxu0 0.0
      %2927 = vmatprep.subr.mxu0 0.0
      %2928 = vmatpush1.msra.mxu0 0.0
      %2929 = vmatprep.subr.mxu0 0.0
      %2930 = vmatpush1.msra.mxu0 0.0
      %2931 = vmatprep.subr.mxu0 0.0
      %2932 = vmatpush1.msra.mxu0 0.0
      %2933 = vmatprep.subr.mxu0 0.0
      %2934 = vmatpush1.msra.mxu0 0.0
      %2935 = vmatprep.subr.mxu0 0.0
      %2936 = vmatpush1.msra.mxu0 %v2909
      %2937 = vmatprep.subr.mxu0 0.0
      %2938 = vmatpush1.msra.mxu0 %v2900
      %2939 = vmatprep.subr.mxu0 0.0
      %2940 = vmatpush1.msra.mxu0 %v2899
      %2941 = vmatprep.subr.mxu0 0.0
      %2942 = vmatpush1.msra.mxu0 %v2898
      %2943 = vmatprep.subr.mxu0 0.0
      %2944 = vmatpush2.msra.mxu0 0.0
      %2945 = vmatprep.subr.mxu0 0.0
      %2946 = vmatpush2.msra.mxu0 0.0
      %2947 = vmatprep.subr.mxu0 0.0
      %2948 = vmatpush2.msra.mxu0 0.0
      %2949 = vmatprep.subr.mxu0 0.0
      %2950 = vmatpush2.msra.mxu0 0.0
      %2951 = vmatprep.subr.mxu0 0.0
      %2952 = vmatpush2.msra.mxu0 0.0
      %2953 = vmatprep.subr.mxu0 0.0
      %2954 = vmatpush2.msra.mxu0 0.0
      %2955 = vmatprep.subr.mxu0 0.0
      %2956 = vmatpush2.msra.mxu0 0.0
      %2957 = vmatprep.subr.mxu0 0.0
      %2958 = vmatpush2.msra.mxu0 0.0
      %2959 = vmatprep.subr.mxu0 0.0
      %2960 = vmatpush2.msra.mxu0 0.0
      %2961 = vmatprep.subr.mxu0 0.0
      %2962 = vmatpush2.msra.mxu0 0.0
      %2963 = vmatprep.subr.mxu0 0.0
      %2964 = vmatpush2.msra.mxu0 0.0
      %2965 = vmatprep.subr.mxu0 0.0
      %2966 = vmatpush2.msra.mxu0 0.0
      %2967 = vmatprep.subr.mxu0 0.0
      %2968 = vmatpush2.msra.mxu0 0.0
      %2969 = vmatprep.subr.mxu0 0.0
      %2970 = vmatpush2.msra.mxu0 0.0
      %2971 = vmatprep.subr.mxu0 0.0
      %2972 = vmatpush2.msra.mxu0 0.0
      %2973 = vmatprep.subr.mxu0 0.0
      %2974 = vmatpush2.msra.mxu0 0.0
      %2975 = vmatprep.mubr.f32.mxu0 0.0
      %2976 = vmatmul.mubr.f32.gmra.mxu0 %v2903
      %v2977 = vpop.f32.mrf.mxu0
      %v2978 = vadd.f32 0.0, %v2977
      %v2979 = vpop.f32.mrf.mxu0
      %2980 = vmatprep.mubr.f32.mxu0 0.0
      %2981 = vmatmul.mubr.f32.gmra.mxu0 %v2906
      %v2982 = vpop.f32.mrf.mxu0
      %v2983 = vadd.f32 0.0, %v2982
      %v2984 = vpop.f32.mrf.mxu0
      %2985 = vdwg.mxu0
      %v2986 = vadd.f32 %v2893, %v2978
      %v2987 = vadd.f32 %v2894, %v2983
      %v2988 = vld [vmem:[%s391 + $0x9] sm:$0xff]
      %v2989 = vld [vmem:[%s391 + $0x11] sm:$0xff]
      %s2990 = scalar_lea.vmem %s1, 896
      %v2991 = vld [vmem:[%s2990] sm:$0xff]
      %v2992 = vld [vmem:[%s2990 + $0x8] sm:$0xff]
      %v2993 = vld [vmem:[%s2990 + $0x10] sm:$0xff]
      %v2994 = vld [vmem:[%s2990 + $0x18] sm:$0x7f]
      %v2996 = vsel %vm399, %v2988, 0
      %v2999 = vsel %vm399, %v2989, 0
      %v3002 = vsel %vm406, %v2994, 0
      %3004 = vmatprep.subr.mxu0 0.0
      %3005 = vmatpush1.msra.mxu0 0.0
      %3006 = vmatprep.subr.mxu0 0.0
      %3007 = vmatpush1.msra.mxu0 0.0
      %3008 = vmatprep.subr.mxu0 0.0
      %3009 = vmatpush1.msra.mxu0 0.0
      %3010 = vmatprep.subr.mxu0 0.0
      %3011 = vmatpush1.msra.mxu0 0.0
      %3012 = vmatprep.subr.mxu0 0.0
      %3013 = vmatpush1.msra.mxu0 0.0
      %3014 = vmatprep.subr.mxu0 0.0
      %3015 = vmatpush1.msra.mxu0 0.0
      %3016 = vmatprep.subr.mxu0 0.0
      %3017 = vmatpush1.msra.mxu0 0.0
      %3018 = vmatprep.subr.mxu0 0.0
      %3019 = vmatpush1.msra.mxu0 0.0
      %3020 = vmatprep.subr.mxu0 0.0
      %3021 = vmatpush1.msra.mxu0 0.0
      %3022 = vmatprep.subr.mxu0 0.0
      %3023 = vmatpush1.msra.mxu0 0.0
      %3024 = vmatprep.subr.mxu0 0.0
      %3025 = vmatpush1.msra.mxu0 0.0
      %3026 = vmatprep.subr.mxu0 0.0
      %3027 = vmatpush1.msra.mxu0 0.0
      %3028 = vmatprep.subr.mxu0 0.0
      %3029 = vmatpush1.msra.mxu0 %v3002
      %3030 = vmatprep.subr.mxu0 0.0
      %3031 = vmatpush1.msra.mxu0 %v2993
      %3032 = vmatprep.subr.mxu0 0.0
      %3033 = vmatpush1.msra.mxu0 %v2992
      %3034 = vmatprep.subr.mxu0 0.0
      %3035 = vmatpush1.msra.mxu0 %v2991
      %3036 = vmatprep.subr.mxu0 0.0
      %3037 = vmatpush2.msra.mxu0 0.0
      %3038 = vmatprep.subr.mxu0 0.0
      %3039 = vmatpush2.msra.mxu0 0.0
      %3040 = vmatprep.subr.mxu0 0.0
      %3041 = vmatpush2.msra.mxu0 0.0
      %3042 = vmatprep.subr.mxu0 0.0
      %3043 = vmatpush2.msra.mxu0 0.0
      %3044 = vmatprep.subr.mxu0 0.0
      %3045 = vmatpush2.msra.mxu0 0.0
      %3046 = vmatprep.subr.mxu0 0.0
      %3047 = vmatpush2.msra.mxu0 0.0
      %3048 = vmatprep.subr.mxu0 0.0
      %3049 = vmatpush2.msra.mxu0 0.0
      %3050 = vmatprep.subr.mxu0 0.0
      %3051 = vmatpush2.msra.mxu0 0.0
      %3052 = vmatprep.subr.mxu0 0.0
      %3053 = vmatpush2.msra.mxu0 0.0
      %3054 = vmatprep.subr.mxu0 0.0
      %3055 = vmatpush2.msra.mxu0 0.0
      %3056 = vmatprep.subr.mxu0 0.0
      %3057 = vmatpush2.msra.mxu0 0.0
      %3058 = vmatprep.subr.mxu0 0.0
      %3059 = vmatpush2.msra.mxu0 0.0
      %3060 = vmatprep.subr.mxu0 0.0
      %3061 = vmatpush2.msra.mxu0 0.0
      %3062 = vmatprep.subr.mxu0 0.0
      %3063 = vmatpush2.msra.mxu0 0.0
      %3064 = vmatprep.subr.mxu0 0.0
      %3065 = vmatpush2.msra.mxu0 0.0
      %3066 = vmatprep.subr.mxu0 0.0
      %3067 = vmatpush2.msra.mxu0 0.0
      %3068 = vmatprep.mubr.f32.mxu0 0.0
      %3069 = vmatmul.mubr.f32.gmra.mxu0 %v2996
      %v3070 = vpop.f32.mrf.mxu0
      %v3071 = vadd.f32 0.0, %v3070
      %v3072 = vpop.f32.mrf.mxu0
      %3073 = vmatprep.mubr.f32.mxu0 0.0
      %3074 = vmatmul.mubr.f32.gmra.mxu0 %v2999
      %v3075 = vpop.f32.mrf.mxu0
      %v3076 = vadd.f32 0.0, %v3075
      %v3077 = vpop.f32.mrf.mxu0
      %3078 = vdwg.mxu0
      %v3079 = vadd.f32 %v2986, %v3071
      %v3080 = vadd.f32 %v2987, %v3076
      %v3081 = vld [vmem:[%s569 + $0x9] sm:$0xff]
      %v3082 = vld [vmem:[%s569 + $0x11] sm:$0xff]
      %s3083 = scalar_lea.vmem %s1, 928
      %v3084 = vld [vmem:[%s3083] sm:$0xff]
      %v3085 = vld [vmem:[%s3083 + $0x8] sm:$0xff]
      %v3086 = vld [vmem:[%s3083 + $0x10] sm:$0xff]
      %v3087 = vld [vmem:[%s3083 + $0x18] sm:$0x7f]
      %v3089 = vsel %vm399, %v3081, 0
      %v3092 = vsel %vm399, %v3082, 0
      %v3095 = vsel %vm406, %v3087, 0
      %3097 = vmatprep.subr.mxu0 0.0
      %3098 = vmatpush1.msra.mxu0 0.0
      %3099 = vmatprep.subr.mxu0 0.0
      %3100 = vmatpush1.msra.mxu0 0.0
      %3101 = vmatprep.subr.mxu0 0.0
      %3102 = vmatpush1.msra.mxu0 0.0
      %3103 = vmatprep.subr.mxu0 0.0
      %3104 = vmatpush1.msra.mxu0 0.0
      %3105 = vmatprep.subr.mxu0 0.0
      %3106 = vmatpush1.msra.mxu0 0.0
      %3107 = vmatprep.subr.mxu0 0.0
      %3108 = vmatpush1.msra.mxu0 0.0
      %3109 = vmatprep.subr.mxu0 0.0
      %3110 = vmatpush1.msra.mxu0 0.0
      %3111 = vmatprep.subr.mxu0 0.0
      %3112 = vmatpush1.msra.mxu0 0.0
      %3113 = vmatprep.subr.mxu0 0.0
      %3114 = vmatpush1.msra.mxu0 0.0
      %3115 = vmatprep.subr.mxu0 0.0
      %3116 = vmatpush1.msra.mxu0 0.0
      %3117 = vmatprep.subr.mxu0 0.0
      %3118 = vmatpush1.msra.mxu0 0.0
      %3119 = vmatprep.subr.mxu0 0.0
      %3120 = vmatpush1.msra.mxu0 0.0
      %3121 = vmatprep.subr.mxu0 0.0
      %3122 = vmatpush1.msra.mxu0 %v3095
      %3123 = vmatprep.subr.mxu0 0.0
      %3124 = vmatpush1.msra.mxu0 %v3086
      %3125 = vmatprep.subr.mxu0 0.0
      %3126 = vmatpush1.msra.mxu0 %v3085
      %3127 = vmatprep.subr.mxu0 0.0
      %3128 = vmatpush1.msra.mxu0 %v3084
      %3129 = vmatprep.subr.mxu0 0.0
      %3130 = vmatpush2.msra.mxu0 0.0
      %3131 = vmatprep.subr.mxu0 0.0
      %3132 = vmatpush2.msra.mxu0 0.0
      %3133 = vmatprep.subr.mxu0 0.0
      %3134 = vmatpush2.msra.mxu0 0.0
      %3135 = vmatprep.subr.mxu0 0.0
      %3136 = vmatpush2.msra.mxu0 0.0
      %3137 = vmatprep.subr.mxu0 0.0
      %3138 = vmatpush2.msra.mxu0 0.0
      %3139 = vmatprep.subr.mxu0 0.0
      %3140 = vmatpush2.msra.mxu0 0.0
      %3141 = vmatprep.subr.mxu0 0.0
      %3142 = vmatpush2.msra.mxu0 0.0
      %3143 = vmatprep.subr.mxu0 0.0
      %3144 = vmatpush2.msra.mxu0 0.0
      %3145 = vmatprep.subr.mxu0 0.0
      %3146 = vmatpush2.msra.mxu0 0.0
      %3147 = vmatprep.subr.mxu0 0.0
      %3148 = vmatpush2.msra.mxu0 0.0
      %3149 = vmatprep.subr.mxu0 0.0
      %3150 = vmatpush2.msra.mxu0 0.0
      %3151 = vmatprep.subr.mxu0 0.0
      %3152 = vmatpush2.msra.mxu0 0.0
      %3153 = vmatprep.subr.mxu0 0.0
      %3154 = vmatpush2.msra.mxu0 0.0
      %3155 = vmatprep.subr.mxu0 0.0
      %3156 = vmatpush2.msra.mxu0 0.0
      %3157 = vmatprep.subr.mxu0 0.0
      %3158 = vmatpush2.msra.mxu0 0.0
      %3159 = vmatprep.subr.mxu0 0.0
      %3160 = vmatpush2.msra.mxu0 0.0
      %3161 = vmatprep.mubr.f32.mxu0 0.0
      %3162 = vmatmul.mubr.f32.gmra.mxu0 %v3089
      %v3163 = vpop.f32.mrf.mxu0
      %v3164 = vadd.f32 0.0, %v3163
      %v3165 = vpop.f32.mrf.mxu0
      %3166 = vmatprep.mubr.f32.mxu0 0.0
      %3167 = vmatmul.mubr.f32.gmra.mxu0 %v3092
      %v3168 = vpop.f32.mrf.mxu0
      %v3169 = vadd.f32 0.0, %v3168
      %v3170 = vpop.f32.mrf.mxu0
      %3171 = vdwg.mxu0
      %v3172 = vadd.f32 %v3079, %v3164
      %v3173 = vadd.f32 %v3080, %v3169
      %v3174 = vld [vmem:[%s381 + $0xa] sm:$0xff]
      %v3175 = vld [vmem:[%s381 + $0x12] sm:$0xff]
      %s3176 = scalar_lea.vmem %s1, 960
      %v3177 = vld [vmem:[%s3176] sm:$0xff]
      %v3178 = vld [vmem:[%s3176 + $0x8] sm:$0xff]
      %v3179 = vld [vmem:[%s3176 + $0x10] sm:$0xff]
      %v3180 = vld [vmem:[%s3176 + $0x18] sm:$0x7f]
      %v3182 = vsel %vm399, %v3174, 0
      %v3185 = vsel %vm399, %v3175, 0
      %v3188 = vsel %vm406, %v3180, 0
      %3190 = vmatprep.subr.mxu0 0.0
      %3191 = vmatpush1.msra.mxu0 0.0
      %3192 = vmatprep.subr.mxu0 0.0
      %3193 = vmatpush1.msra.mxu0 0.0
      %3194 = vmatprep.subr.mxu0 0.0
      %3195 = vmatpush1.msra.mxu0 0.0
      %3196 = vmatprep.subr.mxu0 0.0
      %3197 = vmatpush1.msra.mxu0 0.0
      %3198 = vmatprep.subr.mxu0 0.0
      %3199 = vmatpush1.msra.mxu0 0.0
      %3200 = vmatprep.subr.mxu0 0.0
      %3201 = vmatpush1.msra.mxu0 0.0
      %3202 = vmatprep.subr.mxu0 0.0
      %3203 = vmatpush1.msra.mxu0 0.0
      %3204 = vmatprep.subr.mxu0 0.0
      %3205 = vmatpush1.msra.mxu0 0.0
      %3206 = vmatprep.subr.mxu0 0.0
      %3207 = vmatpush1.msra.mxu0 0.0
      %3208 = vmatprep.subr.mxu0 0.0
      %3209 = vmatpush1.msra.mxu0 0.0
      %3210 = vmatprep.subr.mxu0 0.0
      %3211 = vmatpush1.msra.mxu0 0.0
      %3212 = vmatprep.subr.mxu0 0.0
      %3213 = vmatpush1.msra.mxu0 0.0
      %3214 = vmatprep.subr.mxu0 0.0
      %3215 = vmatpush1.msra.mxu0 %v3188
      %3216 = vmatprep.subr.mxu0 0.0
      %3217 = vmatpush1.msra.mxu0 %v3179
      %3218 = vmatprep.subr.mxu0 0.0
      %3219 = vmatpush1.msra.mxu0 %v3178
      %3220 = vmatprep.subr.mxu0 0.0
      %3221 = vmatpush1.msra.mxu0 %v3177
      %3222 = vmatprep.subr.mxu0 0.0
      %3223 = vmatpush2.msra.mxu0 0.0
      %3224 = vmatprep.subr.mxu0 0.0
      %3225 = vmatpush2.msra.mxu0 0.0
      %3226 = vmatprep.subr.mxu0 0.0
      %3227 = vmatpush2.msra.mxu0 0.0
      %3228 = vmatprep.subr.mxu0 0.0
      %3229 = vmatpush2.msra.mxu0 0.0
      %3230 = vmatprep.subr.mxu0 0.0
      %3231 = vmatpush2.msra.mxu0 0.0
      %3232 = vmatprep.subr.mxu0 0.0
      %3233 = vmatpush2.msra.mxu0 0.0
      %3234 = vmatprep.subr.mxu0 0.0
      %3235 = vmatpush2.msra.mxu0 0.0
      %3236 = vmatprep.subr.mxu0 0.0
      %3237 = vmatpush2.msra.mxu0 0.0
      %3238 = vmatprep.subr.mxu0 0.0
      %3239 = vmatpush2.msra.mxu0 0.0
      %3240 = vmatprep.subr.mxu0 0.0
      %3241 = vmatpush2.msra.mxu0 0.0
      %3242 = vmatprep.subr.mxu0 0.0
      %3243 = vmatpush2.msra.mxu0 0.0
      %3244 = vmatprep.subr.mxu0 0.0
      %3245 = vmatpush2.msra.mxu0 0.0
      %3246 = vmatprep.subr.mxu0 0.0
      %3247 = vmatpush2.msra.mxu0 0.0
      %3248 = vmatprep.subr.mxu0 0.0
      %3249 = vmatpush2.msra.mxu0 0.0
      %3250 = vmatprep.subr.mxu0 0.0
      %3251 = vmatpush2.msra.mxu0 0.0
      %3252 = vmatprep.subr.mxu0 0.0
      %3253 = vmatpush2.msra.mxu0 0.0
      %3254 = vmatprep.mubr.f32.mxu0 0.0
      %3255 = vmatmul.mubr.f32.gmra.mxu0 %v3182
      %v3256 = vpop.f32.mrf.mxu0
      %v3257 = vadd.f32 0.0, %v3256
      %v3258 = vpop.f32.mrf.mxu0
      %3259 = vmatprep.mubr.f32.mxu0 0.0
      %3260 = vmatmul.mubr.f32.gmra.mxu0 %v3185
      %v3261 = vpop.f32.mrf.mxu0
      %v3262 = vadd.f32 0.0, %v3261
      %v3263 = vpop.f32.mrf.mxu0
      %3264 = vdwg.mxu0
      %v3265 = vadd.f32 %v3172, %v3257
      %v3266 = vadd.f32 %v3173, %v3262
      %v3267 = vld [vmem:[%s391 + $0xa] sm:$0xff]
      %v3268 = vld [vmem:[%s391 + $0x12] sm:$0xff]
      %s3269 = scalar_lea.vmem %s1, 992
      %v3270 = vld [vmem:[%s3269] sm:$0xff]
      %v3271 = vld [vmem:[%s3269 + $0x8] sm:$0xff]
      %v3272 = vld [vmem:[%s3269 + $0x10] sm:$0xff]
      %v3273 = vld [vmem:[%s3269 + $0x18] sm:$0x7f]
      %v3275 = vsel %vm399, %v3267, 0
      %v3278 = vsel %vm399, %v3268, 0
      %v3281 = vsel %vm406, %v3273, 0
      %3283 = vmatprep.subr.mxu0 0.0
      %3284 = vmatpush1.msra.mxu0 0.0
      %3285 = vmatprep.subr.mxu0 0.0
      %3286 = vmatpush1.msra.mxu0 0.0
      %3287 = vmatprep.subr.mxu0 0.0
      %3288 = vmatpush1.msra.mxu0 0.0
      %3289 = vmatprep.subr.mxu0 0.0
      %3290 = vmatpush1.msra.mxu0 0.0
      %3291 = vmatprep.subr.mxu0 0.0
      %3292 = vmatpush1.msra.mxu0 0.0
      %3293 = vmatprep.subr.mxu0 0.0
      %3294 = vmatpush1.msra.mxu0 0.0
      %3295 = vmatprep.subr.mxu0 0.0
      %3296 = vmatpush1.msra.mxu0 0.0
      %3297 = vmatprep.subr.mxu0 0.0
      %3298 = vmatpush1.msra.mxu0 0.0
      %3299 = vmatprep.subr.mxu0 0.0
      %3300 = vmatpush1.msra.mxu0 0.0
      %3301 = vmatprep.subr.mxu0 0.0
      %3302 = vmatpush1.msra.mxu0 0.0
      %3303 = vmatprep.subr.mxu0 0.0
      %3304 = vmatpush1.msra.mxu0 0.0
      %3305 = vmatprep.subr.mxu0 0.0
      %3306 = vmatpush1.msra.mxu0 0.0
      %3307 = vmatprep.subr.mxu0 0.0
      %3308 = vmatpush1.msra.mxu0 %v3281
      %3309 = vmatprep.subr.mxu0 0.0
      %3310 = vmatpush1.msra.mxu0 %v3272
      %3311 = vmatprep.subr.mxu0 0.0
      %3312 = vmatpush1.msra.mxu0 %v3271
      %3313 = vmatprep.subr.mxu0 0.0
      %3314 = vmatpush1.msra.mxu0 %v3270
      %3315 = vmatprep.subr.mxu0 0.0
      %3316 = vmatpush2.msra.mxu0 0.0
      %3317 = vmatprep.subr.mxu0 0.0
      %3318 = vmatpush2.msra.mxu0 0.0
      %3319 = vmatprep.subr.mxu0 0.0
      %3320 = vmatpush2.msra.mxu0 0.0
      %3321 = vmatprep.subr.mxu0 0.0
      %3322 = vmatpush2.msra.mxu0 0.0
      %3323 = vmatprep.subr.mxu0 0.0
      %3324 = vmatpush2.msra.mxu0 0.0
      %3325 = vmatprep.subr.mxu0 0.0
      %3326 = vmatpush2.msra.mxu0 0.0
      %3327 = vmatprep.subr.mxu0 0.0
      %3328 = vmatpush2.msra.mxu0 0.0
      %3329 = vmatprep.subr.mxu0 0.0
      %3330 = vmatpush2.msra.mxu0 0.0
      %3331 = vmatprep.subr.mxu0 0.0
      %3332 = vmatpush2.msra.mxu0 0.0
      %3333 = vmatprep.subr.mxu0 0.0
      %3334 = vmatpush2.msra.mxu0 0.0
      %3335 = vmatprep.subr.mxu0 0.0
      %3336 = vmatpush2.msra.mxu0 0.0
      %3337 = vmatprep.subr.mxu0 0.0
      %3338 = vmatpush2.msra.mxu0 0.0
      %3339 = vmatprep.subr.mxu0 0.0
      %3340 = vmatpush2.msra.mxu0 0.0
      %3341 = vmatprep.subr.mxu0 0.0
      %3342 = vmatpush2.msra.mxu0 0.0
      %3343 = vmatprep.subr.mxu0 0.0
      %3344 = vmatpush2.msra.mxu0 0.0
      %3345 = vmatprep.subr.mxu0 0.0
      %3346 = vmatpush2.msra.mxu0 0.0
      %3347 = vmatprep.mubr.f32.mxu0 0.0
      %3348 = vmatmul.mubr.f32.gmra.mxu0 %v3275
      %v3349 = vpop.f32.mrf.mxu0
      %v3350 = vadd.f32 0.0, %v3349
      %v3351 = vpop.f32.mrf.mxu0
      %3352 = vmatprep.mubr.f32.mxu0 0.0
      %3353 = vmatmul.mubr.f32.gmra.mxu0 %v3278
      %v3354 = vpop.f32.mrf.mxu0
      %v3355 = vadd.f32 0.0, %v3354
      %v3356 = vpop.f32.mrf.mxu0
      %3357 = vdwg.mxu0
      %v3358 = vadd.f32 %v3265, %v3350
      %v3359 = vadd.f32 %v3266, %v3355
      %v3360 = vld [vmem:[%s569 + $0xa] sm:$0xff]
      %v3361 = vld [vmem:[%s569 + $0x12] sm:$0xff]
      %s3362 = scalar_lea.vmem %s1, 1024
      %v3363 = vld [vmem:[%s3362] sm:$0xff]
      %v3364 = vld [vmem:[%s3362 + $0x8] sm:$0xff]
      %v3365 = vld [vmem:[%s3362 + $0x10] sm:$0xff]
      %v3366 = vld [vmem:[%s3362 + $0x18] sm:$0x7f]
      %v3368 = vsel %vm399, %v3360, 0
      %v3371 = vsel %vm399, %v3361, 0
      %v3374 = vsel %vm406, %v3366, 0
      %3376 = vmatprep.subr.mxu0 0.0
      %3377 = vmatpush1.msra.mxu0 0.0
      %3378 = vmatprep.subr.mxu0 0.0
      %3379 = vmatpush1.msra.mxu0 0.0
      %3380 = vmatprep.subr.mxu0 0.0
      %3381 = vmatpush1.msra.mxu0 0.0
      %3382 = vmatprep.subr.mxu0 0.0
      %3383 = vmatpush1.msra.mxu0 0.0
      %3384 = vmatprep.subr.mxu0 0.0
      %3385 = vmatpush1.msra.mxu0 0.0
      %3386 = vmatprep.subr.mxu0 0.0
      %3387 = vmatpush1.msra.mxu0 0.0
      %3388 = vmatprep.subr.mxu0 0.0
      %3389 = vmatpush1.msra.mxu0 0.0
      %3390 = vmatprep.subr.mxu0 0.0
      %3391 = vmatpush1.msra.mxu0 0.0
      %3392 = vmatprep.subr.mxu0 0.0
      %3393 = vmatpush1.msra.mxu0 0.0
      %3394 = vmatprep.subr.mxu0 0.0
      %3395 = vmatpush1.msra.mxu0 0.0
      %3396 = vmatprep.subr.mxu0 0.0
      %3397 = vmatpush1.msra.mxu0 0.0
      %3398 = vmatprep.subr.mxu0 0.0
      %3399 = vmatpush1.msra.mxu0 0.0
      %3400 = vmatprep.subr.mxu0 0.0
      %3401 = vmatpush1.msra.mxu0 %v3374
      %3402 = vmatprep.subr.mxu0 0.0
      %3403 = vmatpush1.msra.mxu0 %v3365
      %3404 = vmatprep.subr.mxu0 0.0
      %3405 = vmatpush1.msra.mxu0 %v3364
      %3406 = vmatprep.subr.mxu0 0.0
      %3407 = vmatpush1.msra.mxu0 %v3363
      %3408 = vmatprep.subr.mxu0 0.0
      %3409 = vmatpush2.msra.mxu0 0.0
      %3410 = vmatprep.subr.mxu0 0.0
      %3411 = vmatpush2.msra.mxu0 0.0
      %3412 = vmatprep.subr.mxu0 0.0
      %3413 = vmatpush2.msra.mxu0 0.0
      %3414 = vmatprep.subr.mxu0 0.0
      %3415 = vmatpush2.msra.mxu0 0.0
      %3416 = vmatprep.subr.mxu0 0.0
      %3417 = vmatpush2.msra.mxu0 0.0
      %3418 = vmatprep.subr.mxu0 0.0
      %3419 = vmatpush2.msra.mxu0 0.0
      %3420 = vmatprep.subr.mxu0 0.0
      %3421 = vmatpush2.msra.mxu0 0.0
      %3422 = vmatprep.subr.mxu0 0.0
      %3423 = vmatpush2.msra.mxu0 0.0
      %3424 = vmatprep.subr.mxu0 0.0
      %3425 = vmatpush2.msra.mxu0 0.0
      %3426 = vmatprep.subr.mxu0 0.0
      %3427 = vmatpush2.msra.mxu0 0.0
      %3428 = vmatprep.subr.mxu0 0.0
      %3429 = vmatpush2.msra.mxu0 0.0
      %3430 = vmatprep.subr.mxu0 0.0
      %3431 = vmatpush2.msra.mxu0 0.0
      %3432 = vmatprep.subr.mxu0 0.0
      %3433 = vmatpush2.msra.mxu0 0.0
      %3434 = vmatprep.subr.mxu0 0.0
      %3435 = vmatpush2.msra.mxu0 0.0
      %3436 = vmatprep.subr.mxu0 0.0
      %3437 = vmatpush2.msra.mxu0 0.0
      %3438 = vmatprep.subr.mxu0 0.0
      %3439 = vmatpush2.msra.mxu0 0.0
      %3440 = vmatprep.mubr.f32.mxu0 0.0
      %3441 = vmatmul.mubr.f32.gmra.mxu0 %v3368
      %v3442 = vpop.f32.mrf.mxu0
      %v3443 = vadd.f32 0.0, %v3442
      %v3444 = vpop.f32.mrf.mxu0
      %3445 = vmatprep.mubr.f32.mxu0 0.0
      %3446 = vmatmul.mubr.f32.gmra.mxu0 %v3371
      %v3447 = vpop.f32.mrf.mxu0
      %v3448 = vadd.f32 0.0, %v3447
      %v3449 = vpop.f32.mrf.mxu0
      %3450 = vdwg.mxu0
      %v3451 = vadd.f32 %v3358, %v3443
      %v3452 = vadd.f32 %v3359, %v3448
      %v3453 = vld [vmem:[%s381 + $0xb] sm:$0xff]
      %v3454 = vld [vmem:[%s381 + $0x13] sm:$0xff]
      %s3455 = scalar_lea.vmem %s1, 1056
      %v3456 = vld [vmem:[%s3455] sm:$0xff]
      %v3457 = vld [vmem:[%s3455 + $0x8] sm:$0xff]
      %v3458 = vld [vmem:[%s3455 + $0x10] sm:$0xff]
      %v3459 = vld [vmem:[%s3455 + $0x18] sm:$0x7f]
      %v3461 = vsel %vm399, %v3453, 0
      %v3464 = vsel %vm399, %v3454, 0
      %v3467 = vsel %vm406, %v3459, 0
      %3469 = vmatprep.subr.mxu0 0.0
      %3470 = vmatpush1.msra.mxu0 0.0
      %3471 = vmatprep.subr.mxu0 0.0
      %3472 = vmatpush1.msra.mxu0 0.0
      %3473 = vmatprep.subr.mxu0 0.0
      %3474 = vmatpush1.msra.mxu0 0.0
      %3475 = vmatprep.subr.mxu0 0.0
      %3476 = vmatpush1.msra.mxu0 0.0
      %3477 = vmatprep.subr.mxu0 0.0
      %3478 = vmatpush1.msra.mxu0 0.0
      %3479 = vmatprep.subr.mxu0 0.0
      %3480 = vmatpush1.msra.mxu0 0.0
      %3481 = vmatprep.subr.mxu0 0.0
      %3482 = vmatpush1.msra.mxu0 0.0
      %3483 = vmatprep.subr.mxu0 0.0
      %3484 = vmatpush1.msra.mxu0 0.0
      %3485 = vmatprep.subr.mxu0 0.0
      %3486 = vmatpush1.msra.mxu0 0.0
      %3487 = vmatprep.subr.mxu0 0.0
      %3488 = vmatpush1.msra.mxu0 0.0
      %3489 = vmatprep.subr.mxu0 0.0
      %3490 = vmatpush1.msra.mxu0 0.0
      %3491 = vmatprep.subr.mxu0 0.0
      %3492 = vmatpush1.msra.mxu0 0.0
      %3493 = vmatprep.subr.mxu0 0.0
      %3494 = vmatpush1.msra.mxu0 %v3467
      %3495 = vmatprep.subr.mxu0 0.0
      %3496 = vmatpush1.msra.mxu0 %v3458
      %3497 = vmatprep.subr.mxu0 0.0
      %3498 = vmatpush1.msra.mxu0 %v3457
      %3499 = vmatprep.subr.mxu0 0.0
      %3500 = vmatpush1.msra.mxu0 %v3456
      %3501 = vmatprep.subr.mxu0 0.0
      %3502 = vmatpush2.msra.mxu0 0.0
      %3503 = vmatprep.subr.mxu0 0.0
      %3504 = vmatpush2.msra.mxu0 0.0
      %3505 = vmatprep.subr.mxu0 0.0
      %3506 = vmatpush2.msra.mxu0 0.0
      %3507 = vmatprep.subr.mxu0 0.0
      %3508 = vmatpush2.msra.mxu0 0.0
      %3509 = vmatprep.subr.mxu0 0.0
      %3510 = vmatpush2.msra.mxu0 0.0
      %3511 = vmatprep.subr.mxu0 0.0
      %3512 = vmatpush2.msra.mxu0 0.0
      %3513 = vmatprep.subr.mxu0 0.0
      %3514 = vmatpush2.msra.mxu0 0.0
      %3515 = vmatprep.subr.mxu0 0.0
      %3516 = vmatpush2.msra.mxu0 0.0
      %3517 = vmatprep.subr.mxu0 0.0
      %3518 = vmatpush2.msra.mxu0 0.0
      %3519 = vmatprep.subr.mxu0 0.0
      %3520 = vmatpush2.msra.mxu0 0.0
      %3521 = vmatprep.subr.mxu0 0.0
      %3522 = vmatpush2.msra.mxu0 0.0
      %3523 = vmatprep.subr.mxu0 0.0
      %3524 = vmatpush2.msra.mxu0 0.0
      %3525 = vmatprep.subr.mxu0 0.0
      %3526 = vmatpush2.msra.mxu0 0.0
      %3527 = vmatprep.subr.mxu0 0.0
      %3528 = vmatpush2.msra.mxu0 0.0
      %3529 = vmatprep.subr.mxu0 0.0
      %3530 = vmatpush2.msra.mxu0 0.0
      %3531 = vmatprep.subr.mxu0 0.0
      %3532 = vmatpush2.msra.mxu0 0.0
      %3533 = vmatprep.mubr.f32.mxu0 0.0
      %3534 = vmatmul.mubr.f32.gmra.mxu0 %v3461
      %v3535 = vpop.f32.mrf.mxu0
      %v3536 = vadd.f32 0.0, %v3535
      %v3537 = vpop.f32.mrf.mxu0
      %3538 = vmatprep.mubr.f32.mxu0 0.0
      %3539 = vmatmul.mubr.f32.gmra.mxu0 %v3464
      %v3540 = vpop.f32.mrf.mxu0
      %v3541 = vadd.f32 0.0, %v3540
      %v3542 = vpop.f32.mrf.mxu0
      %3543 = vdwg.mxu0
      %v3544 = vadd.f32 %v3451, %v3536
      %v3545 = vadd.f32 %v3452, %v3541
      %v3546 = vld [vmem:[%s391 + $0xb] sm:$0xff]
      %v3547 = vld [vmem:[%s391 + $0x13] sm:$0xff]
      %s3548 = scalar_lea.vmem %s1, 1088
      %v3549 = vld [vmem:[%s3548] sm:$0xff]
      %v3550 = vld [vmem:[%s3548 + $0x8] sm:$0xff]
      %v3551 = vld [vmem:[%s3548 + $0x10] sm:$0xff]
      %v3552 = vld [vmem:[%s3548 + $0x18] sm:$0x7f]
      %v3554 = vsel %vm399, %v3546, 0
      %v3557 = vsel %vm399, %v3547, 0
      %v3560 = vsel %vm406, %v3552, 0
      %3562 = vmatprep.subr.mxu0 0.0
      %3563 = vmatpush1.msra.mxu0 0.0
      %3564 = vmatprep.subr.mxu0 0.0
      %3565 = vmatpush1.msra.mxu0 0.0
      %3566 = vmatprep.subr.mxu0 0.0
      %3567 = vmatpush1.msra.mxu0 0.0
      %3568 = vmatprep.subr.mxu0 0.0
      %3569 = vmatpush1.msra.mxu0 0.0
      %3570 = vmatprep.subr.mxu0 0.0
      %3571 = vmatpush1.msra.mxu0 0.0
      %3572 = vmatprep.subr.mxu0 0.0
      %3573 = vmatpush1.msra.mxu0 0.0
      %3574 = vmatprep.subr.mxu0 0.0
      %3575 = vmatpush1.msra.mxu0 0.0
      %3576 = vmatprep.subr.mxu0 0.0
      %3577 = vmatpush1.msra.mxu0 0.0
      %3578 = vmatprep.subr.mxu0 0.0
      %3579 = vmatpush1.msra.mxu0 0.0
      %3580 = vmatprep.subr.mxu0 0.0
      %3581 = vmatpush1.msra.mxu0 0.0
      %3582 = vmatprep.subr.mxu0 0.0
      %3583 = vmatpush1.msra.mxu0 0.0
      %3584 = vmatprep.subr.mxu0 0.0
      %3585 = vmatpush1.msra.mxu0 0.0
      %3586 = vmatprep.subr.mxu0 0.0
      %3587 = vmatpush1.msra.mxu0 %v3560
      %3588 = vmatprep.subr.mxu0 0.0
      %3589 = vmatpush1.msra.mxu0 %v3551
      %3590 = vmatprep.subr.mxu0 0.0
      %3591 = vmatpush1.msra.mxu0 %v3550
      %3592 = vmatprep.subr.mxu0 0.0
      %3593 = vmatpush1.msra.mxu0 %v3549
      %3594 = vmatprep.subr.mxu0 0.0
      %3595 = vmatpush2.msra.mxu0 0.0
      %3596 = vmatprep.subr.mxu0 0.0
      %3597 = vmatpush2.msra.mxu0 0.0
      %3598 = vmatprep.subr.mxu0 0.0
      %3599 = vmatpush2.msra.mxu0 0.0
      %3600 = vmatprep.subr.mxu0 0.0
      %3601 = vmatpush2.msra.mxu0 0.0
      %3602 = vmatprep.subr.mxu0 0.0
      %3603 = vmatpush2.msra.mxu0 0.0
      %3604 = vmatprep.subr.mxu0 0.0
      %3605 = vmatpush2.msra.mxu0 0.0
      %3606 = vmatprep.subr.mxu0 0.0
      %3607 = vmatpush2.msra.mxu0 0.0
      %3608 = vmatprep.subr.mxu0 0.0
      %3609 = vmatpush2.msra.mxu0 0.0
      %3610 = vmatprep.subr.mxu0 0.0
      %3611 = vmatpush2.msra.mxu0 0.0
      %3612 = vmatprep.subr.mxu0 0.0
      %3613 = vmatpush2.msra.mxu0 0.0
      %3614 = vmatprep.subr.mxu0 0.0
      %3615 = vmatpush2.msra.mxu0 0.0
      %3616 = vmatprep.subr.mxu0 0.0
      %3617 = vmatpush2.msra.mxu0 0.0
      %3618 = vmatprep.subr.mxu0 0.0
      %3619 = vmatpush2.msra.mxu0 0.0
      %3620 = vmatprep.subr.mxu0 0.0
      %3621 = vmatpush2.msra.mxu0 0.0
      %3622 = vmatprep.subr.mxu0 0.0
      %3623 = vmatpush2.msra.mxu0 0.0
      %3624 = vmatprep.subr.mxu0 0.0
      %3625 = vmatpush2.msra.mxu0 0.0
      %3626 = vmatprep.mubr.f32.mxu0 0.0
      %3627 = vmatmul.mubr.f32.gmra.mxu0 %v3554
      %v3628 = vpop.f32.mrf.mxu0
      %v3629 = vadd.f32 0.0, %v3628
      %v3630 = vpop.f32.mrf.mxu0
      %3631 = vmatprep.mubr.f32.mxu0 0.0
      %3632 = vmatmul.mubr.f32.gmra.mxu0 %v3557
      %v3633 = vpop.f32.mrf.mxu0
      %v3634 = vadd.f32 0.0, %v3633
      %v3635 = vpop.f32.mrf.mxu0
      %3636 = vdwg.mxu0
      %v3637 = vadd.f32 %v3544, %v3629
      %v3638 = vadd.f32 %v3545, %v3634
      %v3639 = vld [vmem:[%s569 + $0xb] sm:$0xff]
      %v3640 = vld [vmem:[%s569 + $0x13] sm:$0xff]
      %s3641 = scalar_lea.vmem %s1, 1120
      %v3642 = vld [vmem:[%s3641] sm:$0xff]
      %v3643 = vld [vmem:[%s3641 + $0x8] sm:$0xff]
      %v3644 = vld [vmem:[%s3641 + $0x10] sm:$0xff]
      %v3645 = vld [vmem:[%s3641 + $0x18] sm:$0x7f]
      %v3647 = vsel %vm399, %v3639, 0
      %v3650 = vsel %vm399, %v3640, 0
      %v3653 = vsel %vm406, %v3645, 0
      %3655 = vmatprep.subr.mxu0 0.0
      %3656 = vmatpush1.msra.mxu0 0.0
      %3657 = vmatprep.subr.mxu0 0.0
      %3658 = vmatpush1.msra.mxu0 0.0
      %3659 = vmatprep.subr.mxu0 0.0
      %3660 = vmatpush1.msra.mxu0 0.0
      %3661 = vmatprep.subr.mxu0 0.0
      %3662 = vmatpush1.msra.mxu0 0.0
      %3663 = vmatprep.subr.mxu0 0.0
      %3664 = vmatpush1.msra.mxu0 0.0
      %3665 = vmatprep.subr.mxu0 0.0
      %3666 = vmatpush1.msra.mxu0 0.0
      %3667 = vmatprep.subr.mxu0 0.0
      %3668 = vmatpush1.msra.mxu0 0.0
      %3669 = vmatprep.subr.mxu0 0.0
      %3670 = vmatpush1.msra.mxu0 0.0
      %3671 = vmatprep.subr.mxu0 0.0
      %3672 = vmatpush1.msra.mxu0 0.0
      %3673 = vmatprep.subr.mxu0 0.0
      %3674 = vmatpush1.msra.mxu0 0.0
      %3675 = vmatprep.subr.mxu0 0.0
      %3676 = vmatpush1.msra.mxu0 0.0
      %3677 = vmatprep.subr.mxu0 0.0
      %3678 = vmatpush1.msra.mxu0 0.0
      %3679 = vmatprep.subr.mxu0 0.0
      %3680 = vmatpush1.msra.mxu0 %v3653
      %3681 = vmatprep.subr.mxu0 0.0
      %3682 = vmatpush1.msra.mxu0 %v3644
      %3683 = vmatprep.subr.mxu0 0.0
      %3684 = vmatpush1.msra.mxu0 %v3643
      %3685 = vmatprep.subr.mxu0 0.0
      %3686 = vmatpush1.msra.mxu0 %v3642
      %3687 = vmatprep.subr.mxu0 0.0
      %3688 = vmatpush2.msra.mxu0 0.0
      %3689 = vmatprep.subr.mxu0 0.0
      %3690 = vmatpush2.msra.mxu0 0.0
      %3691 = vmatprep.subr.mxu0 0.0
      %3692 = vmatpush2.msra.mxu0 0.0
      %3693 = vmatprep.subr.mxu0 0.0
      %3694 = vmatpush2.msra.mxu0 0.0
      %3695 = vmatprep.subr.mxu0 0.0
      %3696 = vmatpush2.msra.mxu0 0.0
      %3697 = vmatprep.subr.mxu0 0.0
      %3698 = vmatpush2.msra.mxu0 0.0
      %3699 = vmatprep.subr.mxu0 0.0
      %3700 = vmatpush2.msra.mxu0 0.0
      %3701 = vmatprep.subr.mxu0 0.0
      %3702 = vmatpush2.msra.mxu0 0.0
      %3703 = vmatprep.subr.mxu0 0.0
      %3704 = vmatpush2.msra.mxu0 0.0
      %3705 = vmatprep.subr.mxu0 0.0
      %3706 = vmatpush2.msra.mxu0 0.0
      %3707 = vmatprep.subr.mxu0 0.0
      %3708 = vmatpush2.msra.mxu0 0.0
      %3709 = vmatprep.subr.mxu0 0.0
      %3710 = vmatpush2.msra.mxu0 0.0
      %3711 = vmatprep.subr.mxu0 0.0
      %3712 = vmatpush2.msra.mxu0 0.0
      %3713 = vmatprep.subr.mxu0 0.0
      %3714 = vmatpush2.msra.mxu0 0.0
      %3715 = vmatprep.subr.mxu0 0.0
      %3716 = vmatpush2.msra.mxu0 0.0
      %3717 = vmatprep.subr.mxu0 0.0
      %3718 = vmatpush2.msra.mxu0 0.0
      %3719 = vmatprep.mubr.f32.mxu0 0.0
      %3720 = vmatmul.mubr.f32.gmra.mxu0 %v3647
      %v3721 = vpop.f32.mrf.mxu0
      %v3722 = vadd.f32 0.0, %v3721
      %v3723 = vpop.f32.mrf.mxu0
      %3724 = vmatprep.mubr.f32.mxu0 0.0
      %3725 = vmatmul.mubr.f32.gmra.mxu0 %v3650
      %v3726 = vpop.f32.mrf.mxu0
      %v3727 = vadd.f32 0.0, %v3726
      %v3728 = vpop.f32.mrf.mxu0
      %3729 = vdwg.mxu0
      %v3730 = vadd.f32 %v3637, %v3722
      %v3731 = vadd.f32 %v3638, %v3727
      %v3732 = vld [vmem:[%s381 + $0xc] sm:$0xff]
      %v3733 = vld [vmem:[%s381 + $0x14] sm:$0xff]
      %s3734 = scalar_lea.vmem %s1, 1152
      %v3735 = vld [vmem:[%s3734] sm:$0xff]
      %v3736 = vld [vmem:[%s3734 + $0x8] sm:$0xff]
      %v3737 = vld [vmem:[%s3734 + $0x10] sm:$0xff]
      %v3738 = vld [vmem:[%s3734 + $0x18] sm:$0x7f]
      %v3740 = vsel %vm399, %v3732, 0
      %v3743 = vsel %vm399, %v3733, 0
      %v3746 = vsel %vm406, %v3738, 0
      %3748 = vmatprep.subr.mxu0 0.0
      %3749 = vmatpush1.msra.mxu0 0.0
      %3750 = vmatprep.subr.mxu0 0.0
      %3751 = vmatpush1.msra.mxu0 0.0
      %3752 = vmatprep.subr.mxu0 0.0
      %3753 = vmatpush1.msra.mxu0 0.0
      %3754 = vmatprep.subr.mxu0 0.0
      %3755 = vmatpush1.msra.mxu0 0.0
      %3756 = vmatprep.subr.mxu0 0.0
      %3757 = vmatpush1.msra.mxu0 0.0
      %3758 = vmatprep.subr.mxu0 0.0
      %3759 = vmatpush1.msra.mxu0 0.0
      %3760 = vmatprep.subr.mxu0 0.0
      %3761 = vmatpush1.msra.mxu0 0.0
      %3762 = vmatprep.subr.mxu0 0.0
      %3763 = vmatpush1.msra.mxu0 0.0
      %3764 = vmatprep.subr.mxu0 0.0
      %3765 = vmatpush1.msra.mxu0 0.0
      %3766 = vmatprep.subr.mxu0 0.0
      %3767 = vmatpush1.msra.mxu0 0.0
      %3768 = vmatprep.subr.mxu0 0.0
      %3769 = vmatpush1.msra.mxu0 0.0
      %3770 = vmatprep.subr.mxu0 0.0
      %3771 = vmatpush1.msra.mxu0 0.0
      %3772 = vmatprep.subr.mxu0 0.0
      %3773 = vmatpush1.msra.mxu0 %v3746
      %3774 = vmatprep.subr.mxu0 0.0
      %3775 = vmatpush1.msra.mxu0 %v3737
      %3776 = vmatprep.subr.mxu0 0.0
      %3777 = vmatpush1.msra.mxu0 %v3736
      %3778 = vmatprep.subr.mxu0 0.0
      %3779 = vmatpush1.msra.mxu0 %v3735
      %3780 = vmatprep.subr.mxu0 0.0
      %3781 = vmatpush2.msra.mxu0 0.0
      %3782 = vmatprep.subr.mxu0 0.0
      %3783 = vmatpush2.msra.mxu0 0.0
      %3784 = vmatprep.subr.mxu0 0.0
      %3785 = vmatpush2.msra.mxu0 0.0
      %3786 = vmatprep.subr.mxu0 0.0
      %3787 = vmatpush2.msra.mxu0 0.0
      %3788 = vmatprep.subr.mxu0 0.0
      %3789 = vmatpush2.msra.mxu0 0.0
      %3790 = vmatprep.subr.mxu0 0.0
      %3791 = vmatpush2.msra.mxu0 0.0
      %3792 = vmatprep.subr.mxu0 0.0
      %3793 = vmatpush2.msra.mxu0 0.0
      %3794 = vmatprep.subr.mxu0 0.0
      %3795 = vmatpush2.msra.mxu0 0.0
      %3796 = vmatprep.subr.mxu0 0.0
      %3797 = vmatpush2.msra.mxu0 0.0
      %3798 = vmatprep.subr.mxu0 0.0
      %3799 = vmatpush2.msra.mxu0 0.0
      %3800 = vmatprep.subr.mxu0 0.0
      %3801 = vmatpush2.msra.mxu0 0.0
      %3802 = vmatprep.subr.mxu0 0.0
      %3803 = vmatpush2.msra.mxu0 0.0
      %3804 = vmatprep.subr.mxu0 0.0
      %3805 = vmatpush2.msra.mxu0 0.0
      %3806 = vmatprep.subr.mxu0 0.0
      %3807 = vmatpush2.msra.mxu0 0.0
      %3808 = vmatprep.subr.mxu0 0.0
      %3809 = vmatpush2.msra.mxu0 0.0
      %3810 = vmatprep.subr.mxu0 0.0
      %3811 = vmatpush2.msra.mxu0 0.0
      %3812 = vmatprep.mubr.f32.mxu0 0.0
      %3813 = vmatmul.mubr.f32.gmra.mxu0 %v3740
      %v3814 = vpop.f32.mrf.mxu0
      %v3815 = vadd.f32 0.0, %v3814
      %v3816 = vpop.f32.mrf.mxu0
      %3817 = vmatprep.mubr.f32.mxu0 0.0
      %3818 = vmatmul.mubr.f32.gmra.mxu0 %v3743
      %v3819 = vpop.f32.mrf.mxu0
      %v3820 = vadd.f32 0.0, %v3819
      %v3821 = vpop.f32.mrf.mxu0
      %3822 = vdwg.mxu0
      %v3823 = vadd.f32 %v3730, %v3815
      %v3824 = vadd.f32 %v3731, %v3820
      %v3825 = vld [vmem:[%s391 + $0xc] sm:$0xff]
      %v3826 = vld [vmem:[%s391 + $0x14] sm:$0xff]
      %s3827 = scalar_lea.vmem %s1, 1184
      %v3828 = vld [vmem:[%s3827] sm:$0xff]
      %v3829 = vld [vmem:[%s3827 + $0x8] sm:$0xff]
      %v3830 = vld [vmem:[%s3827 + $0x10] sm:$0xff]
      %v3831 = vld [vmem:[%s3827 + $0x18] sm:$0x7f]
      %v3833 = vsel %vm399, %v3825, 0
      %v3836 = vsel %vm399, %v3826, 0
      %v3839 = vsel %vm406, %v3831, 0
      %3841 = vmatprep.subr.mxu0 0.0
      %3842 = vmatpush1.msra.mxu0 0.0
      %3843 = vmatprep.subr.mxu0 0.0
      %3844 = vmatpush1.msra.mxu0 0.0
      %3845 = vmatprep.subr.mxu0 0.0
      %3846 = vmatpush1.msra.mxu0 0.0
      %3847 = vmatprep.subr.mxu0 0.0
      %3848 = vmatpush1.msra.mxu0 0.0
      %3849 = vmatprep.subr.mxu0 0.0
      %3850 = vmatpush1.msra.mxu0 0.0
      %3851 = vmatprep.subr.mxu0 0.0
      %3852 = vmatpush1.msra.mxu0 0.0
      %3853 = vmatprep.subr.mxu0 0.0
      %3854 = vmatpush1.msra.mxu0 0.0
      %3855 = vmatprep.subr.mxu0 0.0
      %3856 = vmatpush1.msra.mxu0 0.0
      %3857 = vmatprep.subr.mxu0 0.0
      %3858 = vmatpush1.msra.mxu0 0.0
      %3859 = vmatprep.subr.mxu0 0.0
      %3860 = vmatpush1.msra.mxu0 0.0
      %3861 = vmatprep.subr.mxu0 0.0
      %3862 = vmatpush1.msra.mxu0 0.0
      %3863 = vmatprep.subr.mxu0 0.0
      %3864 = vmatpush1.msra.mxu0 0.0
      %3865 = vmatprep.subr.mxu0 0.0
      %3866 = vmatpush1.msra.mxu0 %v3839
      %3867 = vmatprep.subr.mxu0 0.0
      %3868 = vmatpush1.msra.mxu0 %v3830
      %3869 = vmatprep.subr.mxu0 0.0
      %3870 = vmatpush1.msra.mxu0 %v3829
      %3871 = vmatprep.subr.mxu0 0.0
      %3872 = vmatpush1.msra.mxu0 %v3828
      %3873 = vmatprep.subr.mxu0 0.0
      %3874 = vmatpush2.msra.mxu0 0.0
      %3875 = vmatprep.subr.mxu0 0.0
      %3876 = vmatpush2.msra.mxu0 0.0
      %3877 = vmatprep.subr.mxu0 0.0
      %3878 = vmatpush2.msra.mxu0 0.0
      %3879 = vmatprep.subr.mxu0 0.0
      %3880 = vmatpush2.msra.mxu0 0.0
      %3881 = vmatprep.subr.mxu0 0.0
      %3882 = vmatpush2.msra.mxu0 0.0
      %3883 = vmatprep.subr.mxu0 0.0
      %3884 = vmatpush2.msra.mxu0 0.0
      %3885 = vmatprep.subr.mxu0 0.0
      %3886 = vmatpush2.msra.mxu0 0.0
      %3887 = vmatprep.subr.mxu0 0.0
      %3888 = vmatpush2.msra.mxu0 0.0
      %3889 = vmatprep.subr.mxu0 0.0
      %3890 = vmatpush2.msra.mxu0 0.0
      %3891 = vmatprep.subr.mxu0 0.0
      %3892 = vmatpush2.msra.mxu0 0.0
      %3893 = vmatprep.subr.mxu0 0.0
      %3894 = vmatpush2.msra.mxu0 0.0
      %3895 = vmatprep.subr.mxu0 0.0
      %3896 = vmatpush2.msra.mxu0 0.0
      %3897 = vmatprep.subr.mxu0 0.0
      %3898 = vmatpush2.msra.mxu0 0.0
      %3899 = vmatprep.subr.mxu0 0.0
      %3900 = vmatpush2.msra.mxu0 0.0
      %3901 = vmatprep.subr.mxu0 0.0
      %3902 = vmatpush2.msra.mxu0 0.0
      %3903 = vmatprep.subr.mxu0 0.0
      %3904 = vmatpush2.msra.mxu0 0.0
      %3905 = vmatprep.mubr.f32.mxu0 0.0
      %3906 = vmatmul.mubr.f32.gmra.mxu0 %v3833
      %v3907 = vpop.f32.mrf.mxu0
      %v3908 = vadd.f32 0.0, %v3907
      %v3909 = vpop.f32.mrf.mxu0
      %3910 = vmatprep.mubr.f32.mxu0 0.0
      %3911 = vmatmul.mubr.f32.gmra.mxu0 %v3836
      %v3912 = vpop.f32.mrf.mxu0
      %v3913 = vadd.f32 0.0, %v3912
      %v3914 = vpop.f32.mrf.mxu0
      %3915 = vdwg.mxu0
      %v3916 = vadd.f32 %v3823, %v3908
      %v3917 = vadd.f32 %v3824, %v3913
      %v3918 = vld [vmem:[%s569 + $0xc] sm:$0xff]
      %v3919 = vld [vmem:[%s569 + $0x14] sm:$0xff]
      %s3920 = scalar_lea.vmem %s1, 1216
      %v3921 = vld [vmem:[%s3920] sm:$0xff]
      %v3922 = vld [vmem:[%s3920 + $0x8] sm:$0xff]
      %v3923 = vld [vmem:[%s3920 + $0x10] sm:$0xff]
      %v3924 = vld [vmem:[%s3920 + $0x18] sm:$0x7f]
      %v3926 = vsel %vm399, %v3918, 0
      %v3929 = vsel %vm399, %v3919, 0
      %v3932 = vsel %vm406, %v3924, 0
      %3934 = vmatprep.subr.mxu0 0.0
      %3935 = vmatpush1.msra.mxu0 0.0
      %3936 = vmatprep.subr.mxu0 0.0
      %3937 = vmatpush1.msra.mxu0 0.0
      %3938 = vmatprep.subr.mxu0 0.0
      %3939 = vmatpush1.msra.mxu0 0.0
      %3940 = vmatprep.subr.mxu0 0.0
      %3941 = vmatpush1.msra.mxu0 0.0
      %3942 = vmatprep.subr.mxu0 0.0
      %3943 = vmatpush1.msra.mxu0 0.0
      %3944 = vmatprep.subr.mxu0 0.0
      %3945 = vmatpush1.msra.mxu0 0.0
      %3946 = vmatprep.subr.mxu0 0.0
      %3947 = vmatpush1.msra.mxu0 0.0
      %3948 = vmatprep.subr.mxu0 0.0
      %3949 = vmatpush1.msra.mxu0 0.0
      %3950 = vmatprep.subr.mxu0 0.0
      %3951 = vmatpush1.msra.mxu0 0.0
      %3952 = vmatprep.subr.mxu0 0.0
      %3953 = vmatpush1.msra.mxu0 0.0
      %3954 = vmatprep.subr.mxu0 0.0
      %3955 = vmatpush1.msra.mxu0 0.0
      %3956 = vmatprep.subr.mxu0 0.0
      %3957 = vmatpush1.msra.mxu0 0.0
      %3958 = vmatprep.subr.mxu0 0.0
      %3959 = vmatpush1.msra.mxu0 %v3932
      %3960 = vmatprep.subr.mxu0 0.0
      %3961 = vmatpush1.msra.mxu0 %v3923
      %3962 = vmatprep.subr.mxu0 0.0
      %3963 = vmatpush1.msra.mxu0 %v3922
      %3964 = vmatprep.subr.mxu0 0.0
      %3965 = vmatpush1.msra.mxu0 %v3921
      %3966 = vmatprep.subr.mxu0 0.0
      %3967 = vmatpush2.msra.mxu0 0.0
      %3968 = vmatprep.subr.mxu0 0.0
      %3969 = vmatpush2.msra.mxu0 0.0
      %3970 = vmatprep.subr.mxu0 0.0
      %3971 = vmatpush2.msra.mxu0 0.0
      %3972 = vmatprep.subr.mxu0 0.0
      %3973 = vmatpush2.msra.mxu0 0.0
      %3974 = vmatprep.subr.mxu0 0.0
      %3975 = vmatpush2.msra.mxu0 0.0
      %3976 = vmatprep.subr.mxu0 0.0
      %3977 = vmatpush2.msra.mxu0 0.0
      %3978 = vmatprep.subr.mxu0 0.0
      %3979 = vmatpush2.msra.mxu0 0.0
      %3980 = vmatprep.subr.mxu0 0.0
      %3981 = vmatpush2.msra.mxu0 0.0
      %3982 = vmatprep.subr.mxu0 0.0
      %3983 = vmatpush2.msra.mxu0 0.0
      %3984 = vmatprep.subr.mxu0 0.0
      %3985 = vmatpush2.msra.mxu0 0.0
      %3986 = vmatprep.subr.mxu0 0.0
      %3987 = vmatpush2.msra.mxu0 0.0
      %3988 = vmatprep.subr.mxu0 0.0
      %3989 = vmatpush2.msra.mxu0 0.0
      %3990 = vmatprep.subr.mxu0 0.0
      %3991 = vmatpush2.msra.mxu0 0.0
      %3992 = vmatprep.subr.mxu0 0.0
      %3993 = vmatpush2.msra.mxu0 0.0
      %3994 = vmatprep.subr.mxu0 0.0
      %3995 = vmatpush2.msra.mxu0 0.0
      %3996 = vmatprep.subr.mxu0 0.0
      %3997 = vmatpush2.msra.mxu0 0.0
      %3998 = vmatprep.mubr.f32.mxu0 0.0
      %3999 = vmatmul.mubr.f32.gmra.mxu0 %v3926
      %v4000 = vpop.f32.mrf.mxu0
      %v4001 = vadd.f32 0.0, %v4000
      %v4002 = vpop.f32.mrf.mxu0
      %4003 = vmatprep.mubr.f32.mxu0 0.0
      %4004 = vmatmul.mubr.f32.gmra.mxu0 %v3929
      %v4005 = vpop.f32.mrf.mxu0
      %v4006 = vadd.f32 0.0, %v4005
      %v4007 = vpop.f32.mrf.mxu0
      %4008 = vdwg.mxu0
      %v4009 = vadd.f32 %v3916, %v4001
      %v4010 = vadd.f32 %v3917, %v4006
      %v4011 = vld [vmem:[%s381 + $0xd] sm:$0xff]
      %v4012 = vld [vmem:[%s381 + $0x15] sm:$0xff]
      %s4013 = scalar_lea.vmem %s1, 1248
      %v4014 = vld [vmem:[%s4013] sm:$0xff]
      %v4015 = vld [vmem:[%s4013 + $0x8] sm:$0xff]
      %v4016 = vld [vmem:[%s4013 + $0x10] sm:$0xff]
      %v4017 = vld [vmem:[%s4013 + $0x18] sm:$0x7f]
      %v4019 = vsel %vm399, %v4011, 0
      %v4022 = vsel %vm399, %v4012, 0
      %v4025 = vsel %vm406, %v4017, 0
      %4027 = vmatprep.subr.mxu0 0.0
      %4028 = vmatpush1.msra.mxu0 0.0
      %4029 = vmatprep.subr.mxu0 0.0
      %4030 = vmatpush1.msra.mxu0 0.0
      %4031 = vmatprep.subr.mxu0 0.0
      %4032 = vmatpush1.msra.mxu0 0.0
      %4033 = vmatprep.subr.mxu0 0.0
      %4034 = vmatpush1.msra.mxu0 0.0
      %4035 = vmatprep.subr.mxu0 0.0
      %4036 = vmatpush1.msra.mxu0 0.0
      %4037 = vmatprep.subr.mxu0 0.0
      %4038 = vmatpush1.msra.mxu0 0.0
      %4039 = vmatprep.subr.mxu0 0.0
      %4040 = vmatpush1.msra.mxu0 0.0
      %4041 = vmatprep.subr.mxu0 0.0
      %4042 = vmatpush1.msra.mxu0 0.0
      %4043 = vmatprep.subr.mxu0 0.0
      %4044 = vmatpush1.msra.mxu0 0.0
      %4045 = vmatprep.subr.mxu0 0.0
      %4046 = vmatpush1.msra.mxu0 0.0
      %4047 = vmatprep.subr.mxu0 0.0
      %4048 = vmatpush1.msra.mxu0 0.0
      %4049 = vmatprep.subr.mxu0 0.0
      %4050 = vmatpush1.msra.mxu0 0.0
      %4051 = vmatprep.subr.mxu0 0.0
      %4052 = vmatpush1.msra.mxu0 %v4025
      %4053 = vmatprep.subr.mxu0 0.0
      %4054 = vmatpush1.msra.mxu0 %v4016
      %4055 = vmatprep.subr.mxu0 0.0
      %4056 = vmatpush1.msra.mxu0 %v4015
      %4057 = vmatprep.subr.mxu0 0.0
      %4058 = vmatpush1.msra.mxu0 %v4014
      %4059 = vmatprep.subr.mxu0 0.0
      %4060 = vmatpush2.msra.mxu0 0.0
      %4061 = vmatprep.subr.mxu0 0.0
      %4062 = vmatpush2.msra.mxu0 0.0
      %4063 = vmatprep.subr.mxu0 0.0
      %4064 = vmatpush2.msra.mxu0 0.0
      %4065 = vmatprep.subr.mxu0 0.0
      %4066 = vmatpush2.msra.mxu0 0.0
      %4067 = vmatprep.subr.mxu0 0.0
      %4068 = vmatpush2.msra.mxu0 0.0
      %4069 = vmatprep.subr.mxu0 0.0
      %4070 = vmatpush2.msra.mxu0 0.0
      %4071 = vmatprep.subr.mxu0 0.0
      %4072 = vmatpush2.msra.mxu0 0.0
      %4073 = vmatprep.subr.mxu0 0.0
      %4074 = vmatpush2.msra.mxu0 0.0
      %4075 = vmatprep.subr.mxu0 0.0
      %4076 = vmatpush2.msra.mxu0 0.0
      %4077 = vmatprep.subr.mxu0 0.0
      %4078 = vmatpush2.msra.mxu0 0.0
      %4079 = vmatprep.subr.mxu0 0.0
      %4080 = vmatpush2.msra.mxu0 0.0
      %4081 = vmatprep.subr.mxu0 0.0
      %4082 = vmatpush2.msra.mxu0 0.0
      %4083 = vmatprep.subr.mxu0 0.0
      %4084 = vmatpush2.msra.mxu0 0.0
      %4085 = vmatprep.subr.mxu0 0.0
      %4086 = vmatpush2.msra.mxu0 0.0
      %4087 = vmatprep.subr.mxu0 0.0
      %4088 = vmatpush2.msra.mxu0 0.0
      %4089 = vmatprep.subr.mxu0 0.0
      %4090 = vmatpush2.msra.mxu0 0.0
      %4091 = vmatprep.mubr.f32.mxu0 0.0
      %4092 = vmatmul.mubr.f32.gmra.mxu0 %v4019
      %v4093 = vpop.f32.mrf.mxu0
      %v4094 = vadd.f32 0.0, %v4093
      %v4095 = vpop.f32.mrf.mxu0
      %4096 = vmatprep.mubr.f32.mxu0 0.0
      %4097 = vmatmul.mubr.f32.gmra.mxu0 %v4022
      %v4098 = vpop.f32.mrf.mxu0
      %v4099 = vadd.f32 0.0, %v4098
      %v4100 = vpop.f32.mrf.mxu0
      %4101 = vdwg.mxu0
      %v4102 = vadd.f32 %v4009, %v4094
      %v4103 = vadd.f32 %v4010, %v4099
      %v4104 = vld [vmem:[%s391 + $0xd] sm:$0xff]
      %v4105 = vld [vmem:[%s391 + $0x15] sm:$0xff]
      %s4106 = scalar_lea.vmem %s1, 1280
      %v4107 = vld [vmem:[%s4106] sm:$0xff]
      %v4108 = vld [vmem:[%s4106 + $0x8] sm:$0xff]
      %v4109 = vld [vmem:[%s4106 + $0x10] sm:$0xff]
      %v4110 = vld [vmem:[%s4106 + $0x18] sm:$0x7f]
      %v4112 = vsel %vm399, %v4104, 0
      %v4115 = vsel %vm399, %v4105, 0
      %v4118 = vsel %vm406, %v4110, 0
      %4120 = vmatprep.subr.mxu0 0.0
      %4121 = vmatpush1.msra.mxu0 0.0
      %4122 = vmatprep.subr.mxu0 0.0
      %4123 = vmatpush1.msra.mxu0 0.0
      %4124 = vmatprep.subr.mxu0 0.0
      %4125 = vmatpush1.msra.mxu0 0.0
      %4126 = vmatprep.subr.mxu0 0.0
      %4127 = vmatpush1.msra.mxu0 0.0
      %4128 = vmatprep.subr.mxu0 0.0
      %4129 = vmatpush1.msra.mxu0 0.0
      %4130 = vmatprep.subr.mxu0 0.0
      %4131 = vmatpush1.msra.mxu0 0.0
      %4132 = vmatprep.subr.mxu0 0.0
      %4133 = vmatpush1.msra.mxu0 0.0
      %4134 = vmatprep.subr.mxu0 0.0
      %4135 = vmatpush1.msra.mxu0 0.0
      %4136 = vmatprep.subr.mxu0 0.0
      %4137 = vmatpush1.msra.mxu0 0.0
      %4138 = vmatprep.subr.mxu0 0.0
      %4139 = vmatpush1.msra.mxu0 0.0
      %4140 = vmatprep.subr.mxu0 0.0
      %4141 = vmatpush1.msra.mxu0 0.0
      %4142 = vmatprep.subr.mxu0 0.0
      %4143 = vmatpush1.msra.mxu0 0.0
      %4144 = vmatprep.subr.mxu0 0.0
      %4145 = vmatpush1.msra.mxu0 %v4118
      %4146 = vmatprep.subr.mxu0 0.0
      %4147 = vmatpush1.msra.mxu0 %v4109
      %4148 = vmatprep.subr.mxu0 0.0
      %4149 = vmatpush1.msra.mxu0 %v4108
      %4150 = vmatprep.subr.mxu0 0.0
      %4151 = vmatpush1.msra.mxu0 %v4107
      %4152 = vmatprep.subr.mxu0 0.0
      %4153 = vmatpush2.msra.mxu0 0.0
      %4154 = vmatprep.subr.mxu0 0.0
      %4155 = vmatpush2.msra.mxu0 0.0
      %4156 = vmatprep.subr.mxu0 0.0
      %4157 = vmatpush2.msra.mxu0 0.0
      %4158 = vmatprep.subr.mxu0 0.0
      %4159 = vmatpush2.msra.mxu0 0.0
      %4160 = vmatprep.subr.mxu0 0.0
      %4161 = vmatpush2.msra.mxu0 0.0
      %4162 = vmatprep.subr.mxu0 0.0
      %4163 = vmatpush2.msra.mxu0 0.0
      %4164 = vmatprep.subr.mxu0 0.0
      %4165 = vmatpush2.msra.mxu0 0.0
      %4166 = vmatprep.subr.mxu0 0.0
      %4167 = vmatpush2.msra.mxu0 0.0
      %4168 = vmatprep.subr.mxu0 0.0
      %4169 = vmatpush2.msra.mxu0 0.0
      %4170 = vmatprep.subr.mxu0 0.0
      %4171 = vmatpush2.msra.mxu0 0.0
      %4172 = vmatprep.subr.mxu0 0.0
      %4173 = vmatpush2.msra.mxu0 0.0
      %4174 = vmatprep.subr.mxu0 0.0
      %4175 = vmatpush2.msra.mxu0 0.0
      %4176 = vmatprep.subr.mxu0 0.0
      %4177 = vmatpush2.msra.mxu0 0.0
      %4178 = vmatprep.subr.mxu0 0.0
      %4179 = vmatpush2.msra.mxu0 0.0
      %4180 = vmatprep.subr.mxu0 0.0
      %4181 = vmatpush2.msra.mxu0 0.0
      %4182 = vmatprep.subr.mxu0 0.0
      %4183 = vmatpush2.msra.mxu0 0.0
      %4184 = vmatprep.mubr.f32.mxu0 0.0
      %4185 = vmatmul.mubr.f32.gmra.mxu0 %v4112
      %v4186 = vpop.f32.mrf.mxu0
      %v4187 = vadd.f32 0.0, %v4186
      %v4188 = vpop.f32.mrf.mxu0
      %4189 = vmatprep.mubr.f32.mxu0 0.0
      %4190 = vmatmul.mubr.f32.gmra.mxu0 %v4115
      %v4191 = vpop.f32.mrf.mxu0
      %v4192 = vadd.f32 0.0, %v4191
      %v4193 = vpop.f32.mrf.mxu0
      %4194 = vdwg.mxu0
      %v4195 = vadd.f32 %v4102, %v4187
      %v4196 = vadd.f32 %v4103, %v4192
      %v4197 = vld [vmem:[%s569 + $0xd] sm:$0xff]
      %v4198 = vld [vmem:[%s569 + $0x15] sm:$0xff]
      %s4199 = scalar_lea.vmem %s1, 1312
      %v4200 = vld [vmem:[%s4199] sm:$0xff]
      %v4201 = vld [vmem:[%s4199 + $0x8] sm:$0xff]
      %v4202 = vld [vmem:[%s4199 + $0x10] sm:$0xff]
      %v4203 = vld [vmem:[%s4199 + $0x18] sm:$0x7f]
      %v4205 = vsel %vm399, %v4197, 0
      %v4208 = vsel %vm399, %v4198, 0
      %v4211 = vsel %vm406, %v4203, 0
      %4213 = vmatprep.subr.mxu0 0.0
      %4214 = vmatpush1.msra.mxu0 0.0
      %4215 = vmatprep.subr.mxu0 0.0
      %4216 = vmatpush1.msra.mxu0 0.0
      %4217 = vmatprep.subr.mxu0 0.0
      %4218 = vmatpush1.msra.mxu0 0.0
      %4219 = vmatprep.subr.mxu0 0.0
      %4220 = vmatpush1.msra.mxu0 0.0
      %4221 = vmatprep.subr.mxu0 0.0
      %4222 = vmatpush1.msra.mxu0 0.0
      %4223 = vmatprep.subr.mxu0 0.0
      %4224 = vmatpush1.msra.mxu0 0.0
      %4225 = vmatprep.subr.mxu0 0.0
      %4226 = vmatpush1.msra.mxu0 0.0
      %4227 = vmatprep.subr.mxu0 0.0
      %4228 = vmatpush1.msra.mxu0 0.0
      %4229 = vmatprep.subr.mxu0 0.0
      %4230 = vmatpush1.msra.mxu0 0.0
      %4231 = vmatprep.subr.mxu0 0.0
      %4232 = vmatpush1.msra.mxu0 0.0
      %4233 = vmatprep.subr.mxu0 0.0
      %4234 = vmatpush1.msra.mxu0 0.0
      %4235 = vmatprep.subr.mxu0 0.0
      %4236 = vmatpush1.msra.mxu0 0.0
      %4237 = vmatprep.subr.mxu0 0.0
      %4238 = vmatpush1.msra.mxu0 %v4211
      %4239 = vmatprep.subr.mxu0 0.0
      %4240 = vmatpush1.msra.mxu0 %v4202
      %4241 = vmatprep.subr.mxu0 0.0
      %4242 = vmatpush1.msra.mxu0 %v4201
      %4243 = vmatprep.subr.mxu0 0.0
      %4244 = vmatpush1.msra.mxu0 %v4200
      %4245 = vmatprep.subr.mxu0 0.0
      %4246 = vmatpush2.msra.mxu0 0.0
      %4247 = vmatprep.subr.mxu0 0.0
      %4248 = vmatpush2.msra.mxu0 0.0
      %4249 = vmatprep.subr.mxu0 0.0
      %4250 = vmatpush2.msra.mxu0 0.0
      %4251 = vmatprep.subr.mxu0 0.0
      %4252 = vmatpush2.msra.mxu0 0.0
      %4253 = vmatprep.subr.mxu0 0.0
      %4254 = vmatpush2.msra.mxu0 0.0
      %4255 = vmatprep.subr.mxu0 0.0
      %4256 = vmatpush2.msra.mxu0 0.0
      %4257 = vmatprep.subr.mxu0 0.0
      %4258 = vmatpush2.msra.mxu0 0.0
      %4259 = vmatprep.subr.mxu0 0.0
      %4260 = vmatpush2.msra.mxu0 0.0
      %4261 = vmatprep.subr.mxu0 0.0
      %4262 = vmatpush2.msra.mxu0 0.0
      %4263 = vmatprep.subr.mxu0 0.0
      %4264 = vmatpush2.msra.mxu0 0.0
      %4265 = vmatprep.subr.mxu0 0.0
      %4266 = vmatpush2.msra.mxu0 0.0
      %4267 = vmatprep.subr.mxu0 0.0
      %4268 = vmatpush2.msra.mxu0 0.0
      %4269 = vmatprep.subr.mxu0 0.0
      %4270 = vmatpush2.msra.mxu0 0.0
      %4271 = vmatprep.subr.mxu0 0.0
      %4272 = vmatpush2.msra.mxu0 0.0
      %4273 = vmatprep.subr.mxu0 0.0
      %4274 = vmatpush2.msra.mxu0 0.0
      %4275 = vmatprep.subr.mxu0 0.0
      %4276 = vmatpush2.msra.mxu0 0.0
      %4277 = vmatprep.mubr.f32.mxu0 0.0
      %4278 = vmatmul.mubr.f32.gmra.mxu0 %v4205
      %v4279 = vpop.f32.mrf.mxu0
      %v4280 = vadd.f32 0.0, %v4279
      %v4281 = vpop.f32.mrf.mxu0
      %4282 = vmatprep.mubr.f32.mxu0 0.0
      %4283 = vmatmul.mubr.f32.gmra.mxu0 %v4208
      %v4284 = vpop.f32.mrf.mxu0
      %v4285 = vadd.f32 0.0, %v4284
      %v4286 = vpop.f32.mrf.mxu0
      %4287 = vdwg.mxu0
      %v4288 = vadd.f32 %v4195, %v4280
      %v4289 = vadd.f32 %v4196, %v4285
      %v4290 = vld [vmem:[%s381 + $0xe] sm:$0xff]
      %v4291 = vld [vmem:[%s381 + $0x16] sm:$0xff]
      %s4292 = scalar_lea.vmem %s1, 1344
      %v4293 = vld [vmem:[%s4292] sm:$0xff]
      %v4294 = vld [vmem:[%s4292 + $0x8] sm:$0xff]
      %v4295 = vld [vmem:[%s4292 + $0x10] sm:$0xff]
      %v4296 = vld [vmem:[%s4292 + $0x18] sm:$0x7f]
      %v4298 = vsel %vm399, %v4290, 0
      %v4301 = vsel %vm399, %v4291, 0
      %v4304 = vsel %vm406, %v4296, 0
      %4306 = vmatprep.subr.mxu0 0.0
      %4307 = vmatpush1.msra.mxu0 0.0
      %4308 = vmatprep.subr.mxu0 0.0
      %4309 = vmatpush1.msra.mxu0 0.0
      %4310 = vmatprep.subr.mxu0 0.0
      %4311 = vmatpush1.msra.mxu0 0.0
      %4312 = vmatprep.subr.mxu0 0.0
      %4313 = vmatpush1.msra.mxu0 0.0
      %4314 = vmatprep.subr.mxu0 0.0
      %4315 = vmatpush1.msra.mxu0 0.0
      %4316 = vmatprep.subr.mxu0 0.0
      %4317 = vmatpush1.msra.mxu0 0.0
      %4318 = vmatprep.subr.mxu0 0.0
      %4319 = vmatpush1.msra.mxu0 0.0
      %4320 = vmatprep.subr.mxu0 0.0
      %4321 = vmatpush1.msra.mxu0 0.0
      %4322 = vmatprep.subr.mxu0 0.0
      %4323 = vmatpush1.msra.mxu0 0.0
      %4324 = vmatprep.subr.mxu0 0.0
      %4325 = vmatpush1.msra.mxu0 0.0
      %4326 = vmatprep.subr.mxu0 0.0
      %4327 = vmatpush1.msra.mxu0 0.0
      %4328 = vmatprep.subr.mxu0 0.0
      %4329 = vmatpush1.msra.mxu0 0.0
      %4330 = vmatprep.subr.mxu0 0.0
      %4331 = vmatpush1.msra.mxu0 %v4304
      %4332 = vmatprep.subr.mxu0 0.0
      %4333 = vmatpush1.msra.mxu0 %v4295
      %4334 = vmatprep.subr.mxu0 0.0
      %4335 = vmatpush1.msra.mxu0 %v4294
      %4336 = vmatprep.subr.mxu0 0.0
      %4337 = vmatpush1.msra.mxu0 %v4293
      %4338 = vmatprep.subr.mxu0 0.0
      %4339 = vmatpush2.msra.mxu0 0.0
      %4340 = vmatprep.subr.mxu0 0.0
      %4341 = vmatpush2.msra.mxu0 0.0
      %4342 = vmatprep.subr.mxu0 0.0
      %4343 = vmatpush2.msra.mxu0 0.0
      %4344 = vmatprep.subr.mxu0 0.0
      %4345 = vmatpush2.msra.mxu0 0.0
      %4346 = vmatprep.subr.mxu0 0.0
      %4347 = vmatpush2.msra.mxu0 0.0
      %4348 = vmatprep.subr.mxu0 0.0
      %4349 = vmatpush2.msra.mxu0 0.0
      %4350 = vmatprep.subr.mxu0 0.0
      %4351 = vmatpush2.msra.mxu0 0.0
      %4352 = vmatprep.subr.mxu0 0.0
      %4353 = vmatpush2.msra.mxu0 0.0
      %4354 = vmatprep.subr.mxu0 0.0
      %4355 = vmatpush2.msra.mxu0 0.0
      %4356 = vmatprep.subr.mxu0 0.0
      %4357 = vmatpush2.msra.mxu0 0.0
      %4358 = vmatprep.subr.mxu0 0.0
      %4359 = vmatpush2.msra.mxu0 0.0
      %4360 = vmatprep.subr.mxu0 0.0
      %4361 = vmatpush2.msra.mxu0 0.0
      %4362 = vmatprep.subr.mxu0 0.0
      %4363 = vmatpush2.msra.mxu0 0.0
      %4364 = vmatprep.subr.mxu0 0.0
      %4365 = vmatpush2.msra.mxu0 0.0
      %4366 = vmatprep.subr.mxu0 0.0
      %4367 = vmatpush2.msra.mxu0 0.0
      %4368 = vmatprep.subr.mxu0 0.0
      %4369 = vmatpush2.msra.mxu0 0.0
      %4370 = vmatprep.mubr.f32.mxu0 0.0
      %4371 = vmatmul.mubr.f32.gmra.mxu0 %v4298
      %v4372 = vpop.f32.mrf.mxu0
      %v4373 = vadd.f32 0.0, %v4372
      %v4374 = vpop.f32.mrf.mxu0
      %4375 = vmatprep.mubr.f32.mxu0 0.0
      %4376 = vmatmul.mubr.f32.gmra.mxu0 %v4301
      %v4377 = vpop.f32.mrf.mxu0
      %v4378 = vadd.f32 0.0, %v4377
      %v4379 = vpop.f32.mrf.mxu0
      %4380 = vdwg.mxu0
      %v4381 = vadd.f32 %v4288, %v4373
      %v4382 = vadd.f32 %v4289, %v4378
      %v4383 = vld [vmem:[%s391 + $0xe] sm:$0xff]
      %v4384 = vld [vmem:[%s391 + $0x16] sm:$0xff]
      %s4385 = scalar_lea.vmem %s1, 1376
      %v4386 = vld [vmem:[%s4385] sm:$0xff]
      %v4387 = vld [vmem:[%s4385 + $0x8] sm:$0xff]
      %v4388 = vld [vmem:[%s4385 + $0x10] sm:$0xff]
      %v4389 = vld [vmem:[%s4385 + $0x18] sm:$0x7f]
      %v4391 = vsel %vm399, %v4383, 0
      %v4394 = vsel %vm399, %v4384, 0
      %v4397 = vsel %vm406, %v4389, 0
      %4399 = vmatprep.subr.mxu0 0.0
      %4400 = vmatpush1.msra.mxu0 0.0
      %4401 = vmatprep.subr.mxu0 0.0
      %4402 = vmatpush1.msra.mxu0 0.0
      %4403 = vmatprep.subr.mxu0 0.0
      %4404 = vmatpush1.msra.mxu0 0.0
      %4405 = vmatprep.subr.mxu0 0.0
      %4406 = vmatpush1.msra.mxu0 0.0
      %4407 = vmatprep.subr.mxu0 0.0
      %4408 = vmatpush1.msra.mxu0 0.0
      %4409 = vmatprep.subr.mxu0 0.0
      %4410 = vmatpush1.msra.mxu0 0.0
      %4411 = vmatprep.subr.mxu0 0.0
      %4412 = vmatpush1.msra.mxu0 0.0
      %4413 = vmatprep.subr.mxu0 0.0
      %4414 = vmatpush1.msra.mxu0 0.0
      %4415 = vmatprep.subr.mxu0 0.0
      %4416 = vmatpush1.msra.mxu0 0.0
      %4417 = vmatprep.subr.mxu0 0.0
      %4418 = vmatpush1.msra.mxu0 0.0
      %4419 = vmatprep.subr.mxu0 0.0
      %4420 = vmatpush1.msra.mxu0 0.0
      %4421 = vmatprep.subr.mxu0 0.0
      %4422 = vmatpush1.msra.mxu0 0.0
      %4423 = vmatprep.subr.mxu0 0.0
      %4424 = vmatpush1.msra.mxu0 %v4397
      %4425 = vmatprep.subr.mxu0 0.0
      %4426 = vmatpush1.msra.mxu0 %v4388
      %4427 = vmatprep.subr.mxu0 0.0
      %4428 = vmatpush1.msra.mxu0 %v4387
      %4429 = vmatprep.subr.mxu0 0.0
      %4430 = vmatpush1.msra.mxu0 %v4386
      %4431 = vmatprep.subr.mxu0 0.0
      %4432 = vmatpush2.msra.mxu0 0.0
      %4433 = vmatprep.subr.mxu0 0.0
      %4434 = vmatpush2.msra.mxu0 0.0
      %4435 = vmatprep.subr.mxu0 0.0
      %4436 = vmatpush2.msra.mxu0 0.0
      %4437 = vmatprep.subr.mxu0 0.0
      %4438 = vmatpush2.msra.mxu0 0.0
      %4439 = vmatprep.subr.mxu0 0.0
      %4440 = vmatpush2.msra.mxu0 0.0
      %4441 = vmatprep.subr.mxu0 0.0
      %4442 = vmatpush2.msra.mxu0 0.0
      %4443 = vmatprep.subr.mxu0 0.0
      %4444 = vmatpush2.msra.mxu0 0.0
      %4445 = vmatprep.subr.mxu0 0.0
      %4446 = vmatpush2.msra.mxu0 0.0
      %4447 = vmatprep.subr.mxu0 0.0
      %4448 = vmatpush2.msra.mxu0 0.0
      %4449 = vmatprep.subr.mxu0 0.0
      %4450 = vmatpush2.msra.mxu0 0.0
      %4451 = vmatprep.subr.mxu0 0.0
      %4452 = vmatpush2.msra.mxu0 0.0
      %4453 = vmatprep.subr.mxu0 0.0
      %4454 = vmatpush2.msra.mxu0 0.0
      %4455 = vmatprep.subr.mxu0 0.0
      %4456 = vmatpush2.msra.mxu0 0.0
      %4457 = vmatprep.subr.mxu0 0.0
      %4458 = vmatpush2.msra.mxu0 0.0
      %4459 = vmatprep.subr.mxu0 0.0
      %4460 = vmatpush2.msra.mxu0 0.0
      %4461 = vmatprep.subr.mxu0 0.0
      %4462 = vmatpush2.msra.mxu0 0.0
      %4463 = vmatprep.mubr.f32.mxu0 0.0
      %4464 = vmatmul.mubr.f32.gmra.mxu0 %v4391
      %v4465 = vpop.f32.mrf.mxu0
      %v4466 = vadd.f32 0.0, %v4465
      %v4467 = vpop.f32.mrf.mxu0
      %4468 = vmatprep.mubr.f32.mxu0 0.0
      %4469 = vmatmul.mubr.f32.gmra.mxu0 %v4394
      %v4470 = vpop.f32.mrf.mxu0
      %v4471 = vadd.f32 0.0, %v4470
      %v4472 = vpop.f32.mrf.mxu0
      %4473 = vdwg.mxu0
      %v4474 = vadd.f32 %v4381, %v4466
      %v4475 = vadd.f32 %v4382, %v4471
      %v4476 = vld [vmem:[%s569 + $0xe] sm:$0xff]
      %v4477 = vld [vmem:[%s569 + $0x16] sm:$0xff]
      %s4478 = scalar_lea.vmem %s1, 1408
      %v4479 = vld [vmem:[%s4478] sm:$0xff]
      %v4480 = vld [vmem:[%s4478 + $0x8] sm:$0xff]
      %v4481 = vld [vmem:[%s4478 + $0x10] sm:$0xff]
      %v4482 = vld [vmem:[%s4478 + $0x18] sm:$0x7f]
      %v4484 = vsel %vm399, %v4476, 0
      %v4487 = vsel %vm399, %v4477, 0
      %v4490 = vsel %vm406, %v4482, 0
      %4492 = vmatprep.subr.mxu0 0.0
      %4493 = vmatpush1.msra.mxu0 0.0
      %4494 = vmatprep.subr.mxu0 0.0
      %4495 = vmatpush1.msra.mxu0 0.0
      %4496 = vmatprep.subr.mxu0 0.0
      %4497 = vmatpush1.msra.mxu0 0.0
      %4498 = vmatprep.subr.mxu0 0.0
      %4499 = vmatpush1.msra.mxu0 0.0
      %4500 = vmatprep.subr.mxu0 0.0
      %4501 = vmatpush1.msra.mxu0 0.0
      %4502 = vmatprep.subr.mxu0 0.0
      %4503 = vmatpush1.msra.mxu0 0.0
      %4504 = vmatprep.subr.mxu0 0.0
      %4505 = vmatpush1.msra.mxu0 0.0
      %4506 = vmatprep.subr.mxu0 0.0
      %4507 = vmatpush1.msra.mxu0 0.0
      %4508 = vmatprep.subr.mxu0 0.0
      %4509 = vmatpush1.msra.mxu0 0.0
      %4510 = vmatprep.subr.mxu0 0.0
      %4511 = vmatpush1.msra.mxu0 0.0
      %4512 = vmatprep.subr.mxu0 0.0
      %4513 = vmatpush1.msra.mxu0 0.0
      %4514 = vmatprep.subr.mxu0 0.0
      %4515 = vmatpush1.msra.mxu0 0.0
      %4516 = vmatprep.subr.mxu0 0.0
      %4517 = vmatpush1.msra.mxu0 %v4490
      %4518 = vmatprep.subr.mxu0 0.0
      %4519 = vmatpush1.msra.mxu0 %v4481
      %4520 = vmatprep.subr.mxu0 0.0
      %4521 = vmatpush1.msra.mxu0 %v4480
      %4522 = vmatprep.subr.mxu0 0.0
      %4523 = vmatpush1.msra.mxu0 %v4479
      %4524 = vmatprep.subr.mxu0 0.0
      %4525 = vmatpush2.msra.mxu0 0.0
      %4526 = vmatprep.subr.mxu0 0.0
      %4527 = vmatpush2.msra.mxu0 0.0
      %4528 = vmatprep.subr.mxu0 0.0
      %4529 = vmatpush2.msra.mxu0 0.0
      %4530 = vmatprep.subr.mxu0 0.0
      %4531 = vmatpush2.msra.mxu0 0.0
      %4532 = vmatprep.subr.mxu0 0.0
      %4533 = vmatpush2.msra.mxu0 0.0
      %4534 = vmatprep.subr.mxu0 0.0
      %4535 = vmatpush2.msra.mxu0 0.0
      %4536 = vmatprep.subr.mxu0 0.0
      %4537 = vmatpush2.msra.mxu0 0.0
      %4538 = vmatprep.subr.mxu0 0.0
      %4539 = vmatpush2.msra.mxu0 0.0
      %4540 = vmatprep.subr.mxu0 0.0
      %4541 = vmatpush2.msra.mxu0 0.0
      %4542 = vmatprep.subr.mxu0 0.0
      %4543 = vmatpush2.msra.mxu0 0.0
      %4544 = vmatprep.subr.mxu0 0.0
      %4545 = vmatpush2.msra.mxu0 0.0
      %4546 = vmatprep.subr.mxu0 0.0
      %4547 = vmatpush2.msra.mxu0 0.0
      %4548 = vmatprep.subr.mxu0 0.0
      %4549 = vmatpush2.msra.mxu0 0.0
      %4550 = vmatprep.subr.mxu0 0.0
      %4551 = vmatpush2.msra.mxu0 0.0
      %4552 = vmatprep.subr.mxu0 0.0
      %4553 = vmatpush2.msra.mxu0 0.0
      %4554 = vmatprep.subr.mxu0 0.0
      %4555 = vmatpush2.msra.mxu0 0.0
      %4556 = vmatprep.mubr.f32.mxu0 0.0
      %4557 = vmatmul.mubr.f32.gmra.mxu0 %v4484
      %v4558 = vpop.f32.mrf.mxu0
      %v4559 = vadd.f32 0.0, %v4558
      %v4560 = vpop.f32.mrf.mxu0
      %4561 = vmatprep.mubr.f32.mxu0 0.0
      %4562 = vmatmul.mubr.f32.gmra.mxu0 %v4487
      %v4563 = vpop.f32.mrf.mxu0
      %v4564 = vadd.f32 0.0, %v4563
      %v4565 = vpop.f32.mrf.mxu0
      %4566 = vdwg.mxu0
      %v4567 = vadd.f32 %v4474, %v4559
      %v4568 = vadd.f32 %v4475, %v4564
      %v4569 = vld [vmem:[%s381 + $0xf] sm:$0xff]
      %v4570 = vld [vmem:[%s381 + $0x17] sm:$0xff]
      %s4571 = scalar_lea.vmem %s1, 1440
      %v4572 = vld [vmem:[%s4571] sm:$0xff]
      %v4573 = vld [vmem:[%s4571 + $0x8] sm:$0xff]
      %v4574 = vld [vmem:[%s4571 + $0x10] sm:$0xff]
      %v4575 = vld [vmem:[%s4571 + $0x18] sm:$0x7f]
      %v4577 = vsel %vm399, %v4569, 0
      %v4580 = vsel %vm399, %v4570, 0
      %v4583 = vsel %vm406, %v4575, 0
      %4585 = vmatprep.subr.mxu0 0.0
      %4586 = vmatpush1.msra.mxu0 0.0
      %4587 = vmatprep.subr.mxu0 0.0
      %4588 = vmatpush1.msra.mxu0 0.0
      %4589 = vmatprep.subr.mxu0 0.0
      %4590 = vmatpush1.msra.mxu0 0.0
      %4591 = vmatprep.subr.mxu0 0.0
      %4592 = vmatpush1.msra.mxu0 0.0
      %4593 = vmatprep.subr.mxu0 0.0
      %4594 = vmatpush1.msra.mxu0 0.0
      %4595 = vmatprep.subr.mxu0 0.0
      %4596 = vmatpush1.msra.mxu0 0.0
      %4597 = vmatprep.subr.mxu0 0.0
      %4598 = vmatpush1.msra.mxu0 0.0
      %4599 = vmatprep.subr.mxu0 0.0
      %4600 = vmatpush1.msra.mxu0 0.0
      %4601 = vmatprep.subr.mxu0 0.0
      %4602 = vmatpush1.msra.mxu0 0.0
      %4603 = vmatprep.subr.mxu0 0.0
      %4604 = vmatpush1.msra.mxu0 0.0
      %4605 = vmatprep.subr.mxu0 0.0
      %4606 = vmatpush1.msra.mxu0 0.0
      %4607 = vmatprep.subr.mxu0 0.0
      %4608 = vmatpush1.msra.mxu0 0.0
      %4609 = vmatprep.subr.mxu0 0.0
      %4610 = vmatpush1.msra.mxu0 %v4583
      %4611 = vmatprep.subr.mxu0 0.0
      %4612 = vmatpush1.msra.mxu0 %v4574
      %4613 = vmatprep.subr.mxu0 0.0
      %4614 = vmatpush1.msra.mxu0 %v4573
      %4615 = vmatprep.subr.mxu0 0.0
      %4616 = vmatpush1.msra.mxu0 %v4572
      %4617 = vmatprep.subr.mxu0 0.0
      %4618 = vmatpush2.msra.mxu0 0.0
      %4619 = vmatprep.subr.mxu0 0.0
      %4620 = vmatpush2.msra.mxu0 0.0
      %4621 = vmatprep.subr.mxu0 0.0
      %4622 = vmatpush2.msra.mxu0 0.0
      %4623 = vmatprep.subr.mxu0 0.0
      %4624 = vmatpush2.msra.mxu0 0.0
      %4625 = vmatprep.subr.mxu0 0.0
      %4626 = vmatpush2.msra.mxu0 0.0
      %4627 = vmatprep.subr.mxu0 0.0
      %4628 = vmatpush2.msra.mxu0 0.0
      %4629 = vmatprep.subr.mxu0 0.0
      %4630 = vmatpush2.msra.mxu0 0.0
      %4631 = vmatprep.subr.mxu0 0.0
      %4632 = vmatpush2.msra.mxu0 0.0
      %4633 = vmatprep.subr.mxu0 0.0
      %4634 = vmatpush2.msra.mxu0 0.0
      %4635 = vmatprep.subr.mxu0 0.0
      %4636 = vmatpush2.msra.mxu0 0.0
      %4637 = vmatprep.subr.mxu0 0.0
      %4638 = vmatpush2.msra.mxu0 0.0
      %4639 = vmatprep.subr.mxu0 0.0
      %4640 = vmatpush2.msra.mxu0 0.0
      %4641 = vmatprep.subr.mxu0 0.0
      %4642 = vmatpush2.msra.mxu0 0.0
      %4643 = vmatprep.subr.mxu0 0.0
      %4644 = vmatpush2.msra.mxu0 0.0
      %4645 = vmatprep.subr.mxu0 0.0
      %4646 = vmatpush2.msra.mxu0 0.0
      %4647 = vmatprep.subr.mxu0 0.0
      %4648 = vmatpush2.msra.mxu0 0.0
      %4649 = vmatprep.mubr.f32.mxu0 0.0
      %4650 = vmatmul.mubr.f32.gmra.mxu0 %v4577
      %v4651 = vpop.f32.mrf.mxu0
      %v4652 = vadd.f32 0.0, %v4651
      %v4653 = vpop.f32.mrf.mxu0
      %4654 = vmatprep.mubr.f32.mxu0 0.0
      %4655 = vmatmul.mubr.f32.gmra.mxu0 %v4580
      %v4656 = vpop.f32.mrf.mxu0
      %v4657 = vadd.f32 0.0, %v4656
      %v4658 = vpop.f32.mrf.mxu0
      %4659 = vdwg.mxu0
      %v4660 = vadd.f32 %v4567, %v4652
      %v4661 = vadd.f32 %v4568, %v4657
      %v4662 = vld [vmem:[%s391 + $0xf] sm:$0xff]
      %v4663 = vld [vmem:[%s391 + $0x17] sm:$0xff]
      %s4664 = scalar_lea.vmem %s1, 1472
      %v4665 = vld [vmem:[%s4664] sm:$0xff]
      %v4666 = vld [vmem:[%s4664 + $0x8] sm:$0xff]
      %v4667 = vld [vmem:[%s4664 + $0x10] sm:$0xff]
      %v4668 = vld [vmem:[%s4664 + $0x18] sm:$0x7f]
      %v4670 = vsel %vm399, %v4662, 0
      %v4673 = vsel %vm399, %v4663, 0
      %v4676 = vsel %vm406, %v4668, 0
      %4678 = vmatprep.subr.mxu0 0.0
      %4679 = vmatpush1.msra.mxu0 0.0
      %4680 = vmatprep.subr.mxu0 0.0
      %4681 = vmatpush1.msra.mxu0 0.0
      %4682 = vmatprep.subr.mxu0 0.0
      %4683 = vmatpush1.msra.mxu0 0.0
      %4684 = vmatprep.subr.mxu0 0.0
      %4685 = vmatpush1.msra.mxu0 0.0
      %4686 = vmatprep.subr.mxu0 0.0
      %4687 = vmatpush1.msra.mxu0 0.0
      %4688 = vmatprep.subr.mxu0 0.0
      %4689 = vmatpush1.msra.mxu0 0.0
      %4690 = vmatprep.subr.mxu0 0.0
      %4691 = vmatpush1.msra.mxu0 0.0
      %4692 = vmatprep.subr.mxu0 0.0
      %4693 = vmatpush1.msra.mxu0 0.0
      %4694 = vmatprep.subr.mxu0 0.0
      %4695 = vmatpush1.msra.mxu0 0.0
      %4696 = vmatprep.subr.mxu0 0.0
      %4697 = vmatpush1.msra.mxu0 0.0
      %4698 = vmatprep.subr.mxu0 0.0
      %4699 = vmatpush1.msra.mxu0 0.0
      %4700 = vmatprep.subr.mxu0 0.0
      %4701 = vmatpush1.msra.mxu0 0.0
      %4702 = vmatprep.subr.mxu0 0.0
      %4703 = vmatpush1.msra.mxu0 %v4676
      %4704 = vmatprep.subr.mxu0 0.0
      %4705 = vmatpush1.msra.mxu0 %v4667
      %4706 = vmatprep.subr.mxu0 0.0
      %4707 = vmatpush1.msra.mxu0 %v4666
      %4708 = vmatprep.subr.mxu0 0.0
      %4709 = vmatpush1.msra.mxu0 %v4665
      %4710 = vmatprep.subr.mxu0 0.0
      %4711 = vmatpush2.msra.mxu0 0.0
      %4712 = vmatprep.subr.mxu0 0.0
      %4713 = vmatpush2.msra.mxu0 0.0
      %4714 = vmatprep.subr.mxu0 0.0
      %4715 = vmatpush2.msra.mxu0 0.0
      %4716 = vmatprep.subr.mxu0 0.0
      %4717 = vmatpush2.msra.mxu0 0.0
      %4718 = vmatprep.subr.mxu0 0.0
      %4719 = vmatpush2.msra.mxu0 0.0
      %4720 = vmatprep.subr.mxu0 0.0
      %4721 = vmatpush2.msra.mxu0 0.0
      %4722 = vmatprep.subr.mxu0 0.0
      %4723 = vmatpush2.msra.mxu0 0.0
      %4724 = vmatprep.subr.mxu0 0.0
      %4725 = vmatpush2.msra.mxu0 0.0
      %4726 = vmatprep.subr.mxu0 0.0
      %4727 = vmatpush2.msra.mxu0 0.0
      %4728 = vmatprep.subr.mxu0 0.0
      %4729 = vmatpush2.msra.mxu0 0.0
      %4730 = vmatprep.subr.mxu0 0.0
      %4731 = vmatpush2.msra.mxu0 0.0
      %4732 = vmatprep.subr.mxu0 0.0
      %4733 = vmatpush2.msra.mxu0 0.0
      %4734 = vmatprep.subr.mxu0 0.0
      %4735 = vmatpush2.msra.mxu0 0.0
      %4736 = vmatprep.subr.mxu0 0.0
      %4737 = vmatpush2.msra.mxu0 0.0
      %4738 = vmatprep.subr.mxu0 0.0
      %4739 = vmatpush2.msra.mxu0 0.0
      %4740 = vmatprep.subr.mxu0 0.0
      %4741 = vmatpush2.msra.mxu0 0.0
      %4742 = vmatprep.mubr.f32.mxu0 0.0
      %4743 = vmatmul.mubr.f32.gmra.mxu0 %v4670
      %v4744 = vpop.f32.mrf.mxu0
      %v4745 = vadd.f32 0.0, %v4744
      %v4746 = vpop.f32.mrf.mxu0
      %4747 = vmatprep.mubr.f32.mxu0 0.0
      %4748 = vmatmul.mubr.f32.gmra.mxu0 %v4673
      %v4749 = vpop.f32.mrf.mxu0
      %v4750 = vadd.f32 0.0, %v4749
      %v4751 = vpop.f32.mrf.mxu0
      %4752 = vdwg.mxu0
      %v4753 = vadd.f32 %v4660, %v4745
      %v4754 = vadd.f32 %v4661, %v4750
      %v4755 = vld [vmem:[%s569 + $0xf] sm:$0xff]
      %v4756 = vld [vmem:[%s569 + $0x17] sm:$0xff]
      %s4757 = scalar_lea.vmem %s1, 1504
      %v4758 = vld [vmem:[%s4757] sm:$0xff]
      %v4759 = vld [vmem:[%s4757 + $0x8] sm:$0xff]
      %v4760 = vld [vmem:[%s4757 + $0x10] sm:$0xff]
      %v4761 = vld [vmem:[%s4757 + $0x18] sm:$0x7f]
      %v4763 = vsel %vm399, %v4755, 0
      %v4766 = vsel %vm399, %v4756, 0
      %v4769 = vsel %vm406, %v4761, 0
      %4771 = vmatprep.subr.mxu0 0.0
      %4772 = vmatpush1.msra.mxu0 0.0
      %4773 = vmatprep.subr.mxu0 0.0
      %4774 = vmatpush1.msra.mxu0 0.0
      %4775 = vmatprep.subr.mxu0 0.0
      %4776 = vmatpush1.msra.mxu0 0.0
      %4777 = vmatprep.subr.mxu0 0.0
      %4778 = vmatpush1.msra.mxu0 0.0
      %4779 = vmatprep.subr.mxu0 0.0
      %4780 = vmatpush1.msra.mxu0 0.0
      %4781 = vmatprep.subr.mxu0 0.0
      %4782 = vmatpush1.msra.mxu0 0.0
      %4783 = vmatprep.subr.mxu0 0.0
      %4784 = vmatpush1.msra.mxu0 0.0
      %4785 = vmatprep.subr.mxu0 0.0
      %4786 = vmatpush1.msra.mxu0 0.0
      %4787 = vmatprep.subr.mxu0 0.0
      %4788 = vmatpush1.msra.mxu0 0.0
      %4789 = vmatprep.subr.mxu0 0.0
      %4790 = vmatpush1.msra.mxu0 0.0
      %4791 = vmatprep.subr.mxu0 0.0
      %4792 = vmatpush1.msra.mxu0 0.0
      %4793 = vmatprep.subr.mxu0 0.0
      %4794 = vmatpush1.msra.mxu0 0.0
      %4795 = vmatprep.subr.mxu0 0.0
      %4796 = vmatpush1.msra.mxu0 %v4769
      %4797 = vmatprep.subr.mxu0 0.0
      %4798 = vmatpush1.msra.mxu0 %v4760
      %4799 = vmatprep.subr.mxu0 0.0
      %4800 = vmatpush1.msra.mxu0 %v4759
      %4801 = vmatprep.subr.mxu0 0.0
      %4802 = vmatpush1.msra.mxu0 %v4758
      %4803 = vmatprep.subr.mxu0 0.0
      %4804 = vmatpush2.msra.mxu0 0.0
      %4805 = vmatprep.subr.mxu0 0.0
      %4806 = vmatpush2.msra.mxu0 0.0
      %4807 = vmatprep.subr.mxu0 0.0
      %4808 = vmatpush2.msra.mxu0 0.0
      %4809 = vmatprep.subr.mxu0 0.0
      %4810 = vmatpush2.msra.mxu0 0.0
      %4811 = vmatprep.subr.mxu0 0.0
      %4812 = vmatpush2.msra.mxu0 0.0
      %4813 = vmatprep.subr.mxu0 0.0
      %4814 = vmatpush2.msra.mxu0 0.0
      %4815 = vmatprep.subr.mxu0 0.0
      %4816 = vmatpush2.msra.mxu0 0.0
      %4817 = vmatprep.subr.mxu0 0.0
      %4818 = vmatpush2.msra.mxu0 0.0
      %4819 = vmatprep.subr.mxu0 0.0
      %4820 = vmatpush2.msra.mxu0 0.0
      %4821 = vmatprep.subr.mxu0 0.0
      %4822 = vmatpush2.msra.mxu0 0.0
      %4823 = vmatprep.subr.mxu0 0.0
      %4824 = vmatpush2.msra.mxu0 0.0
      %4825 = vmatprep.subr.mxu0 0.0
      %4826 = vmatpush2.msra.mxu0 0.0
      %4827 = vmatprep.subr.mxu0 0.0
      %4828 = vmatpush2.msra.mxu0 0.0
      %4829 = vmatprep.subr.mxu0 0.0
      %4830 = vmatpush2.msra.mxu0 0.0
      %4831 = vmatprep.subr.mxu0 0.0
      %4832 = vmatpush2.msra.mxu0 0.0
      %4833 = vmatprep.subr.mxu0 0.0
      %4834 = vmatpush2.msra.mxu0 0.0
      %4835 = vmatprep.mubr.f32.mxu0 0.0
      %4836 = vmatmul.mubr.f32.gmra.mxu0 %v4763
      %v4837 = vpop.f32.mrf.mxu0
      %v4838 = vadd.f32 0.0, %v4837
      %v4839 = vpop.f32.mrf.mxu0
      %4840 = vmatprep.mubr.f32.mxu0 0.0
      %4841 = vmatmul.mubr.f32.gmra.mxu0 %v4766
      %v4842 = vpop.f32.mrf.mxu0
      %v4843 = vadd.f32 0.0, %v4842
      %v4844 = vpop.f32.mrf.mxu0
      %4845 = vdwg.mxu0
      %v4846 = vadd.f32 %v4753, %v4838
      %v4847 = vadd.f32 %v4754, %v4843
      %v4848 = vld [vmem:[%s2] sm:$0x1]
      %v4850 = vlaneseq
      %v4851 = vshrl.u32 %v4850, 7
      %v4852 = vsub.s32 0, %v4851
      %v4853 = vrot.slane %v4848, %v4852
      %v4855 = vadd.f32 %v4846, %v4853
      %v4856 = vadd.f32 %v4847, %v4853
      %v4857 = vmax.f32 %v4855, 0.0
      %v4858 = vmax.f32 %v4856, 0.0
      %v4861 = vrot.slane %v4857, 1
      %v4862 = vrot.slane %v4858, 1
      %v4863 = vsel %vm406, %v4861, %v4862
      %v4866 = vmax.f32 %v4857, %v4863
      %v4867 = vmax.f32 %v4858, %v4862
      %4870 = vrot.lane.b32.xlu0 %v4866, 127
      %v4871 = vpop.permute.xlu0 %4870
      %4872 = vrot.lane.b32.xlu0 %v4867, 127
      %v4873 = vpop.permute.xlu0 %4872
      %v4876 = vmax.f32 %v4866, %v4871
      %v4877 = vmax.f32 %v4867, %v4873
      %v4878 = vld [vmem:[%s3] sm:$0xff]
      %v4879 = vld [vmem:[%s3 + $0x8] sm:$0xff]
      %v4880 = vld [vmem:[%s3 + $0x10] sm:$0xff]
      %v4881 = vld [vmem:[%s3 + $0x18] sm:$0xff]
      %v4882 = vld [vmem:[%s3 + $0x20] sm:$0xff]
      %v4883 = vld [vmem:[%s3 + $0x28] sm:$0xff]
      %v4884 = vld [vmem:[%s3 + $0x30] sm:$0xff]
      %v4885 = vld [vmem:[%s3 + $0x38] sm:$0xff]
      %v4886 = vld [vmem:[%s3 + $0x40] sm:$0xff]
      %v4887 = vld [vmem:[%s3 + $0x48] sm:$0xff]
      %v4888 = vld [vmem:[%s3 + $0x50] sm:$0xff]
      %v4889 = vld [vmem:[%s3 + $0x58] sm:$0x7f]
      %s4890 = scalar_lea.vmem %s3, 96
      %v4891 = vld [vmem:[%s4890] sm:$0xff]
      %v4892 = vld [vmem:[%s4890 + $0x8] sm:$0xff]
      %v4893 = vld [vmem:[%s4890 + $0x10] sm:$0xff]
      %v4894 = vld [vmem:[%s4890 + $0x18] sm:$0xff]
      %v4895 = vld [vmem:[%s4890 + $0x20] sm:$0xff]
      %v4896 = vld [vmem:[%s4890 + $0x28] sm:$0xff]
      %v4897 = vld [vmem:[%s4890 + $0x30] sm:$0xff]
      %v4898 = vld [vmem:[%s4890 + $0x38] sm:$0xff]
      %v4899 = vld [vmem:[%s4890 + $0x40] sm:$0xff]
      %v4900 = vld [vmem:[%s4890 + $0x48] sm:$0xff]
      %v4901 = vld [vmem:[%s4890 + $0x50] sm:$0xff]
      %v4902 = vld [vmem:[%s4890 + $0x58] sm:$0x7f]
      %vm4905 = vcmask 1045504
      %v4906 = vrot.slane %v4876, 2
      %v4907 = vrot.slane %v4877, 2
      %v4908 = vsel %vm4905, %v4906, %v4907
      %vm4909 = vcmask 777216
      %v4910 = vsel %vm4909, %v4908, 0
      %v4913 = vsel %vm406, %v4902, 0
      %4915 = vmatprep.subr.mxu0 0.0
      %4916 = vmatpush1.msra.mxu0 0.0
      %4917 = vmatprep.subr.mxu0 0.0
      %4918 = vmatpush1.msra.mxu0 0.0
      %4919 = vmatprep.subr.mxu0 0.0
      %4920 = vmatpush1.msra.mxu0 0.0
      %4921 = vmatprep.subr.mxu0 0.0
      %4922 = vmatpush1.msra.mxu0 0.0
      %4923 = vmatprep.subr.mxu0 0.0
      %4924 = vmatpush1.msra.mxu0 %v4913
      %4925 = vmatprep.subr.mxu0 0.0
      %4926 = vmatpush1.msra.mxu0 %v4901
      %4927 = vmatprep.subr.mxu0 0.0
      %4928 = vmatpush1.msra.mxu0 %v4900
      %4929 = vmatprep.subr.mxu0 0.0
      %4930 = vmatpush1.msra.mxu0 %v4899
      %4931 = vmatprep.subr.mxu0 0.0
      %4932 = vmatpush1.msra.mxu0 %v4898
      %4933 = vmatprep.subr.mxu0 0.0
      %4934 = vmatpush1.msra.mxu0 %v4897
      %4935 = vmatprep.subr.mxu0 0.0
      %4936 = vmatpush1.msra.mxu0 %v4896
      %4937 = vmatprep.subr.mxu0 0.0
      %4938 = vmatpush1.msra.mxu0 %v4895
      %4939 = vmatprep.subr.mxu0 0.0
      %4940 = vmatpush1.msra.mxu0 %v4894
      %4941 = vmatprep.subr.mxu0 0.0
      %4942 = vmatpush1.msra.mxu0 %v4893
      %4943 = vmatprep.subr.mxu0 0.0
      %4944 = vmatpush1.msra.mxu0 %v4892
      %4945 = vmatprep.subr.mxu0 0.0
      %4946 = vmatpush1.msra.mxu0 %v4891
      %4947 = vmatprep.subr.mxu0 0.0
      %4948 = vmatpush2.msra.mxu0 0.0
      %4949 = vmatprep.subr.mxu0 0.0
      %4950 = vmatpush2.msra.mxu0 0.0
      %4951 = vmatprep.subr.mxu0 0.0
      %4952 = vmatpush2.msra.mxu0 0.0
      %4953 = vmatprep.subr.mxu0 0.0
      %4954 = vmatpush2.msra.mxu0 0.0
      %4955 = vmatprep.subr.mxu0 0.0
      %4956 = vmatpush2.msra.mxu0 0.0
      %4957 = vmatprep.subr.mxu0 0.0
      %4958 = vmatpush2.msra.mxu0 0.0
      %4959 = vmatprep.subr.mxu0 0.0
      %4960 = vmatpush2.msra.mxu0 0.0
      %4961 = vmatprep.subr.mxu0 0.0
      %4962 = vmatpush2.msra.mxu0 0.0
      %4963 = vmatprep.subr.mxu0 0.0
      %4964 = vmatpush2.msra.mxu0 0.0
      %4965 = vmatprep.subr.mxu0 0.0
      %4966 = vmatpush2.msra.mxu0 0.0
      %4967 = vmatprep.subr.mxu0 0.0
      %4968 = vmatpush2.msra.mxu0 0.0
      %4969 = vmatprep.subr.mxu0 0.0
      %4970 = vmatpush2.msra.mxu0 0.0
      %4971 = vmatprep.subr.mxu0 0.0
      %4972 = vmatpush2.msra.mxu0 0.0
      %4973 = vmatprep.subr.mxu0 0.0
      %4974 = vmatpush2.msra.mxu0 0.0
      %4975 = vmatprep.subr.mxu0 0.0
      %4976 = vmatpush2.msra.mxu0 0.0
      %4977 = vmatprep.subr.mxu0 0.0
      %4978 = vmatpush2.msra.mxu0 0.0
      %4979 = vmatprep.mubr.f32.mxu0 0.0
      %4980 = vmatmul.mubr.f32.gmra.mxu0 %v4910
      %v4981 = vpop.f32.mrf.mxu0
      %v4982 = vadd.f32 0.0, %v4981
      %v4983 = vpop.f32.mrf.mxu0
      %4984 = vdwg.mxu0
      %v4985 = vsel %vm4909, %v4876, 0
      %v4988 = vsel %vm406, %v4889, 0
      %4990 = vmatprep.subr.mxu0 0.0
      %4991 = vmatpush1.msra.mxu0 0.0
      %4992 = vmatprep.subr.mxu0 0.0
      %4993 = vmatpush1.msra.mxu0 0.0
      %4994 = vmatprep.subr.mxu0 0.0
      %4995 = vmatpush1.msra.mxu0 0.0
      %4996 = vmatprep.subr.mxu0 0.0
      %4997 = vmatpush1.msra.mxu0 0.0
      %4998 = vmatprep.subr.mxu0 0.0
      %4999 = vmatpush1.msra.mxu0 %v4988
      %5000 = vmatprep.subr.mxu0 0.0
      %5001 = vmatpush1.msra.mxu0 %v4888
      %5002 = vmatprep.subr.mxu0 0.0
      %5003 = vmatpush1.msra.mxu0 %v4887
      %5004 = vmatprep.subr.mxu0 0.0
      %5005 = vmatpush1.msra.mxu0 %v4886
      %5006 = vmatprep.subr.mxu0 0.0
      %5007 = vmatpush1.msra.mxu0 %v4885
      %5008 = vmatprep.subr.mxu0 0.0
      %5009 = vmatpush1.msra.mxu0 %v4884
      %5010 = vmatprep.subr.mxu0 0.0
      %5011 = vmatpush1.msra.mxu0 %v4883
      %5012 = vmatprep.subr.mxu0 0.0
      %5013 = vmatpush1.msra.mxu0 %v4882
      %5014 = vmatprep.subr.mxu0 0.0
      %5015 = vmatpush1.msra.mxu0 %v4881
      %5016 = vmatprep.subr.mxu0 0.0
      %5017 = vmatpush1.msra.mxu0 %v4880
      %5018 = vmatprep.subr.mxu0 0.0
      %5019 = vmatpush1.msra.mxu0 %v4879
      %5020 = vmatprep.subr.mxu0 0.0
      %5021 = vmatpush1.msra.mxu0 %v4878
      %5022 = vmatprep.subr.mxu0 0.0
      %5023 = vmatpush2.msra.mxu0 0.0
      %5024 = vmatprep.subr.mxu0 0.0
      %5025 = vmatpush2.msra.mxu0 0.0
      %5026 = vmatprep.subr.mxu0 0.0
      %5027 = vmatpush2.msra.mxu0 0.0
      %5028 = vmatprep.subr.mxu0 0.0
      %5029 = vmatpush2.msra.mxu0 0.0
      %5030 = vmatprep.subr.mxu0 0.0
      %5031 = vmatpush2.msra.mxu0 0.0
      %5032 = vmatprep.subr.mxu0 0.0
      %5033 = vmatpush2.msra.mxu0 0.0
      %5034 = vmatprep.subr.mxu0 0.0
      %5035 = vmatpush2.msra.mxu0 0.0
      %5036 = vmatprep.subr.mxu0 0.0
      %5037 = vmatpush2.msra.mxu0 0.0
      %5038 = vmatprep.subr.mxu0 0.0
      %5039 = vmatpush2.msra.mxu0 0.0
      %5040 = vmatprep.subr.mxu0 0.0
      %5041 = vmatpush2.msra.mxu0 0.0
      %5042 = vmatprep.subr.mxu0 0.0
      %5043 = vmatpush2.msra.mxu0 0.0
      %5044 = vmatprep.subr.mxu0 0.0
      %5045 = vmatpush2.msra.mxu0 0.0
      %5046 = vmatprep.subr.mxu0 0.0
      %5047 = vmatpush2.msra.mxu0 0.0
      %5048 = vmatprep.subr.mxu0 0.0
      %5049 = vmatpush2.msra.mxu0 0.0
      %5050 = vmatprep.subr.mxu0 0.0
      %5051 = vmatpush2.msra.mxu0 0.0
      %5052 = vmatprep.subr.mxu0 0.0
      %5053 = vmatpush2.msra.mxu0 0.0
      %5054 = vmatprep.mubr.f32.mxu0 0.0
      %5055 = vmatmul.mubr.f32.gmra.mxu0 %v4985
      %v5056 = vpop.f32.mrf.mxu0
      %v5057 = vadd.f32 %v4982, %v5056
      %v5058 = vpop.f32.mrf.mxu0
      %5059 = vdwg.mxu0
      %s5060 = scalar_lea.vmem %s3, 192
      %v5061 = vld [vmem:[%s5060] sm:$0xff]
      %v5062 = vld [vmem:[%s5060 + $0x8] sm:$0xff]
      %v5063 = vld [vmem:[%s5060 + $0x10] sm:$0xff]
      %v5064 = vld [vmem:[%s5060 + $0x18] sm:$0xff]
      %v5065 = vld [vmem:[%s5060 + $0x20] sm:$0xff]
      %v5066 = vld [vmem:[%s5060 + $0x28] sm:$0xff]
      %v5067 = vld [vmem:[%s5060 + $0x30] sm:$0xff]
      %v5068 = vld [vmem:[%s5060 + $0x38] sm:$0xff]
      %v5069 = vld [vmem:[%s5060 + $0x40] sm:$0xff]
      %v5070 = vld [vmem:[%s5060 + $0x48] sm:$0xff]
      %v5071 = vld [vmem:[%s5060 + $0x50] sm:$0xff]
      %v5072 = vld [vmem:[%s5060 + $0x58] sm:$0x7f]
      %vm5073 = vcmask 1043456
      %v5074 = vrot.slane %v4876, 4
      %v5075 = vrot.slane %v4877, 4
      %v5076 = vsel %vm5073, %v5074, %v5075
      %v5077 = vsel %vm4909, %v5076, 0
      %v5080 = vsel %vm406, %v5072, 0
      %5082 = vmatprep.subr.mxu0 0.0
      %5083 = vmatpush1.msra.mxu0 0.0
      %5084 = vmatprep.subr.mxu0 0.0
      %5085 = vmatpush1.msra.mxu0 0.0
      %5086 = vmatprep.subr.mxu0 0.0
      %5087 = vmatpush1.msra.mxu0 0.0
      %5088 = vmatprep.subr.mxu0 0.0
      %5089 = vmatpush1.msra.mxu0 0.0
      %5090 = vmatprep.subr.mxu0 0.0
      %5091 = vmatpush1.msra.mxu0 %v5080
      %5092 = vmatprep.subr.mxu0 0.0
      %5093 = vmatpush1.msra.mxu0 %v5071
      %5094 = vmatprep.subr.mxu0 0.0
      %5095 = vmatpush1.msra.mxu0 %v5070
      %5096 = vmatprep.subr.mxu0 0.0
      %5097 = vmatpush1.msra.mxu0 %v5069
      %5098 = vmatprep.subr.mxu0 0.0
      %5099 = vmatpush1.msra.mxu0 %v5068
      %5100 = vmatprep.subr.mxu0 0.0
      %5101 = vmatpush1.msra.mxu0 %v5067
      %5102 = vmatprep.subr.mxu0 0.0
      %5103 = vmatpush1.msra.mxu0 %v5066
      %5104 = vmatprep.subr.mxu0 0.0
      %5105 = vmatpush1.msra.mxu0 %v5065
      %5106 = vmatprep.subr.mxu0 0.0
      %5107 = vmatpush1.msra.mxu0 %v5064
      %5108 = vmatprep.subr.mxu0 0.0
      %5109 = vmatpush1.msra.mxu0 %v5063
      %5110 = vmatprep.subr.mxu0 0.0
      %5111 = vmatpush1.msra.mxu0 %v5062
      %5112 = vmatprep.subr.mxu0 0.0
      %5113 = vmatpush1.msra.mxu0 %v5061
      %5114 = vmatprep.subr.mxu0 0.0
      %5115 = vmatpush2.msra.mxu0 0.0
      %5116 = vmatprep.subr.mxu0 0.0
      %5117 = vmatpush2.msra.mxu0 0.0
      %5118 = vmatprep.subr.mxu0 0.0
      %5119 = vmatpush2.msra.mxu0 0.0
      %5120 = vmatprep.subr.mxu0 0.0
      %5121 = vmatpush2.msra.mxu0 0.0
      %5122 = vmatprep.subr.mxu0 0.0
      %5123 = vmatpush2.msra.mxu0 0.0
      %5124 = vmatprep.subr.mxu0 0.0
      %5125 = vmatpush2.msra.mxu0 0.0
      %5126 = vmatprep.subr.mxu0 0.0
      %5127 = vmatpush2.msra.mxu0 0.0
      %5128 = vmatprep.subr.mxu0 0.0
      %5129 = vmatpush2.msra.mxu0 0.0
      %5130 = vmatprep.subr.mxu0 0.0
      %5131 = vmatpush2.msra.mxu0 0.0
      %5132 = vmatprep.subr.mxu0 0.0
      %5133 = vmatpush2.msra.mxu0 0.0
      %5134 = vmatprep.subr.mxu0 0.0
      %5135 = vmatpush2.msra.mxu0 0.0
      %5136 = vmatprep.subr.mxu0 0.0
      %5137 = vmatpush2.msra.mxu0 0.0
      %5138 = vmatprep.subr.mxu0 0.0
      %5139 = vmatpush2.msra.mxu0 0.0
      %5140 = vmatprep.subr.mxu0 0.0
      %5141 = vmatpush2.msra.mxu0 0.0
      %5142 = vmatprep.subr.mxu0 0.0
      %5143 = vmatpush2.msra.mxu0 0.0
      %5144 = vmatprep.subr.mxu0 0.0
      %5145 = vmatpush2.msra.mxu0 0.0
      %5146 = vmatprep.mubr.f32.mxu0 0.0
      %5147 = vmatmul.mubr.f32.gmra.mxu0 %v5077
      %v5148 = vpop.f32.mrf.mxu0
      %v5149 = vadd.f32 0.0, %v5148
      %v5150 = vpop.f32.mrf.mxu0
      %5151 = vdwg.mxu0
      %v5152 = vadd.f32 %v5057, %v5149
      %s5153 = scalar_lea.vmem %s3, 288
      %v5154 = vld [vmem:[%s5153] sm:$0xff]
      %v5155 = vld [vmem:[%s5153 + $0x8] sm:$0xff]
      %v5156 = vld [vmem:[%s5153 + $0x10] sm:$0xff]
      %v5157 = vld [vmem:[%s5153 + $0x18] sm:$0xff]
      %v5158 = vld [vmem:[%s5153 + $0x20] sm:$0xff]
      %v5159 = vld [vmem:[%s5153 + $0x28] sm:$0xff]
      %v5160 = vld [vmem:[%s5153 + $0x30] sm:$0xff]
      %v5161 = vld [vmem:[%s5153 + $0x38] sm:$0xff]
      %v5162 = vld [vmem:[%s5153 + $0x40] sm:$0xff]
      %v5163 = vld [vmem:[%s5153 + $0x48] sm:$0xff]
      %v5164 = vld [vmem:[%s5153 + $0x50] sm:$0xff]
      %v5165 = vld [vmem:[%s5153 + $0x58] sm:$0x7f]
      %vm5166 = vcmask 1041408
      %v5167 = vrot.slane %v4876, 6
      %v5168 = vrot.slane %v4877, 6
      %v5169 = vsel %vm5166, %v5167, %v5168
      %v5170 = vsel %vm4909, %v5169, 0
      %v5173 = vsel %vm406, %v5165, 0
      %5175 = vmatprep.subr.mxu0 0.0
      %5176 = vmatpush1.msra.mxu0 0.0
      %5177 = vmatprep.subr.mxu0 0.0
      %5178 = vmatpush1.msra.mxu0 0.0
      %5179 = vmatprep.subr.mxu0 0.0
      %5180 = vmatpush1.msra.mxu0 0.0
      %5181 = vmatprep.subr.mxu0 0.0
      %5182 = vmatpush1.msra.mxu0 0.0
      %5183 = vmatprep.subr.mxu0 0.0
      %5184 = vmatpush1.msra.mxu0 %v5173
      %5185 = vmatprep.subr.mxu0 0.0
      %5186 = vmatpush1.msra.mxu0 %v5164
      %5187 = vmatprep.subr.mxu0 0.0
      %5188 = vmatpush1.msra.mxu0 %v5163
      %5189 = vmatprep.subr.mxu0 0.0
      %5190 = vmatpush1.msra.mxu0 %v5162
      %5191 = vmatprep.subr.mxu0 0.0
      %5192 = vmatpush1.msra.mxu0 %v5161
      %5193 = vmatprep.subr.mxu0 0.0
      %5194 = vmatpush1.msra.mxu0 %v5160
      %5195 = vmatprep.subr.mxu0 0.0
      %5196 = vmatpush1.msra.mxu0 %v5159
      %5197 = vmatprep.subr.mxu0 0.0
      %5198 = vmatpush1.msra.mxu0 %v5158
      %5199 = vmatprep.subr.mxu0 0.0
      %5200 = vmatpush1.msra.mxu0 %v5157
      %5201 = vmatprep.subr.mxu0 0.0
      %5202 = vmatpush1.msra.mxu0 %v5156
      %5203 = vmatprep.subr.mxu0 0.0
      %5204 = vmatpush1.msra.mxu0 %v5155
      %5205 = vmatprep.subr.mxu0 0.0
      %5206 = vmatpush1.msra.mxu0 %v5154
      %5207 = vmatprep.subr.mxu0 0.0
      %5208 = vmatpush2.msra.mxu0 0.0
      %5209 = vmatprep.subr.mxu0 0.0
      %5210 = vmatpush2.msra.mxu0 0.0
      %5211 = vmatprep.subr.mxu0 0.0
      %5212 = vmatpush2.msra.mxu0 0.0
      %5213 = vmatprep.subr.mxu0 0.0
      %5214 = vmatpush2.msra.mxu0 0.0
      %5215 = vmatprep.subr.mxu0 0.0
      %5216 = vmatpush2.msra.mxu0 0.0
      %5217 = vmatprep.subr.mxu0 0.0
      %5218 = vmatpush2.msra.mxu0 0.0
      %5219 = vmatprep.subr.mxu0 0.0
      %5220 = vmatpush2.msra.mxu0 0.0
      %5221 = vmatprep.subr.mxu0 0.0
      %5222 = vmatpush2.msra.mxu0 0.0
      %5223 = vmatprep.subr.mxu0 0.0
      %5224 = vmatpush2.msra.mxu0 0.0
      %5225 = vmatprep.subr.mxu0 0.0
      %5226 = vmatpush2.msra.mxu0 0.0
      %5227 = vmatprep.subr.mxu0 0.0
      %5228 = vmatpush2.msra.mxu0 0.0
      %5229 = vmatprep.subr.mxu0 0.0
      %5230 = vmatpush2.msra.mxu0 0.0
      %5231 = vmatprep.subr.mxu0 0.0
      %5232 = vmatpush2.msra.mxu0 0.0
      %5233 = vmatprep.subr.mxu0 0.0
      %5234 = vmatpush2.msra.mxu0 0.0
      %5235 = vmatprep.subr.mxu0 0.0
      %5236 = vmatpush2.msra.mxu0 0.0
      %5237 = vmatprep.subr.mxu0 0.0
      %5238 = vmatpush2.msra.mxu0 0.0
      %5239 = vmatprep.mubr.f32.mxu0 0.0
      %5240 = vmatmul.mubr.f32.gmra.mxu0 %v5170
      %v5241 = vpop.f32.mrf.mxu0
      %v5242 = vadd.f32 0.0, %v5241
      %v5243 = vpop.f32.mrf.mxu0
      %5244 = vdwg.mxu0
      %v5245 = vadd.f32 %v5152, %v5242
      %s5246 = scalar_lea.vmem %s3, 384
      %v5247 = vld [vmem:[%s5246] sm:$0xff]
      %v5248 = vld [vmem:[%s5246 + $0x8] sm:$0xff]
      %v5249 = vld [vmem:[%s5246 + $0x10] sm:$0xff]
      %v5250 = vld [vmem:[%s5246 + $0x18] sm:$0xff]
      %v5251 = vld [vmem:[%s5246 + $0x20] sm:$0xff]
      %v5252 = vld [vmem:[%s5246 + $0x28] sm:$0xff]
      %v5253 = vld [vmem:[%s5246 + $0x30] sm:$0xff]
      %v5254 = vld [vmem:[%s5246 + $0x38] sm:$0xff]
      %v5255 = vld [vmem:[%s5246 + $0x40] sm:$0xff]
      %v5256 = vld [vmem:[%s5246 + $0x48] sm:$0xff]
      %v5257 = vld [vmem:[%s5246 + $0x50] sm:$0xff]
      %v5258 = vld [vmem:[%s5246 + $0x58] sm:$0x7f]
      %v5259 = vsel %vm4909, %v4877, 0
      %v5262 = vsel %vm406, %v5258, 0
      %5264 = vmatprep.subr.mxu0 0.0
      %5265 = vmatpush1.msra.mxu0 0.0
      %5266 = vmatprep.subr.mxu0 0.0
      %5267 = vmatpush1.msra.mxu0 0.0
      %5268 = vmatprep.subr.mxu0 0.0
      %5269 = vmatpush1.msra.mxu0 0.0
      %5270 = vmatprep.subr.mxu0 0.0
      %5271 = vmatpush1.msra.mxu0 0.0
      %5272 = vmatprep.subr.mxu0 0.0
      %5273 = vmatpush1.msra.mxu0 %v5262
      %5274 = vmatprep.subr.mxu0 0.0
      %5275 = vmatpush1.msra.mxu0 %v5257
      %5276 = vmatprep.subr.mxu0 0.0
      %5277 = vmatpush1.msra.mxu0 %v5256
      %5278 = vmatprep.subr.mxu0 0.0
      %5279 = vmatpush1.msra.mxu0 %v5255
      %5280 = vmatprep.subr.mxu0 0.0
      %5281 = vmatpush1.msra.mxu0 %v5254
      %5282 = vmatprep.subr.mxu0 0.0
      %5283 = vmatpush1.msra.mxu0 %v5253
      %5284 = vmatprep.subr.mxu0 0.0
      %5285 = vmatpush1.msra.mxu0 %v5252
      %5286 = vmatprep.subr.mxu0 0.0
      %5287 = vmatpush1.msra.mxu0 %v5251
      %5288 = vmatprep.subr.mxu0 0.0
      %5289 = vmatpush1.msra.mxu0 %v5250
      %5290 = vmatprep.subr.mxu0 0.0
      %5291 = vmatpush1.msra.mxu0 %v5249
      %5292 = vmatprep.subr.mxu0 0.0
      %5293 = vmatpush1.msra.mxu0 %v5248
      %5294 = vmatprep.subr.mxu0 0.0
      %5295 = vmatpush1.msra.mxu0 %v5247
      %5296 = vmatprep.subr.mxu0 0.0
      %5297 = vmatpush2.msra.mxu0 0.0
      %5298 = vmatprep.subr.mxu0 0.0
      %5299 = vmatpush2.msra.mxu0 0.0
      %5300 = vmatprep.subr.mxu0 0.0
      %5301 = vmatpush2.msra.mxu0 0.0
      %5302 = vmatprep.subr.mxu0 0.0
      %5303 = vmatpush2.msra.mxu0 0.0
      %5304 = vmatprep.subr.mxu0 0.0
      %5305 = vmatpush2.msra.mxu0 0.0
      %5306 = vmatprep.subr.mxu0 0.0
      %5307 = vmatpush2.msra.mxu0 0.0
      %5308 = vmatprep.subr.mxu0 0.0
      %5309 = vmatpush2.msra.mxu0 0.0
      %5310 = vmatprep.subr.mxu0 0.0
      %5311 = vmatpush2.msra.mxu0 0.0
      %5312 = vmatprep.subr.mxu0 0.0
      %5313 = vmatpush2.msra.mxu0 0.0
      %5314 = vmatprep.subr.mxu0 0.0
      %5315 = vmatpush2.msra.mxu0 0.0
      %5316 = vmatprep.subr.mxu0 0.0
      %5317 = vmatpush2.msra.mxu0 0.0
      %5318 = vmatprep.subr.mxu0 0.0
      %5319 = vmatpush2.msra.mxu0 0.0
      %5320 = vmatprep.subr.mxu0 0.0
      %5321 = vmatpush2.msra.mxu0 0.0
      %5322 = vmatprep.subr.mxu0 0.0
      %5323 = vmatpush2.msra.mxu0 0.0
      %5324 = vmatprep.subr.mxu0 0.0
      %5325 = vmatpush2.msra.mxu0 0.0
      %5326 = vmatprep.subr.mxu0 0.0
      %5327 = vmatpush2.msra.mxu0 0.0
      %5328 = vmatprep.mubr.f32.mxu0 0.0
      %5329 = vmatmul.mubr.f32.gmra.mxu0 %v5259
      %v5330 = vpop.f32.mrf.mxu0
      %v5331 = vadd.f32 0.0, %v5330
      %v5332 = vpop.f32.mrf.mxu0
      %5333 = vdwg.mxu0
      %v5334 = vadd.f32 %v5245, %v5331
      %v5335 = vld [vmem:[%s4] sm:$0x1]
      %v5337 = vlaneseq
      %v5338 = vshrl.u32 %v5337, 7
      %v5339 = vsub.s32 0, %v5338
      %v5340 = vrot.slane %v5335, %v5339
      %v5342 = vadd.f32 %v5334, %v5340
      %v5343 = vmax.f32 %v5342, 0.0
      %v5345 = vrot.slane %v5343, 2
      %v5347 = vmax.f32 %v5343, %v5345
      %5349 = vrot.lane.b32.xlu0 %v5347, 127
      %v5350 = vpop.permute.xlu0 %5349
      %v5352 = vmax.f32 %v5347, %v5350
      %v5353 = vld [vmem:[%s5] sm:$0xff]
      %v5354 = vld [vmem:[%s5 + $0x8] sm:$0xff]
      %v5355 = vld [vmem:[%s5 + $0x10] sm:$0xff]
      %v5356 = vld [vmem:[%s5 + $0x18] sm:$0xff]
      %v5357 = vld [vmem:[%s5 + $0x20] sm:$0xff]
      %v5358 = vld [vmem:[%s5 + $0x28] sm:$0xff]
      %v5359 = vld [vmem:[%s5 + $0x30] sm:$0xff]
      %v5360 = vld [vmem:[%s5 + $0x38] sm:$0x7f]
      %s5361 = scalar_lea.vmem %s5, 64
      %v5362 = vld [vmem:[%s5361] sm:$0xff]
      %v5363 = vld [vmem:[%s5361 + $0x8] sm:$0xff]
      %v5364 = vld [vmem:[%s5361 + $0x10] sm:$0xff]
      %v5365 = vld [vmem:[%s5361 + $0x18] sm:$0xff]
      %v5366 = vld [vmem:[%s5361 + $0x20] sm:$0xff]
      %v5367 = vld [vmem:[%s5361 + $0x28] sm:$0xff]
      %v5368 = vld [vmem:[%s5361 + $0x30] sm:$0xff]
      %v5369 = vld [vmem:[%s5361 + $0x38] sm:$0x7f]
      %v5371 = vrot.slane %v5352, 4
      %vm5372 = vcmask 515072
      %v5373 = vsel %vm5372, %v5371, 0
      %v5376 = vsel %vm406, %v5369, 0
      %5378 = vmatprep.subr.mxu0 0.0
      %5379 = vmatpush1.msra.mxu0 0.0
      %5380 = vmatprep.subr.mxu0 0.0
      %5381 = vmatpush1.msra.mxu0 0.0
      %5382 = vmatprep.subr.mxu0 0.0
      %5383 = vmatpush1.msra.mxu0 0.0
      %5384 = vmatprep.subr.mxu0 0.0
      %5385 = vmatpush1.msra.mxu0 0.0
      %5386 = vmatprep.subr.mxu0 0.0
      %5387 = vmatpush1.msra.mxu0 0.0
      %5388 = vmatprep.subr.mxu0 0.0
      %5389 = vmatpush1.msra.mxu0 0.0
      %5390 = vmatprep.subr.mxu0 0.0
      %5391 = vmatpush1.msra.mxu0 0.0
      %5392 = vmatprep.subr.mxu0 0.0
      %5393 = vmatpush1.msra.mxu0 0.0
      %5394 = vmatprep.subr.mxu0 0.0
      %5395 = vmatpush1.msra.mxu0 %v5376
      %5396 = vmatprep.subr.mxu0 0.0
      %5397 = vmatpush1.msra.mxu0 %v5368
      %5398 = vmatprep.subr.mxu0 0.0
      %5399 = vmatpush1.msra.mxu0 %v5367
      %5400 = vmatprep.subr.mxu0 0.0
      %5401 = vmatpush1.msra.mxu0 %v5366
      %5402 = vmatprep.subr.mxu0 0.0
      %5403 = vmatpush1.msra.mxu0 %v5365
      %5404 = vmatprep.subr.mxu0 0.0
      %5405 = vmatpush1.msra.mxu0 %v5364
      %5406 = vmatprep.subr.mxu0 0.0
      %5407 = vmatpush1.msra.mxu0 %v5363
      %5408 = vmatprep.subr.mxu0 0.0
      %5409 = vmatpush1.msra.mxu0 %v5362
      %5410 = vmatprep.subr.mxu0 0.0
      %5411 = vmatpush2.msra.mxu0 0.0
      %5412 = vmatprep.subr.mxu0 0.0
      %5413 = vmatpush2.msra.mxu0 0.0
      %5414 = vmatprep.subr.mxu0 0.0
      %5415 = vmatpush2.msra.mxu0 0.0
      %5416 = vmatprep.subr.mxu0 0.0
      %5417 = vmatpush2.msra.mxu0 0.0
      %5418 = vmatprep.subr.mxu0 0.0
      %5419 = vmatpush2.msra.mxu0 0.0
      %5420 = vmatprep.subr.mxu0 0.0
      %5421 = vmatpush2.msra.mxu0 0.0
      %5422 = vmatprep.subr.mxu0 0.0
      %5423 = vmatpush2.msra.mxu0 0.0
      %5424 = vmatprep.subr.mxu0 0.0
      %5425 = vmatpush2.msra.mxu0 0.0
      %5426 = vmatprep.subr.mxu0 0.0
      %5427 = vmatpush2.msra.mxu0 0.0
      %5428 = vmatprep.subr.mxu0 0.0
      %5429 = vmatpush2.msra.mxu0 0.0
      %5430 = vmatprep.subr.mxu0 0.0
      %5431 = vmatpush2.msra.mxu0 0.0
      %5432 = vmatprep.subr.mxu0 0.0
      %5433 = vmatpush2.msra.mxu0 0.0
      %5434 = vmatprep.subr.mxu0 0.0
      %5435 = vmatpush2.msra.mxu0 0.0
      %5436 = vmatprep.subr.mxu0 0.0
      %5437 = vmatpush2.msra.mxu0 0.0
      %5438 = vmatprep.subr.mxu0 0.0
      %5439 = vmatpush2.msra.mxu0 0.0
      %5440 = vmatprep.subr.mxu0 0.0
      %5441 = vmatpush2.msra.mxu0 0.0
      %5442 = vmatprep.mubr.f32.mxu0 0.0
      %5443 = vmatmul.mubr.f32.gmra.mxu0 %v5373
      %v5444 = vpop.f32.mrf.mxu0
      %v5445 = vadd.f32 0.0, %v5444
      %v5446 = vpop.f32.mrf.mxu0
      %5447 = vdwg.mxu0
      %v5448 = vsel %vm5372, %v5352, 0
      %v5451 = vsel %vm406, %v5360, 0
      %5453 = vmatprep.subr.mxu0 0.0
      %5454 = vmatpush1.msra.mxu0 0.0
      %5455 = vmatprep.subr.mxu0 0.0
      %5456 = vmatpush1.msra.mxu0 0.0
      %5457 = vmatprep.subr.mxu0 0.0
      %5458 = vmatpush1.msra.mxu0 0.0
      %5459 = vmatprep.subr.mxu0 0.0
      %5460 = vmatpush1.msra.mxu0 0.0
      %5461 = vmatprep.subr.mxu0 0.0
      %5462 = vmatpush1.msra.mxu0 0.0
      %5463 = vmatprep.subr.mxu0 0.0
      %5464 = vmatpush1.msra.mxu0 0.0
      %5465 = vmatprep.subr.mxu0 0.0
      %5466 = vmatpush1.msra.mxu0 0.0
      %5467 = vmatprep.subr.mxu0 0.0
      %5468 = vmatpush1.msra.mxu0 0.0
      %5469 = vmatprep.subr.mxu0 0.0
      %5470 = vmatpush1.msra.mxu0 %v5451
      %5471 = vmatprep.subr.mxu0 0.0
      %5472 = vmatpush1.msra.mxu0 %v5359
      %5473 = vmatprep.subr.mxu0 0.0
      %5474 = vmatpush1.msra.mxu0 %v5358
      %5475 = vmatprep.subr.mxu0 0.0
      %5476 = vmatpush1.msra.mxu0 %v5357
      %5477 = vmatprep.subr.mxu0 0.0
      %5478 = vmatpush1.msra.mxu0 %v5356
      %5479 = vmatprep.subr.mxu0 0.0
      %5480 = vmatpush1.msra.mxu0 %v5355
      %5481 = vmatprep.subr.mxu0 0.0
      %5482 = vmatpush1.msra.mxu0 %v5354
      %5483 = vmatprep.subr.mxu0 0.0
      %5484 = vmatpush1.msra.mxu0 %v5353
      %5485 = vmatprep.subr.mxu0 0.0
      %5486 = vmatpush2.msra.mxu0 0.0
      %5487 = vmatprep.subr.mxu0 0.0
      %5488 = vmatpush2.msra.mxu0 0.0
      %5489 = vmatprep.subr.mxu0 0.0
      %5490 = vmatpush2.msra.mxu0 0.0
      %5491 = vmatprep.subr.mxu0 0.0
      %5492 = vmatpush2.msra.mxu0 0.0
      %5493 = vmatprep.subr.mxu0 0.0
      %5494 = vmatpush2.msra.mxu0 0.0
      %5495 = vmatprep.subr.mxu0 0.0
      %5496 = vmatpush2.msra.mxu0 0.0
      %5497 = vmatprep.subr.mxu0 0.0
      %5498 = vmatpush2.msra.mxu0 0.0
      %5499 = vmatprep.subr.mxu0 0.0
      %5500 = vmatpush2.msra.mxu0 0.0
      %5501 = vmatprep.subr.mxu0 0.0
      %5502 = vmatpush2.msra.mxu0 0.0
      %5503 = vmatprep.subr.mxu0 0.0
      %5504 = vmatpush2.msra.mxu0 0.0
      %5505 = vmatprep.subr.mxu0 0.0
      %5506 = vmatpush2.msra.mxu0 0.0
      %5507 = vmatprep.subr.mxu0 0.0
      %5508 = vmatpush2.msra.mxu0 0.0
      %5509 = vmatprep.subr.mxu0 0.0
      %5510 = vmatpush2.msra.mxu0 0.0
      %5511 = vmatprep.subr.mxu0 0.0
      %5512 = vmatpush2.msra.mxu0 0.0
      %5513 = vmatprep.subr.mxu0 0.0
      %5514 = vmatpush2.msra.mxu0 0.0
      %5515 = vmatprep.subr.mxu0 0.0
      %5516 = vmatpush2.msra.mxu0 0.0
      %5517 = vmatprep.mubr.f32.mxu0 0.0
      %5518 = vmatmul.mubr.f32.gmra.mxu0 %v5448
      %v5519 = vpop.f32.mrf.mxu0
      %v5520 = vadd.f32 %v5445, %v5519
      %v5521 = vpop.f32.mrf.mxu0
      %5522 = vdwg.mxu0
      %v5523 = vld [vmem:[%s6] sm:$0x1]
      %v5524 = vadd.f32 %v5520, %v5523
      %v5525 = vmax.f32 %v5524, 0.0
      %v5526 = vld [vmem:[%s7] sm:$0xff]
      %v5527 = vld [vmem:[%s7 + $0x8] sm:$0xff]
      %v5528 = vld [vmem:[%s7 + $0x10] sm:$0xff]
      %v5529 = vld [vmem:[%s7 + $0x18] sm:$0xff]
      %v5530 = vld [vmem:[%s8] sm:$0x1]
      %vm5531 = vcmask 261120
      %v5533 = vsel %vm5531, %v5525, 0
      %5535 = vmatprep.subr.mxu0 0.0
      %5536 = vmatpush1.msra.mxu0 0.0
      %5537 = vmatprep.subr.mxu0 0.0
      %5538 = vmatpush1.msra.mxu0 0.0
      %5539 = vmatprep.subr.mxu0 0.0
      %5540 = vmatpush1.msra.mxu0 0.0
      %5541 = vmatprep.subr.mxu0 0.0
      %5542 = vmatpush1.msra.mxu0 0.0
      %5543 = vmatprep.subr.mxu0 0.0
      %5544 = vmatpush1.msra.mxu0 0.0
      %5545 = vmatprep.subr.mxu0 0.0
      %5546 = vmatpush1.msra.mxu0 0.0
      %5547 = vmatprep.subr.mxu0 0.0
      %5548 = vmatpush1.msra.mxu0 0.0
      %5549 = vmatprep.subr.mxu0 0.0
      %5550 = vmatpush1.msra.mxu0 0.0
      %5551 = vmatprep.subr.mxu0 0.0
      %5552 = vmatpush1.msra.mxu0 0.0
      %5553 = vmatprep.subr.mxu0 0.0
      %5554 = vmatpush1.msra.mxu0 0.0
      %5555 = vmatprep.subr.mxu0 0.0
      %5556 = vmatpush1.msra.mxu0 0.0
      %5557 = vmatprep.subr.mxu0 0.0
      %5558 = vmatpush1.msra.mxu0 0.0
      %5559 = vmatprep.subr.mxu0 0.0
      %5560 = vmatpush1.msra.mxu0 %v5529
      %5561 = vmatprep.subr.mxu0 0.0
      %5562 = vmatpush1.msra.mxu0 %v5528
      %5563 = vmatprep.subr.mxu0 0.0
      %5564 = vmatpush1.msra.mxu0 %v5527
      %5565 = vmatprep.subr.mxu0 0.0
      %5566 = vmatpush1.msra.mxu0 %v5526
      %5567 = vmatprep.subr.mxu0 0.0
      %5568 = vmatpush2.msra.mxu0 0.0
      %5569 = vmatprep.subr.mxu0 0.0
      %5570 = vmatpush2.msra.mxu0 0.0
      %5571 = vmatprep.subr.mxu0 0.0
      %5572 = vmatpush2.msra.mxu0 0.0
      %5573 = vmatprep.subr.mxu0 0.0
      %5574 = vmatpush2.msra.mxu0 0.0
      %5575 = vmatprep.subr.mxu0 0.0
      %5576 = vmatpush2.msra.mxu0 0.0
      %5577 = vmatprep.subr.mxu0 0.0
      %5578 = vmatpush2.msra.mxu0 0.0
      %5579 = vmatprep.subr.mxu0 0.0
      %5580 = vmatpush2.msra.mxu0 0.0
      %5581 = vmatprep.subr.mxu0 0.0
      %5582 = vmatpush2.msra.mxu0 0.0
      %5583 = vmatprep.subr.mxu0 0.0
      %5584 = vmatpush2.msra.mxu0 0.0
      %5585 = vmatprep.subr.mxu0 0.0
      %5586 = vmatpush2.msra.mxu0 0.0
      %5587 = vmatprep.subr.mxu0 0.0
      %5588 = vmatpush2.msra.mxu0 0.0
      %5589 = vmatprep.subr.mxu0 0.0
      %5590 = vmatpush2.msra.mxu0 0.0
      %5591 = vmatprep.subr.mxu0 0.0
      %5592 = vmatpush2.msra.mxu0 0.0
      %5593 = vmatprep.subr.mxu0 0.0
      %5594 = vmatpush2.msra.mxu0 0.0
      %5595 = vmatprep.subr.mxu0 0.0
      %5596 = vmatpush2.msra.mxu0 0.0
      %5597 = vmatprep.subr.mxu0 0.0
      %5598 = vmatpush2.msra.mxu0 0.0
      %5599 = vmatprep.mubr.f32.mxu0 0.0
      %5600 = vmatmul.mubr.f32.gmra.mxu0 %v5533
      %v5601 = vpop.f32.mrf.mxu0
      %v5602 = vadd.f32 %v5530, %v5601
      %v5603 = vpop.f32.mrf.mxu0
      %5604 = vdwg.mxu0
      %v5605 = vmax.f32 %v5602, 0.0
      %v5606 = vld [vmem:[%s9] sm:$0xff]
      %v5607 = vld [vmem:[%s9 + $0x8] sm:$0xff]
      %v5608 = vld [vmem:[#allocation2] sm:$0x1]
      %vm5609 = vcmask 130048
      %v5611 = vsel %vm5609, %v5605, 0
      %5613 = vmatprep.subr.mxu0 0.0
      %5614 = vmatpush1.msra.mxu0 0.0
      %5615 = vmatprep.subr.mxu0 0.0
      %5616 = vmatpush1.msra.mxu0 0.0
      %5617 = vmatprep.subr.mxu0 0.0
      %5618 = vmatpush1.msra.mxu0 0.0
      %5619 = vmatprep.subr.mxu0 0.0
      %5620 = vmatpush1.msra.mxu0 0.0
      %5621 = vmatprep.subr.mxu0 0.0
      %5622 = vmatpush1.msra.mxu0 0.0
      %5623 = vmatprep.subr.mxu0 0.0
      %5624 = vmatpush1.msra.mxu0 0.0
      %5625 = vmatprep.subr.mxu0 0.0
      %5626 = vmatpush1.msra.mxu0 0.0
      %5627 = vmatprep.subr.mxu0 0.0
      %5628 = vmatpush1.msra.mxu0 0.0
      %5629 = vmatprep.subr.mxu0 0.0
      %5630 = vmatpush1.msra.mxu0 0.0
      %5631 = vmatprep.subr.mxu0 0.0
      %5632 = vmatpush1.msra.mxu0 0.0
      %5633 = vmatprep.subr.mxu0 0.0
      %5634 = vmatpush1.msra.mxu0 0.0
      %5635 = vmatprep.subr.mxu0 0.0
      %5636 = vmatpush1.msra.mxu0 0.0
      %5637 = vmatprep.subr.mxu0 0.0
      %5638 = vmatpush1.msra.mxu0 0.0
      %5639 = vmatprep.subr.mxu0 0.0
      %5640 = vmatpush1.msra.mxu0 0.0
      %5641 = vmatprep.subr.mxu0 0.0
      %5642 = vmatpush1.msra.mxu0 %v5607
      %5643 = vmatprep.subr.mxu0 0.0
      %5644 = vmatpush1.msra.mxu0 %v5606
      %5645 = vmatprep.subr.mxu0 0.0
      %5646 = vmatpush2.msra.mxu0 0.0
      %5647 = vmatprep.subr.mxu0 0.0
      %5648 = vmatpush2.msra.mxu0 0.0
      %5649 = vmatprep.subr.mxu0 0.0
      %5650 = vmatpush2.msra.mxu0 0.0
      %5651 = vmatprep.subr.mxu0 0.0
      %5652 = vmatpush2.msra.mxu0 0.0
      %5653 = vmatprep.subr.mxu0 0.0
      %5654 = vmatpush2.msra.mxu0 0.0
      %5655 = vmatprep.subr.mxu0 0.0
      %5656 = vmatpush2.msra.mxu0 0.0
      %5657 = vmatprep.subr.mxu0 0.0
      %5658 = vmatpush2.msra.mxu0 0.0
      %5659 = vmatprep.subr.mxu0 0.0
      %5660 = vmatpush2.msra.mxu0 0.0
      %5661 = vmatprep.subr.mxu0 0.0
      %5662 = vmatpush2.msra.mxu0 0.0
      %5663 = vmatprep.subr.mxu0 0.0
      %5664 = vmatpush2.msra.mxu0 0.0
      %5665 = vmatprep.subr.mxu0 0.0
      %5666 = vmatpush2.msra.mxu0 0.0
      %5667 = vmatprep.subr.mxu0 0.0
      %5668 = vmatpush2.msra.mxu0 0.0
      %5669 = vmatprep.subr.mxu0 0.0
      %5670 = vmatpush2.msra.mxu0 0.0
      %5671 = vmatprep.subr.mxu0 0.0
      %5672 = vmatpush2.msra.mxu0 0.0
      %5673 = vmatprep.subr.mxu0 0.0
      %5674 = vmatpush2.msra.mxu0 0.0
      %5675 = vmatprep.subr.mxu0 0.0
      %5676 = vmatpush2.msra.mxu0 0.0
      %5677 = vmatprep.mubr.f32.mxu0 0.0
      %5678 = vmatmul.mubr.f32.gmra.mxu0 %v5611
      %v5679 = vpop.f32.mrf.mxu0
      %v5680 = vadd.f32 %v5608, %v5679
      %v5681 = vpop.f32.mrf.mxu0
      %5682 = vdwg.mxu0
      %v5683 = vsub.f32 0.0, %v5680
      %v5684 = vmul.f32 %v5683, 1.442695
      %v5685 = vpow.pop %v5684
      %v5686 = vadd.f32 %v5685, 1.0
      %v5687 = vrcp.pop %v5686
      %vm5688 = vcmask 0
      %5689 = vst.msk [vmem:[%s384] sm:$0x1] %vm5688, %v5687
      %p5690 = scmp.lt.s32.totalorder %s24, 1
      %s5691 = scalar_select %p5690, %s24, 1
      %s5692 = scalar_lea.vmem %s11, %s5691
      // Predicated region
      $region65: #{classification_forward.1} parent=63 // pred_check
        %p5693 = pneg %p278
      $region66: #{classification_forward.1} parent=63 // pred_check_branch
        %5695 = sbr.rel (%p5693) target = $region68
      $region67: #{classification_forward.1} parent=63 // pred_region
        _
      $region68: #{classification_forward.1} parent=63 // pred_fallthru
        _
    $region64: #{classification_forward.1} parent=5 // pred_fallthru
      _
    %p5696 = scmp.le.s32.totalorder 2, %s19
    // Predicated region
    $region69: #{classification_forward.1} parent=5 // pred_check
      %p5697 = pneg %p5696
    $region70: #{classification_forward.1} parent=5 // pred_check_branch
      %5699 = sbr.rel (%p5697) target = $region72
    $region71: #{classification_forward.1} parent=5 // pred_region
      %s5700 = ssub.s32 %s19, 2
      // Predicated region
      $region73: #{classification_forward.1} parent=71 // pred_check
        %p5701 = pneg %p284
      $region74: #{classification_forward.1} parent=71 // pred_check_branch
        %5703 = sbr.rel (%p5701) target = $region76
      $region75: #{classification_forward.1} parent=71 // pred_region
        %p5704 = scmp.lt.s32.totalorder %s25, 1
        %s5705 = scalar_select %p5704, %s25, 1
        %s5706 = scalar_lea.vmem %s11, %s5705
      $region76: #{classification_forward.1} parent=71 // pred_fallthru
        _
    $region72: #{classification_forward.1} parent=5 // pred_fallthru
      _
  $region6: #{classification_forward.1} parent=0 // loop_footer
    %s23 = sadd.s32 1, %s19
  $region7: #{classification_forward.1} parent=0 // loop_footer_branch
    %18 = sbr.rel target = $region3
  $region8: #{classification_forward.1} parent=0 // loop_exit
    _

</llo_original>
